<compile_context>
chip_gen: v7x
topology: tpu7x:2x2x1
jax: 0.10.0
libtpu: 0.0.40
codegen_flags: <defaults>
</compile_context>

<pallas_src>
import math

import jax
import jax.numpy as jnp
from jax.experimental import pallas as pl
from jax.experimental.pallas import tpu as pltpu

OBJ_DIM, COL_DIM, CON_DIM, LOC_DIM = 5, 3, 2, 10
NUM_CHANNELS = OBJ_DIM + COL_DIM + CON_DIM      # 10
EXTRA_DIM = LOC_DIM + OBJ_DIM + COL_DIM         # 18
HID = 128
CONV_CH = 32
PAD_IDX = 11 * 6 * 4                            # 264 -> all-zero embedding row
NB_MAX = 128                                    # target samples per grid block


# ----------------------------------------------------------------------------
# In-kernel building blocks
# ----------------------------------------------------------------------------
def _elu(y):
    # ELU(alpha=1).  exp(min(y,0))-1 instead of expm1: overflow-safe and does
    # not rely on an expm1 lowering being present in Mosaic.
    return jnp.where(y > 0.0, y, jnp.exp(jnp.minimum(y, 0.0)) - 1.0)


def _conv3x3_s2_elu(xp, w_ref, b_ref):
    """Conv2d(k=3, s=2, p=1) + ELU on a zero-padded bf16 activation.

    xp:    (S0+2, S1+2, nb, ci) bf16 value, spatially zero-padded by 1,
           S0/S1 even, nb a multiple of 16.
    w_ref: (9*ci, co) bf16 ref, rows ordered (k0, k1, ci) row-major (im2col).
    b_ref: (1, co) f32 ref.
    returns (S0//2, S1//2, nb, co) bf16 value.
    """
    S0p, S1p, nb, ci = xp.shape
    H0, H1 = (S0p - 2) // 2, (S1p - 2) // 2
    co = w_ref.shape[-1]

    # Stride-2 tap selection via an even/odd split of the (untiled) leading
    # spatial dims: padded index 2*h + k -> k=0 -> (h,0), k=1 -> (h,1),
    # k=2 -> (h+1,0).  Unit-stride leading-dim slices only.
    sel = ((0, 0), (0, 1), (1, 0))
    xr0 = xp.reshape(H0 + 1, 2, S1p, nb, ci)

    taps = []
    for k0 in range(3):
        a0, a1 = sel[k0]
        rows = xr0[a0:a0 + H0, a1]                   # (H0, S1p, nb, ci)
        rows = rows.reshape(H0, H1 + 1, 2, nb, ci)
        for k1 in range(3):
            c0, c1 = sel[k1]
            taps.append(rows[:, c0:c0 + H1, c1])     # (H0, H1, nb, ci)

    # im2col: fold all 9 taps into the contraction dim -> ONE matmul per layer
    im = jnp.concatenate(taps, axis=-1)              # (H0, H1, nb, 9*ci)
    im = im.reshape(H0 * H1 * nb, 9 * ci)
    y = jnp.dot(im, w_ref[...], preferred_element_type=jnp.float32)
    y = _elu(y + b_ref[...])
    return y.astype(jnp.bfloat16).reshape(H0, H1, nb, co)


def _pad_spatial(act):
    """Zero-pad the two (leading, untiled) spatial dims of (S0,S1,nb,c) by 1."""
    S0, S1, nb, c = act.shape
    z0 = jnp.zeros((1, S1, nb, c), act.dtype)
    xp = jnp.concatenate([z0, act, z0], axis=0)      # (S0+2, S1, nb, c)
    z1 = jnp.zeros((S0 + 2, 1, nb, c), act.dtype)
    return jnp.concatenate([z1, xp, z1], axis=1)     # (S0+2, S1+2, nb, c)


def _fused_kernel(x_ref, ext_ref,
                  cw0, cb0, cw1, cb1, cw2, cb2, cw3, cb3, cw4, cb4,
                  fc1_wa, fc1_wb, fc1_b, fc2_w, fc2_b,
                  o_ref):
    conv_ws = (cw0, cw1, cw2, cw3, cw4)
    conv_bs = (cb0, cb1, cb2, cb3, cb4)

    act = x_ref[0]                           # (S0+2, S1+2, NB, 10) bf16, padded
    for li in range(5):
        w_ref, b_ref = conv_ws[li], conv_bs[li]
        if li > 0 and act.shape[0] == 1 and act.shape[1] == 1:
            # 3x3/s2/p1 conv on a 1x1 map: only the centre tap sees data.
            nb, ci = act.shape[2], act.shape[3]
            co = b_ref.shape[-1]
            y = jnp.dot(act.reshape(nb, ci), w_ref[4 * ci:5 * ci, :],
                        preferred_element_type=jnp.float32)
            act = _elu(y + b_ref[...]).astype(jnp.bfloat16).reshape(1, 1, nb, co)
        else:
            if li > 0:
                act = _pad_spatial(act)      # layer-1 input arrives pre-padded
            act = _conv3x3_s2_elu(act, w_ref, b_ref)

    nb = act.shape[2]
    feat = act.reshape(nb, act.shape[3])     # (NB, 32) bf16
    ext = ext_ref[...]                       # (NB, 18) bf16

    # fc1 on [feat | extras] expressed as two matmuls (avoids a lane concat)
    h = (jnp.dot(feat, fc1_wa[...], preferred_element_type=jnp.float32)
         + jnp.dot(ext, fc1_wb[...], preferred_element_type=jnp.float32)
         + fc1_b[...])
    h = jnp.maximum(h, 0.0).astype(jnp.bfloat16)          # ReLU
    out = jnp.dot(h, fc2_w[...], preferred_element_type=jnp.float32) + fc2_b[...]
    o_ref[...] = jnp.maximum(out, 0.0).astype(o_ref.dtype)


# ----------------------------------------------------------------------------
# pallas_call wrapper
# ----------------------------------------------------------------------------
def _fused_forward(x_emb, extras, params):
    """x_emb: (n_blk, S0+2, S1+2, NB, 10) bf16 (padded, batch-blocked);
    extras: (n_blk*NB, 18) bf16.  Returns (n_blk*NB, 128) f32."""
    n_blk, S0p, S1p, NB, Cin = x_emb.shape
    NP = n_blk * NB
    assert extras.shape == (NP, EXTRA_DIM)
    assert NB % 16 == 0 or NB == NP   # bf16 sublane-tile friendly reshapes

    # the conv stack must collapse the spatial dims to 1x1 (fc expects 32 feats)
    s0, s1 = S0p - 2, S1p - 2
    # TODO(synk): odd spatial sizes (torch's ceil-halving conv) are unsupported.
    if s0 < 2 or s1 < 2:
        raise ValueError(f"unsupported spatial size {(s0, s1)}")
    for _ in range(5):
        if s0 == 1 and s1 == 1:
            continue
        if s0 % 2 or s1 % 2:
            raise ValueError(f"unsupported spatial size {(S0p - 2, S1p - 2)}")
        s0, s1 = s0 // 2, s1 // 2
    if not (s0 == 1 and s1 == 1):
        raise ValueError(f"conv stack does not reduce {(S0p - 2, S1p - 2)} to 1x1")

    def full_spec(a):
        return pl.BlockSpec(a.shape, lambda i, nd=a.ndim: (0,) * nd)

    weight_args, weight_specs = [], []
    for w, b in zip(params["conv_w"], params["conv_b"]):
        weight_args += [w, b]
        weight_specs += [full_spec(w), full_spec(b)]
    for name in ("fc1_w_feat", "fc1_w_extra", "fc1_b", "fc2_w", "fc2_b"):
        weight_args.append(params[name])
        weight_specs.append(full_spec(params[name]))

    # advisory cost estimate (weights counted once: constant index_map)
    flops_blk, trans_blk = 0, 0
    ss0, ss1, ci = S0p - 2, S1p - 2, Cin
    for _ in range(5):
        if ss0 == 1 and ss1 == 1:
            o0, o1, k = 1, 1, ci
        else:
            o0, o1, k = ss0 // 2, ss1 // 2, 9 * ci
        flops_blk += 2 * NB * o0 * o1 * k * CONV_CH
        trans_blk += NB * o0 * o1 * CONV_CH
        ss0, ss1, ci = o0, o1, CONV_CH
    flops_blk += 2 * NB * (CONV_CH + EXTRA_DIM) * HID + 2 * NB * HID * HID
    weight_bytes = sum(int(a.size) * a.dtype.itemsize for a in weight_args)
    cost = pl.CostEstimate(
        flops=n_blk * flops_blk,
        transcendentals=n_blk * trans_blk,
        bytes_accessed=int(x_emb.size * x_emb.dtype.itemsize
                           + extras.size * extras.dtype.itemsize
                           + NP * HID * 4 + weight_bytes),
    )

    return pl.pallas_call(
        _fused_kernel,
        out_shape=jax.ShapeDtypeStruct((NP, HID), jnp.float32),
        grid=(n_blk,),
        in_specs=[
            pl.BlockSpec((1, S0p, S1p, NB, Cin), lambda i: (i, 0, 0, 0, 0)),
            pl.BlockSpec((NB, EXTRA_DIM), lambda i: (i, 0)),
        ] + weight_specs,
        out_specs=pl.BlockSpec((NB, HID), lambda i: (i, 0)),
        compiler_params=pltpu.CompilerParams(
            dimension_semantics=("parallel",),
            vmem_limit_bytes=32 * 1024 * 1024,
        ),
        cost_estimate=cost,
    )(x_emb, extras, *weight_args)


# ----------------------------------------------------------------------------
# Parameters (deterministic synthetic init, same shapes as the nn.Module)
# ----------------------------------------------------------------------------
def init_params(key, observation_shape):
    H, W = observation_shape[0], observation_shape[1]
    ks = jax.random.split(key, 12)
    orth = jax.nn.initializers.orthogonal(scale=math.sqrt(2.0))  # relu gain

    obj_t = jax.random.normal(ks[0], (11, OBJ_DIM), jnp.float32)
    col_t = jax.random.normal(ks[1], (6, COL_DIM), jnp.float32)
    con_t = jax.random.normal(ks[2], (4, CON_DIM), jnp.float32)
    # fused per-cell table: row = obj*24 + col*4 + con -> 10-wide embedding.
    # Extra all-zero row (PAD_IDX) implements the conv's spatial zero padding
    # directly at the gather.
    cell = jnp.concatenate([
        jnp.repeat(obj_t, 6 * 4, axis=0),                   # (264, 5)
        jnp.tile(jnp.repeat(col_t, 4, axis=0), (11, 1)),    # (264, 3)
        jnp.tile(con_t, (11 * 6, 1)),                       # (264, 2)
    ], axis=1)                                              # (264, 10)
    cell = jnp.concatenate([cell, jnp.zeros((1, NUM_CHANNELS), jnp.float32)], 0)

    params = {
        "embed_object": obj_t,
        "embed_color": col_t,
        "embed_contains": con_t,
        # bf16 table: the kernel feeds bf16 into the MXU anyway; this halves
        # the dominant HBM read of the embedded frame.
        "embed_cell": cell.astype(jnp.bfloat16),             # (265, 10)
        "embed_agent_loc": jax.random.normal(ks[3], (H * W + 1, LOC_DIM),
                                             jnp.float32),
    }

    # TODO(synk): if trained PyTorch weights (Co,Ci,kh,kw) are ever loaded, the
    # (kh,kw) order must be permuted consistently with the W/H axis swap below.
    conv_w, conv_b = [], []
    cin = NUM_CHANNELS
    for li in range(5):
        w = orth(ks[4 + li], (3, 3, cin, CONV_CH), jnp.float32)
        # folded im2col weight: row index = (k0*3 + k1)*cin + c
        conv_w.append(w.reshape(9 * cin, CONV_CH).astype(jnp.bfloat16))
        conv_b.append(jnp.zeros((1, CONV_CH), jnp.float32))
        cin = CONV_CH
    params["conv_w"] = conv_w
    params["conv_b"] = conv_b

    fc1 = orth(ks[9], (CONV_CH + EXTRA_DIM, HID), jnp.float32)   # (50, 128)
    params["fc1_w_feat"] = fc1[:CONV_CH].astype(jnp.bfloat16)    # (32, 128)
    params["fc1_w_extra"] = fc1[CONV_CH:].astype(jnp.bfloat16)   # (18, 128)
    params["fc1_b"] = jnp.zeros((1, HID), jnp.float32)
    params["fc2_w"] = orth(ks[10], (HID, HID), jnp.float32).astype(jnp.bfloat16)
    params["fc2_b"] = jnp.zeros((1, HID), jnp.float32)
    return params


# ----------------------------------------------------------------------------
# Forward pass (matches FullObsMinigridStateEmbeddingNet.forward)
# ----------------------------------------------------------------------------
def _choose_nb(tb):
    """Samples per grid block: large blocks for lane/MXU efficiency, at least
    2 blocks when the batch allows (v7x has 2 TensorCores), multiple of 16 so
    the bf16 (16,128) sublane tile stays packed and reshapes are layout no-ops.
    """
    if tb >= 2 * NB_MAX:
        return NB_MAX
    nb = max(16, (tb + 1) // 2)
    nb = ((nb + 15) // 16) * 16
    return min(nb, NB_MAX)


def forward(params, frame, carried_obj, carried_col, next_state=False):
    # frame: (T+1, B, H, W, 3) int32 ; carried_*: (T+1, B) int32
    if next_state:
        xf, c_obj, c_col = frame[1:], carried_obj[1:], carried_col[1:]
    else:
        xf, c_obj, c_col = frame[:-1], carried_obj[:-1], carried_col[:-1]

    T, B, H, W, _ = xf.shape
    TB = T * B
    x = xf.reshape(TB, H, W, 3)

    # agent location: flattened H*W index where the object channel == 10.
    # TODO(synk): reference uses .nonzero(); argmax assumes exactly one agent
    # per frame and silently returns 0 if none is present.
    agent_loc = jnp.argmax((x[..., 0].reshape(TB, H * W) == 10)
                           .astype(jnp.int32), axis=1)

    nb = _choose_nb(TB)
    n_blk = -(-TB // nb)
    NP = n_blk * nb

    # single fused per-cell key (obj, col, contains); padding rows / the conv
    # padding ring use PAD_IDX whose embedding row is all zeros.
    cell_key = x[..., 0] * 24 + x[..., 1] * 4 + x[..., 2]          # (TB, H, W)
    if NP != TB:
        cell_key = jnp.pad(cell_key, ((0, NP - TB), (0, 0), (0, 0)),
                           constant_values=PAD_IDX)
    # block the batch (contiguous per-grid-step DMA), swap spatial axes
    # (torch's NCHW transpose(1, 3)), add the conv's zero-padding ring, and
    # gather straight into the kernel's blocked bf16 layout.
    key_b = cell_key.reshape(n_blk, nb, H, W)
    key_b = jnp.transpose(key_b, (0, 3, 2, 1))                     # (n_blk, W, H, nb)
    key_b = jnp.pad(key_b, ((0, 0), (1, 1), (1, 1), (0, 0)),
                    constant_values=PAD_IDX)
    x_emb = jnp.take(params["embed_cell"], key_b, axis=0)  # (n_blk, W+2, H+2, nb, 10)

    extras = jnp.concatenate([
        jnp.take(params["embed_agent_loc"], agent_loc, axis=0),       # (TB,10)
        jnp.take(params["embed_object"], c_obj.reshape(TB), axis=0),  # (TB, 5)
        jnp.take(params["embed_color"], c_col.reshape(TB), axis=0),   # (TB, 3)
    ], axis=1).astype(jnp.bfloat16)                                   # (TB,18)
    if NP != TB:
        extras = jnp.pad(extras, ((0, NP - TB), (0, 0)))

    out = _fused_forward(x_emb, extras, params)
    return out[:TB]                                           # (T*B, 128) f32


# ----------------------------------------------------------------------------
if __name__ == "__main__":
    key = jax.random.PRNGKey(0)
    obs_shape = (16, 16, 3)  # H, W, 3
    H, W, _ = obs_shape
    Tp1, B = 5, 2  # T = 4 -> T*B = 8

    kp, ko, kc, ks, ka, kco, kcc = jax.random.split(key, 7)
    params = init_params(kp, obs_shape)

    # frames: object ids in [0, 10) (10 reserved for agent), colors [0, 6),
    # container states [0, 4)
    obj = jax.random.randint(ko, (Tp1, B, H, W), 0, 10)
    col = jax.random.randint(kc, (Tp1, B, H, W), 0, 6)
    con = jax.random.randint(ks, (Tp1, B, H, W), 0, 4)
    frame = jnp.stack([obj, col, con], axis=-1).astype(jnp.int32)

    # place exactly one agent (object id 10) per (t, b)
    agent_pos = jax.random.randint(ka, (Tp1, B), 0, H * W)
    mask = jax.nn.one_hot(agent_pos, H * W, dtype=jnp.int32)   # (Tp1, B, H*W)
    frame_flat = frame.reshape(Tp1, B, H * W, 3)
    obj_flat = frame_flat[..., 0] * (1 - mask) + 10 * mask
    frame = frame_flat.at[..., 0].set(obj_flat).reshape(Tp1, B, H, W, 3)

    carried_obj = jax.random.randint(kco, (Tp1, B), 0, 11).astype(jnp.int32)
    carried_col = jax.random.randint(kcc, (Tp1, B), 0, 6).astype(jnp.int32)

    fwd = jax.jit(lambda p, f, o, c: forward(p, f, o, c, next_state=False))
    out = fwd(params, frame, carried_obj, carried_col)
    jax.block_until_ready(out)

    assert out.shape == ((Tp1 - 1) * B, 128), out.shape
    assert out.dtype == jnp.float32
    assert bool(jnp.all(jnp.isfinite(out)))
    print("KERNEL_OK")
</pallas_src>

<mosaic_0001>
module attributes {stable_mosaic.version = 11 : i64} {
  func.func @_fused_kernel(%arg0: i32, %arg1: memref<1x18x18x16x10xbf16, #tpu.memory_space<vmem>>, %arg2: memref<16x18xbf16, #tpu.memory_space<vmem>>, %arg3: memref<90x32xbf16, #tpu.memory_space<vmem>>, %arg4: memref<1x32xf32, #tpu.memory_space<vmem>>, %arg5: memref<288x32xbf16, #tpu.memory_space<vmem>>, %arg6: memref<1x32xf32, #tpu.memory_space<vmem>>, %arg7: memref<288x32xbf16, #tpu.memory_space<vmem>>, %arg8: memref<1x32xf32, #tpu.memory_space<vmem>>, %arg9: memref<288x32xbf16, #tpu.memory_space<vmem>>, %arg10: memref<1x32xf32, #tpu.memory_space<vmem>>, %arg11: memref<288x32xbf16, #tpu.memory_space<vmem>>, %arg12: memref<1x32xf32, #tpu.memory_space<vmem>>, %arg13: memref<32x128xbf16, #tpu.memory_space<vmem>>, %arg14: memref<18x128xbf16, #tpu.memory_space<vmem>>, %arg15: memref<1x128xf32, #tpu.memory_space<vmem>>, %arg16: memref<128x128xbf16, #tpu.memory_space<vmem>>, %arg17: memref<1x128xf32, #tpu.memory_space<vmem>>, %arg18: memref<16x128xf32, #tpu.memory_space<vmem>>) attributes {dimension_semantics = [#tpu.dimension_semantics<parallel>], iteration_bounds = array<i64: 1>, scalar_prefetch = 0 : i64, scratch_operands = 0 : i64, tpu.core_type = #tpu.core_type<tc>, window_params = [{transform_indices = @transform_0, window_bounds = array<i64: 1, 18, 18, 16, 10>}, {transform_indices = @transform_1, window_bounds = array<i64: 16, 18>}, {pipeline_mode = #tpu.pipeline_mode<synchronous>, transform_indices = @transform_2, window_bounds = array<i64: 90, 32>}, {pipeline_mode = #tpu.pipeline_mode<synchronous>, transform_indices = @transform_3, window_bounds = array<i64: 1, 32>}, {pipeline_mode = #tpu.pipeline_mode<synchronous>, transform_indices = @transform_4, window_bounds = array<i64: 288, 32>}, {pipeline_mode = #tpu.pipeline_mode<synchronous>, transform_indices = @transform_5, window_bounds = array<i64: 1, 32>}, {pipeline_mode = #tpu.pipeline_mode<synchronous>, transform_indices = @transform_6, window_bounds = array<i64: 288, 32>}, {pipeline_mode = #tpu.pipeline_mode<synchronous>, transform_indices = @transform_7, window_bounds = array<i64: 1, 32>}, {pipeline_mode = #tpu.pipeline_mode<synchronous>, transform_indices = @transform_8, window_bounds = array<i64: 288, 32>}, {pipeline_mode = #tpu.pipeline_mode<synchronous>, transform_indices = @transform_9, window_bounds = array<i64: 1, 32>}, {pipeline_mode = #tpu.pipeline_mode<synchronous>, transform_indices = @transform_10, window_bounds = array<i64: 288, 32>}, {pipeline_mode = #tpu.pipeline_mode<synchronous>, transform_indices = @transform_11, window_bounds = array<i64: 1, 32>}, {pipeline_mode = #tpu.pipeline_mode<synchronous>, transform_indices = @transform_12, window_bounds = array<i64: 32, 128>}, {pipeline_mode = #tpu.pipeline_mode<synchronous>, transform_indices = @transform_13, window_bounds = array<i64: 18, 128>}, {pipeline_mode = #tpu.pipeline_mode<synchronous>, transform_indices = @transform_14, window_bounds = array<i64: 1, 128>}, {pipeline_mode = #tpu.pipeline_mode<synchronous>, transform_indices = @transform_15, window_bounds = array<i64: 128, 128>}, {pipeline_mode = #tpu.pipeline_mode<synchronous>, transform_indices = @transform_16, window_bounds = array<i64: 1, 128>}, {transform_indices = @transform_17, window_bounds = array<i64: 16, 128>}]} {
    %c0 = arith.constant 0 : index
    %c0_0 = arith.constant 0 : index
    %c0_1 = arith.constant 0 : index
    %c0_2 = arith.constant 0 : index
    %c0_3 = arith.constant 0 : index
    %0 = vector.load %arg1[%c0, %c0_0, %c0_1, %c0_2, %c0_3] : memref<1x18x18x16x10xbf16, #tpu.memory_space<vmem>>, vector<1x18x18x16x10xbf16>
    %1 = vector.shape_cast %0 : vector<1x18x18x16x10xbf16> to vector<18x18x16x10xbf16>
    %2 = vector.shape_cast %1 : vector<18x18x16x10xbf16> to vector<9x2x18x16x10xbf16>
    %3 = vector.extract_strided_slice %2 {offsets = [0, 0, 0, 0, 0], sizes = [8, 1, 18, 16, 10], strides = [1, 1, 1, 1, 1]} : vector<9x2x18x16x10xbf16> to vector<8x1x18x16x10xbf16>
    %4 = vector.shape_cast %3 : vector<8x1x18x16x10xbf16> to vector<8x18x16x10xbf16>
    %5 = vector.shape_cast %4 : vector<8x18x16x10xbf16> to vector<8x9x2x16x10xbf16>
    %6 = vector.extract_strided_slice %5 {offsets = [0, 0, 0, 0, 0], sizes = [8, 8, 1, 16, 10], strides = [1, 1, 1, 1, 1]} : vector<8x9x2x16x10xbf16> to vector<8x8x1x16x10xbf16>
    %7 = vector.shape_cast %6 : vector<8x8x1x16x10xbf16> to vector<8x8x16x10xbf16>
    %8 = vector.extract_strided_slice %5 {offsets = [0, 0, 1, 0, 0], sizes = [8, 8, 1, 16, 10], strides = [1, 1, 1, 1, 1]} : vector<8x9x2x16x10xbf16> to vector<8x8x1x16x10xbf16>
    %9 = vector.shape_cast %8 : vector<8x8x1x16x10xbf16> to vector<8x8x16x10xbf16>
    %10 = vector.extract_strided_slice %5 {offsets = [0, 1, 0, 0, 0], sizes = [8, 8, 1, 16, 10], strides = [1, 1, 1, 1, 1]} : vector<8x9x2x16x10xbf16> to vector<8x8x1x16x10xbf16>
    %11 = vector.shape_cast %10 : vector<8x8x1x16x10xbf16> to vector<8x8x16x10xbf16>
    %12 = vector.extract_strided_slice %2 {offsets = [0, 1, 0, 0, 0], sizes = [8, 1, 18, 16, 10], strides = [1, 1, 1, 1, 1]} : vector<9x2x18x16x10xbf16> to vector<8x1x18x16x10xbf16>
    %13 = vector.shape_cast %12 : vector<8x1x18x16x10xbf16> to vector<8x18x16x10xbf16>
    %14 = vector.shape_cast %13 : vector<8x18x16x10xbf16> to vector<8x9x2x16x10xbf16>
    %15 = vector.extract_strided_slice %14 {offsets = [0, 0, 0, 0, 0], sizes = [8, 8, 1, 16, 10], strides = [1, 1, 1, 1, 1]} : vector<8x9x2x16x10xbf16> to vector<8x8x1x16x10xbf16>
    %16 = vector.shape_cast %15 : vector<8x8x1x16x10xbf16> to vector<8x8x16x10xbf16>
    %17 = vector.extract_strided_slice %14 {offsets = [0, 0, 1, 0, 0], sizes = [8, 8, 1, 16, 10], strides = [1, 1, 1, 1, 1]} : vector<8x9x2x16x10xbf16> to vector<8x8x1x16x10xbf16>
    %18 = vector.shape_cast %17 : vector<8x8x1x16x10xbf16> to vector<8x8x16x10xbf16>
    %19 = vector.extract_strided_slice %14 {offsets = [0, 1, 0, 0, 0], sizes = [8, 8, 1, 16, 10], strides = [1, 1, 1, 1, 1]} : vector<8x9x2x16x10xbf16> to vector<8x8x1x16x10xbf16>
    %20 = vector.shape_cast %19 : vector<8x8x1x16x10xbf16> to vector<8x8x16x10xbf16>
    %21 = vector.extract_strided_slice %2 {offsets = [1, 0, 0, 0, 0], sizes = [8, 1, 18, 16, 10], strides = [1, 1, 1, 1, 1]} : vector<9x2x18x16x10xbf16> to vector<8x1x18x16x10xbf16>
    %22 = vector.shape_cast %21 : vector<8x1x18x16x10xbf16> to vector<8x18x16x10xbf16>
    %23 = vector.shape_cast %22 : vector<8x18x16x10xbf16> to vector<8x9x2x16x10xbf16>
    %24 = vector.extract_strided_slice %23 {offsets = [0, 0, 0, 0, 0], sizes = [8, 8, 1, 16, 10], strides = [1, 1, 1, 1, 1]} : vector<8x9x2x16x10xbf16> to vector<8x8x1x16x10xbf16>
    %25 = vector.shape_cast %24 : vector<8x8x1x16x10xbf16> to vector<8x8x16x10xbf16>
    %26 = vector.extract_strided_slice %23 {offsets = [0, 0, 1, 0, 0], sizes = [8, 8, 1, 16, 10], strides = [1, 1, 1, 1, 1]} : vector<8x9x2x16x10xbf16> to vector<8x8x1x16x10xbf16>
    %27 = vector.shape_cast %26 : vector<8x8x1x16x10xbf16> to vector<8x8x16x10xbf16>
    %28 = vector.extract_strided_slice %23 {offsets = [0, 1, 0, 0, 0], sizes = [8, 8, 1, 16, 10], strides = [1, 1, 1, 1, 1]} : vector<8x9x2x16x10xbf16> to vector<8x8x1x16x10xbf16>
    %29 = vector.shape_cast %28 : vector<8x8x1x16x10xbf16> to vector<8x8x16x10xbf16>
    %30 = tpu.concatenate %7, %9, %11, %16, %18, %20, %25, %27, %29 in 3 : vector<8x8x16x10xbf16>, vector<8x8x16x10xbf16>, vector<8x8x16x10xbf16>, vector<8x8x16x10xbf16>, vector<8x8x16x10xbf16>, vector<8x8x16x10xbf16>, vector<8x8x16x10xbf16>, vector<8x8x16x10xbf16>, vector<8x8x16x10xbf16> -> vector<8x8x16x90xbf16>
    %31 = vector.shape_cast %30 : vector<8x8x16x90xbf16> to vector<1024x90xbf16>
    %c0_4 = arith.constant 0 : index
    %c0_5 = arith.constant 0 : index
    %32 = vector.load %arg3[%c0_4, %c0_5] : memref<90x32xbf16, #tpu.memory_space<vmem>>, vector<90x32xbf16>
    %cst = arith.constant dense<0.000000e+00> : vector<1024x32xf32>
    %33 = tpu.matmul %31, %32, %cst {dimension_numbers = #tpu.dot_dimension_numbers<[1], [0], [0], [1], [0, 0, 1, 1], [], []>} : vector<1024x90xbf16>, vector<90x32xbf16>, vector<1024x32xf32> -> vector<1024x32xf32>
    %c0_6 = arith.constant 0 : index
    %c0_7 = arith.constant 0 : index
    %34 = vector.load %arg4[%c0_6, %c0_7] : memref<1x32xf32, #tpu.memory_space<vmem>>, vector<1x32xf32>
    %35 = vector.broadcast %34 : vector<1x32xf32> to vector<1024x32xf32>
    %36 = arith.addf %33, %35 : vector<1024x32xf32>
    %cst_8 = arith.constant 0.000000e+00 : f32
    %37 = vector.broadcast %cst_8 : f32 to vector<1024x32xf32>
    %38 = arith.cmpf ogt, %36, %37 : vector<1024x32xf32>
    %cst_9 = arith.constant 0.000000e+00 : f32
    %39 = vector.broadcast %cst_9 : f32 to vector<1024x32xf32>
    %40 = arith.minimumf %36, %39 : vector<1024x32xf32>
    %41 = math.exp %40 : vector<1024x32xf32>
    %cst_10 = arith.constant 1.000000e+00 : f32
    %42 = vector.broadcast %cst_10 : f32 to vector<1024x32xf32>
    %43 = arith.subf %41, %42 : vector<1024x32xf32>
    %44 = arith.select %38, %36, %43 : vector<1024x32xi1>, vector<1024x32xf32>
    %45 = arith.truncf %44 : vector<1024x32xf32> to vector<1024x32xbf16>
    %46 = vector.shape_cast %45 : vector<1024x32xbf16> to vector<8x8x16x32xbf16>
    %cst_11 = arith.constant 0.000000e+00 : bf16
    %47 = vector.broadcast %cst_11 : bf16 to vector<1x8x16x32xbf16>
    %48 = tpu.concatenate %47, %46, %47 in 0 : vector<1x8x16x32xbf16>, vector<8x8x16x32xbf16>, vector<1x8x16x32xbf16> -> vector<10x8x16x32xbf16>
    %cst_12 = arith.constant 0.000000e+00 : bf16
    %49 = vector.broadcast %cst_12 : bf16 to vector<10x1x16x32xbf16>
    %50 = tpu.concatenate %49, %48, %49 in 1 : vector<10x1x16x32xbf16>, vector<10x8x16x32xbf16>, vector<10x1x16x32xbf16> -> vector<10x10x16x32xbf16>
    %51 = vector.shape_cast %50 : vector<10x10x16x32xbf16> to vector<5x2x10x16x32xbf16>
    %52 = vector.extract_strided_slice %51 {offsets = [0, 0, 0, 0, 0], sizes = [4, 1, 10, 16, 32], strides = [1, 1, 1, 1, 1]} : vector<5x2x10x16x32xbf16> to vector<4x1x10x16x32xbf16>
    %53 = vector.shape_cast %52 : vector<4x1x10x16x32xbf16> to vector<4x10x16x32xbf16>
    %54 = vector.shape_cast %53 : vector<4x10x16x32xbf16> to vector<4x5x2x16x32xbf16>
    %55 = vector.extract_strided_slice %54 {offsets = [0, 0, 0, 0, 0], sizes = [4, 4, 1, 16, 32], strides = [1, 1, 1, 1, 1]} : vector<4x5x2x16x32xbf16> to vector<4x4x1x16x32xbf16>
    %56 = vector.shape_cast %55 : vector<4x4x1x16x32xbf16> to vector<4x4x16x32xbf16>
    %57 = vector.extract_strided_slice %54 {offsets = [0, 0, 1, 0, 0], sizes = [4, 4, 1, 16, 32], strides = [1, 1, 1, 1, 1]} : vector<4x5x2x16x32xbf16> to vector<4x4x1x16x32xbf16>
    %58 = vector.shape_cast %57 : vector<4x4x1x16x32xbf16> to vector<4x4x16x32xbf16>
    %59 = vector.extract_strided_slice %54 {offsets = [0, 1, 0, 0, 0], sizes = [4, 4, 1, 16, 32], strides = [1, 1, 1, 1, 1]} : vector<4x5x2x16x32xbf16> to vector<4x4x1x16x32xbf16>
    %60 = vector.shape_cast %59 : vector<4x4x1x16x32xbf16> to vector<4x4x16x32xbf16>
    %61 = vector.extract_strided_slice %51 {offsets = [0, 1, 0, 0, 0], sizes = [4, 1, 10, 16, 32], strides = [1, 1, 1, 1, 1]} : vector<5x2x10x16x32xbf16> to vector<4x1x10x16x32xbf16>
    %62 = vector.shape_cast %61 : vector<4x1x10x16x32xbf16> to vector<4x10x16x32xbf16>
    %63 = vector.shape_cast %62 : vector<4x10x16x32xbf16> to vector<4x5x2x16x32xbf16>
    %64 = vector.extract_strided_slice %63 {offsets = [0, 0, 0, 0, 0], sizes = [4, 4, 1, 16, 32], strides = [1, 1, 1, 1, 1]} : vector<4x5x2x16x32xbf16> to vector<4x4x1x16x32xbf16>
    %65 = vector.shape_cast %64 : vector<4x4x1x16x32xbf16> to vector<4x4x16x32xbf16>
    %66 = vector.extract_strided_slice %63 {offsets = [0, 0, 1, 0, 0], sizes = [4, 4, 1, 16, 32], strides = [1, 1, 1, 1, 1]} : vector<4x5x2x16x32xbf16> to vector<4x4x1x16x32xbf16>
    %67 = vector.shape_cast %66 : vector<4x4x1x16x32xbf16> to vector<4x4x16x32xbf16>
    %68 = vector.extract_strided_slice %63 {offsets = [0, 1, 0, 0, 0], sizes = [4, 4, 1, 16, 32], strides = [1, 1, 1, 1, 1]} : vector<4x5x2x16x32xbf16> to vector<4x4x1x16x32xbf16>
    %69 = vector.shape_cast %68 : vector<4x4x1x16x32xbf16> to vector<4x4x16x32xbf16>
    %70 = vector.extract_strided_slice %51 {offsets = [1, 0, 0, 0, 0], sizes = [4, 1, 10, 16, 32], strides = [1, 1, 1, 1, 1]} : vector<5x2x10x16x32xbf16> to vector<4x1x10x16x32xbf16>
    %71 = vector.shape_cast %70 : vector<4x1x10x16x32xbf16> to vector<4x10x16x32xbf16>
    %72 = vector.shape_cast %71 : vector<4x10x16x32xbf16> to vector<4x5x2x16x32xbf16>
    %73 = vector.extract_strided_slice %72 {offsets = [0, 0, 0, 0, 0], sizes = [4, 4, 1, 16, 32], strides = [1, 1, 1, 1, 1]} : vector<4x5x2x16x32xbf16> to vector<4x4x1x16x32xbf16>
    %74 = vector.shape_cast %73 : vector<4x4x1x16x32xbf16> to vector<4x4x16x32xbf16>
    %75 = vector.extract_strided_slice %72 {offsets = [0, 0, 1, 0, 0], sizes = [4, 4, 1, 16, 32], strides = [1, 1, 1, 1, 1]} : vector<4x5x2x16x32xbf16> to vector<4x4x1x16x32xbf16>
    %76 = vector.shape_cast %75 : vector<4x4x1x16x32xbf16> to vector<4x4x16x32xbf16>
    %77 = vector.extract_strided_slice %72 {offsets = [0, 1, 0, 0, 0], sizes = [4, 4, 1, 16, 32], strides = [1, 1, 1, 1, 1]} : vector<4x5x2x16x32xbf16> to vector<4x4x1x16x32xbf16>
    %78 = vector.shape_cast %77 : vector<4x4x1x16x32xbf16> to vector<4x4x16x32xbf16>
    %79 = tpu.concatenate %56, %58, %60, %65, %67, %69, %74, %76, %78 in 3 : vector<4x4x16x32xbf16>, vector<4x4x16x32xbf16>, vector<4x4x16x32xbf16>, vector<4x4x16x32xbf16>, vector<4x4x16x32xbf16>, vector<4x4x16x32xbf16>, vector<4x4x16x32xbf16>, vector<4x4x16x32xbf16>, vector<4x4x16x32xbf16> -> vector<4x4x16x288xbf16>
    %80 = vector.shape_cast %79 : vector<4x4x16x288xbf16> to vector<256x288xbf16>
    %c0_13 = arith.constant 0 : index
    %c0_14 = arith.constant 0 : index
    %81 = vector.load %arg5[%c0_13, %c0_14] : memref<288x32xbf16, #tpu.memory_space<vmem>>, vector<288x32xbf16>
    %cst_15 = arith.constant dense<0.000000e+00> : vector<256x32xf32>
    %82 = tpu.matmul %80, %81, %cst_15 {dimension_numbers = #tpu.dot_dimension_numbers<[1], [0], [0], [1], [0, 0, 1, 1], [], []>} : vector<256x288xbf16>, vector<288x32xbf16>, vector<256x32xf32> -> vector<256x32xf32>
    %c0_16 = arith.constant 0 : index
    %c0_17 = arith.constant 0 : index
    %83 = vector.load %arg6[%c0_16, %c0_17] : memref<1x32xf32, #tpu.memory_space<vmem>>, vector<1x32xf32>
    %84 = vector.broadcast %83 : vector<1x32xf32> to vector<256x32xf32>
    %85 = arith.addf %82, %84 : vector<256x32xf32>
    %cst_18 = arith.constant 0.000000e+00 : f32
    %86 = vector.broadcast %cst_18 : f32 to vector<256x32xf32>
    %87 = arith.cmpf ogt, %85, %86 : vector<256x32xf32>
    %cst_19 = arith.constant 0.000000e+00 : f32
    %88 = vector.broadcast %cst_19 : f32 to vector<256x32xf32>
    %89 = arith.minimumf %85, %88 : vector<256x32xf32>
    %90 = math.exp %89 : vector<256x32xf32>
    %cst_20 = arith.constant 1.000000e+00 : f32
    %91 = vector.broadcast %cst_20 : f32 to vector<256x32xf32>
    %92 = arith.subf %90, %91 : vector<256x32xf32>
    %93 = arith.select %87, %85, %92 : vector<256x32xi1>, vector<256x32xf32>
    %94 = arith.truncf %93 : vector<256x32xf32> to vector<256x32xbf16>
    %95 = vector.shape_cast %94 : vector<256x32xbf16> to vector<4x4x16x32xbf16>
    %cst_21 = arith.constant 0.000000e+00 : bf16
    %96 = vector.broadcast %cst_21 : bf16 to vector<1x4x16x32xbf16>
    %97 = tpu.concatenate %96, %95, %96 in 0 : vector<1x4x16x32xbf16>, vector<4x4x16x32xbf16>, vector<1x4x16x32xbf16> -> vector<6x4x16x32xbf16>
    %cst_22 = arith.constant 0.000000e+00 : bf16
    %98 = vector.broadcast %cst_22 : bf16 to vector<6x1x16x32xbf16>
    %99 = tpu.concatenate %98, %97, %98 in 1 : vector<6x1x16x32xbf16>, vector<6x4x16x32xbf16>, vector<6x1x16x32xbf16> -> vector<6x6x16x32xbf16>
    %100 = vector.shape_cast %99 : vector<6x6x16x32xbf16> to vector<3x2x6x16x32xbf16>
    %101 = vector.extract_strided_slice %100 {offsets = [0, 0, 0, 0, 0], sizes = [2, 1, 6, 16, 32], strides = [1, 1, 1, 1, 1]} : vector<3x2x6x16x32xbf16> to vector<2x1x6x16x32xbf16>
    %102 = vector.shape_cast %101 : vector<2x1x6x16x32xbf16> to vector<2x6x16x32xbf16>
    %103 = vector.shape_cast %102 : vector<2x6x16x32xbf16> to vector<2x3x2x16x32xbf16>
    %104 = vector.extract_strided_slice %103 {offsets = [0, 0, 0, 0, 0], sizes = [2, 2, 1, 16, 32], strides = [1, 1, 1, 1, 1]} : vector<2x3x2x16x32xbf16> to vector<2x2x1x16x32xbf16>
    %105 = vector.shape_cast %104 : vector<2x2x1x16x32xbf16> to vector<2x2x16x32xbf16>
    %106 = vector.extract_strided_slice %103 {offsets = [0, 0, 1, 0, 0], sizes = [2, 2, 1, 16, 32], strides = [1, 1, 1, 1, 1]} : vector<2x3x2x16x32xbf16> to vector<2x2x1x16x32xbf16>
    %107 = vector.shape_cast %106 : vector<2x2x1x16x32xbf16> to vector<2x2x16x32xbf16>
    %108 = vector.extract_strided_slice %103 {offsets = [0, 1, 0, 0, 0], sizes = [2, 2, 1, 16, 32], strides = [1, 1, 1, 1, 1]} : vector<2x3x2x16x32xbf16> to vector<2x2x1x16x32xbf16>
    %109 = vector.shape_cast %108 : vector<2x2x1x16x32xbf16> to vector<2x2x16x32xbf16>
    %110 = vector.extract_strided_slice %100 {offsets = [0, 1, 0, 0, 0], sizes = [2, 1, 6, 16, 32], strides = [1, 1, 1, 1, 1]} : vector<3x2x6x16x32xbf16> to vector<2x1x6x16x32xbf16>
    %111 = vector.shape_cast %110 : vector<2x1x6x16x32xbf16> to vector<2x6x16x32xbf16>
    %112 = vector.shape_cast %111 : vector<2x6x16x32xbf16> to vector<2x3x2x16x32xbf16>
    %113 = vector.extract_strided_slice %112 {offsets = [0, 0, 0, 0, 0], sizes = [2, 2, 1, 16, 32], strides = [1, 1, 1, 1, 1]} : vector<2x3x2x16x32xbf16> to vector<2x2x1x16x32xbf16>
    %114 = vector.shape_cast %113 : vector<2x2x1x16x32xbf16> to vector<2x2x16x32xbf16>
    %115 = vector.extract_strided_slice %112 {offsets = [0, 0, 1, 0, 0], sizes = [2, 2, 1, 16, 32], strides = [1, 1, 1, 1, 1]} : vector<2x3x2x16x32xbf16> to vector<2x2x1x16x32xbf16>
    %116 = vector.shape_cast %115 : vector<2x2x1x16x32xbf16> to vector<2x2x16x32xbf16>
    %117 = vector.extract_strided_slice %112 {offsets = [0, 1, 0, 0, 0], sizes = [2, 2, 1, 16, 32], strides = [1, 1, 1, 1, 1]} : vector<2x3x2x16x32xbf16> to vector<2x2x1x16x32xbf16>
    %118 = vector.shape_cast %117 : vector<2x2x1x16x32xbf16> to vector<2x2x16x32xbf16>
    %119 = vector.extract_strided_slice %100 {offsets = [1, 0, 0, 0, 0], sizes = [2, 1, 6, 16, 32], strides = [1, 1, 1, 1, 1]} : vector<3x2x6x16x32xbf16> to vector<2x1x6x16x32xbf16>
    %120 = vector.shape_cast %119 : vector<2x1x6x16x32xbf16> to vector<2x6x16x32xbf16>
    %121 = vector.shape_cast %120 : vector<2x6x16x32xbf16> to vector<2x3x2x16x32xbf16>
    %122 = vector.extract_strided_slice %121 {offsets = [0, 0, 0, 0, 0], sizes = [2, 2, 1, 16, 32], strides = [1, 1, 1, 1, 1]} : vector<2x3x2x16x32xbf16> to vector<2x2x1x16x32xbf16>
    %123 = vector.shape_cast %122 : vector<2x2x1x16x32xbf16> to vector<2x2x16x32xbf16>
    %124 = vector.extract_strided_slice %121 {offsets = [0, 0, 1, 0, 0], sizes = [2, 2, 1, 16, 32], strides = [1, 1, 1, 1, 1]} : vector<2x3x2x16x32xbf16> to vector<2x2x1x16x32xbf16>
    %125 = vector.shape_cast %124 : vector<2x2x1x16x32xbf16> to vector<2x2x16x32xbf16>
    %126 = vector.extract_strided_slice %121 {offsets = [0, 1, 0, 0, 0], sizes = [2, 2, 1, 16, 32], strides = [1, 1, 1, 1, 1]} : vector<2x3x2x16x32xbf16> to vector<2x2x1x16x32xbf16>
    %127 = vector.shape_cast %126 : vector<2x2x1x16x32xbf16> to vector<2x2x16x32xbf16>
    %128 = tpu.concatenate %105, %107, %109, %114, %116, %118, %123, %125, %127 in 3 : vector<2x2x16x32xbf16>, vector<2x2x16x32xbf16>, vector<2x2x16x32xbf16>, vector<2x2x16x32xbf16>, vector<2x2x16x32xbf16>, vector<2x2x16x32xbf16>, vector<2x2x16x32xbf16>, vector<2x2x16x32xbf16>, vector<2x2x16x32xbf16> -> vector<2x2x16x288xbf16>
    %129 = vector.shape_cast %128 : vector<2x2x16x288xbf16> to vector<64x288xbf16>
    %c0_23 = arith.constant 0 : index
    %c0_24 = arith.constant 0 : index
    %130 = vector.load %arg7[%c0_23, %c0_24] : memref<288x32xbf16, #tpu.memory_space<vmem>>, vector<288x32xbf16>
    %cst_25 = arith.constant dense<0.000000e+00> : vector<64x32xf32>
    %131 = tpu.matmul %129, %130, %cst_25 {dimension_numbers = #tpu.dot_dimension_numbers<[1], [0], [0], [1], [0, 0, 1, 1], [], []>} : vector<64x288xbf16>, vector<288x32xbf16>, vector<64x32xf32> -> vector<64x32xf32>
    %c0_26 = arith.constant 0 : index
    %c0_27 = arith.constant 0 : index
    %132 = vector.load %arg8[%c0_26, %c0_27] : memref<1x32xf32, #tpu.memory_space<vmem>>, vector<1x32xf32>
    %133 = vector.broadcast %132 : vector<1x32xf32> to vector<64x32xf32>
    %134 = arith.addf %131, %133 : vector<64x32xf32>
    %cst_28 = arith.constant 0.000000e+00 : f32
    %135 = vector.broadcast %cst_28 : f32 to vector<64x32xf32>
    %136 = arith.cmpf ogt, %134, %135 : vector<64x32xf32>
    %cst_29 = arith.constant 0.000000e+00 : f32
    %137 = vector.broadcast %cst_29 : f32 to vector<64x32xf32>
    %138 = arith.minimumf %134, %137 : vector<64x32xf32>
    %139 = math.exp %138 : vector<64x32xf32>
    %cst_30 = arith.constant 1.000000e+00 : f32
    %140 = vector.broadcast %cst_30 : f32 to vector<64x32xf32>
    %141 = arith.subf %139, %140 : vector<64x32xf32>
    %142 = arith.select %136, %134, %141 : vector<64x32xi1>, vector<64x32xf32>
    %143 = arith.truncf %142 : vector<64x32xf32> to vector<64x32xbf16>
    %144 = vector.shape_cast %143 : vector<64x32xbf16> to vector<2x2x16x32xbf16>
    %cst_31 = arith.constant 0.000000e+00 : bf16
    %145 = vector.broadcast %cst_31 : bf16 to vector<1x2x16x32xbf16>
    %146 = tpu.concatenate %145, %144, %145 in 0 : vector<1x2x16x32xbf16>, vector<2x2x16x32xbf16>, vector<1x2x16x32xbf16> -> vector<4x2x16x32xbf16>
    %cst_32 = arith.constant 0.000000e+00 : bf16
    %147 = vector.broadcast %cst_32 : bf16 to vector<4x1x16x32xbf16>
    %148 = tpu.concatenate %147, %146, %147 in 1 : vector<4x1x16x32xbf16>, vector<4x2x16x32xbf16>, vector<4x1x16x32xbf16> -> vector<4x4x16x32xbf16>
    %149 = vector.shape_cast %148 : vector<4x4x16x32xbf16> to vector<2x2x4x16x32xbf16>
    %150 = vector.extract_strided_slice %149 {offsets = [0, 0, 0, 0, 0], sizes = [1, 1, 4, 16, 32], strides = [1, 1, 1, 1, 1]} : vector<2x2x4x16x32xbf16> to vector<1x1x4x16x32xbf16>
    %151 = vector.shape_cast %150 : vector<1x1x4x16x32xbf16> to vector<1x4x16x32xbf16>
    %152 = vector.shape_cast %151 : vector<1x4x16x32xbf16> to vector<1x2x2x16x32xbf16>
    %153 = vector.extract_strided_slice %152 {offsets = [0, 0, 0, 0, 0], sizes = [1, 1, 1, 16, 32], strides = [1, 1, 1, 1, 1]} : vector<1x2x2x16x32xbf16> to vector<1x1x1x16x32xbf16>
    %154 = vector.shape_cast %153 : vector<1x1x1x16x32xbf16> to vector<1x1x16x32xbf16>
    %155 = vector.extract_strided_slice %152 {offsets = [0, 0, 1, 0, 0], sizes = [1, 1, 1, 16, 32], strides = [1, 1, 1, 1, 1]} : vector<1x2x2x16x32xbf16> to vector<1x1x1x16x32xbf16>
    %156 = vector.shape_cast %155 : vector<1x1x1x16x32xbf16> to vector<1x1x16x32xbf16>
    %157 = vector.extract_strided_slice %152 {offsets = [0, 1, 0, 0, 0], sizes = [1, 1, 1, 16, 32], strides = [1, 1, 1, 1, 1]} : vector<1x2x2x16x32xbf16> to vector<1x1x1x16x32xbf16>
    %158 = vector.shape_cast %157 : vector<1x1x1x16x32xbf16> to vector<1x1x16x32xbf16>
    %159 = vector.extract_strided_slice %149 {offsets = [0, 1, 0, 0, 0], sizes = [1, 1, 4, 16, 32], strides = [1, 1, 1, 1, 1]} : vector<2x2x4x16x32xbf16> to vector<1x1x4x16x32xbf16>
    %160 = vector.shape_cast %159 : vector<1x1x4x16x32xbf16> to vector<1x4x16x32xbf16>
    %161 = vector.shape_cast %160 : vector<1x4x16x32xbf16> to vector<1x2x2x16x32xbf16>
    %162 = vector.extract_strided_slice %161 {offsets = [0, 0, 0, 0, 0], sizes = [1, 1, 1, 16, 32], strides = [1, 1, 1, 1, 1]} : vector<1x2x2x16x32xbf16> to vector<1x1x1x16x32xbf16>
    %163 = vector.shape_cast %162 : vector<1x1x1x16x32xbf16> to vector<1x1x16x32xbf16>
    %164 = vector.extract_strided_slice %161 {offsets = [0, 0, 1, 0, 0], sizes = [1, 1, 1, 16, 32], strides = [1, 1, 1, 1, 1]} : vector<1x2x2x16x32xbf16> to vector<1x1x1x16x32xbf16>
    %165 = vector.shape_cast %164 : vector<1x1x1x16x32xbf16> to vector<1x1x16x32xbf16>
    %166 = vector.extract_strided_slice %161 {offsets = [0, 1, 0, 0, 0], sizes = [1, 1, 1, 16, 32], strides = [1, 1, 1, 1, 1]} : vector<1x2x2x16x32xbf16> to vector<1x1x1x16x32xbf16>
    %167 = vector.shape_cast %166 : vector<1x1x1x16x32xbf16> to vector<1x1x16x32xbf16>
    %168 = vector.extract_strided_slice %149 {offsets = [1, 0, 0, 0, 0], sizes = [1, 1, 4, 16, 32], strides = [1, 1, 1, 1, 1]} : vector<2x2x4x16x32xbf16> to vector<1x1x4x16x32xbf16>
    %169 = vector.shape_cast %168 : vector<1x1x4x16x32xbf16> to vector<1x4x16x32xbf16>
    %170 = vector.shape_cast %169 : vector<1x4x16x32xbf16> to vector<1x2x2x16x32xbf16>
    %171 = vector.extract_strided_slice %170 {offsets = [0, 0, 0, 0, 0], sizes = [1, 1, 1, 16, 32], strides = [1, 1, 1, 1, 1]} : vector<1x2x2x16x32xbf16> to vector<1x1x1x16x32xbf16>
    %172 = vector.shape_cast %171 : vector<1x1x1x16x32xbf16> to vector<1x1x16x32xbf16>
    %173 = vector.extract_strided_slice %170 {offsets = [0, 0, 1, 0, 0], sizes = [1, 1, 1, 16, 32], strides = [1, 1, 1, 1, 1]} : vector<1x2x2x16x32xbf16> to vector<1x1x1x16x32xbf16>
    %174 = vector.shape_cast %173 : vector<1x1x1x16x32xbf16> to vector<1x1x16x32xbf16>
    %175 = vector.extract_strided_slice %170 {offsets = [0, 1, 0, 0, 0], sizes = [1, 1, 1, 16, 32], strides = [1, 1, 1, 1, 1]} : vector<1x2x2x16x32xbf16> to vector<1x1x1x16x32xbf16>
    %176 = vector.shape_cast %175 : vector<1x1x1x16x32xbf16> to vector<1x1x16x32xbf16>
    %177 = tpu.concatenate %154, %156, %158, %163, %165, %167, %172, %174, %176 in 3 : vector<1x1x16x32xbf16>, vector<1x1x16x32xbf16>, vector<1x1x16x32xbf16>, vector<1x1x16x32xbf16>, vector<1x1x16x32xbf16>, vector<1x1x16x32xbf16>, vector<1x1x16x32xbf16>, vector<1x1x16x32xbf16>, vector<1x1x16x32xbf16> -> vector<1x1x16x288xbf16>
    %178 = vector.shape_cast %177 : vector<1x1x16x288xbf16> to vector<16x288xbf16>
    %c0_33 = arith.constant 0 : index
    %c0_34 = arith.constant 0 : index
    %179 = vector.load %arg9[%c0_33, %c0_34] : memref<288x32xbf16, #tpu.memory_space<vmem>>, vector<288x32xbf16>
    %cst_35 = arith.constant dense<0.000000e+00> : vector<16x32xf32>
    %180 = tpu.matmul %178, %179, %cst_35 {dimension_numbers = #tpu.dot_dimension_numbers<[1], [0], [0], [1], [0, 0, 1, 1], [], []>} : vector<16x288xbf16>, vector<288x32xbf16>, vector<16x32xf32> -> vector<16x32xf32>
    %c0_36 = arith.constant 0 : index
    %c0_37 = arith.constant 0 : index
    %181 = vector.load %arg10[%c0_36, %c0_37] : memref<1x32xf32, #tpu.memory_space<vmem>>, vector<1x32xf32>
    %182 = vector.broadcast %181 : vector<1x32xf32> to vector<16x32xf32>
    %183 = arith.addf %180, %182 : vector<16x32xf32>
    %cst_38 = arith.constant 0.000000e+00 : f32
    %184 = vector.broadcast %cst_38 : f32 to vector<16x32xf32>
    %185 = arith.cmpf ogt, %183, %184 : vector<16x32xf32>
    %cst_39 = arith.constant 0.000000e+00 : f32
    %186 = vector.broadcast %cst_39 : f32 to vector<16x32xf32>
    %187 = arith.minimumf %183, %186 : vector<16x32xf32>
    %188 = math.exp %187 : vector<16x32xf32>
    %cst_40 = arith.constant 1.000000e+00 : f32
    %189 = vector.broadcast %cst_40 : f32 to vector<16x32xf32>
    %190 = arith.subf %188, %189 : vector<16x32xf32>
    %191 = arith.select %185, %183, %190 : vector<16x32xi1>, vector<16x32xf32>
    %192 = arith.truncf %191 : vector<16x32xf32> to vector<16x32xbf16>
    %193 = vector.shape_cast %192 : vector<16x32xbf16> to vector<1x1x16x32xbf16>
    %194 = vector.shape_cast %193 : vector<1x1x16x32xbf16> to vector<16x32xbf16>
    %c128 = arith.constant 128 : index
    %c0_41 = arith.constant 0 : index
    %195 = vector.load %arg11[%c128, %c0_41] : memref<288x32xbf16, #tpu.memory_space<vmem>>, vector<32x32xbf16>
    %cst_42 = arith.constant dense<0.000000e+00> : vector<16x32xf32>
    %196 = tpu.matmul %194, %195, %cst_42 {dimension_numbers = #tpu.dot_dimension_numbers<[1], [0], [0], [1], [0, 0, 1, 1], [], []>} : vector<16x32xbf16>, vector<32x32xbf16>, vector<16x32xf32> -> vector<16x32xf32>
    %c0_43 = arith.constant 0 : index
    %c0_44 = arith.constant 0 : index
    %197 = vector.load %arg12[%c0_43, %c0_44] : memref<1x32xf32, #tpu.memory_space<vmem>>, vector<1x32xf32>
    %198 = vector.broadcast %197 : vector<1x32xf32> to vector<16x32xf32>
    %199 = arith.addf %196, %198 : vector<16x32xf32>
    %cst_45 = arith.constant 0.000000e+00 : f32
    %200 = vector.broadcast %cst_45 : f32 to vector<16x32xf32>
    %201 = arith.cmpf ogt, %199, %200 : vector<16x32xf32>
    %cst_46 = arith.constant 0.000000e+00 : f32
    %202 = vector.broadcast %cst_46 : f32 to vector<16x32xf32>
    %203 = arith.minimumf %199, %202 : vector<16x32xf32>
    %204 = math.exp %203 : vector<16x32xf32>
    %cst_47 = arith.constant 1.000000e+00 : f32
    %205 = vector.broadcast %cst_47 : f32 to vector<16x32xf32>
    %206 = arith.subf %204, %205 : vector<16x32xf32>
    %207 = arith.select %201, %199, %206 : vector<16x32xi1>, vector<16x32xf32>
    %208 = arith.truncf %207 : vector<16x32xf32> to vector<16x32xbf16>
    %209 = vector.shape_cast %208 : vector<16x32xbf16> to vector<1x1x16x32xbf16>
    %210 = vector.shape_cast %209 : vector<1x1x16x32xbf16> to vector<16x32xbf16>
    %c0_48 = arith.constant 0 : index
    %c0_49 = arith.constant 0 : index
    %211 = vector.load %arg2[%c0_48, %c0_49] : memref<16x18xbf16, #tpu.memory_space<vmem>>, vector<16x18xbf16>
    %c0_50 = arith.constant 0 : index
    %c0_51 = arith.constant 0 : index
    %212 = vector.load %arg13[%c0_50, %c0_51] : memref<32x128xbf16, #tpu.memory_space<vmem>>, vector<32x128xbf16>
    %cst_52 = arith.constant dense<0.000000e+00> : vector<16x128xf32>
    %213 = tpu.matmul %210, %212, %cst_52 {dimension_numbers = #tpu.dot_dimension_numbers<[1], [0], [0], [1], [0, 0, 1, 1], [], []>} : vector<16x32xbf16>, vector<32x128xbf16>, vector<16x128xf32> -> vector<16x128xf32>
    %c0_53 = arith.constant 0 : index
    %c0_54 = arith.constant 0 : index
    %214 = vector.load %arg14[%c0_53, %c0_54] : memref<18x128xbf16, #tpu.memory_space<vmem>>, vector<18x128xbf16>
    %cst_55 = arith.constant dense<0.000000e+00> : vector<16x128xf32>
    %215 = tpu.matmul %211, %214, %cst_55 {dimension_numbers = #tpu.dot_dimension_numbers<[1], [0], [0], [1], [0, 0, 1, 1], [], []>} : vector<16x18xbf16>, vector<18x128xbf16>, vector<16x128xf32> -> vector<16x128xf32>
    %216 = arith.addf %213, %215 : vector<16x128xf32>
    %c0_56 = arith.constant 0 : index
    %c0_57 = arith.constant 0 : index
    %217 = vector.load %arg15[%c0_56, %c0_57] : memref<1x128xf32, #tpu.memory_space<vmem>>, vector<1x128xf32>
    %218 = vector.broadcast %217 : vector<1x128xf32> to vector<16x128xf32>
    %219 = arith.addf %216, %218 : vector<16x128xf32>
    %cst_58 = arith.constant 0.000000e+00 : f32
    %220 = vector.broadcast %cst_58 : f32 to vector<16x128xf32>
    %221 = arith.maximumf %219, %220 : vector<16x128xf32>
    %222 = arith.truncf %221 : vector<16x128xf32> to vector<16x128xbf16>
    %c0_59 = arith.constant 0 : index
    %c0_60 = arith.constant 0 : index
    %223 = vector.load %arg16[%c0_59, %c0_60] : memref<128x128xbf16, #tpu.memory_space<vmem>>, vector<128x128xbf16>
    %cst_61 = arith.constant dense<0.000000e+00> : vector<16x128xf32>
    %224 = tpu.matmul %222, %223, %cst_61 {dimension_numbers = #tpu.dot_dimension_numbers<[1], [0], [0], [1], [0, 0, 1, 1], [], []>} : vector<16x128xbf16>, vector<128x128xbf16>, vector<16x128xf32> -> vector<16x128xf32>
    %c0_62 = arith.constant 0 : index
    %c0_63 = arith.constant 0 : index
    %225 = vector.load %arg17[%c0_62, %c0_63] : memref<1x128xf32, #tpu.memory_space<vmem>>, vector<1x128xf32>
    %226 = vector.broadcast %225 : vector<1x128xf32> to vector<16x128xf32>
    %227 = arith.addf %224, %226 : vector<16x128xf32>
    %cst_64 = arith.constant 0.000000e+00 : f32
    %228 = vector.broadcast %cst_64 : f32 to vector<16x128xf32>
    %229 = arith.maximumf %227, %228 : vector<16x128xf32>
    %c0_65 = arith.constant 0 : index
    %c0_66 = arith.constant 0 : index
    %230 = vector.load %arg18[%c0_65, %c0_66] : memref<16x128xf32, #tpu.memory_space<vmem>>, vector<16x128xf32>
    tpu.vector_store %arg18[%c0_65, %c0_66], %229 {strides = array<i32>} : memref<16x128xf32, #tpu.memory_space<vmem>>, vector<16x128xf32>,
    return
  }
  func.func @transform_0(%arg0: i32) -> (i32, i32, i32, i32, i32) {
    %c0_i32 = arith.constant 0 : i32
    %c0_i32_0 = arith.constant 0 : i32
    %c0_i32_1 = arith.constant 0 : i32
    %c0_i32_2 = arith.constant 0 : i32
    %c0_i32_3 = arith.constant 0 : i32
    return %arg0, %c0_i32, %c0_i32_0, %c0_i32_1, %c0_i32_2 : i32, i32, i32, i32, i32
  }
  func.func @transform_1(%arg0: i32) -> (i32, i32) {
    %c0_i32 = arith.constant 0 : i32
    %c0_i32_0 = arith.constant 0 : i32
    return %arg0, %c0_i32 : i32, i32
  }
  func.func @transform_2(%arg0: i32) -> (i32, i32) {
    %c0_i32 = arith.constant 0 : i32
    %c0_i32_0 = arith.constant 0 : i32
    %c0_i32_1 = arith.constant 0 : i32
    return %c0_i32, %c0_i32_0 : i32, i32
  }
  func.func @transform_3(%arg0: i32) -> (i32, i32) {
    %c0_i32 = arith.constant 0 : i32
    %c0_i32_0 = arith.constant 0 : i32
    %c0_i32_1 = arith.constant 0 : i32
    return %c0_i32, %c0_i32_0 : i32, i32
  }
  func.func @transform_4(%arg0: i32) -> (i32, i32) {
    %c0_i32 = arith.constant 0 : i32
    %c0_i32_0 = arith.constant 0 : i32
    %c0_i32_1 = arith.constant 0 : i32
    return %c0_i32, %c0_i32_0 : i32, i32
  }
  func.func @transform_5(%arg0: i32) -> (i32, i32) {
    %c0_i32 = arith.constant 0 : i32
    %c0_i32_0 = arith.constant 0 : i32
    %c0_i32_1 = arith.constant 0 : i32
    return %c0_i32, %c0_i32_0 : i32, i32
  }
  func.func @transform_6(%arg0: i32) -> (i32, i32) {
    %c0_i32 = arith.constant 0 : i32
    %c0_i32_0 = arith.constant 0 : i32
    %c0_i32_1 = arith.constant 0 : i32
    return %c0_i32, %c0_i32_0 : i32, i32
  }
  func.func @transform_7(%arg0: i32) -> (i32, i32) {
    %c0_i32 = arith.constant 0 : i32
    %c0_i32_0 = arith.constant 0 : i32
    %c0_i32_1 = arith.constant 0 : i32
    return %c0_i32, %c0_i32_0 : i32, i32
  }
  func.func @transform_8(%arg0: i32) -> (i32, i32) {
    %c0_i32 = arith.constant 0 : i32
    %c0_i32_0 = arith.constant 0 : i32
    %c0_i32_1 = arith.constant 0 : i32
    return %c0_i32, %c0_i32_0 : i32, i32
  }
  func.func @transform_9(%arg0: i32) -> (i32, i32) {
    %c0_i32 = arith.constant 0 : i32
    %c0_i32_0 = arith.constant 0 : i32
    %c0_i32_1 = arith.constant 0 : i32
    return %c0_i32, %c0_i32_0 : i32, i32
  }
  func.func @transform_10(%arg0: i32) -> (i32, i32) {
    %c0_i32 = arith.constant 0 : i32
    %c0_i32_0 = arith.constant 0 : i32
    %c0_i32_1 = arith.constant 0 : i32
    return %c0_i32, %c0_i32_0 : i32, i32
  }
  func.func @transform_11(%arg0: i32) -> (i32, i32) {
    %c0_i32 = arith.constant 0 : i32
    %c0_i32_0 = arith.constant 0 : i32
    %c0_i32_1 = arith.constant 0 : i32
    return %c0_i32, %c0_i32_0 : i32, i32
  }
  func.func @transform_12(%arg0: i32) -> (i32, i32) {
    %c0_i32 = arith.constant 0 : i32
    %c0_i32_0 = arith.constant 0 : i32
    %c0_i32_1 = arith.constant 0 : i32
    return %c0_i32, %c0_i32_0 : i32, i32
  }
  func.func @transform_13(%arg0: i32) -> (i32, i32) {
    %c0_i32 = arith.constant 0 : i32
    %c0_i32_0 = arith.constant 0 : i32
    %c0_i32_1 = arith.constant 0 : i32
    return %c0_i32, %c0_i32_0 : i32, i32
  }
  func.func @transform_14(%arg0: i32) -> (i32, i32) {
    %c0_i32 = arith.constant 0 : i32
    %c0_i32_0 = arith.constant 0 : i32
    %c0_i32_1 = arith.constant 0 : i32
    return %c0_i32, %c0_i32_0 : i32, i32
  }
  func.func @transform_15(%arg0: i32) -> (i32, i32) {
    %c0_i32 = arith.constant 0 : i32
    %c0_i32_0 = arith.constant 0 : i32
    %c0_i32_1 = arith.constant 0 : i32
    return %c0_i32, %c0_i32_0 : i32, i32
  }
  func.func @transform_16(%arg0: i32) -> (i32, i32) {
    %c0_i32 = arith.constant 0 : i32
    %c0_i32_0 = arith.constant 0 : i32
    %c0_i32_1 = arith.constant 0 : i32
    return %c0_i32, %c0_i32_0 : i32, i32
  }
  func.func @transform_17(%arg0: i32) -> (i32, i32) {
    %c0_i32 = arith.constant 0 : i32
    %c0_i32_0 = arith.constant 0 : i32
    return %arg0, %c0_i32 : i32, i32
  }
}

</mosaic_0001>

<llo_original>
// kernel: _lambda_.1
$region0: #{_lambda_.1}
  #allocation0 [shape = 'u32[]', space=smem, size = 0x4, offset = 0x4, fixed_abs, tag = 'smem constant byte address 0x4 - core index']
  #allocation1 [shape = 'u32[144,128]{1,0:T(1,128)}', space=vmem, size = 0x12000, scoped, tag = 'internal scratch']
  %s0 = inlined_call_operand.vmem [shape: bf16[1,18,18,16,10], index: 0, kind: input, shape index: {}]
  %s1 = inlined_call_operand.vmem [shape: bf16[16,18], index: 1, kind: input, shape index: {}]
  %s2 = inlined_call_operand.vmem [shape: bf16[90,32], index: 2, kind: input, shape index: {}]
  %s3 = inlined_call_operand.vmem [shape: f32[1,32], index: 3, kind: input, shape index: {}]
  %s4 = inlined_call_operand.vmem [shape: bf16[288,32], index: 4, kind: input, shape index: {}]
  %s5 = inlined_call_operand.vmem [shape: f32[1,32], index: 5, kind: input, shape index: {}]
  %s6 = inlined_call_operand.vmem [shape: bf16[288,32], index: 6, kind: input, shape index: {}]
  %s7 = inlined_call_operand.vmem [shape: f32[1,32], index: 7, kind: input, shape index: {}]
  %s8 = inlined_call_operand.vmem [shape: bf16[288,32], index: 8, kind: input, shape index: {}]
  %s9 = inlined_call_operand.vmem [shape: f32[1,32], index: 9, kind: input, shape index: {}]
  %s10 = inlined_call_operand.vmem [shape: bf16[288,32], index: 10, kind: input, shape index: {}]
  %s11 = inlined_call_operand.vmem [shape: f32[1,32], index: 11, kind: input, shape index: {}]
  %s12 = inlined_call_operand.vmem [shape: bf16[32,128], index: 12, kind: input, shape index: {}]
  %s13 = inlined_call_operand.vmem [shape: bf16[18,128], index: 13, kind: input, shape index: {}]
  %s14 = inlined_call_operand.vmem [shape: f32[1,128], index: 14, kind: input, shape index: {}]
  %s15 = inlined_call_operand.vmem [shape: bf16[128,128], index: 15, kind: input, shape index: {}]
  %s16 = inlined_call_operand.vmem [shape: f32[1,128], index: 16, kind: input, shape index: {}]
  %s17 = inlined_call_operand.vmem [shape: f32[16,128], index: 17, kind: output, shape index: {}]
  %s18 = sld [smem:[#allocation0]]
  $region78: #{_lambda_.1} parent=0
    _
  %s20 = ssub.s32 1, %s18
  %s21 = scalar_select 0, %s20, %s18
  // Predicated region
  $region2: #{_lambda_.1} parent=0 // pred_check
    _
  $region3: #{_lambda_.1} parent=0 // pred_check_branch
    %23 = sbr.rel (0) target = $region5
  $region4: #{_lambda_.1} parent=0 // pred_region
    _
  $region5: #{_lambda_.1} parent=0 // pred_fallthru
    _
  // Predicated region
  $region6: #{_lambda_.1} parent=0 // pred_check
    _
  $region7: #{_lambda_.1} parent=0 // pred_check_branch
    %25 = sbr.rel (0) target = $region9
  $region8: #{_lambda_.1} parent=0 // pred_region
    _
  $region9: #{_lambda_.1} parent=0 // pred_fallthru
    _
  // Predicated region
  $region10: #{_lambda_.1} parent=0 // pred_check
    _
  $region11: #{_lambda_.1} parent=0 // pred_check_branch
    %27 = sbr.rel (0) target = $region13
  $region12: #{_lambda_.1} parent=0 // pred_region
    _
  $region13: #{_lambda_.1} parent=0 // pred_fallthru
    _
  // Predicated region
  $region14: #{_lambda_.1} parent=0 // pred_check
    _
  $region15: #{_lambda_.1} parent=0 // pred_check_branch
    %29 = sbr.rel (0) target = $region17
  $region16: #{_lambda_.1} parent=0 // pred_region
    _
  $region17: #{_lambda_.1} parent=0 // pred_fallthru
    _
  // Predicated region
  $region18: #{_lambda_.1} parent=0 // pred_check
    _
  $region19: #{_lambda_.1} parent=0 // pred_check_branch
    %31 = sbr.rel (0) target = $region21
  $region20: #{_lambda_.1} parent=0 // pred_region
    _
  $region21: #{_lambda_.1} parent=0 // pred_fallthru
    _
  // Predicated region
  $region22: #{_lambda_.1} parent=0 // pred_check
    _
  $region23: #{_lambda_.1} parent=0 // pred_check_branch
    %33 = sbr.rel (0) target = $region25
  $region24: #{_lambda_.1} parent=0 // pred_region
    _
  $region25: #{_lambda_.1} parent=0 // pred_fallthru
    _
  // Predicated region
  $region26: #{_lambda_.1} parent=0 // pred_check
    _
  $region27: #{_lambda_.1} parent=0 // pred_check_branch
    %35 = sbr.rel (0) target = $region29
  $region28: #{_lambda_.1} parent=0 // pred_region
    _
  $region29: #{_lambda_.1} parent=0 // pred_fallthru
    _
  // Predicated region
  $region30: #{_lambda_.1} parent=0 // pred_check
    _
  $region31: #{_lambda_.1} parent=0 // pred_check_branch
    %37 = sbr.rel (0) target = $region33
  $region32: #{_lambda_.1} parent=0 // pred_region
    _
  $region33: #{_lambda_.1} parent=0 // pred_fallthru
    _
  // Predicated region
  $region34: #{_lambda_.1} parent=0 // pred_check
    _
  $region35: #{_lambda_.1} parent=0 // pred_check_branch
    %39 = sbr.rel (0) target = $region37
  $region36: #{_lambda_.1} parent=0 // pred_region
    _
  $region37: #{_lambda_.1} parent=0 // pred_fallthru
    _
  // Predicated region
  $region38: #{_lambda_.1} parent=0 // pred_check
    _
  $region39: #{_lambda_.1} parent=0 // pred_check_branch
    %41 = sbr.rel (0) target = $region41
  $region40: #{_lambda_.1} parent=0 // pred_region
    _
  $region41: #{_lambda_.1} parent=0 // pred_fallthru
    _
  // Predicated region
  $region42: #{_lambda_.1} parent=0 // pred_check
    _
  $region43: #{_lambda_.1} parent=0 // pred_check_branch
    %43 = sbr.rel (0) target = $region45
  $region44: #{_lambda_.1} parent=0 // pred_region
    _
  $region45: #{_lambda_.1} parent=0 // pred_fallthru
    _
  // Predicated region
  $region46: #{_lambda_.1} parent=0 // pred_check
    _
  $region47: #{_lambda_.1} parent=0 // pred_check_branch
    %45 = sbr.rel (0) target = $region49
  $region48: #{_lambda_.1} parent=0 // pred_region
    _
  $region49: #{_lambda_.1} parent=0 // pred_fallthru
    _
  // Predicated region
  $region50: #{_lambda_.1} parent=0 // pred_check
    _
  $region51: #{_lambda_.1} parent=0 // pred_check_branch
    %47 = sbr.rel (0) target = $region53
  $region52: #{_lambda_.1} parent=0 // pred_region
    _
  $region53: #{_lambda_.1} parent=0 // pred_fallthru
    _
  // Predicated region
  $region54: #{_lambda_.1} parent=0 // pred_check
    _
  $region55: #{_lambda_.1} parent=0 // pred_check_branch
    %49 = sbr.rel (0) target = $region57
  $region56: #{_lambda_.1} parent=0 // pred_region
    _
  $region57: #{_lambda_.1} parent=0 // pred_fallthru
    _
  // Predicated region
  $region58: #{_lambda_.1} parent=0 // pred_check
    _
  $region59: #{_lambda_.1} parent=0 // pred_check_branch
    %51 = sbr.rel (0) target = $region61
  $region60: #{_lambda_.1} parent=0 // pred_region
    _
  $region61: #{_lambda_.1} parent=0 // pred_fallthru
    _
  // Predicated region
  $region62: #{_lambda_.1} parent=0 // pred_check
    _
  $region63: #{_lambda_.1} parent=0 // pred_check_branch
    %53 = sbr.rel (0) target = $region65
  $region64: #{_lambda_.1} parent=0 // pred_region
    _
  $region65: #{_lambda_.1} parent=0 // pred_fallthru
    _
  // Predicated region
  $region66: #{_lambda_.1} parent=0 // pred_check
    _
  $region67: #{_lambda_.1} parent=0 // pred_check_branch
    %55 = sbr.rel (0) target = $region69
  $region68: #{_lambda_.1} parent=0 // pred_region
    _
  $region69: #{_lambda_.1} parent=0 // pred_fallthru
    _
  %v57 = vld [vmem:[%s0] sm:$0xf]
  %v58 = vld [vmem:[%s0 + $0x4] sm:$0xf]
  %v59 = vld [vmem:[%s0 + $0x8] sm:$0xf]
  %v60 = vld [vmem:[%s0 + $0xc] sm:$0xf]
  %v61 = vld [vmem:[%s0 + $0x10] sm:$0xf]
  %v62 = vld [vmem:[%s0 + $0x14] sm:$0xf]
  %v63 = vld [vmem:[%s0 + $0x18] sm:$0xf]
  %v64 = vld [vmem:[%s0 + $0x1c] sm:$0xf]
  %v65 = vld [vmem:[%s0 + $0x20] sm:$0xf]
  %v66 = vld [vmem:[%s0 + $0x24] sm:$0xf]
  %v67 = vld [vmem:[%s0 + $0x28] sm:$0xf]
  %v68 = vld [vmem:[%s0 + $0x2c] sm:$0xf]
  %v69 = vld [vmem:[%s0 + $0x30] sm:$0xf]
  %v70 = vld [vmem:[%s0 + $0x34] sm:$0xf]
  %v71 = vld [vmem:[%s0 + $0x38] sm:$0xf]
  %v72 = vld [vmem:[%s0 + $0x3c] sm:$0xf]
  %v73 = vld [vmem:[%s0 + $0x40] sm:$0xf]
  %v74 = vld [vmem:[%s0 + $0x44] sm:$0xf]
  %v75 = vld [vmem:[%s0 + $0x48] sm:$0xf]
  %v76 = vld [vmem:[%s0 + $0x4c] sm:$0xf]
  %v77 = vld [vmem:[%s0 + $0x50] sm:$0xf]
  %v78 = vld [vmem:[%s0 + $0x54] sm:$0xf]
  %v79 = vld [vmem:[%s0 + $0x58] sm:$0xf]
  %v80 = vld [vmem:[%s0 + $0x5c] sm:$0xf]
  %v81 = vld [vmem:[%s0 + $0x60] sm:$0xf]
  %v82 = vld [vmem:[%s0 + $0x64] sm:$0xf]
  %v83 = vld [vmem:[%s0 + $0x68] sm:$0xf]
  %v84 = vld [vmem:[%s0 + $0x6c] sm:$0xf]
  %v85 = vld [vmem:[%s0 + $0x70] sm:$0xf]
  %v86 = vld [vmem:[%s0 + $0x74] sm:$0xf]
  %v87 = vld [vmem:[%s0 + $0x78] sm:$0xf]
  %v88 = vld [vmem:[%s0 + $0x7c] sm:$0xf]
  %v89 = vld [vmem:[%s0 + $0x80] sm:$0xf]
  %v90 = vld [vmem:[%s0 + $0x84] sm:$0xf]
  %v91 = vld [vmem:[%s0 + $0x90] sm:$0xf]
  %v92 = vld [vmem:[%s0 + $0x94] sm:$0xf]
  %v93 = vld [vmem:[%s0 + $0x98] sm:$0xf]
  %v94 = vld [vmem:[%s0 + $0x9c] sm:$0xf]
  %v95 = vld [vmem:[%s0 + $0xa0] sm:$0xf]
  %v96 = vld [vmem:[%s0 + $0xa4] sm:$0xf]
  %v97 = vld [vmem:[%s0 + $0xa8] sm:$0xf]
  %v98 = vld [vmem:[%s0 + $0xac] sm:$0xf]
  %v99 = vld [vmem:[%s0 + $0xb0] sm:$0xf]
  %v100 = vld [vmem:[%s0 + $0xb4] sm:$0xf]
  %v101 = vld [vmem:[%s0 + $0xb8] sm:$0xf]
  %v102 = vld [vmem:[%s0 + $0xbc] sm:$0xf]
  %v103 = vld [vmem:[%s0 + $0xc0] sm:$0xf]
  %v104 = vld [vmem:[%s0 + $0xc4] sm:$0xf]
  %v105 = vld [vmem:[%s0 + $0xc8] sm:$0xf]
  %v106 = vld [vmem:[%s0 + $0xcc] sm:$0xf]
  %v107 = vld [vmem:[%s0 + $0xd0] sm:$0xf]
  %v108 = vld [vmem:[%s0 + $0xd4] sm:$0xf]
  %v109 = vld [vmem:[%s0 + $0xd8] sm:$0xf]
  %v110 = vld [vmem:[%s0 + $0xdc] sm:$0xf]
  %v111 = vld [vmem:[%s0 + $0xe0] sm:$0xf]
  %v112 = vld [vmem:[%s0 + $0xe4] sm:$0xf]
  %v113 = vld [vmem:[%s0 + $0xe8] sm:$0xf]
  %v114 = vld [vmem:[%s0 + $0xec] sm:$0xf]
  %v115 = vld [vmem:[%s0 + $0xf0] sm:$0xf]
  %v116 = vld [vmem:[%s0 + $0xf4] sm:$0xf]
  %v117 = vld [vmem:[%s0 + $0xf8] sm:$0xf]
  %v118 = vld [vmem:[%s0 + $0xfc] sm:$0xf]
  %v119 = vld [vmem:[%s0 + $0x100] sm:$0xf]
  %v120 = vld [vmem:[%s0 + $0x104] sm:$0xf]
  %v121 = vld [vmem:[%s0 + $0x108] sm:$0xf]
  %v122 = vld [vmem:[%s0 + $0x10c] sm:$0xf]
  %v123 = vld [vmem:[%s0 + $0x110] sm:$0xf]
  %v124 = vld [vmem:[%s0 + $0x114] sm:$0xf]
  %v125 = vld [vmem:[%s0 + $0x120] sm:$0xf]
  %v126 = vld [vmem:[%s0 + $0x124] sm:$0xf]
  %v127 = vld [vmem:[%s0 + $0x128] sm:$0xf]
  %v128 = vld [vmem:[%s0 + $0x12c] sm:$0xf]
  %v129 = vld [vmem:[%s0 + $0x130] sm:$0xf]
  %v130 = vld [vmem:[%s0 + $0x134] sm:$0xf]
  %v131 = vld [vmem:[%s0 + $0x138] sm:$0xf]
  %v132 = vld [vmem:[%s0 + $0x13c] sm:$0xf]
  %v133 = vld [vmem:[%s0 + $0x140] sm:$0xf]
  %v134 = vld [vmem:[%s0 + $0x144] sm:$0xf]
  %v135 = vld [vmem:[%s0 + $0x148] sm:$0xf]
  %v136 = vld [vmem:[%s0 + $0x14c] sm:$0xf]
  %v137 = vld [vmem:[%s0 + $0x150] sm:$0xf]
  %v138 = vld [vmem:[%s0 + $0x154] sm:$0xf]
  %v139 = vld [vmem:[%s0 + $0x158] sm:$0xf]
  %v140 = vld [vmem:[%s0 + $0x15c] sm:$0xf]
  %v141 = vld [vmem:[%s0 + $0x160] sm:$0xf]
  %v142 = vld [vmem:[%s0 + $0x164] sm:$0xf]
  %v143 = vld [vmem:[%s0 + $0x168] sm:$0xf]
  %v144 = vld [vmem:[%s0 + $0x16c] sm:$0xf]
  %v145 = vld [vmem:[%s0 + $0x170] sm:$0xf]
  %v146 = vld [vmem:[%s0 + $0x174] sm:$0xf]
  %v147 = vld [vmem:[%s0 + $0x178] sm:$0xf]
  %v148 = vld [vmem:[%s0 + $0x17c] sm:$0xf]
  %v149 = vld [vmem:[%s0 + $0x180] sm:$0xf]
  %v150 = vld [vmem:[%s0 + $0x184] sm:$0xf]
  %v151 = vld [vmem:[%s0 + $0x188] sm:$0xf]
  %v152 = vld [vmem:[%s0 + $0x18c] sm:$0xf]
  %v153 = vld [vmem:[%s0 + $0x190] sm:$0xf]
  %v154 = vld [vmem:[%s0 + $0x194] sm:$0xf]
  %v155 = vld [vmem:[%s0 + $0x198] sm:$0xf]
  %v156 = vld [vmem:[%s0 + $0x19c] sm:$0xf]
  %v157 = vld [vmem:[%s0 + $0x1a0] sm:$0xf]
  %v158 = vld [vmem:[%s0 + $0x1a4] sm:$0xf]
  %v159 = vld [vmem:[%s0 + $0x1b0] sm:$0xf]
  %v160 = vld [vmem:[%s0 + $0x1b4] sm:$0xf]
  %v161 = vld [vmem:[%s0 + $0x1b8] sm:$0xf]
  %v162 = vld [vmem:[%s0 + $0x1bc] sm:$0xf]
  %v163 = vld [vmem:[%s0 + $0x1c0] sm:$0xf]
  %v164 = vld [vmem:[%s0 + $0x1c4] sm:$0xf]
  %v165 = vld [vmem:[%s0 + $0x1c8] sm:$0xf]
  %v166 = vld [vmem:[%s0 + $0x1cc] sm:$0xf]
  %v167 = vld [vmem:[%s0 + $0x1d0] sm:$0xf]
  %v168 = vld [vmem:[%s0 + $0x1d4] sm:$0xf]
  %v169 = vld [vmem:[%s0 + $0x1d8] sm:$0xf]
  %v170 = vld [vmem:[%s0 + $0x1dc] sm:$0xf]
  %v171 = vld [vmem:[%s0 + $0x1e0] sm:$0xf]
  %v172 = vld [vmem:[%s0 + $0x1e4] sm:$0xf]
  %v173 = vld [vmem:[%s0 + $0x1e8] sm:$0xf]
  %v174 = vld [vmem:[%s0 + $0x1ec] sm:$0xf]
  %v175 = vld [vmem:[%s0 + $0x1f0] sm:$0xf]
  %v176 = vld [vmem:[%s0 + $0x1f4] sm:$0xf]
  %v177 = vld [vmem:[%s0 + $0x1f8] sm:$0xf]
  %v178 = vld [vmem:[%s0 + $0x1fc] sm:$0xf]
  %v179 = vld [vmem:[%s0 + $0x200] sm:$0xf]
  %v180 = vld [vmem:[%s0 + $0x204] sm:$0xf]
  %v181 = vld [vmem:[%s0 + $0x208] sm:$0xf]
  %v182 = vld [vmem:[%s0 + $0x20c] sm:$0xf]
  %v183 = vld [vmem:[%s0 + $0x210] sm:$0xf]
  %v184 = vld [vmem:[%s0 + $0x214] sm:$0xf]
  %v185 = vld [vmem:[%s0 + $0x218] sm:$0xf]
  %v186 = vld [vmem:[%s0 + $0x21c] sm:$0xf]
  %v187 = vld [vmem:[%s0 + $0x220] sm:$0xf]
  %v188 = vld [vmem:[%s0 + $0x224] sm:$0xf]
  %v189 = vld [vmem:[%s0 + $0x228] sm:$0xf]
  %v190 = vld [vmem:[%s0 + $0x22c] sm:$0xf]
  %v191 = vld [vmem:[%s0 + $0x230] sm:$0xf]
  %v192 = vld [vmem:[%s0 + $0x234] sm:$0xf]
  %v193 = vld [vmem:[%s0 + $0x240] sm:$0xf]
  %v194 = vld [vmem:[%s0 + $0x244] sm:$0xf]
  %v195 = vld [vmem:[%s0 + $0x248] sm:$0xf]
  %v196 = vld [vmem:[%s0 + $0x24c] sm:$0xf]
  %v197 = vld [vmem:[%s0 + $0x250] sm:$0xf]
  %v198 = vld [vmem:[%s0 + $0x254] sm:$0xf]
  %v199 = vld [vmem:[%s0 + $0x258] sm:$0xf]
  %v200 = vld [vmem:[%s0 + $0x25c] sm:$0xf]
  %v201 = vld [vmem:[%s0 + $0x260] sm:$0xf]
  %v202 = vld [vmem:[%s0 + $0x264] sm:$0xf]
  %v203 = vld [vmem:[%s0 + $0x268] sm:$0xf]
  %v204 = vld [vmem:[%s0 + $0x26c] sm:$0xf]
  %v205 = vld [vmem:[%s0 + $0x270] sm:$0xf]
  %v206 = vld [vmem:[%s0 + $0x274] sm:$0xf]
  %v207 = vld [vmem:[%s0 + $0x278] sm:$0xf]
  %v208 = vld [vmem:[%s0 + $0x27c] sm:$0xf]
  %v209 = vld [vmem:[%s0 + $0x280] sm:$0xf]
  %v210 = vld [vmem:[%s0 + $0x284] sm:$0xf]
  %v211 = vld [vmem:[%s0 + $0x288] sm:$0xf]
  %v212 = vld [vmem:[%s0 + $0x28c] sm:$0xf]
  %v213 = vld [vmem:[%s0 + $0x290] sm:$0xf]
  %v214 = vld [vmem:[%s0 + $0x294] sm:$0xf]
  %v215 = vld [vmem:[%s0 + $0x298] sm:$0xf]
  %v216 = vld [vmem:[%s0 + $0x29c] sm:$0xf]
  %v217 = vld [vmem:[%s0 + $0x2a0] sm:$0xf]
  %v218 = vld [vmem:[%s0 + $0x2a4] sm:$0xf]
  %v219 = vld [vmem:[%s0 + $0x2a8] sm:$0xf]
  %v220 = vld [vmem:[%s0 + $0x2ac] sm:$0xf]
  %v221 = vld [vmem:[%s0 + $0x2b0] sm:$0xf]
  %v222 = vld [vmem:[%s0 + $0x2b4] sm:$0xf]
  %v223 = vld [vmem:[%s0 + $0x2b8] sm:$0xf]
  %v224 = vld [vmem:[%s0 + $0x2bc] sm:$0xf]
  %v225 = vld [vmem:[%s0 + $0x2c0] sm:$0xf]
  %v226 = vld [vmem:[%s0 + $0x2c4] sm:$0xf]
  %v227 = vld [vmem:[%s0 + $0x2d0] sm:$0xf]
  %v228 = vld [vmem:[%s0 + $0x2d4] sm:$0xf]
  %v229 = vld [vmem:[%s0 + $0x2d8] sm:$0xf]
  %v230 = vld [vmem:[%s0 + $0x2dc] sm:$0xf]
  %v231 = vld [vmem:[%s0 + $0x2e0] sm:$0xf]
  %v232 = vld [vmem:[%s0 + $0x2e4] sm:$0xf]
  %v233 = vld [vmem:[%s0 + $0x2e8] sm:$0xf]
  %v234 = vld [vmem:[%s0 + $0x2ec] sm:$0xf]
  %v235 = vld [vmem:[%s0 + $0x2f0] sm:$0xf]
  %v236 = vld [vmem:[%s0 + $0x2f4] sm:$0xf]
  %v237 = vld [vmem:[%s0 + $0x2f8] sm:$0xf]
  %v238 = vld [vmem:[%s0 + $0x2fc] sm:$0xf]
  %v239 = vld [vmem:[%s0 + $0x300] sm:$0xf]
  %v240 = vld [vmem:[%s0 + $0x304] sm:$0xf]
  %v241 = vld [vmem:[%s0 + $0x308] sm:$0xf]
  %v242 = vld [vmem:[%s0 + $0x30c] sm:$0xf]
  %v243 = vld [vmem:[%s0 + $0x310] sm:$0xf]
  %v244 = vld [vmem:[%s0 + $0x314] sm:$0xf]
  %v245 = vld [vmem:[%s0 + $0x318] sm:$0xf]
  %v246 = vld [vmem:[%s0 + $0x31c] sm:$0xf]
  %v247 = vld [vmem:[%s0 + $0x320] sm:$0xf]
  %v248 = vld [vmem:[%s0 + $0x324] sm:$0xf]
  %v249 = vld [vmem:[%s0 + $0x328] sm:$0xf]
  %v250 = vld [vmem:[%s0 + $0x32c] sm:$0xf]
  %v251 = vld [vmem:[%s0 + $0x330] sm:$0xf]
  %v252 = vld [vmem:[%s0 + $0x334] sm:$0xf]
  %v253 = vld [vmem:[%s0 + $0x338] sm:$0xf]
  %v254 = vld [vmem:[%s0 + $0x33c] sm:$0xf]
  %v255 = vld [vmem:[%s0 + $0x340] sm:$0xf]
  %v256 = vld [vmem:[%s0 + $0x344] sm:$0xf]
  %v257 = vld [vmem:[%s0 + $0x348] sm:$0xf]
  %v258 = vld [vmem:[%s0 + $0x34c] sm:$0xf]
  %v259 = vld [vmem:[%s0 + $0x350] sm:$0xf]
  %v260 = vld [vmem:[%s0 + $0x354] sm:$0xf]
  %v261 = vld [vmem:[%s0 + $0x360] sm:$0xf]
  %v262 = vld [vmem:[%s0 + $0x364] sm:$0xf]
  %v263 = vld [vmem:[%s0 + $0x368] sm:$0xf]
  %v264 = vld [vmem:[%s0 + $0x36c] sm:$0xf]
  %v265 = vld [vmem:[%s0 + $0x370] sm:$0xf]
  %v266 = vld [vmem:[%s0 + $0x374] sm:$0xf]
  %v267 = vld [vmem:[%s0 + $0x378] sm:$0xf]
  %v268 = vld [vmem:[%s0 + $0x37c] sm:$0xf]
  %v269 = vld [vmem:[%s0 + $0x380] sm:$0xf]
  %v270 = vld [vmem:[%s0 + $0x384] sm:$0xf]
  %v271 = vld [vmem:[%s0 + $0x388] sm:$0xf]
  %v272 = vld [vmem:[%s0 + $0x38c] sm:$0xf]
  %v273 = vld [vmem:[%s0 + $0x390] sm:$0xf]
  %v274 = vld [vmem:[%s0 + $0x394] sm:$0xf]
  %v275 = vld [vmem:[%s0 + $0x398] sm:$0xf]
  %v276 = vld [vmem:[%s0 + $0x39c] sm:$0xf]
  %v277 = vld [vmem:[%s0 + $0x3a0] sm:$0xf]
  %v278 = vld [vmem:[%s0 + $0x3a4] sm:$0xf]
  %v279 = vld [vmem:[%s0 + $0x3a8] sm:$0xf]
  %v280 = vld [vmem:[%s0 + $0x3ac] sm:$0xf]
  %v281 = vld [vmem:[%s0 + $0x3b0] sm:$0xf]
  %v282 = vld [vmem:[%s0 + $0x3b4] sm:$0xf]
  %v283 = vld [vmem:[%s0 + $0x3b8] sm:$0xf]
  %v284 = vld [vmem:[%s0 + $0x3bc] sm:$0xf]
  %v285 = vld [vmem:[%s0 + $0x3c0] sm:$0xf]
  %v286 = vld [vmem:[%s0 + $0x3c4] sm:$0xf]
  %v287 = vld [vmem:[%s0 + $0x3c8] sm:$0xf]
  %v288 = vld [vmem:[%s0 + $0x3cc] sm:$0xf]
  %v289 = vld [vmem:[%s0 + $0x3d0] sm:$0xf]
  %v290 = vld [vmem:[%s0 + $0x3d4] sm:$0xf]
  %v291 = vld [vmem:[%s0 + $0x3d8] sm:$0xf]
  %v292 = vld [vmem:[%s0 + $0x3dc] sm:$0xf]
  %v293 = vld [vmem:[%s0 + $0x3e0] sm:$0xf]
  %v294 = vld [vmem:[%s0 + $0x3e4] sm:$0xf]
  %v295 = vld [vmem:[%s0 + $0x3f0] sm:$0xf]
  %v296 = vld [vmem:[%s0 + $0x3f4] sm:$0xf]
  %v297 = vld [vmem:[%s0 + $0x3f8] sm:$0xf]
  %v298 = vld [vmem:[%s0 + $0x3fc] sm:$0xf]
  %v299 = vld [vmem:[%s0 + $0x400] sm:$0xf]
  %v300 = vld [vmem:[%s0 + $0x404] sm:$0xf]
  %v301 = vld [vmem:[%s0 + $0x408] sm:$0xf]
  %v302 = vld [vmem:[%s0 + $0x40c] sm:$0xf]
  %v303 = vld [vmem:[%s0 + $0x410] sm:$0xf]
  %v304 = vld [vmem:[%s0 + $0x414] sm:$0xf]
  %v305 = vld [vmem:[%s0 + $0x418] sm:$0xf]
  %v306 = vld [vmem:[%s0 + $0x41c] sm:$0xf]
  %v307 = vld [vmem:[%s0 + $0x420] sm:$0xf]
  %v308 = vld [vmem:[%s0 + $0x424] sm:$0xf]
  %v309 = vld [vmem:[%s0 + $0x428] sm:$0xf]
  %v310 = vld [vmem:[%s0 + $0x42c] sm:$0xf]
  %v311 = vld [vmem:[%s0 + $0x430] sm:$0xf]
  %v312 = vld [vmem:[%s0 + $0x434] sm:$0xf]
  %v313 = vld [vmem:[%s0 + $0x438] sm:$0xf]
  %v314 = vld [vmem:[%s0 + $0x43c] sm:$0xf]
  %v315 = vld [vmem:[%s0 + $0x440] sm:$0xf]
  %v316 = vld [vmem:[%s0 + $0x444] sm:$0xf]
  %v317 = vld [vmem:[%s0 + $0x448] sm:$0xf]
  %v318 = vld [vmem:[%s0 + $0x44c] sm:$0xf]
  %v319 = vld [vmem:[%s0 + $0x450] sm:$0xf]
  %v320 = vld [vmem:[%s0 + $0x454] sm:$0xf]
  %v321 = vld [vmem:[%s0 + $0x458] sm:$0xf]
  %v322 = vld [vmem:[%s0 + $0x45c] sm:$0xf]
  %v323 = vld [vmem:[%s0 + $0x460] sm:$0xf]
  %v324 = vld [vmem:[%s0 + $0x464] sm:$0xf]
  %v325 = vld [vmem:[%s0 + $0x468] sm:$0xf]
  %v326 = vld [vmem:[%s0 + $0x46c] sm:$0xf]
  %v327 = vld [vmem:[%s0 + $0x470] sm:$0xf]
  %v328 = vld [vmem:[%s0 + $0x474] sm:$0xf]
  %v329 = vld [vmem:[%s0 + $0x480] sm:$0xf]
  %v330 = vld [vmem:[%s0 + $0x484] sm:$0xf]
  %v331 = vld [vmem:[%s0 + $0x488] sm:$0xf]
  %v332 = vld [vmem:[%s0 + $0x48c] sm:$0xf]
  %v333 = vld [vmem:[%s0 + $0x490] sm:$0xf]
  %v334 = vld [vmem:[%s0 + $0x494] sm:$0xf]
  %v335 = vld [vmem:[%s0 + $0x498] sm:$0xf]
  %v336 = vld [vmem:[%s0 + $0x49c] sm:$0xf]
  %v337 = vld [vmem:[%s0 + $0x4a0] sm:$0xf]
  %v338 = vld [vmem:[%s0 + $0x4a4] sm:$0xf]
  %v339 = vld [vmem:[%s0 + $0x4a8] sm:$0xf]
  %v340 = vld [vmem:[%s0 + $0x4ac] sm:$0xf]
  %v341 = vld [vmem:[%s0 + $0x4b0] sm:$0xf]
  %v342 = vld [vmem:[%s0 + $0x4b4] sm:$0xf]
  %v343 = vld [vmem:[%s0 + $0x4b8] sm:$0xf]
  %v344 = vld [vmem:[%s0 + $0x4bc] sm:$0xf]
  %v345 = vld [vmem:[%s0 + $0x4c0] sm:$0xf]
  %v346 = vld [vmem:[%s0 + $0x4c4] sm:$0xf]
  %v347 = vld [vmem:[%s0 + $0x4c8] sm:$0xf]
  %v348 = vld [vmem:[%s0 + $0x4cc] sm:$0xf]
  %v349 = vld [vmem:[%s0 + $0x4d0] sm:$0xf]
  %v350 = vld [vmem:[%s0 + $0x4d4] sm:$0xf]
  %v351 = vld [vmem:[%s0 + $0x4d8] sm:$0xf]
  %v352 = vld [vmem:[%s0 + $0x4dc] sm:$0xf]
  %v353 = vld [vmem:[%s0 + $0x4e0] sm:$0xf]
  %v354 = vld [vmem:[%s0 + $0x4e4] sm:$0xf]
  %v355 = vld [vmem:[%s0 + $0x4e8] sm:$0xf]
  %v356 = vld [vmem:[%s0 + $0x4ec] sm:$0xf]
  %v357 = vld [vmem:[%s0 + $0x4f0] sm:$0xf]
  %v358 = vld [vmem:[%s0 + $0x4f4] sm:$0xf]
  %v359 = vld [vmem:[%s0 + $0x4f8] sm:$0xf]
  %v360 = vld [vmem:[%s0 + $0x4fc] sm:$0xf]
  %v361 = vld [vmem:[%s0 + $0x500] sm:$0xf]
  %v362 = vld [vmem:[%s0 + $0x504] sm:$0xf]
  %v363 = vld [vmem:[%s0 + $0x510] sm:$0xf]
  %v364 = vld [vmem:[%s0 + $0x514] sm:$0xf]
  %v365 = vld [vmem:[%s0 + $0x518] sm:$0xf]
  %v366 = vld [vmem:[%s0 + $0x51c] sm:$0xf]
  %v367 = vld [vmem:[%s0 + $0x520] sm:$0xf]
  %v368 = vld [vmem:[%s0 + $0x524] sm:$0xf]
  %v369 = vld [vmem:[%s0 + $0x528] sm:$0xf]
  %v370 = vld [vmem:[%s0 + $0x52c] sm:$0xf]
  %v371 = vld [vmem:[%s0 + $0x530] sm:$0xf]
  %v372 = vld [vmem:[%s0 + $0x534] sm:$0xf]
  %v373 = vld [vmem:[%s0 + $0x538] sm:$0xf]
  %v374 = vld [vmem:[%s0 + $0x53c] sm:$0xf]
  %v375 = vld [vmem:[%s0 + $0x540] sm:$0xf]
  %v376 = vld [vmem:[%s0 + $0x544] sm:$0xf]
  %v377 = vld [vmem:[%s0 + $0x548] sm:$0xf]
  %v378 = vld [vmem:[%s0 + $0x54c] sm:$0xf]
  %v379 = vld [vmem:[%s0 + $0x550] sm:$0xf]
  %v380 = vld [vmem:[%s0 + $0x554] sm:$0xf]
  %v381 = vld [vmem:[%s0 + $0x558] sm:$0xf]
  %v382 = vld [vmem:[%s0 + $0x55c] sm:$0xf]
  %v383 = vld [vmem:[%s0 + $0x560] sm:$0xf]
  %v384 = vld [vmem:[%s0 + $0x564] sm:$0xf]
  %v385 = vld [vmem:[%s0 + $0x568] sm:$0xf]
  %v386 = vld [vmem:[%s0 + $0x56c] sm:$0xf]
  %v387 = vld [vmem:[%s0 + $0x570] sm:$0xf]
  %v388 = vld [vmem:[%s0 + $0x574] sm:$0xf]
  %v389 = vld [vmem:[%s0 + $0x578] sm:$0xf]
  %v390 = vld [vmem:[%s0 + $0x57c] sm:$0xf]
  %v391 = vld [vmem:[%s0 + $0x580] sm:$0xf]
  %v392 = vld [vmem:[%s0 + $0x584] sm:$0xf]
  %v393 = vld [vmem:[%s0 + $0x588] sm:$0xf]
  %v394 = vld [vmem:[%s0 + $0x58c] sm:$0xf]
  %v395 = vld [vmem:[%s0 + $0x590] sm:$0xf]
  %v396 = vld [vmem:[%s0 + $0x594] sm:$0xf]
  %v397 = vld [vmem:[%s0 + $0x5a0] sm:$0xf]
  %v398 = vld [vmem:[%s0 + $0x5a4] sm:$0xf]
  %v399 = vld [vmem:[%s0 + $0x5a8] sm:$0xf]
  %v400 = vld [vmem:[%s0 + $0x5ac] sm:$0xf]
  %v401 = vld [vmem:[%s0 + $0x5b0] sm:$0xf]
  %v402 = vld [vmem:[%s0 + $0x5b4] sm:$0xf]
  %v403 = vld [vmem:[%s0 + $0x5b8] sm:$0xf]
  %v404 = vld [vmem:[%s0 + $0x5bc] sm:$0xf]
  %v405 = vld [vmem:[%s0 + $0x5c0] sm:$0xf]
  %v406 = vld [vmem:[%s0 + $0x5c4] sm:$0xf]
  %v407 = vld [vmem:[%s0 + $0x5c8] sm:$0xf]
  %v408 = vld [vmem:[%s0 + $0x5cc] sm:$0xf]
  %v409 = vld [vmem:[%s0 + $0x5d0] sm:$0xf]
  %v410 = vld [vmem:[%s0 + $0x5d4] sm:$0xf]
  %v411 = vld [vmem:[%s0 + $0x5d8] sm:$0xf]
  %v412 = vld [vmem:[%s0 + $0x5dc] sm:$0xf]
  %v413 = vld [vmem:[%s0 + $0x5e0] sm:$0xf]
  %v414 = vld [vmem:[%s0 + $0x5e4] sm:$0xf]
  %v415 = vld [vmem:[%s0 + $0x5e8] sm:$0xf]
  %v416 = vld [vmem:[%s0 + $0x5ec] sm:$0xf]
  %v417 = vld [vmem:[%s0 + $0x5f0] sm:$0xf]
  %v418 = vld [vmem:[%s0 + $0x5f4] sm:$0xf]
  %v419 = vld [vmem:[%s0 + $0x5f8] sm:$0xf]
  %v420 = vld [vmem:[%s0 + $0x5fc] sm:$0xf]
  %v421 = vld [vmem:[%s0 + $0x600] sm:$0xf]
  %v422 = vld [vmem:[%s0 + $0x604] sm:$0xf]
  %v423 = vld [vmem:[%s0 + $0x608] sm:$0xf]
  %v424 = vld [vmem:[%s0 + $0x60c] sm:$0xf]
  %v425 = vld [vmem:[%s0 + $0x610] sm:$0xf]
  %v426 = vld [vmem:[%s0 + $0x614] sm:$0xf]
  %v427 = vld [vmem:[%s0 + $0x618] sm:$0xf]
  %v428 = vld [vmem:[%s0 + $0x61c] sm:$0xf]
  %v429 = vld [vmem:[%s0 + $0x620] sm:$0xf]
  %v430 = vld [vmem:[%s0 + $0x624] sm:$0xf]
  %v431 = vld [vmem:[%s0 + $0x630] sm:$0xf]
  %v432 = vld [vmem:[%s0 + $0x634] sm:$0xf]
  %v433 = vld [vmem:[%s0 + $0x638] sm:$0xf]
  %v434 = vld [vmem:[%s0 + $0x63c] sm:$0xf]
  %v435 = vld [vmem:[%s0 + $0x640] sm:$0xf]
  %v436 = vld [vmem:[%s0 + $0x644] sm:$0xf]
  %v437 = vld [vmem:[%s0 + $0x648] sm:$0xf]
  %v438 = vld [vmem:[%s0 + $0x64c] sm:$0xf]
  %v439 = vld [vmem:[%s0 + $0x650] sm:$0xf]
  %v440 = vld [vmem:[%s0 + $0x654] sm:$0xf]
  %v441 = vld [vmem:[%s0 + $0x658] sm:$0xf]
  %v442 = vld [vmem:[%s0 + $0x65c] sm:$0xf]
  %v443 = vld [vmem:[%s0 + $0x660] sm:$0xf]
  %v444 = vld [vmem:[%s0 + $0x664] sm:$0xf]
  %v445 = vld [vmem:[%s0 + $0x668] sm:$0xf]
  %v446 = vld [vmem:[%s0 + $0x66c] sm:$0xf]
  %v447 = vld [vmem:[%s0 + $0x670] sm:$0xf]
  %v448 = vld [vmem:[%s0 + $0x674] sm:$0xf]
  %v449 = vld [vmem:[%s0 + $0x678] sm:$0xf]
  %v450 = vld [vmem:[%s0 + $0x67c] sm:$0xf]
  %v451 = vld [vmem:[%s0 + $0x680] sm:$0xf]
  %v452 = vld [vmem:[%s0 + $0x684] sm:$0xf]
  %v453 = vld [vmem:[%s0 + $0x688] sm:$0xf]
  %v454 = vld [vmem:[%s0 + $0x68c] sm:$0xf]
  %v455 = vld [vmem:[%s0 + $0x690] sm:$0xf]
  %v456 = vld [vmem:[%s0 + $0x694] sm:$0xf]
  %v457 = vld [vmem:[%s0 + $0x698] sm:$0xf]
  %v458 = vld [vmem:[%s0 + $0x69c] sm:$0xf]
  %v459 = vld [vmem:[%s0 + $0x6a0] sm:$0xf]
  %v460 = vld [vmem:[%s0 + $0x6a4] sm:$0xf]
  %v461 = vld [vmem:[%s0 + $0x6a8] sm:$0xf]
  %v462 = vld [vmem:[%s0 + $0x6ac] sm:$0xf]
  %v463 = vld [vmem:[%s0 + $0x6b0] sm:$0xf]
  %v464 = vld [vmem:[%s0 + $0x6b4] sm:$0xf]
  %v465 = vld [vmem:[%s0 + $0x6c0] sm:$0xf]
  %v466 = vld [vmem:[%s0 + $0x6c4] sm:$0xf]
  %v467 = vld [vmem:[%s0 + $0x6c8] sm:$0xf]
  %v468 = vld [vmem:[%s0 + $0x6cc] sm:$0xf]
  %v469 = vld [vmem:[%s0 + $0x6d0] sm:$0xf]
  %v470 = vld [vmem:[%s0 + $0x6d4] sm:$0xf]
  %v471 = vld [vmem:[%s0 + $0x6d8] sm:$0xf]
  %v472 = vld [vmem:[%s0 + $0x6dc] sm:$0xf]
  %v473 = vld [vmem:[%s0 + $0x6e0] sm:$0xf]
  %v474 = vld [vmem:[%s0 + $0x6e4] sm:$0xf]
  %v475 = vld [vmem:[%s0 + $0x6e8] sm:$0xf]
  %v476 = vld [vmem:[%s0 + $0x6ec] sm:$0xf]
  %v477 = vld [vmem:[%s0 + $0x6f0] sm:$0xf]
  %v478 = vld [vmem:[%s0 + $0x6f4] sm:$0xf]
  %v479 = vld [vmem:[%s0 + $0x6f8] sm:$0xf]
  %v480 = vld [vmem:[%s0 + $0x6fc] sm:$0xf]
  %v481 = vld [vmem:[%s0 + $0x700] sm:$0xf]
  %v482 = vld [vmem:[%s0 + $0x704] sm:$0xf]
  %v483 = vld [vmem:[%s0 + $0x708] sm:$0xf]
  %v484 = vld [vmem:[%s0 + $0x70c] sm:$0xf]
  %v485 = vld [vmem:[%s0 + $0x710] sm:$0xf]
  %v486 = vld [vmem:[%s0 + $0x714] sm:$0xf]
  %v487 = vld [vmem:[%s0 + $0x718] sm:$0xf]
  %v488 = vld [vmem:[%s0 + $0x71c] sm:$0xf]
  %v489 = vld [vmem:[%s0 + $0x720] sm:$0xf]
  %v490 = vld [vmem:[%s0 + $0x724] sm:$0xf]
  %v491 = vld [vmem:[%s0 + $0x728] sm:$0xf]
  %v492 = vld [vmem:[%s0 + $0x72c] sm:$0xf]
  %v493 = vld [vmem:[%s0 + $0x730] sm:$0xf]
  %v494 = vld [vmem:[%s0 + $0x734] sm:$0xf]
  %v495 = vld [vmem:[%s0 + $0x738] sm:$0xf]
  %v496 = vld [vmem:[%s0 + $0x73c] sm:$0xf]
  %v497 = vld [vmem:[%s0 + $0x740] sm:$0xf]
  %v498 = vld [vmem:[%s0 + $0x744] sm:$0xf]
  %v499 = vld [vmem:[%s0 + $0x750] sm:$0xf]
  %v500 = vld [vmem:[%s0 + $0x754] sm:$0xf]
  %v501 = vld [vmem:[%s0 + $0x758] sm:$0xf]
  %v502 = vld [vmem:[%s0 + $0x75c] sm:$0xf]
  %v503 = vld [vmem:[%s0 + $0x760] sm:$0xf]
  %v504 = vld [vmem:[%s0 + $0x764] sm:$0xf]
  %v505 = vld [vmem:[%s0 + $0x768] sm:$0xf]
  %v506 = vld [vmem:[%s0 + $0x76c] sm:$0xf]
  %v507 = vld [vmem:[%s0 + $0x770] sm:$0xf]
  %v508 = vld [vmem:[%s0 + $0x774] sm:$0xf]
  %v509 = vld [vmem:[%s0 + $0x778] sm:$0xf]
  %v510 = vld [vmem:[%s0 + $0x77c] sm:$0xf]
  %v511 = vld [vmem:[%s0 + $0x780] sm:$0xf]
  %v512 = vld [vmem:[%s0 + $0x784] sm:$0xf]
  %v513 = vld [vmem:[%s0 + $0x788] sm:$0xf]
  %v514 = vld [vmem:[%s0 + $0x78c] sm:$0xf]
  %v515 = vld [vmem:[%s0 + $0x790] sm:$0xf]
  %v516 = vld [vmem:[%s0 + $0x794] sm:$0xf]
  %v517 = vld [vmem:[%s0 + $0x798] sm:$0xf]
  %v518 = vld [vmem:[%s0 + $0x79c] sm:$0xf]
  %v519 = vld [vmem:[%s0 + $0x7a0] sm:$0xf]
  %v520 = vld [vmem:[%s0 + $0x7a4] sm:$0xf]
  %v521 = vld [vmem:[%s0 + $0x7a8] sm:$0xf]
  %v522 = vld [vmem:[%s0 + $0x7ac] sm:$0xf]
  %v523 = vld [vmem:[%s0 + $0x7b0] sm:$0xf]
  %v524 = vld [vmem:[%s0 + $0x7b4] sm:$0xf]
  %v525 = vld [vmem:[%s0 + $0x7b8] sm:$0xf]
  %v526 = vld [vmem:[%s0 + $0x7bc] sm:$0xf]
  %v527 = vld [vmem:[%s0 + $0x7c0] sm:$0xf]
  %v528 = vld [vmem:[%s0 + $0x7c4] sm:$0xf]
  %v529 = vld [vmem:[%s0 + $0x7c8] sm:$0xf]
  %v530 = vld [vmem:[%s0 + $0x7cc] sm:$0xf]
  %v531 = vld [vmem:[%s0 + $0x7d0] sm:$0xf]
  %v532 = vld [vmem:[%s0 + $0x7d4] sm:$0xf]
  %v533 = vld [vmem:[%s0 + $0x7e0] sm:$0xf]
  %v534 = vld [vmem:[%s0 + $0x7e4] sm:$0xf]
  %v535 = vld [vmem:[%s0 + $0x7e8] sm:$0xf]
  %v536 = vld [vmem:[%s0 + $0x7ec] sm:$0xf]
  %v537 = vld [vmem:[%s0 + $0x7f0] sm:$0xf]
  %v538 = vld [vmem:[%s0 + $0x7f4] sm:$0xf]
  %v539 = vld [vmem:[%s0 + $0x7f8] sm:$0xf]
  %v540 = vld [vmem:[%s0 + $0x7fc] sm:$0xf]
  %v541 = vld [vmem:[%s0 + $0x800] sm:$0xf]
  %v542 = vld [vmem:[%s0 + $0x804] sm:$0xf]
  %v543 = vld [vmem:[%s0 + $0x808] sm:$0xf]
  %v544 = vld [vmem:[%s0 + $0x80c] sm:$0xf]
  %v545 = vld [vmem:[%s0 + $0x810] sm:$0xf]
  %v546 = vld [vmem:[%s0 + $0x814] sm:$0xf]
  %v547 = vld [vmem:[%s0 + $0x818] sm:$0xf]
  %v548 = vld [vmem:[%s0 + $0x81c] sm:$0xf]
  %v549 = vld [vmem:[%s0 + $0x820] sm:$0xf]
  %v550 = vld [vmem:[%s0 + $0x824] sm:$0xf]
  %v551 = vld [vmem:[%s0 + $0x828] sm:$0xf]
  %v552 = vld [vmem:[%s0 + $0x82c] sm:$0xf]
  %v553 = vld [vmem:[%s0 + $0x830] sm:$0xf]
  %v554 = vld [vmem:[%s0 + $0x834] sm:$0xf]
  %v555 = vld [vmem:[%s0 + $0x838] sm:$0xf]
  %v556 = vld [vmem:[%s0 + $0x83c] sm:$0xf]
  %v557 = vld [vmem:[%s0 + $0x840] sm:$0xf]
  %v558 = vld [vmem:[%s0 + $0x844] sm:$0xf]
  %v559 = vld [vmem:[%s0 + $0x848] sm:$0xf]
  %v560 = vld [vmem:[%s0 + $0x84c] sm:$0xf]
  %v561 = vld [vmem:[%s0 + $0x850] sm:$0xf]
  %v562 = vld [vmem:[%s0 + $0x854] sm:$0xf]
  %v563 = vld [vmem:[%s0 + $0x858] sm:$0xf]
  %v564 = vld [vmem:[%s0 + $0x85c] sm:$0xf]
  %v565 = vld [vmem:[%s0 + $0x860] sm:$0xf]
  %v566 = vld [vmem:[%s0 + $0x864] sm:$0xf]
  %v567 = vld [vmem:[%s0 + $0x870] sm:$0xf]
  %v568 = vld [vmem:[%s0 + $0x874] sm:$0xf]
  %v569 = vld [vmem:[%s0 + $0x878] sm:$0xf]
  %v570 = vld [vmem:[%s0 + $0x87c] sm:$0xf]
  %v571 = vld [vmem:[%s0 + $0x880] sm:$0xf]
  %v572 = vld [vmem:[%s0 + $0x884] sm:$0xf]
  %v573 = vld [vmem:[%s0 + $0x888] sm:$0xf]
  %v574 = vld [vmem:[%s0 + $0x88c] sm:$0xf]
  %v575 = vld [vmem:[%s0 + $0x890] sm:$0xf]
  %v576 = vld [vmem:[%s0 + $0x894] sm:$0xf]
  %v577 = vld [vmem:[%s0 + $0x898] sm:$0xf]
  %v578 = vld [vmem:[%s0 + $0x89c] sm:$0xf]
  %v579 = vld [vmem:[%s0 + $0x8a0] sm:$0xf]
  %v580 = vld [vmem:[%s0 + $0x8a4] sm:$0xf]
  %v581 = vld [vmem:[%s0 + $0x8a8] sm:$0xf]
  %v582 = vld [vmem:[%s0 + $0x8ac] sm:$0xf]
  %v583 = vld [vmem:[%s0 + $0x8b0] sm:$0xf]
  %v584 = vld [vmem:[%s0 + $0x8b4] sm:$0xf]
  %v585 = vld [vmem:[%s0 + $0x8b8] sm:$0xf]
  %v586 = vld [vmem:[%s0 + $0x8bc] sm:$0xf]
  %v587 = vld [vmem:[%s0 + $0x8c0] sm:$0xf]
  %v588 = vld [vmem:[%s0 + $0x8c4] sm:$0xf]
  %v589 = vld [vmem:[%s0 + $0x8c8] sm:$0xf]
  %v590 = vld [vmem:[%s0 + $0x8cc] sm:$0xf]
  %v591 = vld [vmem:[%s0 + $0x8d0] sm:$0xf]
  %v592 = vld [vmem:[%s0 + $0x8d4] sm:$0xf]
  %v593 = vld [vmem:[%s0 + $0x8d8] sm:$0xf]
  %v594 = vld [vmem:[%s0 + $0x8dc] sm:$0xf]
  %v595 = vld [vmem:[%s0 + $0x8e0] sm:$0xf]
  %v596 = vld [vmem:[%s0 + $0x8e4] sm:$0xf]
  %v597 = vld [vmem:[%s0 + $0x8e8] sm:$0xf]
  %v598 = vld [vmem:[%s0 + $0x8ec] sm:$0xf]
  %v599 = vld [vmem:[%s0 + $0x8f0] sm:$0xf]
  %v600 = vld [vmem:[%s0 + $0x8f4] sm:$0xf]
  %v601 = vld [vmem:[%s0 + $0x900] sm:$0xf]
  %v602 = vld [vmem:[%s0 + $0x904] sm:$0xf]
  %v603 = vld [vmem:[%s0 + $0x908] sm:$0xf]
  %v604 = vld [vmem:[%s0 + $0x90c] sm:$0xf]
  %v605 = vld [vmem:[%s0 + $0x910] sm:$0xf]
  %v606 = vld [vmem:[%s0 + $0x914] sm:$0xf]
  %v607 = vld [vmem:[%s0 + $0x918] sm:$0xf]
  %v608 = vld [vmem:[%s0 + $0x91c] sm:$0xf]
  %v609 = vld [vmem:[%s0 + $0x920] sm:$0xf]
  %v610 = vld [vmem:[%s0 + $0x924] sm:$0xf]
  %v611 = vld [vmem:[%s0 + $0x928] sm:$0xf]
  %v612 = vld [vmem:[%s0 + $0x92c] sm:$0xf]
  %v613 = vld [vmem:[%s0 + $0x930] sm:$0xf]
  %v614 = vld [vmem:[%s0 + $0x934] sm:$0xf]
  %v615 = vld [vmem:[%s0 + $0x938] sm:$0xf]
  %v616 = vld [vmem:[%s0 + $0x93c] sm:$0xf]
  %v617 = vld [vmem:[%s0 + $0x940] sm:$0xf]
  %v618 = vld [vmem:[%s0 + $0x944] sm:$0xf]
  %v619 = vld [vmem:[%s0 + $0x948] sm:$0xf]
  %v620 = vld [vmem:[%s0 + $0x94c] sm:$0xf]
  %v621 = vld [vmem:[%s0 + $0x950] sm:$0xf]
  %v622 = vld [vmem:[%s0 + $0x954] sm:$0xf]
  %v623 = vld [vmem:[%s0 + $0x958] sm:$0xf]
  %v624 = vld [vmem:[%s0 + $0x95c] sm:$0xf]
  %v625 = vld [vmem:[%s0 + $0x960] sm:$0xf]
  %v626 = vld [vmem:[%s0 + $0x964] sm:$0xf]
  %v627 = vld [vmem:[%s0 + $0x968] sm:$0xf]
  %v628 = vld [vmem:[%s0 + $0x96c] sm:$0xf]
  %v629 = vld [vmem:[%s0 + $0x970] sm:$0xf]
  %v630 = vld [vmem:[%s0 + $0x974] sm:$0xf]
  %v631 = vld [vmem:[%s0 + $0x978] sm:$0xf]
  %v632 = vld [vmem:[%s0 + $0x97c] sm:$0xf]
  %v633 = vld [vmem:[%s0 + $0x980] sm:$0xf]
  %v634 = vld [vmem:[%s0 + $0x984] sm:$0xf]
  %v763 = vunpack.c.l.b16 %v57
  %v764 = vunpack.c.l.b16 %v58
  %v765 = vunpack.c.l.b16 %v61
  %v766 = vunpack.c.l.b16 %v62
  %v767 = vunpack.c.l.b16 %v65
  %v768 = vunpack.c.l.b16 %v66
  %v769 = vunpack.c.l.b16 %v69
  %v770 = vunpack.c.l.b16 %v70
  %v771 = vunpack.c.l.b16 %v73
  %v772 = vunpack.c.l.b16 %v74
  %v773 = vunpack.c.l.b16 %v77
  %v774 = vunpack.c.l.b16 %v78
  %v775 = vunpack.c.l.b16 %v81
  %v776 = vunpack.c.l.b16 %v82
  %v777 = vunpack.c.l.b16 %v85
  %v778 = vunpack.c.l.b16 %v86
  %v779 = vunpack.c.l.b16 %v125
  %v780 = vunpack.c.l.b16 %v126
  %v781 = vunpack.c.l.b16 %v129
  %v782 = vunpack.c.l.b16 %v130
  %v783 = vunpack.c.l.b16 %v133
  %v784 = vunpack.c.l.b16 %v134
  %v785 = vunpack.c.l.b16 %v137
  %v786 = vunpack.c.l.b16 %v138
  %v787 = vunpack.c.l.b16 %v141
  %v788 = vunpack.c.l.b16 %v142
  %v789 = vunpack.c.l.b16 %v145
  %v790 = vunpack.c.l.b16 %v146
  %v791 = vunpack.c.l.b16 %v149
  %v792 = vunpack.c.l.b16 %v150
  %v793 = vunpack.c.l.b16 %v153
  %v794 = vunpack.c.l.b16 %v154
  %v795 = vunpack.c.l.b16 %v193
  %v796 = vunpack.c.l.b16 %v194
  %v797 = vunpack.c.l.b16 %v197
  %v798 = vunpack.c.l.b16 %v198
  %v799 = vunpack.c.l.b16 %v201
  %v800 = vunpack.c.l.b16 %v202
  %v801 = vunpack.c.l.b16 %v205
  %v802 = vunpack.c.l.b16 %v206
  %v803 = vunpack.c.l.b16 %v209
  %v804 = vunpack.c.l.b16 %v210
  %v805 = vunpack.c.l.b16 %v213
  %v806 = vunpack.c.l.b16 %v214
  %v807 = vunpack.c.l.b16 %v217
  %v808 = vunpack.c.l.b16 %v218
  %v809 = vunpack.c.l.b16 %v221
  %v810 = vunpack.c.l.b16 %v222
  %v811 = vunpack.c.l.b16 %v261
  %v812 = vunpack.c.l.b16 %v262
  %v813 = vunpack.c.l.b16 %v265
  %v814 = vunpack.c.l.b16 %v266
  %v815 = vunpack.c.l.b16 %v269
  %v816 = vunpack.c.l.b16 %v270
  %v817 = vunpack.c.l.b16 %v273
  %v818 = vunpack.c.l.b16 %v274
  %v819 = vunpack.c.l.b16 %v277
  %v820 = vunpack.c.l.b16 %v278
  %v821 = vunpack.c.l.b16 %v281
  %v822 = vunpack.c.l.b16 %v282
  %v823 = vunpack.c.l.b16 %v285
  %v824 = vunpack.c.l.b16 %v286
  %v825 = vunpack.c.l.b16 %v289
  %v826 = vunpack.c.l.b16 %v290
  %v827 = vunpack.c.l.b16 %v329
  %v828 = vunpack.c.l.b16 %v330
  %v829 = vunpack.c.l.b16 %v333
  %v830 = vunpack.c.l.b16 %v334
  %v831 = vunpack.c.l.b16 %v337
  %v832 = vunpack.c.l.b16 %v338
  %v833 = vunpack.c.l.b16 %v341
  %v834 = vunpack.c.l.b16 %v342
  %v835 = vunpack.c.l.b16 %v345
  %v836 = vunpack.c.l.b16 %v346
  %v837 = vunpack.c.l.b16 %v349
  %v838 = vunpack.c.l.b16 %v350
  %v839 = vunpack.c.l.b16 %v353
  %v840 = vunpack.c.l.b16 %v354
  %v841 = vunpack.c.l.b16 %v357
  %v842 = vunpack.c.l.b16 %v358
  %v843 = vunpack.c.l.b16 %v397
  %v844 = vunpack.c.l.b16 %v398
  %v845 = vunpack.c.l.b16 %v401
  %v846 = vunpack.c.l.b16 %v402
  %v847 = vunpack.c.l.b16 %v405
  %v848 = vunpack.c.l.b16 %v406
  %v849 = vunpack.c.l.b16 %v409
  %v850 = vunpack.c.l.b16 %v410
  %v851 = vunpack.c.l.b16 %v413
  %v852 = vunpack.c.l.b16 %v414
  %v853 = vunpack.c.l.b16 %v417
  %v854 = vunpack.c.l.b16 %v418
  %v855 = vunpack.c.l.b16 %v421
  %v856 = vunpack.c.l.b16 %v422
  %v857 = vunpack.c.l.b16 %v425
  %v858 = vunpack.c.l.b16 %v426
  %v859 = vunpack.c.l.b16 %v465
  %v860 = vunpack.c.l.b16 %v466
  %v861 = vunpack.c.l.b16 %v469
  %v862 = vunpack.c.l.b16 %v470
  %v863 = vunpack.c.l.b16 %v473
  %v864 = vunpack.c.l.b16 %v474
  %v865 = vunpack.c.l.b16 %v477
  %v866 = vunpack.c.l.b16 %v478
  %v867 = vunpack.c.l.b16 %v481
  %v868 = vunpack.c.l.b16 %v482
  %v869 = vunpack.c.l.b16 %v485
  %v870 = vunpack.c.l.b16 %v486
  %v871 = vunpack.c.l.b16 %v489
  %v872 = vunpack.c.l.b16 %v490
  %v873 = vunpack.c.l.b16 %v493
  %v874 = vunpack.c.l.b16 %v494
  %v875 = vunpack.c.l.b16 %v533
  %v876 = vunpack.c.l.b16 %v534
  %v877 = vunpack.c.l.b16 %v537
  %v878 = vunpack.c.l.b16 %v538
  %v879 = vunpack.c.l.b16 %v541
  %v880 = vunpack.c.l.b16 %v542
  %v881 = vunpack.c.l.b16 %v545
  %v882 = vunpack.c.l.b16 %v546
  %v883 = vunpack.c.l.b16 %v549
  %v884 = vunpack.c.l.b16 %v550
  %v885 = vunpack.c.l.b16 %v553
  %v886 = vunpack.c.l.b16 %v554
  %v887 = vunpack.c.l.b16 %v557
  %v888 = vunpack.c.l.b16 %v558
  %v889 = vunpack.c.l.b16 %v561
  %v890 = vunpack.c.l.b16 %v562
  %v891 = vpack.c.b16 %v764, %v763
  %v892 = vpack.c.b16 %v766, %v765
  %v893 = vpack.c.b16 %v768, %v767
  %v894 = vpack.c.b16 %v770, %v769
  %v895 = vpack.c.b16 %v772, %v771
  %v896 = vpack.c.b16 %v774, %v773
  %v897 = vpack.c.b16 %v776, %v775
  %v898 = vpack.c.b16 %v778, %v777
  %v899 = vpack.c.b16 %v780, %v779
  %v900 = vpack.c.b16 %v782, %v781
  %v901 = vpack.c.b16 %v784, %v783
  %v902 = vpack.c.b16 %v786, %v785
  %v903 = vpack.c.b16 %v788, %v787
  %v904 = vpack.c.b16 %v790, %v789
  %v905 = vpack.c.b16 %v792, %v791
  %v906 = vpack.c.b16 %v794, %v793
  %v907 = vpack.c.b16 %v796, %v795
  %v908 = vpack.c.b16 %v798, %v797
  %v909 = vpack.c.b16 %v800, %v799
  %v910 = vpack.c.b16 %v802, %v801
  %v911 = vpack.c.b16 %v804, %v803
  %v912 = vpack.c.b16 %v806, %v805
  %v913 = vpack.c.b16 %v808, %v807
  %v914 = vpack.c.b16 %v810, %v809
  %v915 = vpack.c.b16 %v812, %v811
  %v916 = vpack.c.b16 %v814, %v813
  %v917 = vpack.c.b16 %v816, %v815
  %v918 = vpack.c.b16 %v818, %v817
  %v919 = vpack.c.b16 %v820, %v819
  %v920 = vpack.c.b16 %v822, %v821
  %v921 = vpack.c.b16 %v824, %v823
  %v922 = vpack.c.b16 %v826, %v825
  %v923 = vpack.c.b16 %v828, %v827
  %v924 = vpack.c.b16 %v830, %v829
  %v925 = vpack.c.b16 %v832, %v831
  %v926 = vpack.c.b16 %v834, %v833
  %v927 = vpack.c.b16 %v836, %v835
  %v928 = vpack.c.b16 %v838, %v837
  %v929 = vpack.c.b16 %v840, %v839
  %v930 = vpack.c.b16 %v842, %v841
  %v931 = vpack.c.b16 %v844, %v843
  %v932 = vpack.c.b16 %v846, %v845
  %v933 = vpack.c.b16 %v848, %v847
  %v934 = vpack.c.b16 %v850, %v849
  %v935 = vpack.c.b16 %v852, %v851
  %v936 = vpack.c.b16 %v854, %v853
  %v937 = vpack.c.b16 %v856, %v855
  %v938 = vpack.c.b16 %v858, %v857
  %v939 = vpack.c.b16 %v860, %v859
  %v940 = vpack.c.b16 %v862, %v861
  %v941 = vpack.c.b16 %v864, %v863
  %v942 = vpack.c.b16 %v866, %v865
  %v943 = vpack.c.b16 %v868, %v867
  %v944 = vpack.c.b16 %v870, %v869
  %v945 = vpack.c.b16 %v872, %v871
  %v946 = vpack.c.b16 %v874, %v873
  %v947 = vpack.c.b16 %v876, %v875
  %v948 = vpack.c.b16 %v878, %v877
  %v949 = vpack.c.b16 %v880, %v879
  %v950 = vpack.c.b16 %v882, %v881
  %v951 = vpack.c.b16 %v884, %v883
  %v952 = vpack.c.b16 %v886, %v885
  %v953 = vpack.c.b16 %v888, %v887
  %v954 = vpack.c.b16 %v890, %v889
  %v1083 = vunpack.c.l.b16 %v59
  %v1084 = vunpack.c.l.b16 %v60
  %v1085 = vunpack.c.l.b16 %v63
  %v1086 = vunpack.c.l.b16 %v64
  %v1087 = vunpack.c.l.b16 %v67
  %v1088 = vunpack.c.l.b16 %v68
  %v1089 = vunpack.c.l.b16 %v71
  %v1090 = vunpack.c.l.b16 %v72
  %v1091 = vunpack.c.l.b16 %v75
  %v1092 = vunpack.c.l.b16 %v76
  %v1093 = vunpack.c.l.b16 %v79
  %v1094 = vunpack.c.l.b16 %v80
  %v1095 = vunpack.c.l.b16 %v83
  %v1096 = vunpack.c.l.b16 %v84
  %v1097 = vunpack.c.l.b16 %v87
  %v1098 = vunpack.c.l.b16 %v88
  %v1099 = vunpack.c.l.b16 %v127
  %v1100 = vunpack.c.l.b16 %v128
  %v1101 = vunpack.c.l.b16 %v131
  %v1102 = vunpack.c.l.b16 %v132
  %v1103 = vunpack.c.l.b16 %v135
  %v1104 = vunpack.c.l.b16 %v136
  %v1105 = vunpack.c.l.b16 %v139
  %v1106 = vunpack.c.l.b16 %v140
  %v1107 = vunpack.c.l.b16 %v143
  %v1108 = vunpack.c.l.b16 %v144
  %v1109 = vunpack.c.l.b16 %v147
  %v1110 = vunpack.c.l.b16 %v148
  %v1111 = vunpack.c.l.b16 %v151
  %v1112 = vunpack.c.l.b16 %v152
  %v1113 = vunpack.c.l.b16 %v155
  %v1114 = vunpack.c.l.b16 %v156
  %v1115 = vunpack.c.l.b16 %v195
  %v1116 = vunpack.c.l.b16 %v196
  %v1117 = vunpack.c.l.b16 %v199
  %v1118 = vunpack.c.l.b16 %v200
  %v1119 = vunpack.c.l.b16 %v203
  %v1120 = vunpack.c.l.b16 %v204
  %v1121 = vunpack.c.l.b16 %v207
  %v1122 = vunpack.c.l.b16 %v208
  %v1123 = vunpack.c.l.b16 %v211
  %v1124 = vunpack.c.l.b16 %v212
  %v1125 = vunpack.c.l.b16 %v215
  %v1126 = vunpack.c.l.b16 %v216
  %v1127 = vunpack.c.l.b16 %v219
  %v1128 = vunpack.c.l.b16 %v220
  %v1129 = vunpack.c.l.b16 %v223
  %v1130 = vunpack.c.l.b16 %v224
  %v1131 = vunpack.c.l.b16 %v263
  %v1132 = vunpack.c.l.b16 %v264
  %v1133 = vunpack.c.l.b16 %v267
  %v1134 = vunpack.c.l.b16 %v268
  %v1135 = vunpack.c.l.b16 %v271
  %v1136 = vunpack.c.l.b16 %v272
  %v1137 = vunpack.c.l.b16 %v275
  %v1138 = vunpack.c.l.b16 %v276
  %v1139 = vunpack.c.l.b16 %v279
  %v1140 = vunpack.c.l.b16 %v280
  %v1141 = vunpack.c.l.b16 %v283
  %v1142 = vunpack.c.l.b16 %v284
  %v1143 = vunpack.c.l.b16 %v287
  %v1144 = vunpack.c.l.b16 %v288
  %v1145 = vunpack.c.l.b16 %v291
  %v1146 = vunpack.c.l.b16 %v292
  %v1147 = vunpack.c.l.b16 %v331
  %v1148 = vunpack.c.l.b16 %v332
  %v1149 = vunpack.c.l.b16 %v335
  %v1150 = vunpack.c.l.b16 %v336
  %v1151 = vunpack.c.l.b16 %v339
  %v1152 = vunpack.c.l.b16 %v340
  %v1153 = vunpack.c.l.b16 %v343
  %v1154 = vunpack.c.l.b16 %v344
  %v1155 = vunpack.c.l.b16 %v347
  %v1156 = vunpack.c.l.b16 %v348
  %v1157 = vunpack.c.l.b16 %v351
  %v1158 = vunpack.c.l.b16 %v352
  %v1159 = vunpack.c.l.b16 %v355
  %v1160 = vunpack.c.l.b16 %v356
  %v1161 = vunpack.c.l.b16 %v359
  %v1162 = vunpack.c.l.b16 %v360
  %v1163 = vunpack.c.l.b16 %v399
  %v1164 = vunpack.c.l.b16 %v400
  %v1165 = vunpack.c.l.b16 %v403
  %v1166 = vunpack.c.l.b16 %v404
  %v1167 = vunpack.c.l.b16 %v407
  %v1168 = vunpack.c.l.b16 %v408
  %v1169 = vunpack.c.l.b16 %v411
  %v1170 = vunpack.c.l.b16 %v412
  %v1171 = vunpack.c.l.b16 %v415
  %v1172 = vunpack.c.l.b16 %v416
  %v1173 = vunpack.c.l.b16 %v419
  %v1174 = vunpack.c.l.b16 %v420
  %v1175 = vunpack.c.l.b16 %v423
  %v1176 = vunpack.c.l.b16 %v424
  %v1177 = vunpack.c.l.b16 %v427
  %v1178 = vunpack.c.l.b16 %v428
  %v1179 = vunpack.c.l.b16 %v467
  %v1180 = vunpack.c.l.b16 %v468
  %v1181 = vunpack.c.l.b16 %v471
  %v1182 = vunpack.c.l.b16 %v472
  %v1183 = vunpack.c.l.b16 %v475
  %v1184 = vunpack.c.l.b16 %v476
  %v1185 = vunpack.c.l.b16 %v479
  %v1186 = vunpack.c.l.b16 %v480
  %v1187 = vunpack.c.l.b16 %v483
  %v1188 = vunpack.c.l.b16 %v484
  %v1189 = vunpack.c.l.b16 %v487
  %v1190 = vunpack.c.l.b16 %v488
  %v1191 = vunpack.c.l.b16 %v491
  %v1192 = vunpack.c.l.b16 %v492
  %v1193 = vunpack.c.l.b16 %v495
  %v1194 = vunpack.c.l.b16 %v496
  %v1195 = vunpack.c.l.b16 %v535
  %v1196 = vunpack.c.l.b16 %v536
  %v1197 = vunpack.c.l.b16 %v539
  %v1198 = vunpack.c.l.b16 %v540
  %v1199 = vunpack.c.l.b16 %v543
  %v1200 = vunpack.c.l.b16 %v544
  %v1201 = vunpack.c.l.b16 %v547
  %v1202 = vunpack.c.l.b16 %v548
  %v1203 = vunpack.c.l.b16 %v551
  %v1204 = vunpack.c.l.b16 %v552
  %v1205 = vunpack.c.l.b16 %v555
  %v1206 = vunpack.c.l.b16 %v556
  %v1207 = vunpack.c.l.b16 %v559
  %v1208 = vunpack.c.l.b16 %v560
  %v1209 = vunpack.c.l.b16 %v563
  %v1210 = vunpack.c.l.b16 %v564
  %v1211 = vpack.c.b16 %v1084, %v1083
  %v1212 = vpack.c.b16 %v1086, %v1085
  %v1213 = vpack.c.b16 %v1088, %v1087
  %v1214 = vpack.c.b16 %v1090, %v1089
  %v1215 = vpack.c.b16 %v1092, %v1091
  %v1216 = vpack.c.b16 %v1094, %v1093
  %v1217 = vpack.c.b16 %v1096, %v1095
  %v1218 = vpack.c.b16 %v1098, %v1097
  %v1219 = vpack.c.b16 %v1100, %v1099
  %v1220 = vpack.c.b16 %v1102, %v1101
  %v1221 = vpack.c.b16 %v1104, %v1103
  %v1222 = vpack.c.b16 %v1106, %v1105
  %v1223 = vpack.c.b16 %v1108, %v1107
  %v1224 = vpack.c.b16 %v1110, %v1109
  %v1225 = vpack.c.b16 %v1112, %v1111
  %v1226 = vpack.c.b16 %v1114, %v1113
  %v1227 = vpack.c.b16 %v1116, %v1115
  %v1228 = vpack.c.b16 %v1118, %v1117
  %v1229 = vpack.c.b16 %v1120, %v1119
  %v1230 = vpack.c.b16 %v1122, %v1121
  %v1231 = vpack.c.b16 %v1124, %v1123
  %v1232 = vpack.c.b16 %v1126, %v1125
  %v1233 = vpack.c.b16 %v1128, %v1127
  %v1234 = vpack.c.b16 %v1130, %v1129
  %v1235 = vpack.c.b16 %v1132, %v1131
  %v1236 = vpack.c.b16 %v1134, %v1133
  %v1237 = vpack.c.b16 %v1136, %v1135
  %v1238 = vpack.c.b16 %v1138, %v1137
  %v1239 = vpack.c.b16 %v1140, %v1139
  %v1240 = vpack.c.b16 %v1142, %v1141
  %v1241 = vpack.c.b16 %v1144, %v1143
  %v1242 = vpack.c.b16 %v1146, %v1145
  %v1243 = vpack.c.b16 %v1148, %v1147
  %v1244 = vpack.c.b16 %v1150, %v1149
  %v1245 = vpack.c.b16 %v1152, %v1151
  %v1246 = vpack.c.b16 %v1154, %v1153
  %v1247 = vpack.c.b16 %v1156, %v1155
  %v1248 = vpack.c.b16 %v1158, %v1157
  %v1249 = vpack.c.b16 %v1160, %v1159
  %v1250 = vpack.c.b16 %v1162, %v1161
  %v1251 = vpack.c.b16 %v1164, %v1163
  %v1252 = vpack.c.b16 %v1166, %v1165
  %v1253 = vpack.c.b16 %v1168, %v1167
  %v1254 = vpack.c.b16 %v1170, %v1169
  %v1255 = vpack.c.b16 %v1172, %v1171
  %v1256 = vpack.c.b16 %v1174, %v1173
  %v1257 = vpack.c.b16 %v1176, %v1175
  %v1258 = vpack.c.b16 %v1178, %v1177
  %v1259 = vpack.c.b16 %v1180, %v1179
  %v1260 = vpack.c.b16 %v1182, %v1181
  %v1261 = vpack.c.b16 %v1184, %v1183
  %v1262 = vpack.c.b16 %v1186, %v1185
  %v1263 = vpack.c.b16 %v1188, %v1187
  %v1264 = vpack.c.b16 %v1190, %v1189
  %v1265 = vpack.c.b16 %v1192, %v1191
  %v1266 = vpack.c.b16 %v1194, %v1193
  %v1267 = vpack.c.b16 %v1196, %v1195
  %v1268 = vpack.c.b16 %v1198, %v1197
  %v1269 = vpack.c.b16 %v1200, %v1199
  %v1270 = vpack.c.b16 %v1202, %v1201
  %v1271 = vpack.c.b16 %v1204, %v1203
  %v1272 = vpack.c.b16 %v1206, %v1205
  %v1273 = vpack.c.b16 %v1208, %v1207
  %v1274 = vpack.c.b16 %v1210, %v1209
  %1275 = vrot.lane.b32.xlu0 %v1211, 10
  %v1276 = vpop.permute.xlu0 %1275
  %1277 = vrot.lane.b32.xlu0 %v1212, 10
  %v1278 = vpop.permute.xlu0 %1277
  %1279 = vrot.lane.b32.xlu0 %v1213, 10
  %v1280 = vpop.permute.xlu0 %1279
  %1281 = vrot.lane.b32.xlu0 %v1214, 10
  %v1282 = vpop.permute.xlu0 %1281
  %1283 = vrot.lane.b32.xlu0 %v1215, 10
  %v1284 = vpop.permute.xlu0 %1283
  %1285 = vrot.lane.b32.xlu0 %v1216, 10
  %v1286 = vpop.permute.xlu0 %1285
  %1287 = vrot.lane.b32.xlu0 %v1217, 10
  %v1288 = vpop.permute.xlu0 %1287
  %1289 = vrot.lane.b32.xlu0 %v1218, 10
  %v1290 = vpop.permute.xlu0 %1289
  %1291 = vrot.lane.b32.xlu0 %v1219, 10
  %v1292 = vpop.permute.xlu0 %1291
  %1293 = vrot.lane.b32.xlu0 %v1220, 10
  %v1294 = vpop.permute.xlu0 %1293
  %1295 = vrot.lane.b32.xlu0 %v1221, 10
  %v1296 = vpop.permute.xlu0 %1295
  %1297 = vrot.lane.b32.xlu0 %v1222, 10
  %v1298 = vpop.permute.xlu0 %1297
  %1299 = vrot.lane.b32.xlu0 %v1223, 10
  %v1300 = vpop.permute.xlu0 %1299
  %1301 = vrot.lane.b32.xlu0 %v1224, 10
  %v1302 = vpop.permute.xlu0 %1301
  %1303 = vrot.lane.b32.xlu0 %v1225, 10
  %v1304 = vpop.permute.xlu0 %1303
  %1305 = vrot.lane.b32.xlu0 %v1226, 10
  %v1306 = vpop.permute.xlu0 %1305
  %1307 = vrot.lane.b32.xlu0 %v1227, 10
  %v1308 = vpop.permute.xlu0 %1307
  %1309 = vrot.lane.b32.xlu0 %v1228, 10
  %v1310 = vpop.permute.xlu0 %1309
  %1311 = vrot.lane.b32.xlu0 %v1229, 10
  %v1312 = vpop.permute.xlu0 %1311
  %1313 = vrot.lane.b32.xlu0 %v1230, 10
  %v1314 = vpop.permute.xlu0 %1313
  %1315 = vrot.lane.b32.xlu0 %v1231, 10
  %v1316 = vpop.permute.xlu0 %1315
  %1317 = vrot.lane.b32.xlu0 %v1232, 10
  %v1318 = vpop.permute.xlu0 %1317
  %1319 = vrot.lane.b32.xlu0 %v1233, 10
  %v1320 = vpop.permute.xlu0 %1319
  %1321 = vrot.lane.b32.xlu0 %v1234, 10
  %v1322 = vpop.permute.xlu0 %1321
  %1323 = vrot.lane.b32.xlu0 %v1235, 10
  %v1324 = vpop.permute.xlu0 %1323
  %1325 = vrot.lane.b32.xlu0 %v1236, 10
  %v1326 = vpop.permute.xlu0 %1325
  %1327 = vrot.lane.b32.xlu0 %v1237, 10
  %v1328 = vpop.permute.xlu0 %1327
  %1329 = vrot.lane.b32.xlu0 %v1238, 10
  %v1330 = vpop.permute.xlu0 %1329
  %1331 = vrot.lane.b32.xlu0 %v1239, 10
  %v1332 = vpop.permute.xlu0 %1331
  %1333 = vrot.lane.b32.xlu0 %v1240, 10
  %v1334 = vpop.permute.xlu0 %1333
  %1335 = vrot.lane.b32.xlu0 %v1241, 10
  %v1336 = vpop.permute.xlu0 %1335
  %1337 = vrot.lane.b32.xlu0 %v1242, 10
  %v1338 = vpop.permute.xlu0 %1337
  %1339 = vrot.lane.b32.xlu0 %v1243, 10
  %v1340 = vpop.permute.xlu0 %1339
  %1341 = vrot.lane.b32.xlu0 %v1244, 10
  %v1342 = vpop.permute.xlu0 %1341
  %1343 = vrot.lane.b32.xlu0 %v1245, 10
  %v1344 = vpop.permute.xlu0 %1343
  %1345 = vrot.lane.b32.xlu0 %v1246, 10
  %v1346 = vpop.permute.xlu0 %1345
  %1347 = vrot.lane.b32.xlu0 %v1247, 10
  %v1348 = vpop.permute.xlu0 %1347
  %1349 = vrot.lane.b32.xlu0 %v1248, 10
  %v1350 = vpop.permute.xlu0 %1349
  %1351 = vrot.lane.b32.xlu0 %v1249, 10
  %v1352 = vpop.permute.xlu0 %1351
  %1353 = vrot.lane.b32.xlu0 %v1250, 10
  %v1354 = vpop.permute.xlu0 %1353
  %1355 = vrot.lane.b32.xlu0 %v1251, 10
  %v1356 = vpop.permute.xlu0 %1355
  %1357 = vrot.lane.b32.xlu0 %v1252, 10
  %v1358 = vpop.permute.xlu0 %1357
  %1359 = vrot.lane.b32.xlu0 %v1253, 10
  %v1360 = vpop.permute.xlu0 %1359
  %1361 = vrot.lane.b32.xlu0 %v1254, 10
  %v1362 = vpop.permute.xlu0 %1361
  %1363 = vrot.lane.b32.xlu0 %v1255, 10
  %v1364 = vpop.permute.xlu0 %1363
  %1365 = vrot.lane.b32.xlu0 %v1256, 10
  %v1366 = vpop.permute.xlu0 %1365
  %1367 = vrot.lane.b32.xlu0 %v1257, 10
  %v1368 = vpop.permute.xlu0 %1367
  %1369 = vrot.lane.b32.xlu0 %v1258, 10
  %v1370 = vpop.permute.xlu0 %1369
  %1371 = vrot.lane.b32.xlu0 %v1259, 10
  %v1372 = vpop.permute.xlu0 %1371
  %1373 = vrot.lane.b32.xlu0 %v1260, 10
  %v1374 = vpop.permute.xlu0 %1373
  %1375 = vrot.lane.b32.xlu0 %v1261, 10
  %v1376 = vpop.permute.xlu0 %1375
  %1377 = vrot.lane.b32.xlu0 %v1262, 10
  %v1378 = vpop.permute.xlu0 %1377
  %1379 = vrot.lane.b32.xlu0 %v1263, 10
  %v1380 = vpop.permute.xlu0 %1379
  %1381 = vrot.lane.b32.xlu0 %v1264, 10
  %v1382 = vpop.permute.xlu0 %1381
  %1383 = vrot.lane.b32.xlu0 %v1265, 10
  %v1384 = vpop.permute.xlu0 %1383
  %1385 = vrot.lane.b32.xlu0 %v1266, 10
  %v1386 = vpop.permute.xlu0 %1385
  %1387 = vrot.lane.b32.xlu0 %v1267, 10
  %v1388 = vpop.permute.xlu0 %1387
  %1389 = vrot.lane.b32.xlu0 %v1268, 10
  %v1390 = vpop.permute.xlu0 %1389
  %1391 = vrot.lane.b32.xlu0 %v1269, 10
  %v1392 = vpop.permute.xlu0 %1391
  %1393 = vrot.lane.b32.xlu0 %v1270, 10
  %v1394 = vpop.permute.xlu0 %1393
  %1395 = vrot.lane.b32.xlu0 %v1271, 10
  %v1396 = vpop.permute.xlu0 %1395
  %1397 = vrot.lane.b32.xlu0 %v1272, 10
  %v1398 = vpop.permute.xlu0 %1397
  %1399 = vrot.lane.b32.xlu0 %v1273, 10
  %v1400 = vpop.permute.xlu0 %1399
  %1401 = vrot.lane.b32.xlu0 %v1274, 10
  %v1402 = vpop.permute.xlu0 %1401
  %v1419 = vunpack.c.l.b16 %v89
  %v1420 = vunpack.c.l.b16 %v90
  %v1421 = vunpack.c.l.b16 %v157
  %v1422 = vunpack.c.l.b16 %v158
  %v1423 = vunpack.c.l.b16 %v225
  %v1424 = vunpack.c.l.b16 %v226
  %v1425 = vunpack.c.l.b16 %v293
  %v1426 = vunpack.c.l.b16 %v294
  %v1427 = vunpack.c.l.b16 %v361
  %v1428 = vunpack.c.l.b16 %v362
  %v1429 = vunpack.c.l.b16 %v429
  %v1430 = vunpack.c.l.b16 %v430
  %v1431 = vunpack.c.l.b16 %v497
  %v1432 = vunpack.c.l.b16 %v498
  %v1433 = vunpack.c.l.b16 %v565
  %v1434 = vunpack.c.l.b16 %v566
  %v1435 = vpack.c.b16 %v1420, %v1419
  %v1436 = vpack.c.b16 %v1422, %v1421
  %v1437 = vpack.c.b16 %v1424, %v1423
  %v1438 = vpack.c.b16 %v1426, %v1425
  %v1439 = vpack.c.b16 %v1428, %v1427
  %v1440 = vpack.c.b16 %v1430, %v1429
  %v1441 = vpack.c.b16 %v1432, %v1431
  %v1442 = vpack.c.b16 %v1434, %v1433
  %1443 = vrot.lane.b32.xlu0 %v892, 20
  %v1444 = vpop.permute.xlu0 %1443
  %1445 = vrot.lane.b32.xlu0 %v893, 20
  %v1446 = vpop.permute.xlu0 %1445
  %1447 = vrot.lane.b32.xlu0 %v894, 20
  %v1448 = vpop.permute.xlu0 %1447
  %1449 = vrot.lane.b32.xlu0 %v895, 20
  %v1450 = vpop.permute.xlu0 %1449
  %1451 = vrot.lane.b32.xlu0 %v896, 20
  %v1452 = vpop.permute.xlu0 %1451
  %1453 = vrot.lane.b32.xlu0 %v897, 20
  %v1454 = vpop.permute.xlu0 %1453
  %1455 = vrot.lane.b32.xlu0 %v898, 20
  %v1456 = vpop.permute.xlu0 %1455
  %1457 = vrot.lane.b32.xlu0 %v1435, 20
  %v1458 = vpop.permute.xlu0 %1457
  %1459 = vrot.lane.b32.xlu0 %v900, 20
  %v1460 = vpop.permute.xlu0 %1459
  %1461 = vrot.lane.b32.xlu0 %v901, 20
  %v1462 = vpop.permute.xlu0 %1461
  %1463 = vrot.lane.b32.xlu0 %v902, 20
  %v1464 = vpop.permute.xlu0 %1463
  %1465 = vrot.lane.b32.xlu0 %v903, 20
  %v1466 = vpop.permute.xlu0 %1465
  %1467 = vrot.lane.b32.xlu0 %v904, 20
  %v1468 = vpop.permute.xlu0 %1467
  %1469 = vrot.lane.b32.xlu0 %v905, 20
  %v1470 = vpop.permute.xlu0 %1469
  %1471 = vrot.lane.b32.xlu0 %v906, 20
  %v1472 = vpop.permute.xlu0 %1471
  %1473 = vrot.lane.b32.xlu0 %v1436, 20
  %v1474 = vpop.permute.xlu0 %1473
  %1475 = vrot.lane.b32.xlu0 %v908, 20
  %v1476 = vpop.permute.xlu0 %1475
  %1477 = vrot.lane.b32.xlu0 %v909, 20
  %v1478 = vpop.permute.xlu0 %1477
  %1479 = vrot.lane.b32.xlu0 %v910, 20
  %v1480 = vpop.permute.xlu0 %1479
  %1481 = vrot.lane.b32.xlu0 %v911, 20
  %v1482 = vpop.permute.xlu0 %1481
  %1483 = vrot.lane.b32.xlu0 %v912, 20
  %v1484 = vpop.permute.xlu0 %1483
  %1485 = vrot.lane.b32.xlu0 %v913, 20
  %v1486 = vpop.permute.xlu0 %1485
  %1487 = vrot.lane.b32.xlu0 %v914, 20
  %v1488 = vpop.permute.xlu0 %1487
  %1489 = vrot.lane.b32.xlu0 %v1437, 20
  %v1490 = vpop.permute.xlu0 %1489
  %1491 = vrot.lane.b32.xlu0 %v916, 20
  %v1492 = vpop.permute.xlu0 %1491
  %1493 = vrot.lane.b32.xlu0 %v917, 20
  %v1494 = vpop.permute.xlu0 %1493
  %1495 = vrot.lane.b32.xlu0 %v918, 20
  %v1496 = vpop.permute.xlu0 %1495
  %1497 = vrot.lane.b32.xlu0 %v919, 20
  %v1498 = vpop.permute.xlu0 %1497
  %1499 = vrot.lane.b32.xlu0 %v920, 20
  %v1500 = vpop.permute.xlu0 %1499
  %1501 = vrot.lane.b32.xlu0 %v921, 20
  %v1502 = vpop.permute.xlu0 %1501
  %1503 = vrot.lane.b32.xlu0 %v922, 20
  %v1504 = vpop.permute.xlu0 %1503
  %1505 = vrot.lane.b32.xlu0 %v1438, 20
  %v1506 = vpop.permute.xlu0 %1505
  %1507 = vrot.lane.b32.xlu0 %v924, 20
  %v1508 = vpop.permute.xlu0 %1507
  %1509 = vrot.lane.b32.xlu0 %v925, 20
  %v1510 = vpop.permute.xlu0 %1509
  %1511 = vrot.lane.b32.xlu0 %v926, 20
  %v1512 = vpop.permute.xlu0 %1511
  %1513 = vrot.lane.b32.xlu0 %v927, 20
  %v1514 = vpop.permute.xlu0 %1513
  %1515 = vrot.lane.b32.xlu0 %v928, 20
  %v1516 = vpop.permute.xlu0 %1515
  %1517 = vrot.lane.b32.xlu0 %v929, 20
  %v1518 = vpop.permute.xlu0 %1517
  %1519 = vrot.lane.b32.xlu0 %v930, 20
  %v1520 = vpop.permute.xlu0 %1519
  %1521 = vrot.lane.b32.xlu0 %v1439, 20
  %v1522 = vpop.permute.xlu0 %1521
  %1523 = vrot.lane.b32.xlu0 %v932, 20
  %v1524 = vpop.permute.xlu0 %1523
  %1525 = vrot.lane.b32.xlu0 %v933, 20
  %v1526 = vpop.permute.xlu0 %1525
  %1527 = vrot.lane.b32.xlu0 %v934, 20
  %v1528 = vpop.permute.xlu0 %1527
  %1529 = vrot.lane.b32.xlu0 %v935, 20
  %v1530 = vpop.permute.xlu0 %1529
  %1531 = vrot.lane.b32.xlu0 %v936, 20
  %v1532 = vpop.permute.xlu0 %1531
  %1533 = vrot.lane.b32.xlu0 %v937, 20
  %v1534 = vpop.permute.xlu0 %1533
  %1535 = vrot.lane.b32.xlu0 %v938, 20
  %v1536 = vpop.permute.xlu0 %1535
  %1537 = vrot.lane.b32.xlu0 %v1440, 20
  %v1538 = vpop.permute.xlu0 %1537
  %1539 = vrot.lane.b32.xlu0 %v940, 20
  %v1540 = vpop.permute.xlu0 %1539
  %1541 = vrot.lane.b32.xlu0 %v941, 20
  %v1542 = vpop.permute.xlu0 %1541
  %1543 = vrot.lane.b32.xlu0 %v942, 20
  %v1544 = vpop.permute.xlu0 %1543
  %1545 = vrot.lane.b32.xlu0 %v943, 20
  %v1546 = vpop.permute.xlu0 %1545
  %1547 = vrot.lane.b32.xlu0 %v944, 20
  %v1548 = vpop.permute.xlu0 %1547
  %1549 = vrot.lane.b32.xlu0 %v945, 20
  %v1550 = vpop.permute.xlu0 %1549
  %1551 = vrot.lane.b32.xlu0 %v946, 20
  %v1552 = vpop.permute.xlu0 %1551
  %1553 = vrot.lane.b32.xlu0 %v1441, 20
  %v1554 = vpop.permute.xlu0 %1553
  %1555 = vrot.lane.b32.xlu0 %v948, 20
  %v1556 = vpop.permute.xlu0 %1555
  %1557 = vrot.lane.b32.xlu0 %v949, 20
  %v1558 = vpop.permute.xlu0 %1557
  %1559 = vrot.lane.b32.xlu0 %v950, 20
  %v1560 = vpop.permute.xlu0 %1559
  %1561 = vrot.lane.b32.xlu0 %v951, 20
  %v1562 = vpop.permute.xlu0 %1561
  %1563 = vrot.lane.b32.xlu0 %v952, 20
  %v1564 = vpop.permute.xlu0 %1563
  %1565 = vrot.lane.b32.xlu0 %v953, 20
  %v1566 = vpop.permute.xlu0 %1565
  %1567 = vrot.lane.b32.xlu0 %v954, 20
  %v1568 = vpop.permute.xlu0 %1567
  %1569 = vrot.lane.b32.xlu0 %v1442, 20
  %v1570 = vpop.permute.xlu0 %1569
  %v1699 = vunpack.c.l.b16 %v91
  %v1700 = vunpack.c.l.b16 %v92
  %v1701 = vunpack.c.l.b16 %v95
  %v1702 = vunpack.c.l.b16 %v96
  %v1703 = vunpack.c.l.b16 %v99
  %v1704 = vunpack.c.l.b16 %v100
  %v1705 = vunpack.c.l.b16 %v103
  %v1706 = vunpack.c.l.b16 %v104
  %v1707 = vunpack.c.l.b16 %v107
  %v1708 = vunpack.c.l.b16 %v108
  %v1709 = vunpack.c.l.b16 %v111
  %v1710 = vunpack.c.l.b16 %v112
  %v1711 = vunpack.c.l.b16 %v115
  %v1712 = vunpack.c.l.b16 %v116
  %v1713 = vunpack.c.l.b16 %v119
  %v1714 = vunpack.c.l.b16 %v120
  %v1715 = vunpack.c.l.b16 %v159
  %v1716 = vunpack.c.l.b16 %v160
  %v1717 = vunpack.c.l.b16 %v163
  %v1718 = vunpack.c.l.b16 %v164
  %v1719 = vunpack.c.l.b16 %v167
  %v1720 = vunpack.c.l.b16 %v168
  %v1721 = vunpack.c.l.b16 %v171
  %v1722 = vunpack.c.l.b16 %v172
  %v1723 = vunpack.c.l.b16 %v175
  %v1724 = vunpack.c.l.b16 %v176
  %v1725 = vunpack.c.l.b16 %v179
  %v1726 = vunpack.c.l.b16 %v180
  %v1727 = vunpack.c.l.b16 %v183
  %v1728 = vunpack.c.l.b16 %v184
  %v1729 = vunpack.c.l.b16 %v187
  %v1730 = vunpack.c.l.b16 %v188
  %v1731 = vunpack.c.l.b16 %v227
  %v1732 = vunpack.c.l.b16 %v228
  %v1733 = vunpack.c.l.b16 %v231
  %v1734 = vunpack.c.l.b16 %v232
  %v1735 = vunpack.c.l.b16 %v235
  %v1736 = vunpack.c.l.b16 %v236
  %v1737 = vunpack.c.l.b16 %v239
  %v1738 = vunpack.c.l.b16 %v240
  %v1739 = vunpack.c.l.b16 %v243
  %v1740 = vunpack.c.l.b16 %v244
  %v1741 = vunpack.c.l.b16 %v247
  %v1742 = vunpack.c.l.b16 %v248
  %v1743 = vunpack.c.l.b16 %v251
  %v1744 = vunpack.c.l.b16 %v252
  %v1745 = vunpack.c.l.b16 %v255
  %v1746 = vunpack.c.l.b16 %v256
  %v1747 = vunpack.c.l.b16 %v295
  %v1748 = vunpack.c.l.b16 %v296
  %v1749 = vunpack.c.l.b16 %v299
  %v1750 = vunpack.c.l.b16 %v300
  %v1751 = vunpack.c.l.b16 %v303
  %v1752 = vunpack.c.l.b16 %v304
  %v1753 = vunpack.c.l.b16 %v307
  %v1754 = vunpack.c.l.b16 %v308
  %v1755 = vunpack.c.l.b16 %v311
  %v1756 = vunpack.c.l.b16 %v312
  %v1757 = vunpack.c.l.b16 %v315
  %v1758 = vunpack.c.l.b16 %v316
  %v1759 = vunpack.c.l.b16 %v319
  %v1760 = vunpack.c.l.b16 %v320
  %v1761 = vunpack.c.l.b16 %v323
  %v1762 = vunpack.c.l.b16 %v324
  %v1763 = vunpack.c.l.b16 %v363
  %v1764 = vunpack.c.l.b16 %v364
  %v1765 = vunpack.c.l.b16 %v367
  %v1766 = vunpack.c.l.b16 %v368
  %v1767 = vunpack.c.l.b16 %v371
  %v1768 = vunpack.c.l.b16 %v372
  %v1769 = vunpack.c.l.b16 %v375
  %v1770 = vunpack.c.l.b16 %v376
  %v1771 = vunpack.c.l.b16 %v379
  %v1772 = vunpack.c.l.b16 %v380
  %v1773 = vunpack.c.l.b16 %v383
  %v1774 = vunpack.c.l.b16 %v384
  %v1775 = vunpack.c.l.b16 %v387
  %v1776 = vunpack.c.l.b16 %v388
  %v1777 = vunpack.c.l.b16 %v391
  %v1778 = vunpack.c.l.b16 %v392
  %v1779 = vunpack.c.l.b16 %v431
  %v1780 = vunpack.c.l.b16 %v432
  %v1781 = vunpack.c.l.b16 %v435
  %v1782 = vunpack.c.l.b16 %v436
  %v1783 = vunpack.c.l.b16 %v439
  %v1784 = vunpack.c.l.b16 %v440
  %v1785 = vunpack.c.l.b16 %v443
  %v1786 = vunpack.c.l.b16 %v444
  %v1787 = vunpack.c.l.b16 %v447
  %v1788 = vunpack.c.l.b16 %v448
  %v1789 = vunpack.c.l.b16 %v451
  %v1790 = vunpack.c.l.b16 %v452
  %v1791 = vunpack.c.l.b16 %v455
  %v1792 = vunpack.c.l.b16 %v456
  %v1793 = vunpack.c.l.b16 %v459
  %v1794 = vunpack.c.l.b16 %v460
  %v1795 = vunpack.c.l.b16 %v499
  %v1796 = vunpack.c.l.b16 %v500
  %v1797 = vunpack.c.l.b16 %v503
  %v1798 = vunpack.c.l.b16 %v504
  %v1799 = vunpack.c.l.b16 %v507
  %v1800 = vunpack.c.l.b16 %v508
  %v1801 = vunpack.c.l.b16 %v511
  %v1802 = vunpack.c.l.b16 %v512
  %v1803 = vunpack.c.l.b16 %v515
  %v1804 = vunpack.c.l.b16 %v516
  %v1805 = vunpack.c.l.b16 %v519
  %v1806 = vunpack.c.l.b16 %v520
  %v1807 = vunpack.c.l.b16 %v523
  %v1808 = vunpack.c.l.b16 %v524
  %v1809 = vunpack.c.l.b16 %v527
  %v1810 = vunpack.c.l.b16 %v528
  %v1811 = vunpack.c.l.b16 %v567
  %v1812 = vunpack.c.l.b16 %v568
  %v1813 = vunpack.c.l.b16 %v571
  %v1814 = vunpack.c.l.b16 %v572
  %v1815 = vunpack.c.l.b16 %v575
  %v1816 = vunpack.c.l.b16 %v576
  %v1817 = vunpack.c.l.b16 %v579
  %v1818 = vunpack.c.l.b16 %v580
  %v1819 = vunpack.c.l.b16 %v583
  %v1820 = vunpack.c.l.b16 %v584
  %v1821 = vunpack.c.l.b16 %v587
  %v1822 = vunpack.c.l.b16 %v588
  %v1823 = vunpack.c.l.b16 %v591
  %v1824 = vunpack.c.l.b16 %v592
  %v1825 = vunpack.c.l.b16 %v595
  %v1826 = vunpack.c.l.b16 %v596
  %v1827 = vpack.c.b16 %v1700, %v1699
  %v1828 = vpack.c.b16 %v1702, %v1701
  %v1829 = vpack.c.b16 %v1704, %v1703
  %v1830 = vpack.c.b16 %v1706, %v1705
  %v1831 = vpack.c.b16 %v1708, %v1707
  %v1832 = vpack.c.b16 %v1710, %v1709
  %v1833 = vpack.c.b16 %v1712, %v1711
  %v1834 = vpack.c.b16 %v1714, %v1713
  %v1835 = vpack.c.b16 %v1716, %v1715
  %v1836 = vpack.c.b16 %v1718, %v1717
  %v1837 = vpack.c.b16 %v1720, %v1719
  %v1838 = vpack.c.b16 %v1722, %v1721
  %v1839 = vpack.c.b16 %v1724, %v1723
  %v1840 = vpack.c.b16 %v1726, %v1725
  %v1841 = vpack.c.b16 %v1728, %v1727
  %v1842 = vpack.c.b16 %v1730, %v1729
  %v1843 = vpack.c.b16 %v1732, %v1731
  %v1844 = vpack.c.b16 %v1734, %v1733
  %v1845 = vpack.c.b16 %v1736, %v1735
  %v1846 = vpack.c.b16 %v1738, %v1737
  %v1847 = vpack.c.b16 %v1740, %v1739
  %v1848 = vpack.c.b16 %v1742, %v1741
  %v1849 = vpack.c.b16 %v1744, %v1743
  %v1850 = vpack.c.b16 %v1746, %v1745
  %v1851 = vpack.c.b16 %v1748, %v1747
  %v1852 = vpack.c.b16 %v1750, %v1749
  %v1853 = vpack.c.b16 %v1752, %v1751
  %v1854 = vpack.c.b16 %v1754, %v1753
  %v1855 = vpack.c.b16 %v1756, %v1755
  %v1856 = vpack.c.b16 %v1758, %v1757
  %v1857 = vpack.c.b16 %v1760, %v1759
  %v1858 = vpack.c.b16 %v1762, %v1761
  %v1859 = vpack.c.b16 %v1764, %v1763
  %v1860 = vpack.c.b16 %v1766, %v1765
  %v1861 = vpack.c.b16 %v1768, %v1767
  %v1862 = vpack.c.b16 %v1770, %v1769
  %v1863 = vpack.c.b16 %v1772, %v1771
  %v1864 = vpack.c.b16 %v1774, %v1773
  %v1865 = vpack.c.b16 %v1776, %v1775
  %v1866 = vpack.c.b16 %v1778, %v1777
  %v1867 = vpack.c.b16 %v1780, %v1779
  %v1868 = vpack.c.b16 %v1782, %v1781
  %v1869 = vpack.c.b16 %v1784, %v1783
  %v1870 = vpack.c.b16 %v1786, %v1785
  %v1871 = vpack.c.b16 %v1788, %v1787
  %v1872 = vpack.c.b16 %v1790, %v1789
  %v1873 = vpack.c.b16 %v1792, %v1791
  %v1874 = vpack.c.b16 %v1794, %v1793
  %v1875 = vpack.c.b16 %v1796, %v1795
  %v1876 = vpack.c.b16 %v1798, %v1797
  %v1877 = vpack.c.b16 %v1800, %v1799
  %v1878 = vpack.c.b16 %v1802, %v1801
  %v1879 = vpack.c.b16 %v1804, %v1803
  %v1880 = vpack.c.b16 %v1806, %v1805
  %v1881 = vpack.c.b16 %v1808, %v1807
  %v1882 = vpack.c.b16 %v1810, %v1809
  %v1883 = vpack.c.b16 %v1812, %v1811
  %v1884 = vpack.c.b16 %v1814, %v1813
  %v1885 = vpack.c.b16 %v1816, %v1815
  %v1886 = vpack.c.b16 %v1818, %v1817
  %v1887 = vpack.c.b16 %v1820, %v1819
  %v1888 = vpack.c.b16 %v1822, %v1821
  %v1889 = vpack.c.b16 %v1824, %v1823
  %v1890 = vpack.c.b16 %v1826, %v1825
  %1891 = vrot.lane.b32.xlu0 %v1827, 30
  %v1892 = vpop.permute.xlu0 %1891
  %1893 = vrot.lane.b32.xlu0 %v1828, 30
  %v1894 = vpop.permute.xlu0 %1893
  %1895 = vrot.lane.b32.xlu0 %v1829, 30
  %v1896 = vpop.permute.xlu0 %1895
  %1897 = vrot.lane.b32.xlu0 %v1830, 30
  %v1898 = vpop.permute.xlu0 %1897
  %1899 = vrot.lane.b32.xlu0 %v1831, 30
  %v1900 = vpop.permute.xlu0 %1899
  %1901 = vrot.lane.b32.xlu0 %v1832, 30
  %v1902 = vpop.permute.xlu0 %1901
  %1903 = vrot.lane.b32.xlu0 %v1833, 30
  %v1904 = vpop.permute.xlu0 %1903
  %1905 = vrot.lane.b32.xlu0 %v1834, 30
  %v1906 = vpop.permute.xlu0 %1905
  %1907 = vrot.lane.b32.xlu0 %v1835, 30
  %v1908 = vpop.permute.xlu0 %1907
  %1909 = vrot.lane.b32.xlu0 %v1836, 30
  %v1910 = vpop.permute.xlu0 %1909
  %1911 = vrot.lane.b32.xlu0 %v1837, 30
  %v1912 = vpop.permute.xlu0 %1911
  %1913 = vrot.lane.b32.xlu0 %v1838, 30
  %v1914 = vpop.permute.xlu0 %1913
  %1915 = vrot.lane.b32.xlu0 %v1839, 30
  %v1916 = vpop.permute.xlu0 %1915
  %1917 = vrot.lane.b32.xlu0 %v1840, 30
  %v1918 = vpop.permute.xlu0 %1917
  %1919 = vrot.lane.b32.xlu0 %v1841, 30
  %v1920 = vpop.permute.xlu0 %1919
  %1921 = vrot.lane.b32.xlu0 %v1842, 30
  %v1922 = vpop.permute.xlu0 %1921
  %1923 = vrot.lane.b32.xlu0 %v1843, 30
  %v1924 = vpop.permute.xlu0 %1923
  %1925 = vrot.lane.b32.xlu0 %v1844, 30
  %v1926 = vpop.permute.xlu0 %1925
  %1927 = vrot.lane.b32.xlu0 %v1845, 30
  %v1928 = vpop.permute.xlu0 %1927
  %1929 = vrot.lane.b32.xlu0 %v1846, 30
  %v1930 = vpop.permute.xlu0 %1929
  %1931 = vrot.lane.b32.xlu0 %v1847, 30
  %v1932 = vpop.permute.xlu0 %1931
  %1933 = vrot.lane.b32.xlu0 %v1848, 30
  %v1934 = vpop.permute.xlu0 %1933
  %1935 = vrot.lane.b32.xlu0 %v1849, 30
  %v1936 = vpop.permute.xlu0 %1935
  %1937 = vrot.lane.b32.xlu0 %v1850, 30
  %v1938 = vpop.permute.xlu0 %1937
  %1939 = vrot.lane.b32.xlu0 %v1851, 30
  %v1940 = vpop.permute.xlu0 %1939
  %1941 = vrot.lane.b32.xlu0 %v1852, 30
  %v1942 = vpop.permute.xlu0 %1941
  %1943 = vrot.lane.b32.xlu0 %v1853, 30
  %v1944 = vpop.permute.xlu0 %1943
  %1945 = vrot.lane.b32.xlu0 %v1854, 30
  %v1946 = vpop.permute.xlu0 %1945
  %1947 = vrot.lane.b32.xlu0 %v1855, 30
  %v1948 = vpop.permute.xlu0 %1947
  %1949 = vrot.lane.b32.xlu0 %v1856, 30
  %v1950 = vpop.permute.xlu0 %1949
  %1951 = vrot.lane.b32.xlu0 %v1857, 30
  %v1952 = vpop.permute.xlu0 %1951
  %1953 = vrot.lane.b32.xlu0 %v1858, 30
  %v1954 = vpop.permute.xlu0 %1953
  %1955 = vrot.lane.b32.xlu0 %v1859, 30
  %v1956 = vpop.permute.xlu0 %1955
  %1957 = vrot.lane.b32.xlu0 %v1860, 30
  %v1958 = vpop.permute.xlu0 %1957
  %1959 = vrot.lane.b32.xlu0 %v1861, 30
  %v1960 = vpop.permute.xlu0 %1959
  %1961 = vrot.lane.b32.xlu0 %v1862, 30
  %v1962 = vpop.permute.xlu0 %1961
  %1963 = vrot.lane.b32.xlu0 %v1863, 30
  %v1964 = vpop.permute.xlu0 %1963
  %1965 = vrot.lane.b32.xlu0 %v1864, 30
  %v1966 = vpop.permute.xlu0 %1965
  %1967 = vrot.lane.b32.xlu0 %v1865, 30
  %v1968 = vpop.permute.xlu0 %1967
  %1969 = vrot.lane.b32.xlu0 %v1866, 30
  %v1970 = vpop.permute.xlu0 %1969
  %1971 = vrot.lane.b32.xlu0 %v1867, 30
  %v1972 = vpop.permute.xlu0 %1971
  %1973 = vrot.lane.b32.xlu0 %v1868, 30
  %v1974 = vpop.permute.xlu0 %1973
  %1975 = vrot.lane.b32.xlu0 %v1869, 30
  %v1976 = vpop.permute.xlu0 %1975
  %1977 = vrot.lane.b32.xlu0 %v1870, 30
  %v1978 = vpop.permute.xlu0 %1977
  %1979 = vrot.lane.b32.xlu0 %v1871, 30
  %v1980 = vpop.permute.xlu0 %1979
  %1981 = vrot.lane.b32.xlu0 %v1872, 30
  %v1982 = vpop.permute.xlu0 %1981
  %1983 = vrot.lane.b32.xlu0 %v1873, 30
  %v1984 = vpop.permute.xlu0 %1983
  %1985 = vrot.lane.b32.xlu0 %v1874, 30
  %v1986 = vpop.permute.xlu0 %1985
  %1987 = vrot.lane.b32.xlu0 %v1875, 30
  %v1988 = vpop.permute.xlu0 %1987
  %1989 = vrot.lane.b32.xlu0 %v1876, 30
  %v1990 = vpop.permute.xlu0 %1989
  %1991 = vrot.lane.b32.xlu0 %v1877, 30
  %v1992 = vpop.permute.xlu0 %1991
  %1993 = vrot.lane.b32.xlu0 %v1878, 30
  %v1994 = vpop.permute.xlu0 %1993
  %1995 = vrot.lane.b32.xlu0 %v1879, 30
  %v1996 = vpop.permute.xlu0 %1995
  %1997 = vrot.lane.b32.xlu0 %v1880, 30
  %v1998 = vpop.permute.xlu0 %1997
  %1999 = vrot.lane.b32.xlu0 %v1881, 30
  %v2000 = vpop.permute.xlu0 %1999
  %2001 = vrot.lane.b32.xlu0 %v1882, 30
  %v2002 = vpop.permute.xlu0 %2001
  %2003 = vrot.lane.b32.xlu0 %v1883, 30
  %v2004 = vpop.permute.xlu0 %2003
  %2005 = vrot.lane.b32.xlu0 %v1884, 30
  %v2006 = vpop.permute.xlu0 %2005
  %2007 = vrot.lane.b32.xlu0 %v1885, 30
  %v2008 = vpop.permute.xlu0 %2007
  %2009 = vrot.lane.b32.xlu0 %v1886, 30
  %v2010 = vpop.permute.xlu0 %2009
  %2011 = vrot.lane.b32.xlu0 %v1887, 30
  %v2012 = vpop.permute.xlu0 %2011
  %2013 = vrot.lane.b32.xlu0 %v1888, 30
  %v2014 = vpop.permute.xlu0 %2013
  %2015 = vrot.lane.b32.xlu0 %v1889, 30
  %v2016 = vpop.permute.xlu0 %2015
  %2017 = vrot.lane.b32.xlu0 %v1890, 30
  %v2018 = vpop.permute.xlu0 %2017
  %v2147 = vunpack.c.l.b16 %v93
  %v2148 = vunpack.c.l.b16 %v94
  %v2149 = vunpack.c.l.b16 %v97
  %v2150 = vunpack.c.l.b16 %v98
  %v2151 = vunpack.c.l.b16 %v101
  %v2152 = vunpack.c.l.b16 %v102
  %v2153 = vunpack.c.l.b16 %v105
  %v2154 = vunpack.c.l.b16 %v106
  %v2155 = vunpack.c.l.b16 %v109
  %v2156 = vunpack.c.l.b16 %v110
  %v2157 = vunpack.c.l.b16 %v113
  %v2158 = vunpack.c.l.b16 %v114
  %v2159 = vunpack.c.l.b16 %v117
  %v2160 = vunpack.c.l.b16 %v118
  %v2161 = vunpack.c.l.b16 %v121
  %v2162 = vunpack.c.l.b16 %v122
  %v2163 = vunpack.c.l.b16 %v161
  %v2164 = vunpack.c.l.b16 %v162
  %v2165 = vunpack.c.l.b16 %v165
  %v2166 = vunpack.c.l.b16 %v166
  %v2167 = vunpack.c.l.b16 %v169
  %v2168 = vunpack.c.l.b16 %v170
  %v2169 = vunpack.c.l.b16 %v173
  %v2170 = vunpack.c.l.b16 %v174
  %v2171 = vunpack.c.l.b16 %v177
  %v2172 = vunpack.c.l.b16 %v178
  %v2173 = vunpack.c.l.b16 %v181
  %v2174 = vunpack.c.l.b16 %v182
  %v2175 = vunpack.c.l.b16 %v185
  %v2176 = vunpack.c.l.b16 %v186
  %v2177 = vunpack.c.l.b16 %v189
  %v2178 = vunpack.c.l.b16 %v190
  %v2179 = vunpack.c.l.b16 %v229
  %v2180 = vunpack.c.l.b16 %v230
  %v2181 = vunpack.c.l.b16 %v233
  %v2182 = vunpack.c.l.b16 %v234
  %v2183 = vunpack.c.l.b16 %v237
  %v2184 = vunpack.c.l.b16 %v238
  %v2185 = vunpack.c.l.b16 %v241
  %v2186 = vunpack.c.l.b16 %v242
  %v2187 = vunpack.c.l.b16 %v245
  %v2188 = vunpack.c.l.b16 %v246
  %v2189 = vunpack.c.l.b16 %v249
  %v2190 = vunpack.c.l.b16 %v250
  %v2191 = vunpack.c.l.b16 %v253
  %v2192 = vunpack.c.l.b16 %v254
  %v2193 = vunpack.c.l.b16 %v257
  %v2194 = vunpack.c.l.b16 %v258
  %v2195 = vunpack.c.l.b16 %v297
  %v2196 = vunpack.c.l.b16 %v298
  %v2197 = vunpack.c.l.b16 %v301
  %v2198 = vunpack.c.l.b16 %v302
  %v2199 = vunpack.c.l.b16 %v305
  %v2200 = vunpack.c.l.b16 %v306
  %v2201 = vunpack.c.l.b16 %v309
  %v2202 = vunpack.c.l.b16 %v310
  %v2203 = vunpack.c.l.b16 %v313
  %v2204 = vunpack.c.l.b16 %v314
  %v2205 = vunpack.c.l.b16 %v317
  %v2206 = vunpack.c.l.b16 %v318
  %v2207 = vunpack.c.l.b16 %v321
  %v2208 = vunpack.c.l.b16 %v322
  %v2209 = vunpack.c.l.b16 %v325
  %v2210 = vunpack.c.l.b16 %v326
  %v2211 = vunpack.c.l.b16 %v365
  %v2212 = vunpack.c.l.b16 %v366
  %v2213 = vunpack.c.l.b16 %v369
  %v2214 = vunpack.c.l.b16 %v370
  %v2215 = vunpack.c.l.b16 %v373
  %v2216 = vunpack.c.l.b16 %v374
  %v2217 = vunpack.c.l.b16 %v377
  %v2218 = vunpack.c.l.b16 %v378
  %v2219 = vunpack.c.l.b16 %v381
  %v2220 = vunpack.c.l.b16 %v382
  %v2221 = vunpack.c.l.b16 %v385
  %v2222 = vunpack.c.l.b16 %v386
  %v2223 = vunpack.c.l.b16 %v389
  %v2224 = vunpack.c.l.b16 %v390
  %v2225 = vunpack.c.l.b16 %v393
  %v2226 = vunpack.c.l.b16 %v394
  %v2227 = vunpack.c.l.b16 %v433
  %v2228 = vunpack.c.l.b16 %v434
  %v2229 = vunpack.c.l.b16 %v437
  %v2230 = vunpack.c.l.b16 %v438
  %v2231 = vunpack.c.l.b16 %v441
  %v2232 = vunpack.c.l.b16 %v442
  %v2233 = vunpack.c.l.b16 %v445
  %v2234 = vunpack.c.l.b16 %v446
  %v2235 = vunpack.c.l.b16 %v449
  %v2236 = vunpack.c.l.b16 %v450
  %v2237 = vunpack.c.l.b16 %v453
  %v2238 = vunpack.c.l.b16 %v454
  %v2239 = vunpack.c.l.b16 %v457
  %v2240 = vunpack.c.l.b16 %v458
  %v2241 = vunpack.c.l.b16 %v461
  %v2242 = vunpack.c.l.b16 %v462
  %v2243 = vunpack.c.l.b16 %v501
  %v2244 = vunpack.c.l.b16 %v502
  %v2245 = vunpack.c.l.b16 %v505
  %v2246 = vunpack.c.l.b16 %v506
  %v2247 = vunpack.c.l.b16 %v509
  %v2248 = vunpack.c.l.b16 %v510
  %v2249 = vunpack.c.l.b16 %v513
  %v2250 = vunpack.c.l.b16 %v514
  %v2251 = vunpack.c.l.b16 %v517
  %v2252 = vunpack.c.l.b16 %v518
  %v2253 = vunpack.c.l.b16 %v521
  %v2254 = vunpack.c.l.b16 %v522
  %v2255 = vunpack.c.l.b16 %v525
  %v2256 = vunpack.c.l.b16 %v526
  %v2257 = vunpack.c.l.b16 %v529
  %v2258 = vunpack.c.l.b16 %v530
  %v2259 = vunpack.c.l.b16 %v569
  %v2260 = vunpack.c.l.b16 %v570
  %v2261 = vunpack.c.l.b16 %v573
  %v2262 = vunpack.c.l.b16 %v574
  %v2263 = vunpack.c.l.b16 %v577
  %v2264 = vunpack.c.l.b16 %v578
  %v2265 = vunpack.c.l.b16 %v581
  %v2266 = vunpack.c.l.b16 %v582
  %v2267 = vunpack.c.l.b16 %v585
  %v2268 = vunpack.c.l.b16 %v586
  %v2269 = vunpack.c.l.b16 %v589
  %v2270 = vunpack.c.l.b16 %v590
  %v2271 = vunpack.c.l.b16 %v593
  %v2272 = vunpack.c.l.b16 %v594
  %v2273 = vunpack.c.l.b16 %v597
  %v2274 = vunpack.c.l.b16 %v598
  %v2275 = vpack.c.b16 %v2148, %v2147
  %v2276 = vpack.c.b16 %v2150, %v2149
  %v2277 = vpack.c.b16 %v2152, %v2151
  %v2278 = vpack.c.b16 %v2154, %v2153
  %v2279 = vpack.c.b16 %v2156, %v2155
  %v2280 = vpack.c.b16 %v2158, %v2157
  %v2281 = vpack.c.b16 %v2160, %v2159
  %v2282 = vpack.c.b16 %v2162, %v2161
  %v2283 = vpack.c.b16 %v2164, %v2163
  %v2284 = vpack.c.b16 %v2166, %v2165
  %v2285 = vpack.c.b16 %v2168, %v2167
  %v2286 = vpack.c.b16 %v2170, %v2169
  %v2287 = vpack.c.b16 %v2172, %v2171
  %v2288 = vpack.c.b16 %v2174, %v2173
  %v2289 = vpack.c.b16 %v2176, %v2175
  %v2290 = vpack.c.b16 %v2178, %v2177
  %v2291 = vpack.c.b16 %v2180, %v2179
  %v2292 = vpack.c.b16 %v2182, %v2181
  %v2293 = vpack.c.b16 %v2184, %v2183
  %v2294 = vpack.c.b16 %v2186, %v2185
  %v2295 = vpack.c.b16 %v2188, %v2187
  %v2296 = vpack.c.b16 %v2190, %v2189
  %v2297 = vpack.c.b16 %v2192, %v2191
  %v2298 = vpack.c.b16 %v2194, %v2193
  %v2299 = vpack.c.b16 %v2196, %v2195
  %v2300 = vpack.c.b16 %v2198, %v2197
  %v2301 = vpack.c.b16 %v2200, %v2199
  %v2302 = vpack.c.b16 %v2202, %v2201
  %v2303 = vpack.c.b16 %v2204, %v2203
  %v2304 = vpack.c.b16 %v2206, %v2205
  %v2305 = vpack.c.b16 %v2208, %v2207
  %v2306 = vpack.c.b16 %v2210, %v2209
  %v2307 = vpack.c.b16 %v2212, %v2211
  %v2308 = vpack.c.b16 %v2214, %v2213
  %v2309 = vpack.c.b16 %v2216, %v2215
  %v2310 = vpack.c.b16 %v2218, %v2217
  %v2311 = vpack.c.b16 %v2220, %v2219
  %v2312 = vpack.c.b16 %v2222, %v2221
  %v2313 = vpack.c.b16 %v2224, %v2223
  %v2314 = vpack.c.b16 %v2226, %v2225
  %v2315 = vpack.c.b16 %v2228, %v2227
  %v2316 = vpack.c.b16 %v2230, %v2229
  %v2317 = vpack.c.b16 %v2232, %v2231
  %v2318 = vpack.c.b16 %v2234, %v2233
  %v2319 = vpack.c.b16 %v2236, %v2235
  %v2320 = vpack.c.b16 %v2238, %v2237
  %v2321 = vpack.c.b16 %v2240, %v2239
  %v2322 = vpack.c.b16 %v2242, %v2241
  %v2323 = vpack.c.b16 %v2244, %v2243
  %v2324 = vpack.c.b16 %v2246, %v2245
  %v2325 = vpack.c.b16 %v2248, %v2247
  %v2326 = vpack.c.b16 %v2250, %v2249
  %v2327 = vpack.c.b16 %v2252, %v2251
  %v2328 = vpack.c.b16 %v2254, %v2253
  %v2329 = vpack.c.b16 %v2256, %v2255
  %v2330 = vpack.c.b16 %v2258, %v2257
  %v2331 = vpack.c.b16 %v2260, %v2259
  %v2332 = vpack.c.b16 %v2262, %v2261
  %v2333 = vpack.c.b16 %v2264, %v2263
  %v2334 = vpack.c.b16 %v2266, %v2265
  %v2335 = vpack.c.b16 %v2268, %v2267
  %v2336 = vpack.c.b16 %v2270, %v2269
  %v2337 = vpack.c.b16 %v2272, %v2271
  %v2338 = vpack.c.b16 %v2274, %v2273
  %2339 = vrot.lane.b32.xlu0 %v2275, 40
  %v2340 = vpop.permute.xlu0 %2339
  %2341 = vrot.lane.b32.xlu0 %v2276, 40
  %v2342 = vpop.permute.xlu0 %2341
  %2343 = vrot.lane.b32.xlu0 %v2277, 40
  %v2344 = vpop.permute.xlu0 %2343
  %2345 = vrot.lane.b32.xlu0 %v2278, 40
  %v2346 = vpop.permute.xlu0 %2345
  %2347 = vrot.lane.b32.xlu0 %v2279, 40
  %v2348 = vpop.permute.xlu0 %2347
  %2349 = vrot.lane.b32.xlu0 %v2280, 40
  %v2350 = vpop.permute.xlu0 %2349
  %2351 = vrot.lane.b32.xlu0 %v2281, 40
  %v2352 = vpop.permute.xlu0 %2351
  %2353 = vrot.lane.b32.xlu0 %v2282, 40
  %v2354 = vpop.permute.xlu0 %2353
  %2355 = vrot.lane.b32.xlu0 %v2283, 40
  %v2356 = vpop.permute.xlu0 %2355
  %2357 = vrot.lane.b32.xlu0 %v2284, 40
  %v2358 = vpop.permute.xlu0 %2357
  %2359 = vrot.lane.b32.xlu0 %v2285, 40
  %v2360 = vpop.permute.xlu0 %2359
  %2361 = vrot.lane.b32.xlu0 %v2286, 40
  %v2362 = vpop.permute.xlu0 %2361
  %2363 = vrot.lane.b32.xlu0 %v2287, 40
  %v2364 = vpop.permute.xlu0 %2363
  %2365 = vrot.lane.b32.xlu0 %v2288, 40
  %v2366 = vpop.permute.xlu0 %2365
  %2367 = vrot.lane.b32.xlu0 %v2289, 40
  %v2368 = vpop.permute.xlu0 %2367
  %2369 = vrot.lane.b32.xlu0 %v2290, 40
  %v2370 = vpop.permute.xlu0 %2369
  %2371 = vrot.lane.b32.xlu0 %v2291, 40
  %v2372 = vpop.permute.xlu0 %2371
  %2373 = vrot.lane.b32.xlu0 %v2292, 40
  %v2374 = vpop.permute.xlu0 %2373
  %2375 = vrot.lane.b32.xlu0 %v2293, 40
  %v2376 = vpop.permute.xlu0 %2375
  %2377 = vrot.lane.b32.xlu0 %v2294, 40
  %v2378 = vpop.permute.xlu0 %2377
  %2379 = vrot.lane.b32.xlu0 %v2295, 40
  %v2380 = vpop.permute.xlu0 %2379
  %2381 = vrot.lane.b32.xlu0 %v2296, 40
  %v2382 = vpop.permute.xlu0 %2381
  %2383 = vrot.lane.b32.xlu0 %v2297, 40
  %v2384 = vpop.permute.xlu0 %2383
  %2385 = vrot.lane.b32.xlu0 %v2298, 40
  %v2386 = vpop.permute.xlu0 %2385
  %2387 = vrot.lane.b32.xlu0 %v2299, 40
  %v2388 = vpop.permute.xlu0 %2387
  %2389 = vrot.lane.b32.xlu0 %v2300, 40
  %v2390 = vpop.permute.xlu0 %2389
  %2391 = vrot.lane.b32.xlu0 %v2301, 40
  %v2392 = vpop.permute.xlu0 %2391
  %2393 = vrot.lane.b32.xlu0 %v2302, 40
  %v2394 = vpop.permute.xlu0 %2393
  %2395 = vrot.lane.b32.xlu0 %v2303, 40
  %v2396 = vpop.permute.xlu0 %2395
  %2397 = vrot.lane.b32.xlu0 %v2304, 40
  %v2398 = vpop.permute.xlu0 %2397
  %2399 = vrot.lane.b32.xlu0 %v2305, 40
  %v2400 = vpop.permute.xlu0 %2399
  %2401 = vrot.lane.b32.xlu0 %v2306, 40
  %v2402 = vpop.permute.xlu0 %2401
  %2403 = vrot.lane.b32.xlu0 %v2307, 40
  %v2404 = vpop.permute.xlu0 %2403
  %2405 = vrot.lane.b32.xlu0 %v2308, 40
  %v2406 = vpop.permute.xlu0 %2405
  %2407 = vrot.lane.b32.xlu0 %v2309, 40
  %v2408 = vpop.permute.xlu0 %2407
  %2409 = vrot.lane.b32.xlu0 %v2310, 40
  %v2410 = vpop.permute.xlu0 %2409
  %2411 = vrot.lane.b32.xlu0 %v2311, 40
  %v2412 = vpop.permute.xlu0 %2411
  %2413 = vrot.lane.b32.xlu0 %v2312, 40
  %v2414 = vpop.permute.xlu0 %2413
  %2415 = vrot.lane.b32.xlu0 %v2313, 40
  %v2416 = vpop.permute.xlu0 %2415
  %2417 = vrot.lane.b32.xlu0 %v2314, 40
  %v2418 = vpop.permute.xlu0 %2417
  %2419 = vrot.lane.b32.xlu0 %v2315, 40
  %v2420 = vpop.permute.xlu0 %2419
  %2421 = vrot.lane.b32.xlu0 %v2316, 40
  %v2422 = vpop.permute.xlu0 %2421
  %2423 = vrot.lane.b32.xlu0 %v2317, 40
  %v2424 = vpop.permute.xlu0 %2423
  %2425 = vrot.lane.b32.xlu0 %v2318, 40
  %v2426 = vpop.permute.xlu0 %2425
  %2427 = vrot.lane.b32.xlu0 %v2319, 40
  %v2428 = vpop.permute.xlu0 %2427
  %2429 = vrot.lane.b32.xlu0 %v2320, 40
  %v2430 = vpop.permute.xlu0 %2429
  %2431 = vrot.lane.b32.xlu0 %v2321, 40
  %v2432 = vpop.permute.xlu0 %2431
  %2433 = vrot.lane.b32.xlu0 %v2322, 40
  %v2434 = vpop.permute.xlu0 %2433
  %2435 = vrot.lane.b32.xlu0 %v2323, 40
  %v2436 = vpop.permute.xlu0 %2435
  %2437 = vrot.lane.b32.xlu0 %v2324, 40
  %v2438 = vpop.permute.xlu0 %2437
  %2439 = vrot.lane.b32.xlu0 %v2325, 40
  %v2440 = vpop.permute.xlu0 %2439
  %2441 = vrot.lane.b32.xlu0 %v2326, 40
  %v2442 = vpop.permute.xlu0 %2441
  %2443 = vrot.lane.b32.xlu0 %v2327, 40
  %v2444 = vpop.permute.xlu0 %2443
  %2445 = vrot.lane.b32.xlu0 %v2328, 40
  %v2446 = vpop.permute.xlu0 %2445
  %2447 = vrot.lane.b32.xlu0 %v2329, 40
  %v2448 = vpop.permute.xlu0 %2447
  %2449 = vrot.lane.b32.xlu0 %v2330, 40
  %v2450 = vpop.permute.xlu0 %2449
  %2451 = vrot.lane.b32.xlu0 %v2331, 40
  %v2452 = vpop.permute.xlu0 %2451
  %2453 = vrot.lane.b32.xlu0 %v2332, 40
  %v2454 = vpop.permute.xlu0 %2453
  %2455 = vrot.lane.b32.xlu0 %v2333, 40
  %v2456 = vpop.permute.xlu0 %2455
  %2457 = vrot.lane.b32.xlu0 %v2334, 40
  %v2458 = vpop.permute.xlu0 %2457
  %2459 = vrot.lane.b32.xlu0 %v2335, 40
  %v2460 = vpop.permute.xlu0 %2459
  %2461 = vrot.lane.b32.xlu0 %v2336, 40
  %v2462 = vpop.permute.xlu0 %2461
  %2463 = vrot.lane.b32.xlu0 %v2337, 40
  %v2464 = vpop.permute.xlu0 %2463
  %2465 = vrot.lane.b32.xlu0 %v2338, 40
  %v2466 = vpop.permute.xlu0 %2465
  %v2483 = vunpack.c.l.b16 %v123
  %v2484 = vunpack.c.l.b16 %v124
  %v2485 = vunpack.c.l.b16 %v191
  %v2486 = vunpack.c.l.b16 %v192
  %v2487 = vunpack.c.l.b16 %v259
  %v2488 = vunpack.c.l.b16 %v260
  %v2489 = vunpack.c.l.b16 %v327
  %v2490 = vunpack.c.l.b16 %v328
  %v2491 = vunpack.c.l.b16 %v395
  %v2492 = vunpack.c.l.b16 %v396
  %v2493 = vunpack.c.l.b16 %v463
  %v2494 = vunpack.c.l.b16 %v464
  %v2495 = vunpack.c.l.b16 %v531
  %v2496 = vunpack.c.l.b16 %v532
  %v2497 = vunpack.c.l.b16 %v599
  %v2498 = vunpack.c.l.b16 %v600
  %v2499 = vpack.c.b16 %v2484, %v2483
  %v2500 = vpack.c.b16 %v2486, %v2485
  %v2501 = vpack.c.b16 %v2488, %v2487
  %v2502 = vpack.c.b16 %v2490, %v2489
  %v2503 = vpack.c.b16 %v2492, %v2491
  %v2504 = vpack.c.b16 %v2494, %v2493
  %v2505 = vpack.c.b16 %v2496, %v2495
  %v2506 = vpack.c.b16 %v2498, %v2497
  %2507 = vrot.lane.b32.xlu0 %v1828, 50
  %v2508 = vpop.permute.xlu0 %2507
  %2509 = vrot.lane.b32.xlu0 %v1829, 50
  %v2510 = vpop.permute.xlu0 %2509
  %2511 = vrot.lane.b32.xlu0 %v1830, 50
  %v2512 = vpop.permute.xlu0 %2511
  %2513 = vrot.lane.b32.xlu0 %v1831, 50
  %v2514 = vpop.permute.xlu0 %2513
  %2515 = vrot.lane.b32.xlu0 %v1832, 50
  %v2516 = vpop.permute.xlu0 %2515
  %2517 = vrot.lane.b32.xlu0 %v1833, 50
  %v2518 = vpop.permute.xlu0 %2517
  %2519 = vrot.lane.b32.xlu0 %v1834, 50
  %v2520 = vpop.permute.xlu0 %2519
  %2521 = vrot.lane.b32.xlu0 %v2499, 50
  %v2522 = vpop.permute.xlu0 %2521
  %2523 = vrot.lane.b32.xlu0 %v1836, 50
  %v2524 = vpop.permute.xlu0 %2523
  %2525 = vrot.lane.b32.xlu0 %v1837, 50
  %v2526 = vpop.permute.xlu0 %2525
  %2527 = vrot.lane.b32.xlu0 %v1838, 50
  %v2528 = vpop.permute.xlu0 %2527
  %2529 = vrot.lane.b32.xlu0 %v1839, 50
  %v2530 = vpop.permute.xlu0 %2529
  %2531 = vrot.lane.b32.xlu0 %v1840, 50
  %v2532 = vpop.permute.xlu0 %2531
  %2533 = vrot.lane.b32.xlu0 %v1841, 50
  %v2534 = vpop.permute.xlu0 %2533
  %2535 = vrot.lane.b32.xlu0 %v1842, 50
  %v2536 = vpop.permute.xlu0 %2535
  %2537 = vrot.lane.b32.xlu0 %v2500, 50
  %v2538 = vpop.permute.xlu0 %2537
  %2539 = vrot.lane.b32.xlu0 %v1844, 50
  %v2540 = vpop.permute.xlu0 %2539
  %2541 = vrot.lane.b32.xlu0 %v1845, 50
  %v2542 = vpop.permute.xlu0 %2541
  %2543 = vrot.lane.b32.xlu0 %v1846, 50
  %v2544 = vpop.permute.xlu0 %2543
  %2545 = vrot.lane.b32.xlu0 %v1847, 50
  %v2546 = vpop.permute.xlu0 %2545
  %2547 = vrot.lane.b32.xlu0 %v1848, 50
  %v2548 = vpop.permute.xlu0 %2547
  %2549 = vrot.lane.b32.xlu0 %v1849, 50
  %v2550 = vpop.permute.xlu0 %2549
  %2551 = vrot.lane.b32.xlu0 %v1850, 50
  %v2552 = vpop.permute.xlu0 %2551
  %2553 = vrot.lane.b32.xlu0 %v2501, 50
  %v2554 = vpop.permute.xlu0 %2553
  %2555 = vrot.lane.b32.xlu0 %v1852, 50
  %v2556 = vpop.permute.xlu0 %2555
  %2557 = vrot.lane.b32.xlu0 %v1853, 50
  %v2558 = vpop.permute.xlu0 %2557
  %2559 = vrot.lane.b32.xlu0 %v1854, 50
  %v2560 = vpop.permute.xlu0 %2559
  %2561 = vrot.lane.b32.xlu0 %v1855, 50
  %v2562 = vpop.permute.xlu0 %2561
  %2563 = vrot.lane.b32.xlu0 %v1856, 50
  %v2564 = vpop.permute.xlu0 %2563
  %2565 = vrot.lane.b32.xlu0 %v1857, 50
  %v2566 = vpop.permute.xlu0 %2565
  %2567 = vrot.lane.b32.xlu0 %v1858, 50
  %v2568 = vpop.permute.xlu0 %2567
  %2569 = vrot.lane.b32.xlu0 %v2502, 50
  %v2570 = vpop.permute.xlu0 %2569
  %2571 = vrot.lane.b32.xlu0 %v1860, 50
  %v2572 = vpop.permute.xlu0 %2571
  %2573 = vrot.lane.b32.xlu0 %v1861, 50
  %v2574 = vpop.permute.xlu0 %2573
  %2575 = vrot.lane.b32.xlu0 %v1862, 50
  %v2576 = vpop.permute.xlu0 %2575
  %2577 = vrot.lane.b32.xlu0 %v1863, 50
  %v2578 = vpop.permute.xlu0 %2577
  %2579 = vrot.lane.b32.xlu0 %v1864, 50
  %v2580 = vpop.permute.xlu0 %2579
  %2581 = vrot.lane.b32.xlu0 %v1865, 50
  %v2582 = vpop.permute.xlu0 %2581
  %2583 = vrot.lane.b32.xlu0 %v1866, 50
  %v2584 = vpop.permute.xlu0 %2583
  %2585 = vrot.lane.b32.xlu0 %v2503, 50
  %v2586 = vpop.permute.xlu0 %2585
  %2587 = vrot.lane.b32.xlu0 %v1868, 50
  %v2588 = vpop.permute.xlu0 %2587
  %2589 = vrot.lane.b32.xlu0 %v1869, 50
  %v2590 = vpop.permute.xlu0 %2589
  %2591 = vrot.lane.b32.xlu0 %v1870, 50
  %v2592 = vpop.permute.xlu0 %2591
  %2593 = vrot.lane.b32.xlu0 %v1871, 50
  %v2594 = vpop.permute.xlu0 %2593
  %2595 = vrot.lane.b32.xlu0 %v1872, 50
  %v2596 = vpop.permute.xlu0 %2595
  %2597 = vrot.lane.b32.xlu0 %v1873, 50
  %v2598 = vpop.permute.xlu0 %2597
  %2599 = vrot.lane.b32.xlu0 %v1874, 50
  %v2600 = vpop.permute.xlu0 %2599
  %2601 = vrot.lane.b32.xlu0 %v2504, 50
  %v2602 = vpop.permute.xlu0 %2601
  %2603 = vrot.lane.b32.xlu0 %v1876, 50
  %v2604 = vpop.permute.xlu0 %2603
  %2605 = vrot.lane.b32.xlu0 %v1877, 50
  %v2606 = vpop.permute.xlu0 %2605
  %2607 = vrot.lane.b32.xlu0 %v1878, 50
  %v2608 = vpop.permute.xlu0 %2607
  %2609 = vrot.lane.b32.xlu0 %v1879, 50
  %v2610 = vpop.permute.xlu0 %2609
  %2611 = vrot.lane.b32.xlu0 %v1880, 50
  %v2612 = vpop.permute.xlu0 %2611
  %2613 = vrot.lane.b32.xlu0 %v1881, 50
  %v2614 = vpop.permute.xlu0 %2613
  %2615 = vrot.lane.b32.xlu0 %v1882, 50
  %v2616 = vpop.permute.xlu0 %2615
  %2617 = vrot.lane.b32.xlu0 %v2505, 50
  %v2618 = vpop.permute.xlu0 %2617
  %2619 = vrot.lane.b32.xlu0 %v1884, 50
  %v2620 = vpop.permute.xlu0 %2619
  %2621 = vrot.lane.b32.xlu0 %v1885, 50
  %v2622 = vpop.permute.xlu0 %2621
  %2623 = vrot.lane.b32.xlu0 %v1886, 50
  %v2624 = vpop.permute.xlu0 %2623
  %2625 = vrot.lane.b32.xlu0 %v1887, 50
  %v2626 = vpop.permute.xlu0 %2625
  %2627 = vrot.lane.b32.xlu0 %v1888, 50
  %v2628 = vpop.permute.xlu0 %2627
  %2629 = vrot.lane.b32.xlu0 %v1889, 50
  %v2630 = vpop.permute.xlu0 %2629
  %2631 = vrot.lane.b32.xlu0 %v1890, 50
  %v2632 = vpop.permute.xlu0 %2631
  %2633 = vrot.lane.b32.xlu0 %v2506, 50
  %v2634 = vpop.permute.xlu0 %2633
  %v2651 = vunpack.c.l.b16 %v601
  %v2652 = vunpack.c.l.b16 %v602
  %v2653 = vunpack.c.l.b16 %v605
  %v2654 = vunpack.c.l.b16 %v606
  %v2655 = vunpack.c.l.b16 %v609
  %v2656 = vunpack.c.l.b16 %v610
  %v2657 = vunpack.c.l.b16 %v613
  %v2658 = vunpack.c.l.b16 %v614
  %v2659 = vunpack.c.l.b16 %v617
  %v2660 = vunpack.c.l.b16 %v618
  %v2661 = vunpack.c.l.b16 %v621
  %v2662 = vunpack.c.l.b16 %v622
  %v2663 = vunpack.c.l.b16 %v625
  %v2664 = vunpack.c.l.b16 %v626
  %v2665 = vunpack.c.l.b16 %v629
  %v2666 = vunpack.c.l.b16 %v630
  %v2667 = vpack.c.b16 %v2652, %v2651
  %v2668 = vpack.c.b16 %v2654, %v2653
  %v2669 = vpack.c.b16 %v2656, %v2655
  %v2670 = vpack.c.b16 %v2658, %v2657
  %v2671 = vpack.c.b16 %v2660, %v2659
  %v2672 = vpack.c.b16 %v2662, %v2661
  %v2673 = vpack.c.b16 %v2664, %v2663
  %v2674 = vpack.c.b16 %v2666, %v2665
  %2675 = vrot.lane.b32.xlu0 %v899, 60
  %v2676 = vpop.permute.xlu0 %2675
  %2677 = vrot.lane.b32.xlu0 %v900, 60
  %v2678 = vpop.permute.xlu0 %2677
  %2679 = vrot.lane.b32.xlu0 %v901, 60
  %v2680 = vpop.permute.xlu0 %2679
  %2681 = vrot.lane.b32.xlu0 %v902, 60
  %v2682 = vpop.permute.xlu0 %2681
  %2683 = vrot.lane.b32.xlu0 %v903, 60
  %v2684 = vpop.permute.xlu0 %2683
  %2685 = vrot.lane.b32.xlu0 %v904, 60
  %v2686 = vpop.permute.xlu0 %2685
  %2687 = vrot.lane.b32.xlu0 %v905, 60
  %v2688 = vpop.permute.xlu0 %2687
  %2689 = vrot.lane.b32.xlu0 %v906, 60
  %v2690 = vpop.permute.xlu0 %2689
  %2691 = vrot.lane.b32.xlu0 %v907, 60
  %v2692 = vpop.permute.xlu0 %2691
  %2693 = vrot.lane.b32.xlu0 %v908, 60
  %v2694 = vpop.permute.xlu0 %2693
  %2695 = vrot.lane.b32.xlu0 %v909, 60
  %v2696 = vpop.permute.xlu0 %2695
  %2697 = vrot.lane.b32.xlu0 %v910, 60
  %v2698 = vpop.permute.xlu0 %2697
  %2699 = vrot.lane.b32.xlu0 %v911, 60
  %v2700 = vpop.permute.xlu0 %2699
  %2701 = vrot.lane.b32.xlu0 %v912, 60
  %v2702 = vpop.permute.xlu0 %2701
  %2703 = vrot.lane.b32.xlu0 %v913, 60
  %v2704 = vpop.permute.xlu0 %2703
  %2705 = vrot.lane.b32.xlu0 %v914, 60
  %v2706 = vpop.permute.xlu0 %2705
  %2707 = vrot.lane.b32.xlu0 %v915, 60
  %v2708 = vpop.permute.xlu0 %2707
  %2709 = vrot.lane.b32.xlu0 %v916, 60
  %v2710 = vpop.permute.xlu0 %2709
  %2711 = vrot.lane.b32.xlu0 %v917, 60
  %v2712 = vpop.permute.xlu0 %2711
  %2713 = vrot.lane.b32.xlu0 %v918, 60
  %v2714 = vpop.permute.xlu0 %2713
  %2715 = vrot.lane.b32.xlu0 %v919, 60
  %v2716 = vpop.permute.xlu0 %2715
  %2717 = vrot.lane.b32.xlu0 %v920, 60
  %v2718 = vpop.permute.xlu0 %2717
  %2719 = vrot.lane.b32.xlu0 %v921, 60
  %v2720 = vpop.permute.xlu0 %2719
  %2721 = vrot.lane.b32.xlu0 %v922, 60
  %v2722 = vpop.permute.xlu0 %2721
  %2723 = vrot.lane.b32.xlu0 %v923, 60
  %v2724 = vpop.permute.xlu0 %2723
  %2725 = vrot.lane.b32.xlu0 %v924, 60
  %v2726 = vpop.permute.xlu0 %2725
  %2727 = vrot.lane.b32.xlu0 %v925, 60
  %v2728 = vpop.permute.xlu0 %2727
  %2729 = vrot.lane.b32.xlu0 %v926, 60
  %v2730 = vpop.permute.xlu0 %2729
  %2731 = vrot.lane.b32.xlu0 %v927, 60
  %v2732 = vpop.permute.xlu0 %2731
  %2733 = vrot.lane.b32.xlu0 %v928, 60
  %v2734 = vpop.permute.xlu0 %2733
  %2735 = vrot.lane.b32.xlu0 %v929, 60
  %v2736 = vpop.permute.xlu0 %2735
  %2737 = vrot.lane.b32.xlu0 %v930, 60
  %v2738 = vpop.permute.xlu0 %2737
  %2739 = vrot.lane.b32.xlu0 %v931, 60
  %v2740 = vpop.permute.xlu0 %2739
  %2741 = vrot.lane.b32.xlu0 %v932, 60
  %v2742 = vpop.permute.xlu0 %2741
  %2743 = vrot.lane.b32.xlu0 %v933, 60
  %v2744 = vpop.permute.xlu0 %2743
  %2745 = vrot.lane.b32.xlu0 %v934, 60
  %v2746 = vpop.permute.xlu0 %2745
  %2747 = vrot.lane.b32.xlu0 %v935, 60
  %v2748 = vpop.permute.xlu0 %2747
  %2749 = vrot.lane.b32.xlu0 %v936, 60
  %v2750 = vpop.permute.xlu0 %2749
  %2751 = vrot.lane.b32.xlu0 %v937, 60
  %v2752 = vpop.permute.xlu0 %2751
  %2753 = vrot.lane.b32.xlu0 %v938, 60
  %v2754 = vpop.permute.xlu0 %2753
  %2755 = vrot.lane.b32.xlu0 %v939, 60
  %v2756 = vpop.permute.xlu0 %2755
  %2757 = vrot.lane.b32.xlu0 %v940, 60
  %v2758 = vpop.permute.xlu0 %2757
  %2759 = vrot.lane.b32.xlu0 %v941, 60
  %v2760 = vpop.permute.xlu0 %2759
  %2761 = vrot.lane.b32.xlu0 %v942, 60
  %v2762 = vpop.permute.xlu0 %2761
  %2763 = vrot.lane.b32.xlu0 %v943, 60
  %v2764 = vpop.permute.xlu0 %2763
  %2765 = vrot.lane.b32.xlu0 %v944, 60
  %v2766 = vpop.permute.xlu0 %2765
  %2767 = vrot.lane.b32.xlu0 %v945, 60
  %v2768 = vpop.permute.xlu0 %2767
  %2769 = vrot.lane.b32.xlu0 %v946, 60
  %v2770 = vpop.permute.xlu0 %2769
  %2771 = vrot.lane.b32.xlu0 %v947, 60
  %v2772 = vpop.permute.xlu0 %2771
  %2773 = vrot.lane.b32.xlu0 %v948, 60
  %v2774 = vpop.permute.xlu0 %2773
  %2775 = vrot.lane.b32.xlu0 %v949, 60
  %v2776 = vpop.permute.xlu0 %2775
  %2777 = vrot.lane.b32.xlu0 %v950, 60
  %v2778 = vpop.permute.xlu0 %2777
  %2779 = vrot.lane.b32.xlu0 %v951, 60
  %v2780 = vpop.permute.xlu0 %2779
  %2781 = vrot.lane.b32.xlu0 %v952, 60
  %v2782 = vpop.permute.xlu0 %2781
  %2783 = vrot.lane.b32.xlu0 %v953, 60
  %v2784 = vpop.permute.xlu0 %2783
  %2785 = vrot.lane.b32.xlu0 %v954, 60
  %v2786 = vpop.permute.xlu0 %2785
  %2787 = vrot.lane.b32.xlu0 %v2667, 60
  %v2788 = vpop.permute.xlu0 %2787
  %2789 = vrot.lane.b32.xlu0 %v2668, 60
  %v2790 = vpop.permute.xlu0 %2789
  %2791 = vrot.lane.b32.xlu0 %v2669, 60
  %v2792 = vpop.permute.xlu0 %2791
  %2793 = vrot.lane.b32.xlu0 %v2670, 60
  %v2794 = vpop.permute.xlu0 %2793
  %2795 = vrot.lane.b32.xlu0 %v2671, 60
  %v2796 = vpop.permute.xlu0 %2795
  %2797 = vrot.lane.b32.xlu0 %v2672, 60
  %v2798 = vpop.permute.xlu0 %2797
  %2799 = vrot.lane.b32.xlu0 %v2673, 60
  %v2800 = vpop.permute.xlu0 %2799
  %2801 = vrot.lane.b32.xlu0 %v2674, 60
  %v2802 = vpop.permute.xlu0 %2801
  %v2819 = vunpack.c.l.b16 %v603
  %v2820 = vunpack.c.l.b16 %v604
  %v2821 = vunpack.c.l.b16 %v607
  %v2822 = vunpack.c.l.b16 %v608
  %v2823 = vunpack.c.l.b16 %v611
  %v2824 = vunpack.c.l.b16 %v612
  %v2825 = vunpack.c.l.b16 %v615
  %v2826 = vunpack.c.l.b16 %v616
  %v2827 = vunpack.c.l.b16 %v619
  %v2828 = vunpack.c.l.b16 %v620
  %v2829 = vunpack.c.l.b16 %v623
  %v2830 = vunpack.c.l.b16 %v624
  %v2831 = vunpack.c.l.b16 %v627
  %v2832 = vunpack.c.l.b16 %v628
  %v2833 = vunpack.c.l.b16 %v631
  %v2834 = vunpack.c.l.b16 %v632
  %v2835 = vpack.c.b16 %v2820, %v2819
  %v2836 = vpack.c.b16 %v2822, %v2821
  %v2837 = vpack.c.b16 %v2824, %v2823
  %v2838 = vpack.c.b16 %v2826, %v2825
  %v2839 = vpack.c.b16 %v2828, %v2827
  %v2840 = vpack.c.b16 %v2830, %v2829
  %v2841 = vpack.c.b16 %v2832, %v2831
  %v2842 = vpack.c.b16 %v2834, %v2833
  %2843 = vrot.lane.b32.xlu0 %v1219, 70
  %v2844 = vpop.permute.xlu0 %2843
  %2845 = vrot.lane.b32.xlu0 %v1220, 70
  %v2846 = vpop.permute.xlu0 %2845
  %2847 = vrot.lane.b32.xlu0 %v1221, 70
  %v2848 = vpop.permute.xlu0 %2847
  %2849 = vrot.lane.b32.xlu0 %v1222, 70
  %v2850 = vpop.permute.xlu0 %2849
  %2851 = vrot.lane.b32.xlu0 %v1223, 70
  %v2852 = vpop.permute.xlu0 %2851
  %2853 = vrot.lane.b32.xlu0 %v1224, 70
  %v2854 = vpop.permute.xlu0 %2853
  %2855 = vrot.lane.b32.xlu0 %v1225, 70
  %v2856 = vpop.permute.xlu0 %2855
  %2857 = vrot.lane.b32.xlu0 %v1226, 70
  %v2858 = vpop.permute.xlu0 %2857
  %2859 = vrot.lane.b32.xlu0 %v1227, 70
  %v2860 = vpop.permute.xlu0 %2859
  %2861 = vrot.lane.b32.xlu0 %v1228, 70
  %v2862 = vpop.permute.xlu0 %2861
  %2863 = vrot.lane.b32.xlu0 %v1229, 70
  %v2864 = vpop.permute.xlu0 %2863
  %2865 = vrot.lane.b32.xlu0 %v1230, 70
  %v2866 = vpop.permute.xlu0 %2865
  %2867 = vrot.lane.b32.xlu0 %v1231, 70
  %v2868 = vpop.permute.xlu0 %2867
  %2869 = vrot.lane.b32.xlu0 %v1232, 70
  %v2870 = vpop.permute.xlu0 %2869
  %2871 = vrot.lane.b32.xlu0 %v1233, 70
  %v2872 = vpop.permute.xlu0 %2871
  %2873 = vrot.lane.b32.xlu0 %v1234, 70
  %v2874 = vpop.permute.xlu0 %2873
  %2875 = vrot.lane.b32.xlu0 %v1235, 70
  %v2876 = vpop.permute.xlu0 %2875
  %2877 = vrot.lane.b32.xlu0 %v1236, 70
  %v2878 = vpop.permute.xlu0 %2877
  %2879 = vrot.lane.b32.xlu0 %v1237, 70
  %v2880 = vpop.permute.xlu0 %2879
  %2881 = vrot.lane.b32.xlu0 %v1238, 70
  %v2882 = vpop.permute.xlu0 %2881
  %2883 = vrot.lane.b32.xlu0 %v1239, 70
  %v2884 = vpop.permute.xlu0 %2883
  %2885 = vrot.lane.b32.xlu0 %v1240, 70
  %v2886 = vpop.permute.xlu0 %2885
  %2887 = vrot.lane.b32.xlu0 %v1241, 70
  %v2888 = vpop.permute.xlu0 %2887
  %2889 = vrot.lane.b32.xlu0 %v1242, 70
  %v2890 = vpop.permute.xlu0 %2889
  %2891 = vrot.lane.b32.xlu0 %v1243, 70
  %v2892 = vpop.permute.xlu0 %2891
  %2893 = vrot.lane.b32.xlu0 %v1244, 70
  %v2894 = vpop.permute.xlu0 %2893
  %2895 = vrot.lane.b32.xlu0 %v1245, 70
  %v2896 = vpop.permute.xlu0 %2895
  %2897 = vrot.lane.b32.xlu0 %v1246, 70
  %v2898 = vpop.permute.xlu0 %2897
  %2899 = vrot.lane.b32.xlu0 %v1247, 70
  %v2900 = vpop.permute.xlu0 %2899
  %2901 = vrot.lane.b32.xlu0 %v1248, 70
  %v2902 = vpop.permute.xlu0 %2901
  %2903 = vrot.lane.b32.xlu0 %v1249, 70
  %v2904 = vpop.permute.xlu0 %2903
  %2905 = vrot.lane.b32.xlu0 %v1250, 70
  %v2906 = vpop.permute.xlu0 %2905
  %2907 = vrot.lane.b32.xlu0 %v1251, 70
  %v2908 = vpop.permute.xlu0 %2907
  %2909 = vrot.lane.b32.xlu0 %v1252, 70
  %v2910 = vpop.permute.xlu0 %2909
  %2911 = vrot.lane.b32.xlu0 %v1253, 70
  %v2912 = vpop.permute.xlu0 %2911
  %2913 = vrot.lane.b32.xlu0 %v1254, 70
  %v2914 = vpop.permute.xlu0 %2913
  %2915 = vrot.lane.b32.xlu0 %v1255, 70
  %v2916 = vpop.permute.xlu0 %2915
  %2917 = vrot.lane.b32.xlu0 %v1256, 70
  %v2918 = vpop.permute.xlu0 %2917
  %2919 = vrot.lane.b32.xlu0 %v1257, 70
  %v2920 = vpop.permute.xlu0 %2919
  %2921 = vrot.lane.b32.xlu0 %v1258, 70
  %v2922 = vpop.permute.xlu0 %2921
  %2923 = vrot.lane.b32.xlu0 %v1259, 70
  %v2924 = vpop.permute.xlu0 %2923
  %2925 = vrot.lane.b32.xlu0 %v1260, 70
  %v2926 = vpop.permute.xlu0 %2925
  %2927 = vrot.lane.b32.xlu0 %v1261, 70
  %v2928 = vpop.permute.xlu0 %2927
  %2929 = vrot.lane.b32.xlu0 %v1262, 70
  %v2930 = vpop.permute.xlu0 %2929
  %2931 = vrot.lane.b32.xlu0 %v1263, 70
  %v2932 = vpop.permute.xlu0 %2931
  %2933 = vrot.lane.b32.xlu0 %v1264, 70
  %v2934 = vpop.permute.xlu0 %2933
  %2935 = vrot.lane.b32.xlu0 %v1265, 70
  %v2936 = vpop.permute.xlu0 %2935
  %2937 = vrot.lane.b32.xlu0 %v1266, 70
  %v2938 = vpop.permute.xlu0 %2937
  %2939 = vrot.lane.b32.xlu0 %v1267, 70
  %v2940 = vpop.permute.xlu0 %2939
  %2941 = vrot.lane.b32.xlu0 %v1268, 70
  %v2942 = vpop.permute.xlu0 %2941
  %2943 = vrot.lane.b32.xlu0 %v1269, 70
  %v2944 = vpop.permute.xlu0 %2943
  %2945 = vrot.lane.b32.xlu0 %v1270, 70
  %v2946 = vpop.permute.xlu0 %2945
  %2947 = vrot.lane.b32.xlu0 %v1271, 70
  %v2948 = vpop.permute.xlu0 %2947
  %2949 = vrot.lane.b32.xlu0 %v1272, 70
  %v2950 = vpop.permute.xlu0 %2949
  %2951 = vrot.lane.b32.xlu0 %v1273, 70
  %v2952 = vpop.permute.xlu0 %2951
  %2953 = vrot.lane.b32.xlu0 %v1274, 70
  %v2954 = vpop.permute.xlu0 %2953
  %2955 = vrot.lane.b32.xlu0 %v2835, 70
  %v2956 = vpop.permute.xlu0 %2955
  %2957 = vrot.lane.b32.xlu0 %v2836, 70
  %v2958 = vpop.permute.xlu0 %2957
  %2959 = vrot.lane.b32.xlu0 %v2837, 70
  %v2960 = vpop.permute.xlu0 %2959
  %2961 = vrot.lane.b32.xlu0 %v2838, 70
  %v2962 = vpop.permute.xlu0 %2961
  %2963 = vrot.lane.b32.xlu0 %v2839, 70
  %v2964 = vpop.permute.xlu0 %2963
  %2965 = vrot.lane.b32.xlu0 %v2840, 70
  %v2966 = vpop.permute.xlu0 %2965
  %2967 = vrot.lane.b32.xlu0 %v2841, 70
  %v2968 = vpop.permute.xlu0 %2967
  %2969 = vrot.lane.b32.xlu0 %v2842, 70
  %v2970 = vpop.permute.xlu0 %2969
  %v2973 = vunpack.c.l.b16 %v633
  %v2974 = vunpack.c.l.b16 %v634
  %v2975 = vpack.c.b16 %v2974, %v2973
  %2976 = vrot.lane.b32.xlu0 %v900, 80
  %v2977 = vpop.permute.xlu0 %2976
  %2978 = vrot.lane.b32.xlu0 %v901, 80
  %v2979 = vpop.permute.xlu0 %2978
  %2980 = vrot.lane.b32.xlu0 %v902, 80
  %v2981 = vpop.permute.xlu0 %2980
  %2982 = vrot.lane.b32.xlu0 %v903, 80
  %v2983 = vpop.permute.xlu0 %2982
  %2984 = vrot.lane.b32.xlu0 %v904, 80
  %v2985 = vpop.permute.xlu0 %2984
  %2986 = vrot.lane.b32.xlu0 %v905, 80
  %v2987 = vpop.permute.xlu0 %2986
  %2988 = vrot.lane.b32.xlu0 %v906, 80
  %v2989 = vpop.permute.xlu0 %2988
  %2990 = vrot.lane.b32.xlu0 %v1436, 80
  %v2991 = vpop.permute.xlu0 %2990
  %2992 = vrot.lane.b32.xlu0 %v908, 80
  %v2993 = vpop.permute.xlu0 %2992
  %2994 = vrot.lane.b32.xlu0 %v909, 80
  %v2995 = vpop.permute.xlu0 %2994
  %2996 = vrot.lane.b32.xlu0 %v910, 80
  %v2997 = vpop.permute.xlu0 %2996
  %2998 = vrot.lane.b32.xlu0 %v911, 80
  %v2999 = vpop.permute.xlu0 %2998
  %3000 = vrot.lane.b32.xlu0 %v912, 80
  %v3001 = vpop.permute.xlu0 %3000
  %3002 = vrot.lane.b32.xlu0 %v913, 80
  %v3003 = vpop.permute.xlu0 %3002
  %3004 = vrot.lane.b32.xlu0 %v914, 80
  %v3005 = vpop.permute.xlu0 %3004
  %3006 = vrot.lane.b32.xlu0 %v1437, 80
  %v3007 = vpop.permute.xlu0 %3006
  %3008 = vrot.lane.b32.xlu0 %v916, 80
  %v3009 = vpop.permute.xlu0 %3008
  %3010 = vrot.lane.b32.xlu0 %v917, 80
  %v3011 = vpop.permute.xlu0 %3010
  %3012 = vrot.lane.b32.xlu0 %v918, 80
  %v3013 = vpop.permute.xlu0 %3012
  %3014 = vrot.lane.b32.xlu0 %v919, 80
  %v3015 = vpop.permute.xlu0 %3014
  %3016 = vrot.lane.b32.xlu0 %v920, 80
  %v3017 = vpop.permute.xlu0 %3016
  %3018 = vrot.lane.b32.xlu0 %v921, 80
  %v3019 = vpop.permute.xlu0 %3018
  %3020 = vrot.lane.b32.xlu0 %v922, 80
  %v3021 = vpop.permute.xlu0 %3020
  %3022 = vrot.lane.b32.xlu0 %v1438, 80
  %v3023 = vpop.permute.xlu0 %3022
  %3024 = vrot.lane.b32.xlu0 %v924, 80
  %v3025 = vpop.permute.xlu0 %3024
  %3026 = vrot.lane.b32.xlu0 %v925, 80
  %v3027 = vpop.permute.xlu0 %3026
  %3028 = vrot.lane.b32.xlu0 %v926, 80
  %v3029 = vpop.permute.xlu0 %3028
  %3030 = vrot.lane.b32.xlu0 %v927, 80
  %v3031 = vpop.permute.xlu0 %3030
  %3032 = vrot.lane.b32.xlu0 %v928, 80
  %v3033 = vpop.permute.xlu0 %3032
  %3034 = vrot.lane.b32.xlu0 %v929, 80
  %v3035 = vpop.permute.xlu0 %3034
  %3036 = vrot.lane.b32.xlu0 %v930, 80
  %v3037 = vpop.permute.xlu0 %3036
  %3038 = vrot.lane.b32.xlu0 %v1439, 80
  %v3039 = vpop.permute.xlu0 %3038
  %3040 = vrot.lane.b32.xlu0 %v932, 80
  %v3041 = vpop.permute.xlu0 %3040
  %3042 = vrot.lane.b32.xlu0 %v933, 80
  %v3043 = vpop.permute.xlu0 %3042
  %3044 = vrot.lane.b32.xlu0 %v934, 80
  %v3045 = vpop.permute.xlu0 %3044
  %3046 = vrot.lane.b32.xlu0 %v935, 80
  %v3047 = vpop.permute.xlu0 %3046
  %3048 = vrot.lane.b32.xlu0 %v936, 80
  %v3049 = vpop.permute.xlu0 %3048
  %3050 = vrot.lane.b32.xlu0 %v937, 80
  %v3051 = vpop.permute.xlu0 %3050
  %3052 = vrot.lane.b32.xlu0 %v938, 80
  %v3053 = vpop.permute.xlu0 %3052
  %3054 = vrot.lane.b32.xlu0 %v1440, 80
  %v3055 = vpop.permute.xlu0 %3054
  %3056 = vrot.lane.b32.xlu0 %v940, 80
  %v3057 = vpop.permute.xlu0 %3056
  %3058 = vrot.lane.b32.xlu0 %v941, 80
  %v3059 = vpop.permute.xlu0 %3058
  %3060 = vrot.lane.b32.xlu0 %v942, 80
  %v3061 = vpop.permute.xlu0 %3060
  %3062 = vrot.lane.b32.xlu0 %v943, 80
  %v3063 = vpop.permute.xlu0 %3062
  %3064 = vrot.lane.b32.xlu0 %v944, 80
  %v3065 = vpop.permute.xlu0 %3064
  %3066 = vrot.lane.b32.xlu0 %v945, 80
  %v3067 = vpop.permute.xlu0 %3066
  %3068 = vrot.lane.b32.xlu0 %v946, 80
  %v3069 = vpop.permute.xlu0 %3068
  %3070 = vrot.lane.b32.xlu0 %v1441, 80
  %v3071 = vpop.permute.xlu0 %3070
  %3072 = vrot.lane.b32.xlu0 %v948, 80
  %v3073 = vpop.permute.xlu0 %3072
  %3074 = vrot.lane.b32.xlu0 %v949, 80
  %v3075 = vpop.permute.xlu0 %3074
  %3076 = vrot.lane.b32.xlu0 %v950, 80
  %v3077 = vpop.permute.xlu0 %3076
  %3078 = vrot.lane.b32.xlu0 %v951, 80
  %v3079 = vpop.permute.xlu0 %3078
  %3080 = vrot.lane.b32.xlu0 %v952, 80
  %v3081 = vpop.permute.xlu0 %3080
  %3082 = vrot.lane.b32.xlu0 %v953, 80
  %v3083 = vpop.permute.xlu0 %3082
  %3084 = vrot.lane.b32.xlu0 %v954, 80
  %v3085 = vpop.permute.xlu0 %3084
  %3086 = vrot.lane.b32.xlu0 %v1442, 80
  %v3087 = vpop.permute.xlu0 %3086
  %3088 = vrot.lane.b32.xlu0 %v2668, 80
  %v3089 = vpop.permute.xlu0 %3088
  %3090 = vrot.lane.b32.xlu0 %v2669, 80
  %v3091 = vpop.permute.xlu0 %3090
  %3092 = vrot.lane.b32.xlu0 %v2670, 80
  %v3093 = vpop.permute.xlu0 %3092
  %3094 = vrot.lane.b32.xlu0 %v2671, 80
  %v3095 = vpop.permute.xlu0 %3094
  %3096 = vrot.lane.b32.xlu0 %v2672, 80
  %v3097 = vpop.permute.xlu0 %3096
  %3098 = vrot.lane.b32.xlu0 %v2673, 80
  %v3099 = vpop.permute.xlu0 %3098
  %3100 = vrot.lane.b32.xlu0 %v2674, 80
  %v3101 = vpop.permute.xlu0 %3100
  %3102 = vrot.lane.b32.xlu0 %v2975, 80
  %v3103 = vpop.permute.xlu0 %3102
  %vm3104 = vcmask 80896
  %v3107 = vsel %vm3104, %v891, %v1276
  %v3110 = vsel %vm3104, %v892, %v1278
  %v3113 = vsel %vm3104, %v893, %v1280
  %v3116 = vsel %vm3104, %v894, %v1282
  %v3119 = vsel %vm3104, %v895, %v1284
  %v3122 = vsel %vm3104, %v896, %v1286
  %v3125 = vsel %vm3104, %v897, %v1288
  %v3128 = vsel %vm3104, %v898, %v1290
  %v3131 = vsel %vm3104, %v899, %v1292
  %v3134 = vsel %vm3104, %v900, %v1294
  %v3137 = vsel %vm3104, %v901, %v1296
  %v3140 = vsel %vm3104, %v902, %v1298
  %v3143 = vsel %vm3104, %v903, %v1300
  %v3146 = vsel %vm3104, %v904, %v1302
  %v3149 = vsel %vm3104, %v905, %v1304
  %v3152 = vsel %vm3104, %v906, %v1306
  %v3155 = vsel %vm3104, %v907, %v1308
  %v3158 = vsel %vm3104, %v908, %v1310
  %v3161 = vsel %vm3104, %v909, %v1312
  %v3164 = vsel %vm3104, %v910, %v1314
  %v3167 = vsel %vm3104, %v911, %v1316
  %v3170 = vsel %vm3104, %v912, %v1318
  %v3173 = vsel %vm3104, %v913, %v1320
  %v3176 = vsel %vm3104, %v914, %v1322
  %v3179 = vsel %vm3104, %v915, %v1324
  %v3182 = vsel %vm3104, %v916, %v1326
  %v3185 = vsel %vm3104, %v917, %v1328
  %v3188 = vsel %vm3104, %v918, %v1330
  %v3191 = vsel %vm3104, %v919, %v1332
  %v3194 = vsel %vm3104, %v920, %v1334
  %v3197 = vsel %vm3104, %v921, %v1336
  %v3200 = vsel %vm3104, %v922, %v1338
  %v3203 = vsel %vm3104, %v923, %v1340
  %v3206 = vsel %vm3104, %v924, %v1342
  %v3209 = vsel %vm3104, %v925, %v1344
  %v3212 = vsel %vm3104, %v926, %v1346
  %v3215 = vsel %vm3104, %v927, %v1348
  %v3218 = vsel %vm3104, %v928, %v1350
  %v3221 = vsel %vm3104, %v929, %v1352
  %v3224 = vsel %vm3104, %v930, %v1354
  %v3227 = vsel %vm3104, %v931, %v1356
  %v3230 = vsel %vm3104, %v932, %v1358
  %v3233 = vsel %vm3104, %v933, %v1360
  %v3236 = vsel %vm3104, %v934, %v1362
  %v3239 = vsel %vm3104, %v935, %v1364
  %v3242 = vsel %vm3104, %v936, %v1366
  %v3245 = vsel %vm3104, %v937, %v1368
  %v3248 = vsel %vm3104, %v938, %v1370
  %v3251 = vsel %vm3104, %v939, %v1372
  %v3254 = vsel %vm3104, %v940, %v1374
  %v3257 = vsel %vm3104, %v941, %v1376
  %v3260 = vsel %vm3104, %v942, %v1378
  %v3263 = vsel %vm3104, %v943, %v1380
  %v3266 = vsel %vm3104, %v944, %v1382
  %v3269 = vsel %vm3104, %v945, %v1384
  %v3272 = vsel %vm3104, %v946, %v1386
  %v3275 = vsel %vm3104, %v947, %v1388
  %v3278 = vsel %vm3104, %v948, %v1390
  %v3281 = vsel %vm3104, %v949, %v1392
  %v3284 = vsel %vm3104, %v950, %v1394
  %v3287 = vsel %vm3104, %v951, %v1396
  %v3290 = vsel %vm3104, %v952, %v1398
  %v3293 = vsel %vm3104, %v953, %v1400
  %v3296 = vsel %vm3104, %v954, %v1402
  %vm3297 = vcmask 162816
  %v3299 = vsel %vm3297, %v3107, %v1444
  %v3301 = vsel %vm3297, %v3110, %v1446
  %v3303 = vsel %vm3297, %v3113, %v1448
  %v3305 = vsel %vm3297, %v3116, %v1450
  %v3307 = vsel %vm3297, %v3119, %v1452
  %v3309 = vsel %vm3297, %v3122, %v1454
  %v3311 = vsel %vm3297, %v3125, %v1456
  %v3313 = vsel %vm3297, %v3128, %v1458
  %v3315 = vsel %vm3297, %v3131, %v1460
  %v3317 = vsel %vm3297, %v3134, %v1462
  %v3319 = vsel %vm3297, %v3137, %v1464
  %v3321 = vsel %vm3297, %v3140, %v1466
  %v3323 = vsel %vm3297, %v3143, %v1468
  %v3325 = vsel %vm3297, %v3146, %v1470
  %v3327 = vsel %vm3297, %v3149, %v1472
  %v3329 = vsel %vm3297, %v3152, %v1474
  %v3331 = vsel %vm3297, %v3155, %v1476
  %v3333 = vsel %vm3297, %v3158, %v1478
  %v3335 = vsel %vm3297, %v3161, %v1480
  %v3337 = vsel %vm3297, %v3164, %v1482
  %v3339 = vsel %vm3297, %v3167, %v1484
  %v3341 = vsel %vm3297, %v3170, %v1486
  %v3343 = vsel %vm3297, %v3173, %v1488
  %v3345 = vsel %vm3297, %v3176, %v1490
  %v3347 = vsel %vm3297, %v3179, %v1492
  %v3349 = vsel %vm3297, %v3182, %v1494
  %v3351 = vsel %vm3297, %v3185, %v1496
  %v3353 = vsel %vm3297, %v3188, %v1498
  %v3355 = vsel %vm3297, %v3191, %v1500
  %v3357 = vsel %vm3297, %v3194, %v1502
  %v3359 = vsel %vm3297, %v3197, %v1504
  %v3361 = vsel %vm3297, %v3200, %v1506
  %v3363 = vsel %vm3297, %v3203, %v1508
  %v3365 = vsel %vm3297, %v3206, %v1510
  %v3367 = vsel %vm3297, %v3209, %v1512
  %v3369 = vsel %vm3297, %v3212, %v1514
  %v3371 = vsel %vm3297, %v3215, %v1516
  %v3373 = vsel %vm3297, %v3218, %v1518
  %v3375 = vsel %vm3297, %v3221, %v1520
  %v3377 = vsel %vm3297, %v3224, %v1522
  %v3379 = vsel %vm3297, %v3227, %v1524
  %v3381 = vsel %vm3297, %v3230, %v1526
  %v3383 = vsel %vm3297, %v3233, %v1528
  %v3385 = vsel %vm3297, %v3236, %v1530
  %v3387 = vsel %vm3297, %v3239, %v1532
  %v3389 = vsel %vm3297, %v3242, %v1534
  %v3391 = vsel %vm3297, %v3245, %v1536
  %v3393 = vsel %vm3297, %v3248, %v1538
  %v3395 = vsel %vm3297, %v3251, %v1540
  %v3397 = vsel %vm3297, %v3254, %v1542
  %v3399 = vsel %vm3297, %v3257, %v1544
  %v3401 = vsel %vm3297, %v3260, %v1546
  %v3403 = vsel %vm3297, %v3263, %v1548
  %v3405 = vsel %vm3297, %v3266, %v1550
  %v3407 = vsel %vm3297, %v3269, %v1552
  %v3409 = vsel %vm3297, %v3272, %v1554
  %v3411 = vsel %vm3297, %v3275, %v1556
  %v3413 = vsel %vm3297, %v3278, %v1558
  %v3415 = vsel %vm3297, %v3281, %v1560
  %v3417 = vsel %vm3297, %v3284, %v1562
  %v3419 = vsel %vm3297, %v3287, %v1564
  %v3421 = vsel %vm3297, %v3290, %v1566
  %v3423 = vsel %vm3297, %v3293, %v1568
  %v3425 = vsel %vm3297, %v3296, %v1570
  %vm3426 = vcmask 244736
  %v3428 = vsel %vm3426, %v3299, %v1892
  %v3430 = vsel %vm3426, %v3301, %v1894
  %v3432 = vsel %vm3426, %v3303, %v1896
  %v3434 = vsel %vm3426, %v3305, %v1898
  %v3436 = vsel %vm3426, %v3307, %v1900
  %v3438 = vsel %vm3426, %v3309, %v1902
  %v3440 = vsel %vm3426, %v3311, %v1904
  %v3442 = vsel %vm3426, %v3313, %v1906
  %v3444 = vsel %vm3426, %v3315, %v1908
  %v3446 = vsel %vm3426, %v3317, %v1910
  %v3448 = vsel %vm3426, %v3319, %v1912
  %v3450 = vsel %vm3426, %v3321, %v1914
  %v3452 = vsel %vm3426, %v3323, %v1916
  %v3454 = vsel %vm3426, %v3325, %v1918
  %v3456 = vsel %vm3426, %v3327, %v1920
  %v3458 = vsel %vm3426, %v3329, %v1922
  %v3460 = vsel %vm3426, %v3331, %v1924
  %v3462 = vsel %vm3426, %v3333, %v1926
  %v3464 = vsel %vm3426, %v3335, %v1928
  %v3466 = vsel %vm3426, %v3337, %v1930
  %v3468 = vsel %vm3426, %v3339, %v1932
  %v3470 = vsel %vm3426, %v3341, %v1934
  %v3472 = vsel %vm3426, %v3343, %v1936
  %v3474 = vsel %vm3426, %v3345, %v1938
  %v3476 = vsel %vm3426, %v3347, %v1940
  %v3478 = vsel %vm3426, %v3349, %v1942
  %v3480 = vsel %vm3426, %v3351, %v1944
  %v3482 = vsel %vm3426, %v3353, %v1946
  %v3484 = vsel %vm3426, %v3355, %v1948
  %v3486 = vsel %vm3426, %v3357, %v1950
  %v3488 = vsel %vm3426, %v3359, %v1952
  %v3490 = vsel %vm3426, %v3361, %v1954
  %v3492 = vsel %vm3426, %v3363, %v1956
  %v3494 = vsel %vm3426, %v3365, %v1958
  %v3496 = vsel %vm3426, %v3367, %v1960
  %v3498 = vsel %vm3426, %v3369, %v1962
  %v3500 = vsel %vm3426, %v3371, %v1964
  %v3502 = vsel %vm3426, %v3373, %v1966
  %v3504 = vsel %vm3426, %v3375, %v1968
  %v3506 = vsel %vm3426, %v3377, %v1970
  %v3508 = vsel %vm3426, %v3379, %v1972
  %v3510 = vsel %vm3426, %v3381, %v1974
  %v3512 = vsel %vm3426, %v3383, %v1976
  %v3514 = vsel %vm3426, %v3385, %v1978
  %v3516 = vsel %vm3426, %v3387, %v1980
  %v3518 = vsel %vm3426, %v3389, %v1982
  %v3520 = vsel %vm3426, %v3391, %v1984
  %v3522 = vsel %vm3426, %v3393, %v1986
  %v3524 = vsel %vm3426, %v3395, %v1988
  %v3526 = vsel %vm3426, %v3397, %v1990
  %v3528 = vsel %vm3426, %v3399, %v1992
  %v3530 = vsel %vm3426, %v3401, %v1994
  %v3532 = vsel %vm3426, %v3403, %v1996
  %v3534 = vsel %vm3426, %v3405, %v1998
  %v3536 = vsel %vm3426, %v3407, %v2000
  %v3538 = vsel %vm3426, %v3409, %v2002
  %v3540 = vsel %vm3426, %v3411, %v2004
  %v3542 = vsel %vm3426, %v3413, %v2006
  %v3544 = vsel %vm3426, %v3415, %v2008
  %v3546 = vsel %vm3426, %v3417, %v2010
  %v3548 = vsel %vm3426, %v3419, %v2012
  %v3550 = vsel %vm3426, %v3421, %v2014
  %v3552 = vsel %vm3426, %v3423, %v2016
  %v3554 = vsel %vm3426, %v3425, %v2018
  %vm3555 = vcmask 326656
  %v3557 = vsel %vm3555, %v3428, %v2340
  %v3559 = vsel %vm3555, %v3430, %v2342
  %v3561 = vsel %vm3555, %v3432, %v2344
  %v3563 = vsel %vm3555, %v3434, %v2346
  %v3565 = vsel %vm3555, %v3436, %v2348
  %v3567 = vsel %vm3555, %v3438, %v2350
  %v3569 = vsel %vm3555, %v3440, %v2352
  %v3571 = vsel %vm3555, %v3442, %v2354
  %v3573 = vsel %vm3555, %v3444, %v2356
  %v3575 = vsel %vm3555, %v3446, %v2358
  %v3577 = vsel %vm3555, %v3448, %v2360
  %v3579 = vsel %vm3555, %v3450, %v2362
  %v3581 = vsel %vm3555, %v3452, %v2364
  %v3583 = vsel %vm3555, %v3454, %v2366
  %v3585 = vsel %vm3555, %v3456, %v2368
  %v3587 = vsel %vm3555, %v3458, %v2370
  %v3589 = vsel %vm3555, %v3460, %v2372
  %v3591 = vsel %vm3555, %v3462, %v2374
  %v3593 = vsel %vm3555, %v3464, %v2376
  %v3595 = vsel %vm3555, %v3466, %v2378
  %v3597 = vsel %vm3555, %v3468, %v2380
  %v3599 = vsel %vm3555, %v3470, %v2382
  %v3601 = vsel %vm3555, %v3472, %v2384
  %v3603 = vsel %vm3555, %v3474, %v2386
  %v3605 = vsel %vm3555, %v3476, %v2388
  %v3607 = vsel %vm3555, %v3478, %v2390
  %v3609 = vsel %vm3555, %v3480, %v2392
  %v3611 = vsel %vm3555, %v3482, %v2394
  %v3613 = vsel %vm3555, %v3484, %v2396
  %v3615 = vsel %vm3555, %v3486, %v2398
  %v3617 = vsel %vm3555, %v3488, %v2400
  %v3619 = vsel %vm3555, %v3490, %v2402
  %v3621 = vsel %vm3555, %v3492, %v2404
  %v3623 = vsel %vm3555, %v3494, %v2406
  %v3625 = vsel %vm3555, %v3496, %v2408
  %v3627 = vsel %vm3555, %v3498, %v2410
  %v3629 = vsel %vm3555, %v3500, %v2412
  %v3631 = vsel %vm3555, %v3502, %v2414
  %v3633 = vsel %vm3555, %v3504, %v2416
  %v3635 = vsel %vm3555, %v3506, %v2418
  %v3637 = vsel %vm3555, %v3508, %v2420
  %v3639 = vsel %vm3555, %v3510, %v2422
  %v3641 = vsel %vm3555, %v3512, %v2424
  %v3643 = vsel %vm3555, %v3514, %v2426
  %v3645 = vsel %vm3555, %v3516, %v2428
  %v3647 = vsel %vm3555, %v3518, %v2430
  %v3649 = vsel %vm3555, %v3520, %v2432
  %v3651 = vsel %vm3555, %v3522, %v2434
  %v3653 = vsel %vm3555, %v3524, %v2436
  %v3655 = vsel %vm3555, %v3526, %v2438
  %v3657 = vsel %vm3555, %v3528, %v2440
  %v3659 = vsel %vm3555, %v3530, %v2442
  %v3661 = vsel %vm3555, %v3532, %v2444
  %v3663 = vsel %vm3555, %v3534, %v2446
  %v3665 = vsel %vm3555, %v3536, %v2448
  %v3667 = vsel %vm3555, %v3538, %v2450
  %v3669 = vsel %vm3555, %v3540, %v2452
  %v3671 = vsel %vm3555, %v3542, %v2454
  %v3673 = vsel %vm3555, %v3544, %v2456
  %v3675 = vsel %vm3555, %v3546, %v2458
  %v3677 = vsel %vm3555, %v3548, %v2460
  %v3679 = vsel %vm3555, %v3550, %v2462
  %v3681 = vsel %vm3555, %v3552, %v2464
  %v3683 = vsel %vm3555, %v3554, %v2466
  %vm3684 = vcmask 408576
  %v3686 = vsel %vm3684, %v3557, %v2508
  %v3688 = vsel %vm3684, %v3559, %v2510
  %v3690 = vsel %vm3684, %v3561, %v2512
  %v3692 = vsel %vm3684, %v3563, %v2514
  %v3694 = vsel %vm3684, %v3565, %v2516
  %v3696 = vsel %vm3684, %v3567, %v2518
  %v3698 = vsel %vm3684, %v3569, %v2520
  %v3700 = vsel %vm3684, %v3571, %v2522
  %v3702 = vsel %vm3684, %v3573, %v2524
  %v3704 = vsel %vm3684, %v3575, %v2526
  %v3706 = vsel %vm3684, %v3577, %v2528
  %v3708 = vsel %vm3684, %v3579, %v2530
  %v3710 = vsel %vm3684, %v3581, %v2532
  %v3712 = vsel %vm3684, %v3583, %v2534
  %v3714 = vsel %vm3684, %v3585, %v2536
  %v3716 = vsel %vm3684, %v3587, %v2538
  %v3718 = vsel %vm3684, %v3589, %v2540
  %v3720 = vsel %vm3684, %v3591, %v2542
  %v3722 = vsel %vm3684, %v3593, %v2544
  %v3724 = vsel %vm3684, %v3595, %v2546
  %v3726 = vsel %vm3684, %v3597, %v2548
  %v3728 = vsel %vm3684, %v3599, %v2550
  %v3730 = vsel %vm3684, %v3601, %v2552
  %v3732 = vsel %vm3684, %v3603, %v2554
  %v3734 = vsel %vm3684, %v3605, %v2556
  %v3736 = vsel %vm3684, %v3607, %v2558
  %v3738 = vsel %vm3684, %v3609, %v2560
  %v3740 = vsel %vm3684, %v3611, %v2562
  %v3742 = vsel %vm3684, %v3613, %v2564
  %v3744 = vsel %vm3684, %v3615, %v2566
  %v3746 = vsel %vm3684, %v3617, %v2568
  %v3748 = vsel %vm3684, %v3619, %v2570
  %v3750 = vsel %vm3684, %v3621, %v2572
  %v3752 = vsel %vm3684, %v3623, %v2574
  %v3754 = vsel %vm3684, %v3625, %v2576
  %v3756 = vsel %vm3684, %v3627, %v2578
  %v3758 = vsel %vm3684, %v3629, %v2580
  %v3760 = vsel %vm3684, %v3631, %v2582
  %v3762 = vsel %vm3684, %v3633, %v2584
  %v3764 = vsel %vm3684, %v3635, %v2586
  %v3766 = vsel %vm3684, %v3637, %v2588
  %v3768 = vsel %vm3684, %v3639, %v2590
  %v3770 = vsel %vm3684, %v3641, %v2592
  %v3772 = vsel %vm3684, %v3643, %v2594
  %v3774 = vsel %vm3684, %v3645, %v2596
  %v3776 = vsel %vm3684, %v3647, %v2598
  %v3778 = vsel %vm3684, %v3649, %v2600
  %v3780 = vsel %vm3684, %v3651, %v2602
  %v3782 = vsel %vm3684, %v3653, %v2604
  %v3784 = vsel %vm3684, %v3655, %v2606
  %v3786 = vsel %vm3684, %v3657, %v2608
  %v3788 = vsel %vm3684, %v3659, %v2610
  %v3790 = vsel %vm3684, %v3661, %v2612
  %v3792 = vsel %vm3684, %v3663, %v2614
  %v3794 = vsel %vm3684, %v3665, %v2616
  %v3796 = vsel %vm3684, %v3667, %v2618
  %v3798 = vsel %vm3684, %v3669, %v2620
  %v3800 = vsel %vm3684, %v3671, %v2622
  %v3802 = vsel %vm3684, %v3673, %v2624
  %v3804 = vsel %vm3684, %v3675, %v2626
  %v3806 = vsel %vm3684, %v3677, %v2628
  %v3808 = vsel %vm3684, %v3679, %v2630
  %v3810 = vsel %vm3684, %v3681, %v2632
  %v3812 = vsel %vm3684, %v3683, %v2634
  %vm3813 = vcmask 490496
  %v3815 = vsel %vm3813, %v3686, %v2676
  %v3817 = vsel %vm3813, %v3688, %v2678
  %v3819 = vsel %vm3813, %v3690, %v2680
  %v3821 = vsel %vm3813, %v3692, %v2682
  %v3823 = vsel %vm3813, %v3694, %v2684
  %v3825 = vsel %vm3813, %v3696, %v2686
  %v3827 = vsel %vm3813, %v3698, %v2688
  %v3829 = vsel %vm3813, %v3700, %v2690
  %v3831 = vsel %vm3813, %v3702, %v2692
  %v3833 = vsel %vm3813, %v3704, %v2694
  %v3835 = vsel %vm3813, %v3706, %v2696
  %v3837 = vsel %vm3813, %v3708, %v2698
  %v3839 = vsel %vm3813, %v3710, %v2700
  %v3841 = vsel %vm3813, %v3712, %v2702
  %v3843 = vsel %vm3813, %v3714, %v2704
  %v3845 = vsel %vm3813, %v3716, %v2706
  %v3847 = vsel %vm3813, %v3718, %v2708
  %v3849 = vsel %vm3813, %v3720, %v2710
  %v3851 = vsel %vm3813, %v3722, %v2712
  %v3853 = vsel %vm3813, %v3724, %v2714
  %v3855 = vsel %vm3813, %v3726, %v2716
  %v3857 = vsel %vm3813, %v3728, %v2718
  %v3859 = vsel %vm3813, %v3730, %v2720
  %v3861 = vsel %vm3813, %v3732, %v2722
  %v3863 = vsel %vm3813, %v3734, %v2724
  %v3865 = vsel %vm3813, %v3736, %v2726
  %v3867 = vsel %vm3813, %v3738, %v2728
  %v3869 = vsel %vm3813, %v3740, %v2730
  %v3871 = vsel %vm3813, %v3742, %v2732
  %v3873 = vsel %vm3813, %v3744, %v2734
  %v3875 = vsel %vm3813, %v3746, %v2736
  %v3877 = vsel %vm3813, %v3748, %v2738
  %v3879 = vsel %vm3813, %v3750, %v2740
  %v3881 = vsel %vm3813, %v3752, %v2742
  %v3883 = vsel %vm3813, %v3754, %v2744
  %v3885 = vsel %vm3813, %v3756, %v2746
  %v3887 = vsel %vm3813, %v3758, %v2748
  %v3889 = vsel %vm3813, %v3760, %v2750
  %v3891 = vsel %vm3813, %v3762, %v2752
  %v3893 = vsel %vm3813, %v3764, %v2754
  %v3895 = vsel %vm3813, %v3766, %v2756
  %v3897 = vsel %vm3813, %v3768, %v2758
  %v3899 = vsel %vm3813, %v3770, %v2760
  %v3901 = vsel %vm3813, %v3772, %v2762
  %v3903 = vsel %vm3813, %v3774, %v2764
  %v3905 = vsel %vm3813, %v3776, %v2766
  %v3907 = vsel %vm3813, %v3778, %v2768
  %v3909 = vsel %vm3813, %v3780, %v2770
  %v3911 = vsel %vm3813, %v3782, %v2772
  %v3913 = vsel %vm3813, %v3784, %v2774
  %v3915 = vsel %vm3813, %v3786, %v2776
  %v3917 = vsel %vm3813, %v3788, %v2778
  %v3919 = vsel %vm3813, %v3790, %v2780
  %v3921 = vsel %vm3813, %v3792, %v2782
  %v3923 = vsel %vm3813, %v3794, %v2784
  %v3925 = vsel %vm3813, %v3796, %v2786
  %v3927 = vsel %vm3813, %v3798, %v2788
  %v3929 = vsel %vm3813, %v3800, %v2790
  %v3931 = vsel %vm3813, %v3802, %v2792
  %v3933 = vsel %vm3813, %v3804, %v2794
  %v3935 = vsel %vm3813, %v3806, %v2796
  %v3937 = vsel %vm3813, %v3808, %v2798
  %v3939 = vsel %vm3813, %v3810, %v2800
  %v3941 = vsel %vm3813, %v3812, %v2802
  %vm3942 = vcmask 572416
  %v3944 = vsel %vm3942, %v3815, %v2844
  %v3946 = vsel %vm3942, %v3817, %v2846
  %v3948 = vsel %vm3942, %v3819, %v2848
  %v3950 = vsel %vm3942, %v3821, %v2850
  %v3952 = vsel %vm3942, %v3823, %v2852
  %v3954 = vsel %vm3942, %v3825, %v2854
  %v3956 = vsel %vm3942, %v3827, %v2856
  %v3958 = vsel %vm3942, %v3829, %v2858
  %v3960 = vsel %vm3942, %v3831, %v2860
  %v3962 = vsel %vm3942, %v3833, %v2862
  %v3964 = vsel %vm3942, %v3835, %v2864
  %v3966 = vsel %vm3942, %v3837, %v2866
  %v3968 = vsel %vm3942, %v3839, %v2868
  %v3970 = vsel %vm3942, %v3841, %v2870
  %v3972 = vsel %vm3942, %v3843, %v2872
  %v3974 = vsel %vm3942, %v3845, %v2874
  %v3976 = vsel %vm3942, %v3847, %v2876
  %v3978 = vsel %vm3942, %v3849, %v2878
  %v3980 = vsel %vm3942, %v3851, %v2880
  %v3982 = vsel %vm3942, %v3853, %v2882
  %v3984 = vsel %vm3942, %v3855, %v2884
  %v3986 = vsel %vm3942, %v3857, %v2886
  %v3988 = vsel %vm3942, %v3859, %v2888
  %v3990 = vsel %vm3942, %v3861, %v2890
  %v3992 = vsel %vm3942, %v3863, %v2892
  %v3994 = vsel %vm3942, %v3865, %v2894
  %v3996 = vsel %vm3942, %v3867, %v2896
  %v3998 = vsel %vm3942, %v3869, %v2898
  %v4000 = vsel %vm3942, %v3871, %v2900
  %v4002 = vsel %vm3942, %v3873, %v2902
  %v4004 = vsel %vm3942, %v3875, %v2904
  %v4006 = vsel %vm3942, %v3877, %v2906
  %v4008 = vsel %vm3942, %v3879, %v2908
  %v4010 = vsel %vm3942, %v3881, %v2910
  %v4012 = vsel %vm3942, %v3883, %v2912
  %v4014 = vsel %vm3942, %v3885, %v2914
  %v4016 = vsel %vm3942, %v3887, %v2916
  %v4018 = vsel %vm3942, %v3889, %v2918
  %v4020 = vsel %vm3942, %v3891, %v2920
  %v4022 = vsel %vm3942, %v3893, %v2922
  %v4024 = vsel %vm3942, %v3895, %v2924
  %v4026 = vsel %vm3942, %v3897, %v2926
  %v4028 = vsel %vm3942, %v3899, %v2928
  %v4030 = vsel %vm3942, %v3901, %v2930
  %v4032 = vsel %vm3942, %v3903, %v2932
  %v4034 = vsel %vm3942, %v3905, %v2934
  %v4036 = vsel %vm3942, %v3907, %v2936
  %v4038 = vsel %vm3942, %v3909, %v2938
  %v4040 = vsel %vm3942, %v3911, %v2940
  %v4042 = vsel %vm3942, %v3913, %v2942
  %v4044 = vsel %vm3942, %v3915, %v2944
  %v4046 = vsel %vm3942, %v3917, %v2946
  %v4048 = vsel %vm3942, %v3919, %v2948
  %v4050 = vsel %vm3942, %v3921, %v2950
  %v4052 = vsel %vm3942, %v3923, %v2952
  %v4054 = vsel %vm3942, %v3925, %v2954
  %v4056 = vsel %vm3942, %v3927, %v2956
  %v4058 = vsel %vm3942, %v3929, %v2958
  %v4060 = vsel %vm3942, %v3931, %v2960
  %v4062 = vsel %vm3942, %v3933, %v2962
  %v4064 = vsel %vm3942, %v3935, %v2964
  %v4066 = vsel %vm3942, %v3937, %v2966
  %v4068 = vsel %vm3942, %v3939, %v2968
  %v4070 = vsel %vm3942, %v3941, %v2970
  %vm4071 = vcmask 654336
  %v4073 = vsel %vm4071, %v3944, %v2977
  %v4075 = vsel %vm4071, %v3946, %v2979
  %v4077 = vsel %vm4071, %v3948, %v2981
  %v4079 = vsel %vm4071, %v3950, %v2983
  %v4081 = vsel %vm4071, %v3952, %v2985
  %v4083 = vsel %vm4071, %v3954, %v2987
  %v4085 = vsel %vm4071, %v3956, %v2989
  %v4087 = vsel %vm4071, %v3958, %v2991
  %v4089 = vsel %vm4071, %v3960, %v2993
  %v4091 = vsel %vm4071, %v3962, %v2995
  %v4093 = vsel %vm4071, %v3964, %v2997
  %v4095 = vsel %vm4071, %v3966, %v2999
  %v4097 = vsel %vm4071, %v3968, %v3001
  %v4099 = vsel %vm4071, %v3970, %v3003
  %v4101 = vsel %vm4071, %v3972, %v3005
  %v4103 = vsel %vm4071, %v3974, %v3007
  %v4105 = vsel %vm4071, %v3976, %v3009
  %v4107 = vsel %vm4071, %v3978, %v3011
  %v4109 = vsel %vm4071, %v3980, %v3013
  %v4111 = vsel %vm4071, %v3982, %v3015
  %v4113 = vsel %vm4071, %v3984, %v3017
  %v4115 = vsel %vm4071, %v3986, %v3019
  %v4117 = vsel %vm4071, %v3988, %v3021
  %v4119 = vsel %vm4071, %v3990, %v3023
  %v4121 = vsel %vm4071, %v3992, %v3025
  %v4123 = vsel %vm4071, %v3994, %v3027
  %v4125 = vsel %vm4071, %v3996, %v3029
  %v4127 = vsel %vm4071, %v3998, %v3031
  %v4129 = vsel %vm4071, %v4000, %v3033
  %v4131 = vsel %vm4071, %v4002, %v3035
  %v4133 = vsel %vm4071, %v4004, %v3037
  %v4135 = vsel %vm4071, %v4006, %v3039
  %v4137 = vsel %vm4071, %v4008, %v3041
  %v4139 = vsel %vm4071, %v4010, %v3043
  %v4141 = vsel %vm4071, %v4012, %v3045
  %v4143 = vsel %vm4071, %v4014, %v3047
  %v4145 = vsel %vm4071, %v4016, %v3049
  %v4147 = vsel %vm4071, %v4018, %v3051
  %v4149 = vsel %vm4071, %v4020, %v3053
  %v4151 = vsel %vm4071, %v4022, %v3055
  %v4153 = vsel %vm4071, %v4024, %v3057
  %v4155 = vsel %vm4071, %v4026, %v3059
  %v4157 = vsel %vm4071, %v4028, %v3061
  %v4159 = vsel %vm4071, %v4030, %v3063
  %v4161 = vsel %vm4071, %v4032, %v3065
  %v4163 = vsel %vm4071, %v4034, %v3067
  %v4165 = vsel %vm4071, %v4036, %v3069
  %v4167 = vsel %vm4071, %v4038, %v3071
  %v4169 = vsel %vm4071, %v4040, %v3073
  %v4171 = vsel %vm4071, %v4042, %v3075
  %v4173 = vsel %vm4071, %v4044, %v3077
  %v4175 = vsel %vm4071, %v4046, %v3079
  %v4177 = vsel %vm4071, %v4048, %v3081
  %v4179 = vsel %vm4071, %v4050, %v3083
  %v4181 = vsel %vm4071, %v4052, %v3085
  %v4183 = vsel %vm4071, %v4054, %v3087
  %v4185 = vsel %vm4071, %v4056, %v3089
  %v4187 = vsel %vm4071, %v4058, %v3091
  %v4189 = vsel %vm4071, %v4060, %v3093
  %v4191 = vsel %vm4071, %v4062, %v3095
  %v4193 = vsel %vm4071, %v4064, %v3097
  %v4195 = vsel %vm4071, %v4066, %v3099
  %v4197 = vsel %vm4071, %v4068, %v3101
  %v4199 = vsel %vm4071, %v4070, %v3103
  %v4200 = vld [vmem:[%s2] sm:$0xf]
  %v4201 = vld [vmem:[%s2 + $0x4] sm:$0xf]
  %v4202 = vld [vmem:[%s2 + $0x8] sm:$0xf]
  %v4203 = vld [vmem:[%s2 + $0xc] sm:$0xf]
  %v4204 = vld [vmem:[%s2 + $0x10] sm:$0xf]
  %v4205 = vld [vmem:[%s2 + $0x14] sm:$0xf]
  %v4206 = vld [vmem:[%s2 + $0x18] sm:$0xf]
  %v4207 = vld [vmem:[%s2 + $0x1c] sm:$0xf]
  %v4208 = vld [vmem:[%s2 + $0x20] sm:$0xf]
  %v4209 = vld [vmem:[%s2 + $0x24] sm:$0xf]
  %v4210 = vld [vmem:[%s2 + $0x28] sm:$0xf]
  %v4211 = vld [vmem:[%s2 + $0x2c] sm:$0x1]
  %v4212 = vld [vmem:[%s3] sm:$0x1]
  %v4214 = vlaneseq
  %v4215 = vshrl.u32 %v4214, 7
  %v4216 = vsub.s32 0, %v4215
  %v4217 = vrot.slane %v4212, %v4216
  %v4231 = vunpack.c.l.b16 %v4200
  %v4232 = vunpack.c.l.b16 %v4201
  %v4233 = vunpack.c.l.b16 %v4202
  %v4234 = vunpack.c.l.b16 %v4203
  %v4235 = vunpack.c.l.b16 %v4204
  %v4236 = vunpack.c.l.b16 %v4205
  %v4237 = vunpack.c.l.b16 %v4206
  %v4238 = vunpack.c.l.b16 %v4207
  %v4239 = vunpack.c.l.b16 %v4208
  %v4240 = vunpack.c.l.b16 %v4209
  %v4241 = vunpack.c.l.b16 %v4210
  %v4242 = vunpack.c.l.b16 %v4211
  %v4243 = vpack.c.b16 %v4232, %v4231
  %v4244 = vpack.c.b16 %v4234, %v4233
  %v4245 = vpack.c.b16 %v4236, %v4235
  %v4246 = vpack.c.b16 %v4238, %v4237
  %v4247 = vpack.c.b16 %v4240, %v4239
  %v4248 = vpack.c.b16 %v4242, %v4241
  %vm4254 = vcmask 736256
  %v4255 = vsel %vm4254, %v4073, 0
  %v4257 = vsel %vm4254, %v4075, 0
  %v4259 = vsel %vm4254, %v4077, 0
  %v4261 = vsel %vm4254, %v4079, 0
  %v4263 = vsel %vm4254, %v4081, 0
  %v4265 = vsel %vm4254, %v4083, 0
  %v4267 = vsel %vm4254, %v4085, 0
  %v4269 = vsel %vm4254, %v4087, 0
  %v4271 = vsel %vm4254, %v4089, 0
  %v4273 = vsel %vm4254, %v4091, 0
  %v4275 = vsel %vm4254, %v4093, 0
  %v4277 = vsel %vm4254, %v4095, 0
  %v4279 = vsel %vm4254, %v4097, 0
  %v4281 = vsel %vm4254, %v4099, 0
  %v4283 = vsel %vm4254, %v4101, 0
  %v4285 = vsel %vm4254, %v4103, 0
  %v4287 = vsel %vm4254, %v4105, 0
  %v4289 = vsel %vm4254, %v4107, 0
  %v4291 = vsel %vm4254, %v4109, 0
  %v4293 = vsel %vm4254, %v4111, 0
  %v4295 = vsel %vm4254, %v4113, 0
  %v4297 = vsel %vm4254, %v4115, 0
  %v4299 = vsel %vm4254, %v4117, 0
  %v4301 = vsel %vm4254, %v4119, 0
  %v4303 = vsel %vm4254, %v4121, 0
  %v4305 = vsel %vm4254, %v4123, 0
  %v4307 = vsel %vm4254, %v4125, 0
  %v4309 = vsel %vm4254, %v4127, 0
  %v4311 = vsel %vm4254, %v4129, 0
  %v4313 = vsel %vm4254, %v4131, 0
  %v4315 = vsel %vm4254, %v4133, 0
  %v4317 = vsel %vm4254, %v4135, 0
  %v4319 = vsel %vm4254, %v4137, 0
  %v4321 = vsel %vm4254, %v4139, 0
  %v4323 = vsel %vm4254, %v4141, 0
  %v4325 = vsel %vm4254, %v4143, 0
  %v4327 = vsel %vm4254, %v4145, 0
  %v4329 = vsel %vm4254, %v4147, 0
  %v4331 = vsel %vm4254, %v4149, 0
  %v4333 = vsel %vm4254, %v4151, 0
  %v4335 = vsel %vm4254, %v4153, 0
  %v4337 = vsel %vm4254, %v4155, 0
  %v4339 = vsel %vm4254, %v4157, 0
  %v4341 = vsel %vm4254, %v4159, 0
  %v4343 = vsel %vm4254, %v4161, 0
  %v4345 = vsel %vm4254, %v4163, 0
  %v4347 = vsel %vm4254, %v4165, 0
  %v4349 = vsel %vm4254, %v4167, 0
  %v4351 = vsel %vm4254, %v4169, 0
  %v4353 = vsel %vm4254, %v4171, 0
  %v4355 = vsel %vm4254, %v4173, 0
  %v4357 = vsel %vm4254, %v4175, 0
  %v4359 = vsel %vm4254, %v4177, 0
  %v4361 = vsel %vm4254, %v4179, 0
  %v4363 = vsel %vm4254, %v4181, 0
  %v4365 = vsel %vm4254, %v4183, 0
  %v4367 = vsel %vm4254, %v4185, 0
  %v4369 = vsel %vm4254, %v4187, 0
  %v4371 = vsel %vm4254, %v4189, 0
  %v4373 = vsel %vm4254, %v4191, 0
  %v4375 = vsel %vm4254, %v4193, 0
  %v4377 = vsel %vm4254, %v4195, 0
  %v4379 = vsel %vm4254, %v4197, 0
  %v4381 = vsel %vm4254, %v4199, 0
  %vm4383 = vcmask 1044480
  %v4385 = vsel %vm4383, %v4248, 0
  %4387 = vmatprep.subr.bf16.mxu0 0
  %4388 = vmatpush1.bf16.msra.mxu0 %v4243
  %4389 = vmatprep.subr.bf16.mxu0 0
  %4390 = vmatpush1.bf16.msra.mxu0 %v4244
  %4391 = vmatprep.subr.bf16.mxu0 0
  %4392 = vmatpush1.bf16.msra.mxu0 %v4245
  %4393 = vmatprep.subr.bf16.mxu0 0
  %4394 = vmatpush1.bf16.msra.mxu0 %v4246
  %4395 = vmatprep.subr.bf16.mxu0 0
  %4396 = vmatpush1.bf16.msra.mxu0 %v4247
  %4397 = vmatprep.subr.bf16.mxu0 0
  %4398 = vmatpush1.bf16.msra.mxu0 %v4385
  %4399 = vmatprep.subr.bf16.mxu0 0
  %4400 = vmatpush1.bf16.msra.mxu0 0
  %4401 = vmatprep.subr.bf16.mxu0 0
  %4402 = vmatpush1.bf16.msra.mxu0 0
  %4403 = vmatprep.subr.bf16.mxu0 0
  %4404 = vmatpush1.bf16.msra.mxu0 0
  %4405 = vmatprep.subr.bf16.mxu0 0
  %4406 = vmatpush1.bf16.msra.mxu0 0
  %4407 = vmatprep.subr.bf16.mxu0 0
  %4408 = vmatpush1.bf16.msra.mxu0 0
  %4409 = vmatprep.subr.bf16.mxu0 0
  %4410 = vmatpush1.bf16.msra.mxu0 0
  %4411 = vmatprep.subr.bf16.mxu0 0
  %4412 = vmatpush1.bf16.msra.mxu0 0
  %4413 = vmatprep.subr.bf16.mxu0 0
  %4414 = vmatpush1.bf16.msra.mxu0 0
  %4415 = vmatprep.subr.bf16.mxu0 0
  %4416 = vmatpush1.bf16.msra.mxu0 0
  %4417 = vmatprep.subr.bf16.mxu0 0
  %4418 = vmatpush1.bf16.msra.mxu0 0
  %4419 = vmatprep.mubr.bf16.mxu0 0
  %4420 = vmatmul.mubr.bf16.gmra.mrb[0].mxu0 %v4255
  %v4421 = vpop.f32.mrb[0].mxu0
  %v4422 = vadd.f32 %v4217, %v4421
  %v4423 = vpop.f32.mrb[0].mxu0
  %v4424 = vpop.f32.mrb[0].mxu0
  %v4425 = vadd.f32 %v4217, %v4424
  %v4426 = vpop.f32.mrb[0].mxu0
  %4427 = vmatprep.mubr.bf16.mxu0 0
  %4428 = vmatmul.mubr.bf16.gmra.mrb[0].mxu0 %v4257
  %v4429 = vpop.f32.mrb[0].mxu0
  %v4430 = vadd.f32 %v4217, %v4429
  %v4431 = vpop.f32.mrb[0].mxu0
  %v4432 = vpop.f32.mrb[0].mxu0
  %v4433 = vadd.f32 %v4217, %v4432
  %v4434 = vpop.f32.mrb[0].mxu0
  %4435 = vmatprep.mubr.bf16.mxu0 0
  %4436 = vmatmul.mubr.bf16.gmra.mrb[0].mxu0 %v4259
  %v4437 = vpop.f32.mrb[0].mxu0
  %v4438 = vadd.f32 %v4217, %v4437
  %v4439 = vpop.f32.mrb[0].mxu0
  %v4440 = vpop.f32.mrb[0].mxu0
  %v4441 = vadd.f32 %v4217, %v4440
  %v4442 = vpop.f32.mrb[0].mxu0
  %4443 = vmatprep.mubr.bf16.mxu0 0
  %4444 = vmatmul.mubr.bf16.gmra.mrb[0].mxu0 %v4261
  %v4445 = vpop.f32.mrb[0].mxu0
  %v4446 = vadd.f32 %v4217, %v4445
  %v4447 = vpop.f32.mrb[0].mxu0
  %v4448 = vpop.f32.mrb[0].mxu0
  %v4449 = vadd.f32 %v4217, %v4448
  %v4450 = vpop.f32.mrb[0].mxu0
  %4451 = vmatprep.mubr.bf16.mxu0 0
  %4452 = vmatmul.mubr.bf16.gmra.mrb[0].mxu0 %v4263
  %v4453 = vpop.f32.mrb[0].mxu0
  %v4454 = vadd.f32 %v4217, %v4453
  %v4455 = vpop.f32.mrb[0].mxu0
  %v4456 = vpop.f32.mrb[0].mxu0
  %v4457 = vadd.f32 %v4217, %v4456
  %v4458 = vpop.f32.mrb[0].mxu0
  %4459 = vmatprep.mubr.bf16.mxu0 0
  %4460 = vmatmul.mubr.bf16.gmra.mrb[0].mxu0 %v4265
  %v4461 = vpop.f32.mrb[0].mxu0
  %v4462 = vadd.f32 %v4217, %v4461
  %v4463 = vpop.f32.mrb[0].mxu0
  %v4464 = vpop.f32.mrb[0].mxu0
  %v4465 = vadd.f32 %v4217, %v4464
  %v4466 = vpop.f32.mrb[0].mxu0
  %4467 = vmatprep.mubr.bf16.mxu0 0
  %4468 = vmatmul.mubr.bf16.gmra.mrb[0].mxu0 %v4267
  %v4469 = vpop.f32.mrb[0].mxu0
  %v4470 = vadd.f32 %v4217, %v4469
  %v4471 = vpop.f32.mrb[0].mxu0
  %v4472 = vpop.f32.mrb[0].mxu0
  %v4473 = vadd.f32 %v4217, %v4472
  %v4474 = vpop.f32.mrb[0].mxu0
  %4475 = vmatprep.mubr.bf16.mxu0 0
  %4476 = vmatmul.mubr.bf16.gmra.mrb[0].mxu0 %v4269
  %v4477 = vpop.f32.mrb[0].mxu0
  %v4478 = vadd.f32 %v4217, %v4477
  %v4479 = vpop.f32.mrb[0].mxu0
  %v4480 = vpop.f32.mrb[0].mxu0
  %v4481 = vadd.f32 %v4217, %v4480
  %v4482 = vpop.f32.mrb[0].mxu0
  %4483 = vmatprep.mubr.bf16.mxu0 0
  %4484 = vmatmul.mubr.bf16.gmra.mrb[0].mxu0 %v4271
  %v4485 = vpop.f32.mrb[0].mxu0
  %v4486 = vadd.f32 %v4217, %v4485
  %v4487 = vpop.f32.mrb[0].mxu0
  %v4488 = vpop.f32.mrb[0].mxu0
  %v4489 = vadd.f32 %v4217, %v4488
  %v4490 = vpop.f32.mrb[0].mxu0
  %4491 = vmatprep.mubr.bf16.mxu0 0
  %4492 = vmatmul.mubr.bf16.gmra.mrb[0].mxu0 %v4273
  %v4493 = vpop.f32.mrb[0].mxu0
  %v4494 = vadd.f32 %v4217, %v4493
  %v4495 = vpop.f32.mrb[0].mxu0
  %v4496 = vpop.f32.mrb[0].mxu0
  %v4497 = vadd.f32 %v4217, %v4496
  %v4498 = vpop.f32.mrb[0].mxu0
  %4499 = vmatprep.mubr.bf16.mxu0 0
  %4500 = vmatmul.mubr.bf16.gmra.mrb[0].mxu0 %v4275
  %v4501 = vpop.f32.mrb[0].mxu0
  %v4502 = vadd.f32 %v4217, %v4501
  %v4503 = vpop.f32.mrb[0].mxu0
  %v4504 = vpop.f32.mrb[0].mxu0
  %v4505 = vadd.f32 %v4217, %v4504
  %v4506 = vpop.f32.mrb[0].mxu0
  %4507 = vmatprep.mubr.bf16.mxu0 0
  %4508 = vmatmul.mubr.bf16.gmra.mrb[0].mxu0 %v4277
  %v4509 = vpop.f32.mrb[0].mxu0
  %v4510 = vadd.f32 %v4217, %v4509
  %v4511 = vpop.f32.mrb[0].mxu0
  %v4512 = vpop.f32.mrb[0].mxu0
  %v4513 = vadd.f32 %v4217, %v4512
  %v4514 = vpop.f32.mrb[0].mxu0
  %4515 = vmatprep.mubr.bf16.mxu0 0
  %4516 = vmatmul.mubr.bf16.gmra.mrb[0].mxu0 %v4279
  %v4517 = vpop.f32.mrb[0].mxu0
  %v4518 = vadd.f32 %v4217, %v4517
  %v4519 = vpop.f32.mrb[0].mxu0
  %v4520 = vpop.f32.mrb[0].mxu0
  %v4521 = vadd.f32 %v4217, %v4520
  %v4522 = vpop.f32.mrb[0].mxu0
  %4523 = vmatprep.mubr.bf16.mxu0 0
  %4524 = vmatmul.mubr.bf16.gmra.mrb[0].mxu0 %v4281
  %v4525 = vpop.f32.mrb[0].mxu0
  %v4526 = vadd.f32 %v4217, %v4525
  %v4527 = vpop.f32.mrb[0].mxu0
  %v4528 = vpop.f32.mrb[0].mxu0
  %v4529 = vadd.f32 %v4217, %v4528
  %v4530 = vpop.f32.mrb[0].mxu0
  %4531 = vmatprep.mubr.bf16.mxu0 0
  %4532 = vmatmul.mubr.bf16.gmra.mrb[0].mxu0 %v4283
  %v4533 = vpop.f32.mrb[0].mxu0
  %v4534 = vadd.f32 %v4217, %v4533
  %v4535 = vpop.f32.mrb[0].mxu0
  %v4536 = vpop.f32.mrb[0].mxu0
  %v4537 = vadd.f32 %v4217, %v4536
  %v4538 = vpop.f32.mrb[0].mxu0
  %4539 = vmatprep.mubr.bf16.mxu0 0
  %4540 = vmatmul.mubr.bf16.gmra.mrb[0].mxu0 %v4285
  %v4541 = vpop.f32.mrb[0].mxu0
  %v4542 = vadd.f32 %v4217, %v4541
  %v4543 = vpop.f32.mrb[0].mxu0
  %v4544 = vpop.f32.mrb[0].mxu0
  %v4545 = vadd.f32 %v4217, %v4544
  %v4546 = vpop.f32.mrb[0].mxu0
  %4547 = vmatprep.mubr.bf16.mxu0 0
  %4548 = vmatmul.mubr.bf16.gmra.mrb[0].mxu0 %v4287
  %v4549 = vpop.f32.mrb[0].mxu0
  %v4550 = vadd.f32 %v4217, %v4549
  %v4551 = vpop.f32.mrb[0].mxu0
  %v4552 = vpop.f32.mrb[0].mxu0
  %v4553 = vadd.f32 %v4217, %v4552
  %v4554 = vpop.f32.mrb[0].mxu0
  %4555 = vmatprep.mubr.bf16.mxu0 0
  %4556 = vmatmul.mubr.bf16.gmra.mrb[0].mxu0 %v4289
  %v4557 = vpop.f32.mrb[0].mxu0
  %v4558 = vadd.f32 %v4217, %v4557
  %v4559 = vpop.f32.mrb[0].mxu0
  %v4560 = vpop.f32.mrb[0].mxu0
  %v4561 = vadd.f32 %v4217, %v4560
  %v4562 = vpop.f32.mrb[0].mxu0
  %4563 = vmatprep.mubr.bf16.mxu0 0
  %4564 = vmatmul.mubr.bf16.gmra.mrb[0].mxu0 %v4291
  %v4565 = vpop.f32.mrb[0].mxu0
  %v4566 = vadd.f32 %v4217, %v4565
  %v4567 = vpop.f32.mrb[0].mxu0
  %v4568 = vpop.f32.mrb[0].mxu0
  %v4569 = vadd.f32 %v4217, %v4568
  %v4570 = vpop.f32.mrb[0].mxu0
  %4571 = vmatprep.mubr.bf16.mxu0 0
  %4572 = vmatmul.mubr.bf16.gmra.mrb[0].mxu0 %v4293
  %v4573 = vpop.f32.mrb[0].mxu0
  %v4574 = vadd.f32 %v4217, %v4573
  %v4575 = vpop.f32.mrb[0].mxu0
  %v4576 = vpop.f32.mrb[0].mxu0
  %v4577 = vadd.f32 %v4217, %v4576
  %v4578 = vpop.f32.mrb[0].mxu0
  %4579 = vmatprep.mubr.bf16.mxu0 0
  %4580 = vmatmul.mubr.bf16.gmra.mrb[0].mxu0 %v4295
  %v4581 = vpop.f32.mrb[0].mxu0
  %v4582 = vadd.f32 %v4217, %v4581
  %v4583 = vpop.f32.mrb[0].mxu0
  %v4584 = vpop.f32.mrb[0].mxu0
  %v4585 = vadd.f32 %v4217, %v4584
  %v4586 = vpop.f32.mrb[0].mxu0
  %4587 = vmatprep.mubr.bf16.mxu0 0
  %4588 = vmatmul.mubr.bf16.gmra.mrb[0].mxu0 %v4297
  %v4589 = vpop.f32.mrb[0].mxu0
  %v4590 = vadd.f32 %v4217, %v4589
  %v4591 = vpop.f32.mrb[0].mxu0
  %v4592 = vpop.f32.mrb[0].mxu0
  %v4593 = vadd.f32 %v4217, %v4592
  %v4594 = vpop.f32.mrb[0].mxu0
  %4595 = vmatprep.mubr.bf16.mxu0 0
  %4596 = vmatmul.mubr.bf16.gmra.mrb[0].mxu0 %v4299
  %v4597 = vpop.f32.mrb[0].mxu0
  %v4598 = vadd.f32 %v4217, %v4597
  %v4599 = vpop.f32.mrb[0].mxu0
  %v4600 = vpop.f32.mrb[0].mxu0
  %v4601 = vadd.f32 %v4217, %v4600
  %v4602 = vpop.f32.mrb[0].mxu0
  %4603 = vmatprep.mubr.bf16.mxu0 0
  %4604 = vmatmul.mubr.bf16.gmra.mrb[0].mxu0 %v4301
  %v4605 = vpop.f32.mrb[0].mxu0
  %v4606 = vadd.f32 %v4217, %v4605
  %v4607 = vpop.f32.mrb[0].mxu0
  %v4608 = vpop.f32.mrb[0].mxu0
  %v4609 = vadd.f32 %v4217, %v4608
  %v4610 = vpop.f32.mrb[0].mxu0
  %4611 = vmatprep.mubr.bf16.mxu0 0
  %4612 = vmatmul.mubr.bf16.gmra.mrb[0].mxu0 %v4303
  %v4613 = vpop.f32.mrb[0].mxu0
  %v4614 = vadd.f32 %v4217, %v4613
  %v4615 = vpop.f32.mrb[0].mxu0
  %v4616 = vpop.f32.mrb[0].mxu0
  %v4617 = vadd.f32 %v4217, %v4616
  %v4618 = vpop.f32.mrb[0].mxu0
  %4619 = vmatprep.mubr.bf16.mxu0 0
  %4620 = vmatmul.mubr.bf16.gmra.mrb[0].mxu0 %v4305
  %v4621 = vpop.f32.mrb[0].mxu0
  %v4622 = vadd.f32 %v4217, %v4621
  %v4623 = vpop.f32.mrb[0].mxu0
  %v4624 = vpop.f32.mrb[0].mxu0
  %v4625 = vadd.f32 %v4217, %v4624
  %v4626 = vpop.f32.mrb[0].mxu0
  %4627 = vmatprep.mubr.bf16.mxu0 0
  %4628 = vmatmul.mubr.bf16.gmra.mrb[0].mxu0 %v4307
  %v4629 = vpop.f32.mrb[0].mxu0
  %v4630 = vadd.f32 %v4217, %v4629
  %v4631 = vpop.f32.mrb[0].mxu0
  %v4632 = vpop.f32.mrb[0].mxu0
  %v4633 = vadd.f32 %v4217, %v4632
  %v4634 = vpop.f32.mrb[0].mxu0
  %4635 = vmatprep.mubr.bf16.mxu0 0
  %4636 = vmatmul.mubr.bf16.gmra.mrb[0].mxu0 %v4309
  %v4637 = vpop.f32.mrb[0].mxu0
  %v4638 = vadd.f32 %v4217, %v4637
  %v4639 = vpop.f32.mrb[0].mxu0
  %v4640 = vpop.f32.mrb[0].mxu0
  %v4641 = vadd.f32 %v4217, %v4640
  %v4642 = vpop.f32.mrb[0].mxu0
  %4643 = vmatprep.mubr.bf16.mxu0 0
  %4644 = vmatmul.mubr.bf16.gmra.mrb[0].mxu0 %v4311
  %v4645 = vpop.f32.mrb[0].mxu0
  %v4646 = vadd.f32 %v4217, %v4645
  %v4647 = vpop.f32.mrb[0].mxu0
  %v4648 = vpop.f32.mrb[0].mxu0
  %v4649 = vadd.f32 %v4217, %v4648
  %v4650 = vpop.f32.mrb[0].mxu0
  %4651 = vmatprep.mubr.bf16.mxu0 0
  %4652 = vmatmul.mubr.bf16.gmra.mrb[0].mxu0 %v4313
  %v4653 = vpop.f32.mrb[0].mxu0
  %v4654 = vadd.f32 %v4217, %v4653
  %v4655 = vpop.f32.mrb[0].mxu0
  %v4656 = vpop.f32.mrb[0].mxu0
  %v4657 = vadd.f32 %v4217, %v4656
  %v4658 = vpop.f32.mrb[0].mxu0
  %4659 = vmatprep.mubr.bf16.mxu0 0
  %4660 = vmatmul.mubr.bf16.gmra.mrb[0].mxu0 %v4315
  %v4661 = vpop.f32.mrb[0].mxu0
  %v4662 = vadd.f32 %v4217, %v4661
  %v4663 = vpop.f32.mrb[0].mxu0
  %v4664 = vpop.f32.mrb[0].mxu0
  %v4665 = vadd.f32 %v4217, %v4664
  %v4666 = vpop.f32.mrb[0].mxu0
  %4667 = vmatprep.mubr.bf16.mxu0 0
  %4668 = vmatmul.mubr.bf16.gmra.mrb[0].mxu0 %v4317
  %v4669 = vpop.f32.mrb[0].mxu0
  %v4670 = vadd.f32 %v4217, %v4669
  %v4671 = vpop.f32.mrb[0].mxu0
  %v4672 = vpop.f32.mrb[0].mxu0
  %v4673 = vadd.f32 %v4217, %v4672
  %v4674 = vpop.f32.mrb[0].mxu0
  %4675 = vmatprep.mubr.bf16.mxu0 0
  %4676 = vmatmul.mubr.bf16.gmra.mrb[0].mxu0 %v4319
  %v4677 = vpop.f32.mrb[0].mxu0
  %v4678 = vadd.f32 %v4217, %v4677
  %v4679 = vpop.f32.mrb[0].mxu0
  %v4680 = vpop.f32.mrb[0].mxu0
  %v4681 = vadd.f32 %v4217, %v4680
  %v4682 = vpop.f32.mrb[0].mxu0
  %4683 = vmatprep.mubr.bf16.mxu0 0
  %4684 = vmatmul.mubr.bf16.gmra.mrb[0].mxu0 %v4321
  %v4685 = vpop.f32.mrb[0].mxu0
  %v4686 = vadd.f32 %v4217, %v4685
  %v4687 = vpop.f32.mrb[0].mxu0
  %v4688 = vpop.f32.mrb[0].mxu0
  %v4689 = vadd.f32 %v4217, %v4688
  %v4690 = vpop.f32.mrb[0].mxu0
  %4691 = vmatprep.mubr.bf16.mxu0 0
  %4692 = vmatmul.mubr.bf16.gmra.mrb[0].mxu0 %v4323
  %v4693 = vpop.f32.mrb[0].mxu0
  %v4694 = vadd.f32 %v4217, %v4693
  %v4695 = vpop.f32.mrb[0].mxu0
  %v4696 = vpop.f32.mrb[0].mxu0
  %v4697 = vadd.f32 %v4217, %v4696
  %v4698 = vpop.f32.mrb[0].mxu0
  %4699 = vmatprep.mubr.bf16.mxu0 0
  %4700 = vmatmul.mubr.bf16.gmra.mrb[0].mxu0 %v4325
  %v4701 = vpop.f32.mrb[0].mxu0
  %v4702 = vadd.f32 %v4217, %v4701
  %v4703 = vpop.f32.mrb[0].mxu0
  %v4704 = vpop.f32.mrb[0].mxu0
  %v4705 = vadd.f32 %v4217, %v4704
  %v4706 = vpop.f32.mrb[0].mxu0
  %4707 = vmatprep.mubr.bf16.mxu0 0
  %4708 = vmatmul.mubr.bf16.gmra.mrb[0].mxu0 %v4327
  %v4709 = vpop.f32.mrb[0].mxu0
  %v4710 = vadd.f32 %v4217, %v4709
  %v4711 = vpop.f32.mrb[0].mxu0
  %v4712 = vpop.f32.mrb[0].mxu0
  %v4713 = vadd.f32 %v4217, %v4712
  %v4714 = vpop.f32.mrb[0].mxu0
  %4715 = vmatprep.mubr.bf16.mxu0 0
  %4716 = vmatmul.mubr.bf16.gmra.mrb[0].mxu0 %v4329
  %v4717 = vpop.f32.mrb[0].mxu0
  %v4718 = vadd.f32 %v4217, %v4717
  %v4719 = vpop.f32.mrb[0].mxu0
  %v4720 = vpop.f32.mrb[0].mxu0
  %v4721 = vadd.f32 %v4217, %v4720
  %v4722 = vpop.f32.mrb[0].mxu0
  %4723 = vmatprep.mubr.bf16.mxu0 0
  %4724 = vmatmul.mubr.bf16.gmra.mrb[0].mxu0 %v4331
  %v4725 = vpop.f32.mrb[0].mxu0
  %v4726 = vadd.f32 %v4217, %v4725
  %v4727 = vpop.f32.mrb[0].mxu0
  %v4728 = vpop.f32.mrb[0].mxu0
  %v4729 = vadd.f32 %v4217, %v4728
  %v4730 = vpop.f32.mrb[0].mxu0
  %4731 = vmatprep.mubr.bf16.mxu0 0
  %4732 = vmatmul.mubr.bf16.gmra.mrb[0].mxu0 %v4333
  %v4733 = vpop.f32.mrb[0].mxu0
  %v4734 = vadd.f32 %v4217, %v4733
  %v4735 = vpop.f32.mrb[0].mxu0
  %v4736 = vpop.f32.mrb[0].mxu0
  %v4737 = vadd.f32 %v4217, %v4736
  %v4738 = vpop.f32.mrb[0].mxu0
  %4739 = vmatprep.mubr.bf16.mxu0 0
  %4740 = vmatmul.mubr.bf16.gmra.mrb[0].mxu0 %v4335
  %v4741 = vpop.f32.mrb[0].mxu0
  %v4742 = vadd.f32 %v4217, %v4741
  %v4743 = vpop.f32.mrb[0].mxu0
  %v4744 = vpop.f32.mrb[0].mxu0
  %v4745 = vadd.f32 %v4217, %v4744
  %v4746 = vpop.f32.mrb[0].mxu0
  %4747 = vmatprep.mubr.bf16.mxu0 0
  %4748 = vmatmul.mubr.bf16.gmra.mrb[0].mxu0 %v4337
  %v4749 = vpop.f32.mrb[0].mxu0
  %v4750 = vadd.f32 %v4217, %v4749
  %v4751 = vpop.f32.mrb[0].mxu0
  %v4752 = vpop.f32.mrb[0].mxu0
  %v4753 = vadd.f32 %v4217, %v4752
  %v4754 = vpop.f32.mrb[0].mxu0
  %4755 = vmatprep.mubr.bf16.mxu0 0
  %4756 = vmatmul.mubr.bf16.gmra.mrb[0].mxu0 %v4339
  %v4757 = vpop.f32.mrb[0].mxu0
  %v4758 = vadd.f32 %v4217, %v4757
  %v4759 = vpop.f32.mrb[0].mxu0
  %v4760 = vpop.f32.mrb[0].mxu0
  %v4761 = vadd.f32 %v4217, %v4760
  %v4762 = vpop.f32.mrb[0].mxu0
  %4763 = vmatprep.mubr.bf16.mxu0 0
  %4764 = vmatmul.mubr.bf16.gmra.mrb[0].mxu0 %v4341
  %v4765 = vpop.f32.mrb[0].mxu0
  %v4766 = vadd.f32 %v4217, %v4765
  %v4767 = vpop.f32.mrb[0].mxu0
  %v4768 = vpop.f32.mrb[0].mxu0
  %v4769 = vadd.f32 %v4217, %v4768
  %v4770 = vpop.f32.mrb[0].mxu0
  %4771 = vmatprep.mubr.bf16.mxu0 0
  %4772 = vmatmul.mubr.bf16.gmra.mrb[0].mxu0 %v4343
  %v4773 = vpop.f32.mrb[0].mxu0
  %v4774 = vadd.f32 %v4217, %v4773
  %v4775 = vpop.f32.mrb[0].mxu0
  %v4776 = vpop.f32.mrb[0].mxu0
  %v4777 = vadd.f32 %v4217, %v4776
  %v4778 = vpop.f32.mrb[0].mxu0
  %4779 = vmatprep.mubr.bf16.mxu0 0
  %4780 = vmatmul.mubr.bf16.gmra.mrb[0].mxu0 %v4345
  %v4781 = vpop.f32.mrb[0].mxu0
  %v4782 = vadd.f32 %v4217, %v4781
  %v4783 = vpop.f32.mrb[0].mxu0
  %v4784 = vpop.f32.mrb[0].mxu0
  %v4785 = vadd.f32 %v4217, %v4784
  %v4786 = vpop.f32.mrb[0].mxu0
  %4787 = vmatprep.mubr.bf16.mxu0 0
  %4788 = vmatmul.mubr.bf16.gmra.mrb[0].mxu0 %v4347
  %v4789 = vpop.f32.mrb[0].mxu0
  %v4790 = vadd.f32 %v4217, %v4789
  %v4791 = vpop.f32.mrb[0].mxu0
  %v4792 = vpop.f32.mrb[0].mxu0
  %v4793 = vadd.f32 %v4217, %v4792
  %v4794 = vpop.f32.mrb[0].mxu0
  %4795 = vmatprep.mubr.bf16.mxu0 0
  %4796 = vmatmul.mubr.bf16.gmra.mrb[0].mxu0 %v4349
  %v4797 = vpop.f32.mrb[0].mxu0
  %v4798 = vadd.f32 %v4217, %v4797
  %v4799 = vpop.f32.mrb[0].mxu0
  %v4800 = vpop.f32.mrb[0].mxu0
  %v4801 = vadd.f32 %v4217, %v4800
  %v4802 = vpop.f32.mrb[0].mxu0
  %4803 = vmatprep.mubr.bf16.mxu0 0
  %4804 = vmatmul.mubr.bf16.gmra.mrb[0].mxu0 %v4351
  %v4805 = vpop.f32.mrb[0].mxu0
  %v4806 = vadd.f32 %v4217, %v4805
  %v4807 = vpop.f32.mrb[0].mxu0
  %v4808 = vpop.f32.mrb[0].mxu0
  %v4809 = vadd.f32 %v4217, %v4808
  %v4810 = vpop.f32.mrb[0].mxu0
  %4811 = vmatprep.mubr.bf16.mxu0 0
  %4812 = vmatmul.mubr.bf16.gmra.mrb[0].mxu0 %v4353
  %v4813 = vpop.f32.mrb[0].mxu0
  %v4814 = vadd.f32 %v4217, %v4813
  %v4815 = vpop.f32.mrb[0].mxu0
  %v4816 = vpop.f32.mrb[0].mxu0
  %v4817 = vadd.f32 %v4217, %v4816
  %v4818 = vpop.f32.mrb[0].mxu0
  %4819 = vmatprep.mubr.bf16.mxu0 0
  %4820 = vmatmul.mubr.bf16.gmra.mrb[0].mxu0 %v4355
  %v4821 = vpop.f32.mrb[0].mxu0
  %v4822 = vadd.f32 %v4217, %v4821
  %v4823 = vpop.f32.mrb[0].mxu0
  %v4824 = vpop.f32.mrb[0].mxu0
  %v4825 = vadd.f32 %v4217, %v4824
  %v4826 = vpop.f32.mrb[0].mxu0
  %4827 = vmatprep.mubr.bf16.mxu0 0
  %4828 = vmatmul.mubr.bf16.gmra.mrb[0].mxu0 %v4357
  %v4829 = vpop.f32.mrb[0].mxu0
  %v4830 = vadd.f32 %v4217, %v4829
  %v4831 = vpop.f32.mrb[0].mxu0
  %v4832 = vpop.f32.mrb[0].mxu0
  %v4833 = vadd.f32 %v4217, %v4832
  %v4834 = vpop.f32.mrb[0].mxu0
  %4835 = vmatprep.mubr.bf16.mxu0 0
  %4836 = vmatmul.mubr.bf16.gmra.mrb[0].mxu0 %v4359
  %v4837 = vpop.f32.mrb[0].mxu0
  %v4838 = vadd.f32 %v4217, %v4837
  %v4839 = vpop.f32.mrb[0].mxu0
  %v4840 = vpop.f32.mrb[0].mxu0
  %v4841 = vadd.f32 %v4217, %v4840
  %v4842 = vpop.f32.mrb[0].mxu0
  %4843 = vmatprep.mubr.bf16.mxu0 0
  %4844 = vmatmul.mubr.bf16.gmra.mrb[0].mxu0 %v4361
  %v4845 = vpop.f32.mrb[0].mxu0
  %v4846 = vadd.f32 %v4217, %v4845
  %v4847 = vpop.f32.mrb[0].mxu0
  %v4848 = vpop.f32.mrb[0].mxu0
  %v4849 = vadd.f32 %v4217, %v4848
  %v4850 = vpop.f32.mrb[0].mxu0
  %4851 = vmatprep.mubr.bf16.mxu0 0
  %4852 = vmatmul.mubr.bf16.gmra.mrb[0].mxu0 %v4363
  %v4853 = vpop.f32.mrb[0].mxu0
  %v4854 = vadd.f32 %v4217, %v4853
  %v4855 = vpop.f32.mrb[0].mxu0
  %v4856 = vpop.f32.mrb[0].mxu0
  %v4857 = vadd.f32 %v4217, %v4856
  %v4858 = vpop.f32.mrb[0].mxu0
  %4859 = vmatprep.mubr.bf16.mxu0 0
  %4860 = vmatmul.mubr.bf16.gmra.mrb[0].mxu0 %v4365
  %v4861 = vpop.f32.mrb[0].mxu0
  %v4862 = vadd.f32 %v4217, %v4861
  %v4863 = vpop.f32.mrb[0].mxu0
  %v4864 = vpop.f32.mrb[0].mxu0
  %v4865 = vadd.f32 %v4217, %v4864
  %v4866 = vpop.f32.mrb[0].mxu0
  %4867 = vmatprep.mubr.bf16.mxu0 0
  %4868 = vmatmul.mubr.bf16.gmra.mrb[0].mxu0 %v4367
  %v4869 = vpop.f32.mrb[0].mxu0
  %v4870 = vadd.f32 %v4217, %v4869
  %v4871 = vpop.f32.mrb[0].mxu0
  %v4872 = vpop.f32.mrb[0].mxu0
  %v4873 = vadd.f32 %v4217, %v4872
  %v4874 = vpop.f32.mrb[0].mxu0
  %4875 = vmatprep.mubr.bf16.mxu0 0
  %4876 = vmatmul.mubr.bf16.gmra.mrb[0].mxu0 %v4369
  %v4877 = vpop.f32.mrb[0].mxu0
  %v4878 = vadd.f32 %v4217, %v4877
  %v4879 = vpop.f32.mrb[0].mxu0
  %v4880 = vpop.f32.mrb[0].mxu0
  %v4881 = vadd.f32 %v4217, %v4880
  %v4882 = vpop.f32.mrb[0].mxu0
  %4883 = vmatprep.mubr.bf16.mxu0 0
  %4884 = vmatmul.mubr.bf16.gmra.mrb[0].mxu0 %v4371
  %v4885 = vpop.f32.mrb[0].mxu0
  %v4886 = vadd.f32 %v4217, %v4885
  %v4887 = vpop.f32.mrb[0].mxu0
  %v4888 = vpop.f32.mrb[0].mxu0
  %v4889 = vadd.f32 %v4217, %v4888
  %v4890 = vpop.f32.mrb[0].mxu0
  %4891 = vmatprep.mubr.bf16.mxu0 0
  %4892 = vmatmul.mubr.bf16.gmra.mrb[0].mxu0 %v4373
  %v4893 = vpop.f32.mrb[0].mxu0
  %v4894 = vadd.f32 %v4217, %v4893
  %v4895 = vpop.f32.mrb[0].mxu0
  %v4896 = vpop.f32.mrb[0].mxu0
  %v4897 = vadd.f32 %v4217, %v4896
  %v4898 = vpop.f32.mrb[0].mxu0
  %4899 = vmatprep.mubr.bf16.mxu0 0
  %4900 = vmatmul.mubr.bf16.gmra.mrb[0].mxu0 %v4375
  %v4901 = vpop.f32.mrb[0].mxu0
  %v4902 = vadd.f32 %v4217, %v4901
  %v4903 = vpop.f32.mrb[0].mxu0
  %v4904 = vpop.f32.mrb[0].mxu0
  %v4905 = vadd.f32 %v4217, %v4904
  %v4906 = vpop.f32.mrb[0].mxu0
  %4907 = vmatprep.mubr.bf16.mxu0 0
  %4908 = vmatmul.mubr.bf16.gmra.mrb[0].mxu0 %v4377
  %v4909 = vpop.f32.mrb[0].mxu0
  %v4910 = vadd.f32 %v4217, %v4909
  %v4911 = vpop.f32.mrb[0].mxu0
  %v4912 = vpop.f32.mrb[0].mxu0
  %v4913 = vadd.f32 %v4217, %v4912
  %v4914 = vpop.f32.mrb[0].mxu0
  %4915 = vmatprep.mubr.bf16.mxu0 0
  %4916 = vmatmul.mubr.bf16.gmra.mrb[0].mxu0 %v4379
  %v4917 = vpop.f32.mrb[0].mxu0
  %v4918 = vadd.f32 %v4217, %v4917
  %v4919 = vpop.f32.mrb[0].mxu0
  %v4920 = vpop.f32.mrb[0].mxu0
  %v4921 = vadd.f32 %v4217, %v4920
  %v4922 = vpop.f32.mrb[0].mxu0
  %4923 = vmatprep.mubr.bf16.mxu0 0
  %4924 = vmatmul.mubr.bf16.gmra.mrb[0].mxu0 %v4381
  %v4925 = vpop.f32.mrb[0].mxu0
  %v4926 = vadd.f32 %v4217, %v4925
  %v4927 = vpop.f32.mrb[0].mxu0
  %v4928 = vpop.f32.mrb[0].mxu0
  %v4929 = vadd.f32 %v4217, %v4928
  %v4930 = vpop.f32.mrb[0].mxu0
  %4931 = vdwg.mxu0
  %vm4932 = vcmp.gt.f32.partialorder %v4422, 0.0
  %vm4933 = vcmp.gt.f32.partialorder %v4425, 0.0
  %vm4934 = vcmp.gt.f32.partialorder %v4430, 0.0
  %vm4935 = vcmp.gt.f32.partialorder %v4433, 0.0
  %vm4936 = vcmp.gt.f32.partialorder %v4438, 0.0
  %vm4937 = vcmp.gt.f32.partialorder %v4441, 0.0
  %vm4938 = vcmp.gt.f32.partialorder %v4446, 0.0
  %vm4939 = vcmp.gt.f32.partialorder %v4449, 0.0
  %vm4940 = vcmp.gt.f32.partialorder %v4454, 0.0
  %vm4941 = vcmp.gt.f32.partialorder %v4457, 0.0
  %vm4942 = vcmp.gt.f32.partialorder %v4462, 0.0
  %vm4943 = vcmp.gt.f32.partialorder %v4465, 0.0
  %vm4944 = vcmp.gt.f32.partialorder %v4470, 0.0
  %vm4945 = vcmp.gt.f32.partialorder %v4473, 0.0
  %vm4946 = vcmp.gt.f32.partialorder %v4478, 0.0
  %vm4947 = vcmp.gt.f32.partialorder %v4481, 0.0
  %vm4948 = vcmp.gt.f32.partialorder %v4486, 0.0
  %vm4949 = vcmp.gt.f32.partialorder %v4489, 0.0
  %vm4950 = vcmp.gt.f32.partialorder %v4494, 0.0
  %vm4951 = vcmp.gt.f32.partialorder %v4497, 0.0
  %vm4952 = vcmp.gt.f32.partialorder %v4502, 0.0
  %vm4953 = vcmp.gt.f32.partialorder %v4505, 0.0
  %vm4954 = vcmp.gt.f32.partialorder %v4510, 0.0
  %vm4955 = vcmp.gt.f32.partialorder %v4513, 0.0
  %vm4956 = vcmp.gt.f32.partialorder %v4518, 0.0
  %vm4957 = vcmp.gt.f32.partialorder %v4521, 0.0
  %vm4958 = vcmp.gt.f32.partialorder %v4526, 0.0
  %vm4959 = vcmp.gt.f32.partialorder %v4529, 0.0
  %vm4960 = vcmp.gt.f32.partialorder %v4534, 0.0
  %vm4961 = vcmp.gt.f32.partialorder %v4537, 0.0
  %vm4962 = vcmp.gt.f32.partialorder %v4542, 0.0
  %vm4963 = vcmp.gt.f32.partialorder %v4545, 0.0
  %vm4964 = vcmp.gt.f32.partialorder %v4550, 0.0
  %vm4965 = vcmp.gt.f32.partialorder %v4553, 0.0
  %vm4966 = vcmp.gt.f32.partialorder %v4558, 0.0
  %vm4967 = vcmp.gt.f32.partialorder %v4561, 0.0
  %vm4968 = vcmp.gt.f32.partialorder %v4566, 0.0
  %vm4969 = vcmp.gt.f32.partialorder %v4569, 0.0
  %vm4970 = vcmp.gt.f32.partialorder %v4574, 0.0
  %vm4971 = vcmp.gt.f32.partialorder %v4577, 0.0
  %vm4972 = vcmp.gt.f32.partialorder %v4582, 0.0
  %vm4973 = vcmp.gt.f32.partialorder %v4585, 0.0
  %vm4974 = vcmp.gt.f32.partialorder %v4590, 0.0
  %vm4975 = vcmp.gt.f32.partialorder %v4593, 0.0
  %vm4976 = vcmp.gt.f32.partialorder %v4598, 0.0
  %vm4977 = vcmp.gt.f32.partialorder %v4601, 0.0
  %vm4978 = vcmp.gt.f32.partialorder %v4606, 0.0
  %vm4979 = vcmp.gt.f32.partialorder %v4609, 0.0
  %vm4980 = vcmp.gt.f32.partialorder %v4614, 0.0
  %vm4981 = vcmp.gt.f32.partialorder %v4617, 0.0
  %vm4982 = vcmp.gt.f32.partialorder %v4622, 0.0
  %vm4983 = vcmp.gt.f32.partialorder %v4625, 0.0
  %vm4984 = vcmp.gt.f32.partialorder %v4630, 0.0
  %vm4985 = vcmp.gt.f32.partialorder %v4633, 0.0
  %vm4986 = vcmp.gt.f32.partialorder %v4638, 0.0
  %vm4987 = vcmp.gt.f32.partialorder %v4641, 0.0
  %vm4988 = vcmp.gt.f32.partialorder %v4646, 0.0
  %vm4989 = vcmp.gt.f32.partialorder %v4649, 0.0
  %vm4990 = vcmp.gt.f32.partialorder %v4654, 0.0
  %vm4991 = vcmp.gt.f32.partialorder %v4657, 0.0
  %vm4992 = vcmp.gt.f32.partialorder %v4662, 0.0
  %vm4993 = vcmp.gt.f32.partialorder %v4665, 0.0
  %vm4994 = vcmp.gt.f32.partialorder %v4670, 0.0
  %vm4995 = vcmp.gt.f32.partialorder %v4673, 0.0
  %vm4996 = vcmp.gt.f32.partialorder %v4678, 0.0
  %vm4997 = vcmp.gt.f32.partialorder %v4681, 0.0
  %vm4998 = vcmp.gt.f32.partialorder %v4686, 0.0
  %vm4999 = vcmp.gt.f32.partialorder %v4689, 0.0
  %vm5000 = vcmp.gt.f32.partialorder %v4694, 0.0
  %vm5001 = vcmp.gt.f32.partialorder %v4697, 0.0
  %vm5002 = vcmp.gt.f32.partialorder %v4702, 0.0
  %vm5003 = vcmp.gt.f32.partialorder %v4705, 0.0
  %vm5004 = vcmp.gt.f32.partialorder %v4710, 0.0
  %vm5005 = vcmp.gt.f32.partialorder %v4713, 0.0
  %vm5006 = vcmp.gt.f32.partialorder %v4718, 0.0
  %vm5007 = vcmp.gt.f32.partialorder %v4721, 0.0
  %vm5008 = vcmp.gt.f32.partialorder %v4726, 0.0
  %vm5009 = vcmp.gt.f32.partialorder %v4729, 0.0
  %vm5010 = vcmp.gt.f32.partialorder %v4734, 0.0
  %vm5011 = vcmp.gt.f32.partialorder %v4737, 0.0
  %vm5012 = vcmp.gt.f32.partialorder %v4742, 0.0
  %vm5013 = vcmp.gt.f32.partialorder %v4745, 0.0
  %vm5014 = vcmp.gt.f32.partialorder %v4750, 0.0
  %vm5015 = vcmp.gt.f32.partialorder %v4753, 0.0
  %vm5016 = vcmp.gt.f32.partialorder %v4758, 0.0
  %vm5017 = vcmp.gt.f32.partialorder %v4761, 0.0
  %vm5018 = vcmp.gt.f32.partialorder %v4766, 0.0
  %vm5019 = vcmp.gt.f32.partialorder %v4769, 0.0
  %vm5020 = vcmp.gt.f32.partialorder %v4774, 0.0
  %vm5021 = vcmp.gt.f32.partialorder %v4777, 0.0
  %vm5022 = vcmp.gt.f32.partialorder %v4782, 0.0
  %vm5023 = vcmp.gt.f32.partialorder %v4785, 0.0
  %vm5024 = vcmp.gt.f32.partialorder %v4790, 0.0
  %vm5025 = vcmp.gt.f32.partialorder %v4793, 0.0
  %vm5026 = vcmp.gt.f32.partialorder %v4798, 0.0
  %vm5027 = vcmp.gt.f32.partialorder %v4801, 0.0
  %vm5028 = vcmp.gt.f32.partialorder %v4806, 0.0
  %vm5029 = vcmp.gt.f32.partialorder %v4809, 0.0
  %vm5030 = vcmp.gt.f32.partialorder %v4814, 0.0
  %vm5031 = vcmp.gt.f32.partialorder %v4817, 0.0
  %vm5032 = vcmp.gt.f32.partialorder %v4822, 0.0
  %vm5033 = vcmp.gt.f32.partialorder %v4825, 0.0
  %vm5034 = vcmp.gt.f32.partialorder %v4830, 0.0
  %vm5035 = vcmp.gt.f32.partialorder %v4833, 0.0
  %vm5036 = vcmp.gt.f32.partialorder %v4838, 0.0
  %vm5037 = vcmp.gt.f32.partialorder %v4841, 0.0
  %vm5038 = vcmp.gt.f32.partialorder %v4846, 0.0
  %vm5039 = vcmp.gt.f32.partialorder %v4849, 0.0
  %vm5040 = vcmp.gt.f32.partialorder %v4854, 0.0
  %vm5041 = vcmp.gt.f32.partialorder %v4857, 0.0
  %vm5042 = vcmp.gt.f32.partialorder %v4862, 0.0
  %vm5043 = vcmp.gt.f32.partialorder %v4865, 0.0
  %vm5044 = vcmp.gt.f32.partialorder %v4870, 0.0
  %vm5045 = vcmp.gt.f32.partialorder %v4873, 0.0
  %vm5046 = vcmp.gt.f32.partialorder %v4878, 0.0
  %vm5047 = vcmp.gt.f32.partialorder %v4881, 0.0
  %vm5048 = vcmp.gt.f32.partialorder %v4886, 0.0
  %vm5049 = vcmp.gt.f32.partialorder %v4889, 0.0
  %vm5050 = vcmp.gt.f32.partialorder %v4894, 0.0
  %vm5051 = vcmp.gt.f32.partialorder %v4897, 0.0
  %vm5052 = vcmp.gt.f32.partialorder %v4902, 0.0
  %vm5053 = vcmp.gt.f32.partialorder %v4905, 0.0
  %vm5054 = vcmp.gt.f32.partialorder %v4910, 0.0
  %vm5055 = vcmp.gt.f32.partialorder %v4913, 0.0
  %vm5056 = vcmp.gt.f32.partialorder %v4918, 0.0
  %vm5057 = vcmp.gt.f32.partialorder %v4921, 0.0
  %vm5058 = vcmp.gt.f32.partialorder %v4926, 0.0
  %vm5059 = vcmp.gt.f32.partialorder %v4929, 0.0
  %v5060 = vmin.f32 %v4422, 0.0
  %v5061 = vmin.f32 %v4425, 0.0
  %v5062 = vmin.f32 %v4430, 0.0
  %v5063 = vmin.f32 %v4433, 0.0
  %v5064 = vmin.f32 %v4438, 0.0
  %v5065 = vmin.f32 %v4441, 0.0
  %v5066 = vmin.f32 %v4446, 0.0
  %v5067 = vmin.f32 %v4449, 0.0
  %v5068 = vmin.f32 %v4454, 0.0
  %v5069 = vmin.f32 %v4457, 0.0
  %v5070 = vmin.f32 %v4462, 0.0
  %v5071 = vmin.f32 %v4465, 0.0
  %v5072 = vmin.f32 %v4470, 0.0
  %v5073 = vmin.f32 %v4473, 0.0
  %v5074 = vmin.f32 %v4478, 0.0
  %v5075 = vmin.f32 %v4481, 0.0
  %v5076 = vmin.f32 %v4486, 0.0
  %v5077 = vmin.f32 %v4489, 0.0
  %v5078 = vmin.f32 %v4494, 0.0
  %v5079 = vmin.f32 %v4497, 0.0
  %v5080 = vmin.f32 %v4502, 0.0
  %v5081 = vmin.f32 %v4505, 0.0
  %v5082 = vmin.f32 %v4510, 0.0
  %v5083 = vmin.f32 %v4513, 0.0
  %v5084 = vmin.f32 %v4518, 0.0
  %v5085 = vmin.f32 %v4521, 0.0
  %v5086 = vmin.f32 %v4526, 0.0
  %v5087 = vmin.f32 %v4529, 0.0
  %v5088 = vmin.f32 %v4534, 0.0
  %v5089 = vmin.f32 %v4537, 0.0
  %v5090 = vmin.f32 %v4542, 0.0
  %v5091 = vmin.f32 %v4545, 0.0
  %v5092 = vmin.f32 %v4550, 0.0
  %v5093 = vmin.f32 %v4553, 0.0
  %v5094 = vmin.f32 %v4558, 0.0
  %v5095 = vmin.f32 %v4561, 0.0
  %v5096 = vmin.f32 %v4566, 0.0
  %v5097 = vmin.f32 %v4569, 0.0
  %v5098 = vmin.f32 %v4574, 0.0
  %v5099 = vmin.f32 %v4577, 0.0
  %v5100 = vmin.f32 %v4582, 0.0
  %v5101 = vmin.f32 %v4585, 0.0
  %v5102 = vmin.f32 %v4590, 0.0
  %v5103 = vmin.f32 %v4593, 0.0
  %v5104 = vmin.f32 %v4598, 0.0
  %v5105 = vmin.f32 %v4601, 0.0
  %v5106 = vmin.f32 %v4606, 0.0
  %v5107 = vmin.f32 %v4609, 0.0
  %v5108 = vmin.f32 %v4614, 0.0
  %v5109 = vmin.f32 %v4617, 0.0
  %v5110 = vmin.f32 %v4622, 0.0
  %v5111 = vmin.f32 %v4625, 0.0
  %v5112 = vmin.f32 %v4630, 0.0
  %v5113 = vmin.f32 %v4633, 0.0
  %v5114 = vmin.f32 %v4638, 0.0
  %v5115 = vmin.f32 %v4641, 0.0
  %v5116 = vmin.f32 %v4646, 0.0
  %v5117 = vmin.f32 %v4649, 0.0
  %v5118 = vmin.f32 %v4654, 0.0
  %v5119 = vmin.f32 %v4657, 0.0
  %v5120 = vmin.f32 %v4662, 0.0
  %v5121 = vmin.f32 %v4665, 0.0
  %v5122 = vmin.f32 %v4670, 0.0
  %v5123 = vmin.f32 %v4673, 0.0
  %v5124 = vmin.f32 %v4678, 0.0
  %v5125 = vmin.f32 %v4681, 0.0
  %v5126 = vmin.f32 %v4686, 0.0
  %v5127 = vmin.f32 %v4689, 0.0
  %v5128 = vmin.f32 %v4694, 0.0
  %v5129 = vmin.f32 %v4697, 0.0
  %v5130 = vmin.f32 %v4702, 0.0
  %v5131 = vmin.f32 %v4705, 0.0
  %v5132 = vmin.f32 %v4710, 0.0
  %v5133 = vmin.f32 %v4713, 0.0
  %v5134 = vmin.f32 %v4718, 0.0
  %v5135 = vmin.f32 %v4721, 0.0
  %v5136 = vmin.f32 %v4726, 0.0
  %v5137 = vmin.f32 %v4729, 0.0
  %v5138 = vmin.f32 %v4734, 0.0
  %v5139 = vmin.f32 %v4737, 0.0
  %v5140 = vmin.f32 %v4742, 0.0
  %v5141 = vmin.f32 %v4745, 0.0
  %v5142 = vmin.f32 %v4750, 0.0
  %v5143 = vmin.f32 %v4753, 0.0
  %v5144 = vmin.f32 %v4758, 0.0
  %v5145 = vmin.f32 %v4761, 0.0
  %v5146 = vmin.f32 %v4766, 0.0
  %v5147 = vmin.f32 %v4769, 0.0
  %v5148 = vmin.f32 %v4774, 0.0
  %v5149 = vmin.f32 %v4777, 0.0
  %v5150 = vmin.f32 %v4782, 0.0
  %v5151 = vmin.f32 %v4785, 0.0
  %v5152 = vmin.f32 %v4790, 0.0
  %v5153 = vmin.f32 %v4793, 0.0
  %v5154 = vmin.f32 %v4798, 0.0
  %v5155 = vmin.f32 %v4801, 0.0
  %v5156 = vmin.f32 %v4806, 0.0
  %v5157 = vmin.f32 %v4809, 0.0
  %v5158 = vmin.f32 %v4814, 0.0
  %v5159 = vmin.f32 %v4817, 0.0
  %v5160 = vmin.f32 %v4822, 0.0
  %v5161 = vmin.f32 %v4825, 0.0
  %v5162 = vmin.f32 %v4830, 0.0
  %v5163 = vmin.f32 %v4833, 0.0
  %v5164 = vmin.f32 %v4838, 0.0
  %v5165 = vmin.f32 %v4841, 0.0
  %v5166 = vmin.f32 %v4846, 0.0
  %v5167 = vmin.f32 %v4849, 0.0
  %v5168 = vmin.f32 %v4854, 0.0
  %v5169 = vmin.f32 %v4857, 0.0
  %v5170 = vmin.f32 %v4862, 0.0
  %v5171 = vmin.f32 %v4865, 0.0
  %v5172 = vmin.f32 %v4870, 0.0
  %v5173 = vmin.f32 %v4873, 0.0
  %v5174 = vmin.f32 %v4878, 0.0
  %v5175 = vmin.f32 %v4881, 0.0
  %v5176 = vmin.f32 %v4886, 0.0
  %v5177 = vmin.f32 %v4889, 0.0
  %v5178 = vmin.f32 %v4894, 0.0
  %v5179 = vmin.f32 %v4897, 0.0
  %v5180 = vmin.f32 %v4902, 0.0
  %v5181 = vmin.f32 %v4905, 0.0
  %v5182 = vmin.f32 %v4910, 0.0
  %v5183 = vmin.f32 %v4913, 0.0
  %v5184 = vmin.f32 %v4918, 0.0
  %v5185 = vmin.f32 %v4921, 0.0
  %v5186 = vmin.f32 %v4926, 0.0
  %v5187 = vmin.f32 %v4929, 0.0
  %v5188 = vmul.f32 %v5060, 1.442695
  %v5189 = vpow.pop %v5188
  %v5190 = vmul.f32 %v5061, 1.442695
  %v5191 = vpow.pop %v5190
  %v5192 = vmul.f32 %v5062, 1.442695
  %v5193 = vpow.pop %v5192
  %v5194 = vmul.f32 %v5063, 1.442695
  %v5195 = vpow.pop %v5194
  %v5196 = vmul.f32 %v5064, 1.442695
  %v5197 = vpow.pop %v5196
  %v5198 = vmul.f32 %v5065, 1.442695
  %v5199 = vpow.pop %v5198
  %v5200 = vmul.f32 %v5066, 1.442695
  %v5201 = vpow.pop %v5200
  %v5202 = vmul.f32 %v5067, 1.442695
  %v5203 = vpow.pop %v5202
  %v5204 = vmul.f32 %v5068, 1.442695
  %v5205 = vpow.pop %v5204
  %v5206 = vmul.f32 %v5069, 1.442695
  %v5207 = vpow.pop %v5206
  %v5208 = vmul.f32 %v5070, 1.442695
  %v5209 = vpow.pop %v5208
  %v5210 = vmul.f32 %v5071, 1.442695
  %v5211 = vpow.pop %v5210
  %v5212 = vmul.f32 %v5072, 1.442695
  %v5213 = vpow.pop %v5212
  %v5214 = vmul.f32 %v5073, 1.442695
  %v5215 = vpow.pop %v5214
  %v5216 = vmul.f32 %v5074, 1.442695
  %v5217 = vpow.pop %v5216
  %v5218 = vmul.f32 %v5075, 1.442695
  %v5219 = vpow.pop %v5218
  %v5220 = vmul.f32 %v5076, 1.442695
  %v5221 = vpow.pop %v5220
  %v5222 = vmul.f32 %v5077, 1.442695
  %v5223 = vpow.pop %v5222
  %v5224 = vmul.f32 %v5078, 1.442695
  %v5225 = vpow.pop %v5224
  %v5226 = vmul.f32 %v5079, 1.442695
  %v5227 = vpow.pop %v5226
  %v5228 = vmul.f32 %v5080, 1.442695
  %v5229 = vpow.pop %v5228
  %v5230 = vmul.f32 %v5081, 1.442695
  %v5231 = vpow.pop %v5230
  %v5232 = vmul.f32 %v5082, 1.442695
  %v5233 = vpow.pop %v5232
  %v5234 = vmul.f32 %v5083, 1.442695
  %v5235 = vpow.pop %v5234
  %v5236 = vmul.f32 %v5084, 1.442695
  %v5237 = vpow.pop %v5236
  %v5238 = vmul.f32 %v5085, 1.442695
  %v5239 = vpow.pop %v5238
  %v5240 = vmul.f32 %v5086, 1.442695
  %v5241 = vpow.pop %v5240
  %v5242 = vmul.f32 %v5087, 1.442695
  %v5243 = vpow.pop %v5242
  %v5244 = vmul.f32 %v5088, 1.442695
  %v5245 = vpow.pop %v5244
  %v5246 = vmul.f32 %v5089, 1.442695
  %v5247 = vpow.pop %v5246
  %v5248 = vmul.f32 %v5090, 1.442695
  %v5249 = vpow.pop %v5248
  %v5250 = vmul.f32 %v5091, 1.442695
  %v5251 = vpow.pop %v5250
  %v5252 = vmul.f32 %v5092, 1.442695
  %v5253 = vpow.pop %v5252
  %v5254 = vmul.f32 %v5093, 1.442695
  %v5255 = vpow.pop %v5254
  %v5256 = vmul.f32 %v5094, 1.442695
  %v5257 = vpow.pop %v5256
  %v5258 = vmul.f32 %v5095, 1.442695
  %v5259 = vpow.pop %v5258
  %v5260 = vmul.f32 %v5096, 1.442695
  %v5261 = vpow.pop %v5260
  %v5262 = vmul.f32 %v5097, 1.442695
  %v5263 = vpow.pop %v5262
  %v5264 = vmul.f32 %v5098, 1.442695
  %v5265 = vpow.pop %v5264
  %v5266 = vmul.f32 %v5099, 1.442695
  %v5267 = vpow.pop %v5266
  %v5268 = vmul.f32 %v5100, 1.442695
  %v5269 = vpow.pop %v5268
  %v5270 = vmul.f32 %v5101, 1.442695
  %v5271 = vpow.pop %v5270
  %v5272 = vmul.f32 %v5102, 1.442695
  %v5273 = vpow.pop %v5272
  %v5274 = vmul.f32 %v5103, 1.442695
  %v5275 = vpow.pop %v5274
  %v5276 = vmul.f32 %v5104, 1.442695
  %v5277 = vpow.pop %v5276
  %v5278 = vmul.f32 %v5105, 1.442695
  %v5279 = vpow.pop %v5278
  %v5280 = vmul.f32 %v5106, 1.442695
  %v5281 = vpow.pop %v5280
  %v5282 = vmul.f32 %v5107, 1.442695
  %v5283 = vpow.pop %v5282
  %v5284 = vmul.f32 %v5108, 1.442695
  %v5285 = vpow.pop %v5284
  %v5286 = vmul.f32 %v5109, 1.442695
  %v5287 = vpow.pop %v5286
  %v5288 = vmul.f32 %v5110, 1.442695
  %v5289 = vpow.pop %v5288
  %v5290 = vmul.f32 %v5111, 1.442695
  %v5291 = vpow.pop %v5290
  %v5292 = vmul.f32 %v5112, 1.442695
  %v5293 = vpow.pop %v5292
  %v5294 = vmul.f32 %v5113, 1.442695
  %v5295 = vpow.pop %v5294
  %v5296 = vmul.f32 %v5114, 1.442695
  %v5297 = vpow.pop %v5296
  %v5298 = vmul.f32 %v5115, 1.442695
  %v5299 = vpow.pop %v5298
  %v5300 = vmul.f32 %v5116, 1.442695
  %v5301 = vpow.pop %v5300
  %v5302 = vmul.f32 %v5117, 1.442695
  %v5303 = vpow.pop %v5302
  %v5304 = vmul.f32 %v5118, 1.442695
  %v5305 = vpow.pop %v5304
  %v5306 = vmul.f32 %v5119, 1.442695
  %v5307 = vpow.pop %v5306
  %v5308 = vmul.f32 %v5120, 1.442695
  %v5309 = vpow.pop %v5308
  %v5310 = vmul.f32 %v5121, 1.442695
  %v5311 = vpow.pop %v5310
  %v5312 = vmul.f32 %v5122, 1.442695
  %v5313 = vpow.pop %v5312
  %v5314 = vmul.f32 %v5123, 1.442695
  %v5315 = vpow.pop %v5314
  %v5316 = vmul.f32 %v5124, 1.442695
  %v5317 = vpow.pop %v5316
  %v5318 = vmul.f32 %v5125, 1.442695
  %v5319 = vpow.pop %v5318
  %v5320 = vmul.f32 %v5126, 1.442695
  %v5321 = vpow.pop %v5320
  %v5322 = vmul.f32 %v5127, 1.442695
  %v5323 = vpow.pop %v5322
  %v5324 = vmul.f32 %v5128, 1.442695
  %v5325 = vpow.pop %v5324
  %v5326 = vmul.f32 %v5129, 1.442695
  %v5327 = vpow.pop %v5326
  %v5328 = vmul.f32 %v5130, 1.442695
  %v5329 = vpow.pop %v5328
  %v5330 = vmul.f32 %v5131, 1.442695
  %v5331 = vpow.pop %v5330
  %v5332 = vmul.f32 %v5132, 1.442695
  %v5333 = vpow.pop %v5332
  %v5334 = vmul.f32 %v5133, 1.442695
  %v5335 = vpow.pop %v5334
  %v5336 = vmul.f32 %v5134, 1.442695
  %v5337 = vpow.pop %v5336
  %v5338 = vmul.f32 %v5135, 1.442695
  %v5339 = vpow.pop %v5338
  %v5340 = vmul.f32 %v5136, 1.442695
  %v5341 = vpow.pop %v5340
  %v5342 = vmul.f32 %v5137, 1.442695
  %v5343 = vpow.pop %v5342
  %v5344 = vmul.f32 %v5138, 1.442695
  %v5345 = vpow.pop %v5344
  %v5346 = vmul.f32 %v5139, 1.442695
  %v5347 = vpow.pop %v5346
  %v5348 = vmul.f32 %v5140, 1.442695
  %v5349 = vpow.pop %v5348
  %v5350 = vmul.f32 %v5141, 1.442695
  %v5351 = vpow.pop %v5350
  %v5352 = vmul.f32 %v5142, 1.442695
  %v5353 = vpow.pop %v5352
  %v5354 = vmul.f32 %v5143, 1.442695
  %v5355 = vpow.pop %v5354
  %v5356 = vmul.f32 %v5144, 1.442695
  %v5357 = vpow.pop %v5356
  %v5358 = vmul.f32 %v5145, 1.442695
  %v5359 = vpow.pop %v5358
  %v5360 = vmul.f32 %v5146, 1.442695
  %v5361 = vpow.pop %v5360
  %v5362 = vmul.f32 %v5147, 1.442695
  %v5363 = vpow.pop %v5362
  %v5364 = vmul.f32 %v5148, 1.442695
  %v5365 = vpow.pop %v5364
  %v5366 = vmul.f32 %v5149, 1.442695
  %v5367 = vpow.pop %v5366
  %v5368 = vmul.f32 %v5150, 1.442695
  %v5369 = vpow.pop %v5368
  %v5370 = vmul.f32 %v5151, 1.442695
  %v5371 = vpow.pop %v5370
  %v5372 = vmul.f32 %v5152, 1.442695
  %v5373 = vpow.pop %v5372
  %v5374 = vmul.f32 %v5153, 1.442695
  %v5375 = vpow.pop %v5374
  %v5376 = vmul.f32 %v5154, 1.442695
  %v5377 = vpow.pop %v5376
  %v5378 = vmul.f32 %v5155, 1.442695
  %v5379 = vpow.pop %v5378
  %v5380 = vmul.f32 %v5156, 1.442695
  %v5381 = vpow.pop %v5380
  %v5382 = vmul.f32 %v5157, 1.442695
  %v5383 = vpow.pop %v5382
  %v5384 = vmul.f32 %v5158, 1.442695
  %v5385 = vpow.pop %v5384
  %v5386 = vmul.f32 %v5159, 1.442695
  %v5387 = vpow.pop %v5386
  %v5388 = vmul.f32 %v5160, 1.442695
  %v5389 = vpow.pop %v5388
  %v5390 = vmul.f32 %v5161, 1.442695
  %v5391 = vpow.pop %v5390
  %v5392 = vmul.f32 %v5162, 1.442695
  %v5393 = vpow.pop %v5392
  %v5394 = vmul.f32 %v5163, 1.442695
  %v5395 = vpow.pop %v5394
  %v5396 = vmul.f32 %v5164, 1.442695
  %v5397 = vpow.pop %v5396
  %v5398 = vmul.f32 %v5165, 1.442695
  %v5399 = vpow.pop %v5398
  %v5400 = vmul.f32 %v5166, 1.442695
  %v5401 = vpow.pop %v5400
  %v5402 = vmul.f32 %v5167, 1.442695
  %v5403 = vpow.pop %v5402
  %v5404 = vmul.f32 %v5168, 1.442695
  %v5405 = vpow.pop %v5404
  %v5406 = vmul.f32 %v5169, 1.442695
  %v5407 = vpow.pop %v5406
  %v5408 = vmul.f32 %v5170, 1.442695
  %v5409 = vpow.pop %v5408
  %v5410 = vmul.f32 %v5171, 1.442695
  %v5411 = vpow.pop %v5410
  %v5412 = vmul.f32 %v5172, 1.442695
  %v5413 = vpow.pop %v5412
  %v5414 = vmul.f32 %v5173, 1.442695
  %v5415 = vpow.pop %v5414
  %v5416 = vmul.f32 %v5174, 1.442695
  %v5417 = vpow.pop %v5416
  %v5418 = vmul.f32 %v5175, 1.442695
  %v5419 = vpow.pop %v5418
  %v5420 = vmul.f32 %v5176, 1.442695
  %v5421 = vpow.pop %v5420
  %v5422 = vmul.f32 %v5177, 1.442695
  %v5423 = vpow.pop %v5422
  %v5424 = vmul.f32 %v5178, 1.442695
  %v5425 = vpow.pop %v5424
  %v5426 = vmul.f32 %v5179, 1.442695
  %v5427 = vpow.pop %v5426
  %v5428 = vmul.f32 %v5180, 1.442695
  %v5429 = vpow.pop %v5428
  %v5430 = vmul.f32 %v5181, 1.442695
  %v5431 = vpow.pop %v5430
  %v5432 = vmul.f32 %v5182, 1.442695
  %v5433 = vpow.pop %v5432
  %v5434 = vmul.f32 %v5183, 1.442695
  %v5435 = vpow.pop %v5434
  %v5436 = vmul.f32 %v5184, 1.442695
  %v5437 = vpow.pop %v5436
  %v5438 = vmul.f32 %v5185, 1.442695
  %v5439 = vpow.pop %v5438
  %v5440 = vmul.f32 %v5186, 1.442695
  %v5441 = vpow.pop %v5440
  %v5442 = vmul.f32 %v5187, 1.442695
  %v5443 = vpow.pop %v5442
  %v5444 = vsub.f32 %v5189, 1.0
  %v5445 = vsub.f32 %v5191, 1.0
  %v5446 = vsub.f32 %v5193, 1.0
  %v5447 = vsub.f32 %v5195, 1.0
  %v5448 = vsub.f32 %v5197, 1.0
  %v5449 = vsub.f32 %v5199, 1.0
  %v5450 = vsub.f32 %v5201, 1.0
  %v5451 = vsub.f32 %v5203, 1.0
  %v5452 = vsub.f32 %v5205, 1.0
  %v5453 = vsub.f32 %v5207, 1.0
  %v5454 = vsub.f32 %v5209, 1.0
  %v5455 = vsub.f32 %v5211, 1.0
  %v5456 = vsub.f32 %v5213, 1.0
  %v5457 = vsub.f32 %v5215, 1.0
  %v5458 = vsub.f32 %v5217, 1.0
  %v5459 = vsub.f32 %v5219, 1.0
  %v5460 = vsub.f32 %v5221, 1.0
  %v5461 = vsub.f32 %v5223, 1.0
  %v5462 = vsub.f32 %v5225, 1.0
  %v5463 = vsub.f32 %v5227, 1.0
  %v5464 = vsub.f32 %v5229, 1.0
  %v5465 = vsub.f32 %v5231, 1.0
  %v5466 = vsub.f32 %v5233, 1.0
  %v5467 = vsub.f32 %v5235, 1.0
  %v5468 = vsub.f32 %v5237, 1.0
  %v5469 = vsub.f32 %v5239, 1.0
  %v5470 = vsub.f32 %v5241, 1.0
  %v5471 = vsub.f32 %v5243, 1.0
  %v5472 = vsub.f32 %v5245, 1.0
  %v5473 = vsub.f32 %v5247, 1.0
  %v5474 = vsub.f32 %v5249, 1.0
  %v5475 = vsub.f32 %v5251, 1.0
  %v5476 = vsub.f32 %v5253, 1.0
  %v5477 = vsub.f32 %v5255, 1.0
  %v5478 = vsub.f32 %v5257, 1.0
  %v5479 = vsub.f32 %v5259, 1.0
  %v5480 = vsub.f32 %v5261, 1.0
  %v5481 = vsub.f32 %v5263, 1.0
  %v5482 = vsub.f32 %v5265, 1.0
  %v5483 = vsub.f32 %v5267, 1.0
  %v5484 = vsub.f32 %v5269, 1.0
  %v5485 = vsub.f32 %v5271, 1.0
  %v5486 = vsub.f32 %v5273, 1.0
  %v5487 = vsub.f32 %v5275, 1.0
  %v5488 = vsub.f32 %v5277, 1.0
  %v5489 = vsub.f32 %v5279, 1.0
  %v5490 = vsub.f32 %v5281, 1.0
  %v5491 = vsub.f32 %v5283, 1.0
  %v5492 = vsub.f32 %v5285, 1.0
  %v5493 = vsub.f32 %v5287, 1.0
  %v5494 = vsub.f32 %v5289, 1.0
  %v5495 = vsub.f32 %v5291, 1.0
  %v5496 = vsub.f32 %v5293, 1.0
  %v5497 = vsub.f32 %v5295, 1.0
  %v5498 = vsub.f32 %v5297, 1.0
  %v5499 = vsub.f32 %v5299, 1.0
  %v5500 = vsub.f32 %v5301, 1.0
  %v5501 = vsub.f32 %v5303, 1.0
  %v5502 = vsub.f32 %v5305, 1.0
  %v5503 = vsub.f32 %v5307, 1.0
  %v5504 = vsub.f32 %v5309, 1.0
  %v5505 = vsub.f32 %v5311, 1.0
  %v5506 = vsub.f32 %v5313, 1.0
  %v5507 = vsub.f32 %v5315, 1.0
  %v5508 = vsub.f32 %v5317, 1.0
  %v5509 = vsub.f32 %v5319, 1.0
  %v5510 = vsub.f32 %v5321, 1.0
  %v5511 = vsub.f32 %v5323, 1.0
  %v5512 = vsub.f32 %v5325, 1.0
  %v5513 = vsub.f32 %v5327, 1.0
  %v5514 = vsub.f32 %v5329, 1.0
  %v5515 = vsub.f32 %v5331, 1.0
  %v5516 = vsub.f32 %v5333, 1.0
  %v5517 = vsub.f32 %v5335, 1.0
  %v5518 = vsub.f32 %v5337, 1.0
  %v5519 = vsub.f32 %v5339, 1.0
  %v5520 = vsub.f32 %v5341, 1.0
  %v5521 = vsub.f32 %v5343, 1.0
  %v5522 = vsub.f32 %v5345, 1.0
  %v5523 = vsub.f32 %v5347, 1.0
  %v5524 = vsub.f32 %v5349, 1.0
  %v5525 = vsub.f32 %v5351, 1.0
  %v5526 = vsub.f32 %v5353, 1.0
  %v5527 = vsub.f32 %v5355, 1.0
  %v5528 = vsub.f32 %v5357, 1.0
  %v5529 = vsub.f32 %v5359, 1.0
  %v5530 = vsub.f32 %v5361, 1.0
  %v5531 = vsub.f32 %v5363, 1.0
  %v5532 = vsub.f32 %v5365, 1.0
  %v5533 = vsub.f32 %v5367, 1.0
  %v5534 = vsub.f32 %v5369, 1.0
  %v5535 = vsub.f32 %v5371, 1.0
  %v5536 = vsub.f32 %v5373, 1.0
  %v5537 = vsub.f32 %v5375, 1.0
  %v5538 = vsub.f32 %v5377, 1.0
  %v5539 = vsub.f32 %v5379, 1.0
  %v5540 = vsub.f32 %v5381, 1.0
  %v5541 = vsub.f32 %v5383, 1.0
  %v5542 = vsub.f32 %v5385, 1.0
  %v5543 = vsub.f32 %v5387, 1.0
  %v5544 = vsub.f32 %v5389, 1.0
  %v5545 = vsub.f32 %v5391, 1.0
  %v5546 = vsub.f32 %v5393, 1.0
  %v5547 = vsub.f32 %v5395, 1.0
  %v5548 = vsub.f32 %v5397, 1.0
  %v5549 = vsub.f32 %v5399, 1.0
  %v5550 = vsub.f32 %v5401, 1.0
  %v5551 = vsub.f32 %v5403, 1.0
  %v5552 = vsub.f32 %v5405, 1.0
  %v5553 = vsub.f32 %v5407, 1.0
  %v5554 = vsub.f32 %v5409, 1.0
  %v5555 = vsub.f32 %v5411, 1.0
  %v5556 = vsub.f32 %v5413, 1.0
  %v5557 = vsub.f32 %v5415, 1.0
  %v5558 = vsub.f32 %v5417, 1.0
  %v5559 = vsub.f32 %v5419, 1.0
  %v5560 = vsub.f32 %v5421, 1.0
  %v5561 = vsub.f32 %v5423, 1.0
  %v5562 = vsub.f32 %v5425, 1.0
  %v5563 = vsub.f32 %v5427, 1.0
  %v5564 = vsub.f32 %v5429, 1.0
  %v5565 = vsub.f32 %v5431, 1.0
  %v5566 = vsub.f32 %v5433, 1.0
  %v5567 = vsub.f32 %v5435, 1.0
  %v5568 = vsub.f32 %v5437, 1.0
  %v5569 = vsub.f32 %v5439, 1.0
  %v5570 = vsub.f32 %v5441, 1.0
  %v5571 = vsub.f32 %v5443, 1.0
  %v5572 = vsel %vm4932, %v4422, %v5444
  %v5573 = vsel %vm4933, %v4425, %v5445
  %v5574 = vsel %vm4934, %v4430, %v5446
  %v5575 = vsel %vm4935, %v4433, %v5447
  %v5576 = vsel %vm4936, %v4438, %v5448
  %v5577 = vsel %vm4937, %v4441, %v5449
  %v5578 = vsel %vm4938, %v4446, %v5450
  %v5579 = vsel %vm4939, %v4449, %v5451
  %v5580 = vsel %vm4940, %v4454, %v5452
  %v5581 = vsel %vm4941, %v4457, %v5453
  %v5582 = vsel %vm4942, %v4462, %v5454
  %v5583 = vsel %vm4943, %v4465, %v5455
  %v5584 = vsel %vm4944, %v4470, %v5456
  %v5585 = vsel %vm4945, %v4473, %v5457
  %v5586 = vsel %vm4946, %v4478, %v5458
  %v5587 = vsel %vm4947, %v4481, %v5459
  %v5588 = vsel %vm4948, %v4486, %v5460
  %v5589 = vsel %vm4949, %v4489, %v5461
  %v5590 = vsel %vm4950, %v4494, %v5462
  %v5591 = vsel %vm4951, %v4497, %v5463
  %v5592 = vsel %vm4952, %v4502, %v5464
  %v5593 = vsel %vm4953, %v4505, %v5465
  %v5594 = vsel %vm4954, %v4510, %v5466
  %v5595 = vsel %vm4955, %v4513, %v5467
  %v5596 = vsel %vm4956, %v4518, %v5468
  %v5597 = vsel %vm4957, %v4521, %v5469
  %v5598 = vsel %vm4958, %v4526, %v5470
  %v5599 = vsel %vm4959, %v4529, %v5471
  %v5600 = vsel %vm4960, %v4534, %v5472
  %v5601 = vsel %vm4961, %v4537, %v5473
  %v5602 = vsel %vm4962, %v4542, %v5474
  %v5603 = vsel %vm4963, %v4545, %v5475
  %v5604 = vsel %vm4964, %v4550, %v5476
  %v5605 = vsel %vm4965, %v4553, %v5477
  %v5606 = vsel %vm4966, %v4558, %v5478
  %v5607 = vsel %vm4967, %v4561, %v5479
  %v5608 = vsel %vm4968, %v4566, %v5480
  %v5609 = vsel %vm4969, %v4569, %v5481
  %v5610 = vsel %vm4970, %v4574, %v5482
  %v5611 = vsel %vm4971, %v4577, %v5483
  %v5612 = vsel %vm4972, %v4582, %v5484
  %v5613 = vsel %vm4973, %v4585, %v5485
  %v5614 = vsel %vm4974, %v4590, %v5486
  %v5615 = vsel %vm4975, %v4593, %v5487
  %v5616 = vsel %vm4976, %v4598, %v5488
  %v5617 = vsel %vm4977, %v4601, %v5489
  %v5618 = vsel %vm4978, %v4606, %v5490
  %v5619 = vsel %vm4979, %v4609, %v5491
  %v5620 = vsel %vm4980, %v4614, %v5492
  %v5621 = vsel %vm4981, %v4617, %v5493
  %v5622 = vsel %vm4982, %v4622, %v5494
  %v5623 = vsel %vm4983, %v4625, %v5495
  %v5624 = vsel %vm4984, %v4630, %v5496
  %v5625 = vsel %vm4985, %v4633, %v5497
  %v5626 = vsel %vm4986, %v4638, %v5498
  %v5627 = vsel %vm4987, %v4641, %v5499
  %v5628 = vsel %vm4988, %v4646, %v5500
  %v5629 = vsel %vm4989, %v4649, %v5501
  %v5630 = vsel %vm4990, %v4654, %v5502
  %v5631 = vsel %vm4991, %v4657, %v5503
  %v5632 = vsel %vm4992, %v4662, %v5504
  %v5633 = vsel %vm4993, %v4665, %v5505
  %v5634 = vsel %vm4994, %v4670, %v5506
  %v5635 = vsel %vm4995, %v4673, %v5507
  %v5636 = vsel %vm4996, %v4678, %v5508
  %v5637 = vsel %vm4997, %v4681, %v5509
  %v5638 = vsel %vm4998, %v4686, %v5510
  %v5639 = vsel %vm4999, %v4689, %v5511
  %v5640 = vsel %vm5000, %v4694, %v5512
  %v5641 = vsel %vm5001, %v4697, %v5513
  %v5642 = vsel %vm5002, %v4702, %v5514
  %v5643 = vsel %vm5003, %v4705, %v5515
  %v5644 = vsel %vm5004, %v4710, %v5516
  %v5645 = vsel %vm5005, %v4713, %v5517
  %v5646 = vsel %vm5006, %v4718, %v5518
  %v5647 = vsel %vm5007, %v4721, %v5519
  %v5648 = vsel %vm5008, %v4726, %v5520
  %v5649 = vsel %vm5009, %v4729, %v5521
  %v5650 = vsel %vm5010, %v4734, %v5522
  %v5651 = vsel %vm5011, %v4737, %v5523
  %v5652 = vsel %vm5012, %v4742, %v5524
  %v5653 = vsel %vm5013, %v4745, %v5525
  %v5654 = vsel %vm5014, %v4750, %v5526
  %v5655 = vsel %vm5015, %v4753, %v5527
  %v5656 = vsel %vm5016, %v4758, %v5528
  %v5657 = vsel %vm5017, %v4761, %v5529
  %v5658 = vsel %vm5018, %v4766, %v5530
  %v5659 = vsel %vm5019, %v4769, %v5531
  %v5660 = vsel %vm5020, %v4774, %v5532
  %v5661 = vsel %vm5021, %v4777, %v5533
  %v5662 = vsel %vm5022, %v4782, %v5534
  %v5663 = vsel %vm5023, %v4785, %v5535
  %v5664 = vsel %vm5024, %v4790, %v5536
  %v5665 = vsel %vm5025, %v4793, %v5537
  %v5666 = vsel %vm5026, %v4798, %v5538
  %v5667 = vsel %vm5027, %v4801, %v5539
  %v5668 = vsel %vm5028, %v4806, %v5540
  %v5669 = vsel %vm5029, %v4809, %v5541
  %v5670 = vsel %vm5030, %v4814, %v5542
  %v5671 = vsel %vm5031, %v4817, %v5543
  %v5672 = vsel %vm5032, %v4822, %v5544
  %v5673 = vsel %vm5033, %v4825, %v5545
  %v5674 = vsel %vm5034, %v4830, %v5546
  %v5675 = vsel %vm5035, %v4833, %v5547
  %v5676 = vsel %vm5036, %v4838, %v5548
  %v5677 = vsel %vm5037, %v4841, %v5549
  %v5678 = vsel %vm5038, %v4846, %v5550
  %v5679 = vsel %vm5039, %v4849, %v5551
  %v5680 = vsel %vm5040, %v4854, %v5552
  %v5681 = vsel %vm5041, %v4857, %v5553
  %v5682 = vsel %vm5042, %v4862, %v5554
  %v5683 = vsel %vm5043, %v4865, %v5555
  %v5684 = vsel %vm5044, %v4870, %v5556
  %v5685 = vsel %vm5045, %v4873, %v5557
  %v5686 = vsel %vm5046, %v4878, %v5558
  %v5687 = vsel %vm5047, %v4881, %v5559
  %v5688 = vsel %vm5048, %v4886, %v5560
  %v5689 = vsel %vm5049, %v4889, %v5561
  %v5690 = vsel %vm5050, %v4894, %v5562
  %v5691 = vsel %vm5051, %v4897, %v5563
  %v5692 = vsel %vm5052, %v4902, %v5564
  %v5693 = vsel %vm5053, %v4905, %v5565
  %v5694 = vsel %vm5054, %v4910, %v5566
  %v5695 = vsel %vm5055, %v4913, %v5567
  %v5696 = vsel %vm5056, %v4918, %v5568
  %v5697 = vsel %vm5057, %v4921, %v5569
  %v5698 = vsel %vm5058, %v4926, %v5570
  %v5699 = vsel %vm5059, %v4929, %v5571
  %v5700 = vpack.c.bf16 %v5573, %v5572
  %v5701 = vpack.c.bf16 %v5575, %v5574
  %v5702 = vpack.c.bf16 %v5577, %v5576
  %v5703 = vpack.c.bf16 %v5579, %v5578
  %v5704 = vpack.c.bf16 %v5581, %v5580
  %v5705 = vpack.c.bf16 %v5583, %v5582
  %v5706 = vpack.c.bf16 %v5585, %v5584
  %v5707 = vpack.c.bf16 %v5587, %v5586
  %v5708 = vpack.c.bf16 %v5589, %v5588
  %v5709 = vpack.c.bf16 %v5591, %v5590
  %v5710 = vpack.c.bf16 %v5593, %v5592
  %v5711 = vpack.c.bf16 %v5595, %v5594
  %v5712 = vpack.c.bf16 %v5597, %v5596
  %v5713 = vpack.c.bf16 %v5599, %v5598
  %v5714 = vpack.c.bf16 %v5601, %v5600
  %v5715 = vpack.c.bf16 %v5603, %v5602
  %v5716 = vpack.c.bf16 %v5605, %v5604
  %v5717 = vpack.c.bf16 %v5607, %v5606
  %v5718 = vpack.c.bf16 %v5609, %v5608
  %v5719 = vpack.c.bf16 %v5611, %v5610
  %v5720 = vpack.c.bf16 %v5613, %v5612
  %v5721 = vpack.c.bf16 %v5615, %v5614
  %v5722 = vpack.c.bf16 %v5617, %v5616
  %v5723 = vpack.c.bf16 %v5619, %v5618
  %v5724 = vpack.c.bf16 %v5621, %v5620
  %v5725 = vpack.c.bf16 %v5623, %v5622
  %v5726 = vpack.c.bf16 %v5625, %v5624
  %v5727 = vpack.c.bf16 %v5627, %v5626
  %v5728 = vpack.c.bf16 %v5629, %v5628
  %v5729 = vpack.c.bf16 %v5631, %v5630
  %v5730 = vpack.c.bf16 %v5633, %v5632
  %v5731 = vpack.c.bf16 %v5635, %v5634
  %v5732 = vpack.c.bf16 %v5637, %v5636
  %v5733 = vpack.c.bf16 %v5639, %v5638
  %v5734 = vpack.c.bf16 %v5641, %v5640
  %v5735 = vpack.c.bf16 %v5643, %v5642
  %v5736 = vpack.c.bf16 %v5645, %v5644
  %v5737 = vpack.c.bf16 %v5647, %v5646
  %v5738 = vpack.c.bf16 %v5649, %v5648
  %v5739 = vpack.c.bf16 %v5651, %v5650
  %v5740 = vpack.c.bf16 %v5653, %v5652
  %v5741 = vpack.c.bf16 %v5655, %v5654
  %v5742 = vpack.c.bf16 %v5657, %v5656
  %v5743 = vpack.c.bf16 %v5659, %v5658
  %v5744 = vpack.c.bf16 %v5661, %v5660
  %v5745 = vpack.c.bf16 %v5663, %v5662
  %v5746 = vpack.c.bf16 %v5665, %v5664
  %v5747 = vpack.c.bf16 %v5667, %v5666
  %v5748 = vpack.c.bf16 %v5669, %v5668
  %v5749 = vpack.c.bf16 %v5671, %v5670
  %v5750 = vpack.c.bf16 %v5673, %v5672
  %v5751 = vpack.c.bf16 %v5675, %v5674
  %v5752 = vpack.c.bf16 %v5677, %v5676
  %v5753 = vpack.c.bf16 %v5679, %v5678
  %v5754 = vpack.c.bf16 %v5681, %v5680
  %v5755 = vpack.c.bf16 %v5683, %v5682
  %v5756 = vpack.c.bf16 %v5685, %v5684
  %v5757 = vpack.c.bf16 %v5687, %v5686
  %v5758 = vpack.c.bf16 %v5689, %v5688
  %v5759 = vpack.c.bf16 %v5691, %v5690
  %v5760 = vpack.c.bf16 %v5693, %v5692
  %v5761 = vpack.c.bf16 %v5695, %v5694
  %v5762 = vpack.c.bf16 %v5697, %v5696
  %v5763 = vpack.c.bf16 %v5699, %v5698
  %5777 = vrot.lane.b32.xlu0 0, 32
  %v5778 = vpop.permute.xlu0 %5777
  %5779 = vrot.lane.b32.xlu0 %v5708, 32
  %v5780 = vpop.permute.xlu0 %5779
  %5781 = vrot.lane.b32.xlu0 %v5710, 32
  %v5782 = vpop.permute.xlu0 %5781
  %5783 = vrot.lane.b32.xlu0 %v5712, 32
  %v5784 = vpop.permute.xlu0 %5783
  %5785 = vrot.lane.b32.xlu0 %v5714, 32
  %v5786 = vpop.permute.xlu0 %5785
  %5787 = vrot.lane.b32.xlu0 %v5724, 32
  %v5788 = vpop.permute.xlu0 %5787
  %5789 = vrot.lane.b32.xlu0 %v5726, 32
  %v5790 = vpop.permute.xlu0 %5789
  %5791 = vrot.lane.b32.xlu0 %v5728, 32
  %v5792 = vpop.permute.xlu0 %5791
  %5793 = vrot.lane.b32.xlu0 %v5730, 32
  %v5794 = vpop.permute.xlu0 %5793
  %5795 = vrot.lane.b32.xlu0 %v5740, 32
  %v5796 = vpop.permute.xlu0 %5795
  %5797 = vrot.lane.b32.xlu0 %v5742, 32
  %v5798 = vpop.permute.xlu0 %5797
  %5799 = vrot.lane.b32.xlu0 %v5744, 32
  %v5800 = vpop.permute.xlu0 %5799
  %5801 = vrot.lane.b32.xlu0 %v5746, 32
  %v5802 = vpop.permute.xlu0 %5801
  %5815 = vrot.lane.b32.xlu0 0, 64
  %v5816 = vpop.permute.xlu0 %5815
  %5817 = vrot.lane.b32.xlu0 %v5709, 64
  %v5818 = vpop.permute.xlu0 %5817
  %5819 = vrot.lane.b32.xlu0 %v5711, 64
  %v5820 = vpop.permute.xlu0 %5819
  %5821 = vrot.lane.b32.xlu0 %v5713, 64
  %v5822 = vpop.permute.xlu0 %5821
  %5823 = vrot.lane.b32.xlu0 %v5715, 64
  %v5824 = vpop.permute.xlu0 %5823
  %5825 = vrot.lane.b32.xlu0 %v5725, 64
  %v5826 = vpop.permute.xlu0 %5825
  %5827 = vrot.lane.b32.xlu0 %v5727, 64
  %v5828 = vpop.permute.xlu0 %5827
  %5829 = vrot.lane.b32.xlu0 %v5729, 64
  %v5830 = vpop.permute.xlu0 %5829
  %5831 = vrot.lane.b32.xlu0 %v5731, 64
  %v5832 = vpop.permute.xlu0 %5831
  %5833 = vrot.lane.b32.xlu0 %v5741, 64
  %v5834 = vpop.permute.xlu0 %5833
  %5835 = vrot.lane.b32.xlu0 %v5743, 64
  %v5836 = vpop.permute.xlu0 %5835
  %5837 = vrot.lane.b32.xlu0 %v5745, 64
  %v5838 = vpop.permute.xlu0 %5837
  %5839 = vrot.lane.b32.xlu0 %v5747, 64
  %v5840 = vpop.permute.xlu0 %5839
  %5853 = vrot.lane.b32.xlu0 0, 96
  %v5854 = vpop.permute.xlu0 %5853
  %5855 = vrot.lane.b32.xlu0 %v5701, 96
  %v5856 = vpop.permute.xlu0 %5855
  %5857 = vrot.lane.b32.xlu0 %v5703, 96
  %v5858 = vpop.permute.xlu0 %5857
  %5859 = vrot.lane.b32.xlu0 %v5705, 96
  %v5860 = vpop.permute.xlu0 %5859
  %5861 = vrot.lane.b32.xlu0 %v5717, 96
  %v5862 = vpop.permute.xlu0 %5861
  %5863 = vrot.lane.b32.xlu0 %v5719, 96
  %v5864 = vpop.permute.xlu0 %5863
  %5865 = vrot.lane.b32.xlu0 %v5721, 96
  %v5866 = vpop.permute.xlu0 %5865
  %5867 = vrot.lane.b32.xlu0 %v5733, 96
  %v5868 = vpop.permute.xlu0 %5867
  %5869 = vrot.lane.b32.xlu0 %v5735, 96
  %v5870 = vpop.permute.xlu0 %5869
  %5871 = vrot.lane.b32.xlu0 %v5737, 96
  %v5872 = vpop.permute.xlu0 %5871
  %5873 = vrot.lane.b32.xlu0 %v5749, 96
  %v5874 = vpop.permute.xlu0 %5873
  %5875 = vrot.lane.b32.xlu0 %v5751, 96
  %v5876 = vpop.permute.xlu0 %5875
  %5877 = vrot.lane.b32.xlu0 %v5753, 96
  %v5878 = vpop.permute.xlu0 %5877
  %5883 = vrot.lane.b32.xlu0 %v5701, 32
  %v5884 = vpop.permute.xlu0 %5883
  %5885 = vrot.lane.b32.xlu0 %v5703, 32
  %v5886 = vpop.permute.xlu0 %5885
  %5887 = vrot.lane.b32.xlu0 %v5705, 32
  %v5888 = vpop.permute.xlu0 %5887
  %5889 = vrot.lane.b32.xlu0 %v5707, 32
  %v5890 = vpop.permute.xlu0 %5889
  %5891 = vrot.lane.b32.xlu0 %v5717, 32
  %v5892 = vpop.permute.xlu0 %5891
  %5893 = vrot.lane.b32.xlu0 %v5719, 32
  %v5894 = vpop.permute.xlu0 %5893
  %5895 = vrot.lane.b32.xlu0 %v5721, 32
  %v5896 = vpop.permute.xlu0 %5895
  %5897 = vrot.lane.b32.xlu0 %v5723, 32
  %v5898 = vpop.permute.xlu0 %5897
  %5899 = vrot.lane.b32.xlu0 %v5733, 32
  %v5900 = vpop.permute.xlu0 %5899
  %5901 = vrot.lane.b32.xlu0 %v5735, 32
  %v5902 = vpop.permute.xlu0 %5901
  %5903 = vrot.lane.b32.xlu0 %v5737, 32
  %v5904 = vpop.permute.xlu0 %5903
  %5905 = vrot.lane.b32.xlu0 %v5739, 32
  %v5906 = vpop.permute.xlu0 %5905
  %5907 = vrot.lane.b32.xlu0 %v5749, 32
  %v5908 = vpop.permute.xlu0 %5907
  %5909 = vrot.lane.b32.xlu0 %v5751, 32
  %v5910 = vpop.permute.xlu0 %5909
  %5911 = vrot.lane.b32.xlu0 %v5753, 32
  %v5912 = vpop.permute.xlu0 %5911
  %5913 = vrot.lane.b32.xlu0 %v5755, 32
  %v5914 = vpop.permute.xlu0 %5913
  %5918 = vrot.lane.b32.xlu0 %v5757, 64
  %v5919 = vpop.permute.xlu0 %5918
  %5920 = vrot.lane.b32.xlu0 %v5759, 64
  %v5921 = vpop.permute.xlu0 %5920
  %5922 = vrot.lane.b32.xlu0 %v5761, 64
  %v5923 = vpop.permute.xlu0 %5922
  %5928 = vrot.lane.b32.xlu0 %v5708, 96
  %v5929 = vpop.permute.xlu0 %5928
  %5930 = vrot.lane.b32.xlu0 %v5710, 96
  %v5931 = vpop.permute.xlu0 %5930
  %5932 = vrot.lane.b32.xlu0 %v5712, 96
  %v5933 = vpop.permute.xlu0 %5932
  %5934 = vrot.lane.b32.xlu0 %v5714, 96
  %v5935 = vpop.permute.xlu0 %5934
  %5936 = vrot.lane.b32.xlu0 %v5724, 96
  %v5937 = vpop.permute.xlu0 %5936
  %5938 = vrot.lane.b32.xlu0 %v5726, 96
  %v5939 = vpop.permute.xlu0 %5938
  %5940 = vrot.lane.b32.xlu0 %v5728, 96
  %v5941 = vpop.permute.xlu0 %5940
  %5942 = vrot.lane.b32.xlu0 %v5730, 96
  %v5943 = vpop.permute.xlu0 %5942
  %5944 = vrot.lane.b32.xlu0 %v5740, 96
  %v5945 = vpop.permute.xlu0 %5944
  %5946 = vrot.lane.b32.xlu0 %v5742, 96
  %v5947 = vpop.permute.xlu0 %5946
  %5948 = vrot.lane.b32.xlu0 %v5744, 96
  %v5949 = vpop.permute.xlu0 %5948
  %5950 = vrot.lane.b32.xlu0 %v5746, 96
  %v5951 = vpop.permute.xlu0 %5950
  %5952 = vrot.lane.b32.xlu0 %v5756, 96
  %v5953 = vpop.permute.xlu0 %5952
  %5954 = vrot.lane.b32.xlu0 %v5758, 96
  %v5955 = vpop.permute.xlu0 %5954
  %5956 = vrot.lane.b32.xlu0 %v5760, 96
  %v5957 = vpop.permute.xlu0 %5956
  %5958 = vrot.lane.b32.xlu0 %v5762, 96
  %v5959 = vpop.permute.xlu0 %5958
  %vm5960 = vcmask 261120
  %v5963 = vsel %vm5960, 0, %v5778
  %v5965 = vsel %vm5960, 0, %v5780
  %v5968 = vsel %vm5960, %v5709, %v5782
  %v5971 = vsel %vm5960, %v5711, %v5784
  %v5974 = vsel %vm5960, %v5713, %v5786
  %v5976 = vsel %vm5960, 0, %v5788
  %v5979 = vsel %vm5960, %v5725, %v5790
  %v5982 = vsel %vm5960, %v5727, %v5792
  %v5985 = vsel %vm5960, %v5729, %v5794
  %v5987 = vsel %vm5960, 0, %v5796
  %v5990 = vsel %vm5960, %v5741, %v5798
  %v5993 = vsel %vm5960, %v5743, %v5800
  %v5996 = vsel %vm5960, %v5745, %v5802
  %vm5997 = vcmask 523264
  %v5999 = vsel %vm5997, %v5963, %v5816
  %v6001 = vsel %vm5997, %v5965, %v5818
  %v6003 = vsel %vm5997, %v5968, %v5820
  %v6005 = vsel %vm5997, %v5971, %v5822
  %v6007 = vsel %vm5997, %v5974, %v5824
  %v6009 = vsel %vm5997, %v5976, %v5826
  %v6011 = vsel %vm5997, %v5979, %v5828
  %v6013 = vsel %vm5997, %v5982, %v5830
  %v6015 = vsel %vm5997, %v5985, %v5832
  %v6017 = vsel %vm5997, %v5987, %v5834
  %v6019 = vsel %vm5997, %v5990, %v5836
  %v6021 = vsel %vm5997, %v5993, %v5838
  %v6023 = vsel %vm5997, %v5996, %v5840
  %vm6024 = vcmask 785408
  %v6026 = vsel %vm6024, %v5999, %v5854
  %v6029 = vsel %vm6024, %v5999, %v5856
  %v6032 = vsel %vm6024, %v5999, %v5858
  %v6035 = vsel %vm6024, %v5999, %v5860
  %v6037 = vsel %vm6024, %v6001, %v5854
  %v6040 = vsel %vm6024, %v6003, %v5862
  %v6043 = vsel %vm6024, %v6005, %v5864
  %v6046 = vsel %vm6024, %v6007, %v5866
  %v6048 = vsel %vm6024, %v6009, %v5854
  %v6051 = vsel %vm6024, %v6011, %v5868
  %v6054 = vsel %vm6024, %v6013, %v5870
  %v6057 = vsel %vm6024, %v6015, %v5872
  %v6059 = vsel %vm6024, %v6017, %v5854
  %v6062 = vsel %vm6024, %v6019, %v5874
  %v6065 = vsel %vm6024, %v6021, %v5876
  %v6068 = vsel %vm6024, %v6023, %v5878
  %v6072 = vsel %vm5960, %v5700, %v5884
  %v6075 = vsel %vm5960, %v5702, %v5886
  %v6078 = vsel %vm5960, %v5704, %v5888
  %v6081 = vsel %vm5960, %v5706, %v5890
  %v6084 = vsel %vm5960, %v5716, %v5892
  %v6087 = vsel %vm5960, %v5718, %v5894
  %v6090 = vsel %vm5960, %v5720, %v5896
  %v6093 = vsel %vm5960, %v5722, %v5898
  %v6096 = vsel %vm5960, %v5732, %v5900
  %v6099 = vsel %vm5960, %v5734, %v5902
  %v6102 = vsel %vm5960, %v5736, %v5904
  %v6105 = vsel %vm5960, %v5738, %v5906
  %v6108 = vsel %vm5960, %v5748, %v5908
  %v6111 = vsel %vm5960, %v5750, %v5910
  %v6114 = vsel %vm5960, %v5752, %v5912
  %v6117 = vsel %vm5960, %v5754, %v5914
  %v6118 = vsel %vm5997, %v6072, %v5816
  %v6119 = vsel %vm5997, %v6075, %v5818
  %v6120 = vsel %vm5997, %v6078, %v5820
  %v6121 = vsel %vm5997, %v6081, %v5822
  %v6122 = vsel %vm5997, %v6084, %v5816
  %v6123 = vsel %vm5997, %v6087, %v5826
  %v6124 = vsel %vm5997, %v6090, %v5828
  %v6125 = vsel %vm5997, %v6093, %v5830
  %v6126 = vsel %vm5997, %v6096, %v5816
  %v6127 = vsel %vm5997, %v6099, %v5834
  %v6128 = vsel %vm5997, %v6102, %v5836
  %v6129 = vsel %vm5997, %v6105, %v5838
  %v6130 = vsel %vm5997, %v6108, %v5816
  %v6132 = vsel %vm5997, %v6111, %v5919
  %v6134 = vsel %vm5997, %v6114, %v5921
  %v6136 = vsel %vm5997, %v6117, %v5923
  %v6138 = vsel %vm6024, %v6118, %v5929
  %v6141 = vsel %vm6024, %v6119, %v5931
  %v6144 = vsel %vm6024, %v6120, %v5933
  %v6147 = vsel %vm6024, %v6121, %v5935
  %v6150 = vsel %vm6024, %v6122, %v5937
  %v6153 = vsel %vm6024, %v6123, %v5939
  %v6156 = vsel %vm6024, %v6124, %v5941
  %v6159 = vsel %vm6024, %v6125, %v5943
  %v6162 = vsel %vm6024, %v6126, %v5945
  %v6165 = vsel %vm6024, %v6127, %v5947
  %v6168 = vsel %vm6024, %v6128, %v5949
  %v6171 = vsel %vm6024, %v6129, %v5951
  %v6174 = vsel %vm6024, %v6130, %v5953
  %v6177 = vsel %vm6024, %v6132, %v5955
  %v6180 = vsel %vm6024, %v6134, %v5957
  %v6183 = vsel %vm6024, %v6136, %v5959
  %v6185 = vld [vmem:[%s4] sm:$0xf]
  %v6186 = vld [vmem:[%s4 + $0x4] sm:$0xf]
  %v6187 = vld [vmem:[%s4 + $0x8] sm:$0xf]
  %v6188 = vld [vmem:[%s4 + $0xc] sm:$0xf]
  %v6189 = vld [vmem:[%s4 + $0x10] sm:$0xf]
  %v6190 = vld [vmem:[%s4 + $0x14] sm:$0xf]
  %v6191 = vld [vmem:[%s4 + $0x18] sm:$0xf]
  %v6192 = vld [vmem:[%s4 + $0x1c] sm:$0xf]
  %v6193 = vld [vmem:[%s4 + $0x20] sm:$0xf]
  %v6194 = vld [vmem:[%s4 + $0x24] sm:$0xf]
  %v6195 = vld [vmem:[%s4 + $0x28] sm:$0xf]
  %v6196 = vld [vmem:[%s4 + $0x2c] sm:$0xf]
  %v6197 = vld [vmem:[%s4 + $0x30] sm:$0xf]
  %v6198 = vld [vmem:[%s4 + $0x34] sm:$0xf]
  %v6199 = vld [vmem:[%s4 + $0x38] sm:$0xf]
  %v6200 = vld [vmem:[%s4 + $0x3c] sm:$0xf]
  %v6201 = vld [vmem:[%s4 + $0x40] sm:$0xf]
  %v6202 = vld [vmem:[%s4 + $0x44] sm:$0xf]
  %v6203 = vld [vmem:[%s4 + $0x48] sm:$0xf]
  %v6204 = vld [vmem:[%s4 + $0x4c] sm:$0xf]
  %v6205 = vld [vmem:[%s4 + $0x50] sm:$0xf]
  %v6206 = vld [vmem:[%s4 + $0x54] sm:$0xf]
  %v6207 = vld [vmem:[%s4 + $0x58] sm:$0xf]
  %v6208 = vld [vmem:[%s4 + $0x5c] sm:$0xf]
  %v6209 = vld [vmem:[%s4 + $0x60] sm:$0xf]
  %v6210 = vld [vmem:[%s4 + $0x64] sm:$0xf]
  %v6211 = vld [vmem:[%s4 + $0x68] sm:$0xf]
  %v6212 = vld [vmem:[%s4 + $0x6c] sm:$0xf]
  %v6213 = vld [vmem:[%s4 + $0x70] sm:$0xf]
  %v6214 = vld [vmem:[%s4 + $0x74] sm:$0xf]
  %v6215 = vld [vmem:[%s4 + $0x78] sm:$0xf]
  %v6216 = vld [vmem:[%s4 + $0x7c] sm:$0xf]
  %v6217 = vld [vmem:[%s4 + $0x80] sm:$0xf]
  %v6218 = vld [vmem:[%s4 + $0x84] sm:$0xf]
  %v6219 = vld [vmem:[%s4 + $0x88] sm:$0xf]
  %v6220 = vld [vmem:[%s4 + $0x8c] sm:$0xf]
  %v6221 = vld [vmem:[%s5] sm:$0x1]
  %v6223 = vlaneseq
  %v6224 = vshrl.u32 %v6223, 7
  %v6225 = vsub.s32 0, %v6224
  %v6226 = vrot.slane %v6221, %v6225
  %v6264 = vunpack.c.l.b16 %v6185
  %v6265 = vunpack.c.l.b16 %v6186
  %v6266 = vunpack.c.l.b16 %v6187
  %v6267 = vunpack.c.l.b16 %v6188
  %v6268 = vunpack.c.l.b16 %v6189
  %v6269 = vunpack.c.l.b16 %v6190
  %v6270 = vunpack.c.l.b16 %v6191
  %v6271 = vunpack.c.l.b16 %v6192
  %v6272 = vunpack.c.l.b16 %v6193
  %v6273 = vunpack.c.l.b16 %v6194
  %v6274 = vunpack.c.l.b16 %v6195
  %v6275 = vunpack.c.l.b16 %v6196
  %v6276 = vunpack.c.l.b16 %v6197
  %v6277 = vunpack.c.l.b16 %v6198
  %v6278 = vunpack.c.l.b16 %v6199
  %v6279 = vunpack.c.l.b16 %v6200
  %v6280 = vunpack.c.l.b16 %v6201
  %v6281 = vunpack.c.l.b16 %v6202
  %v6282 = vunpack.c.l.b16 %v6203
  %v6283 = vunpack.c.l.b16 %v6204
  %v6284 = vunpack.c.l.b16 %v6205
  %v6285 = vunpack.c.l.b16 %v6206
  %v6286 = vunpack.c.l.b16 %v6207
  %v6287 = vunpack.c.l.b16 %v6208
  %v6288 = vunpack.c.l.b16 %v6209
  %v6289 = vunpack.c.l.b16 %v6210
  %v6290 = vunpack.c.l.b16 %v6211
  %v6291 = vunpack.c.l.b16 %v6212
  %v6292 = vunpack.c.l.b16 %v6213
  %v6293 = vunpack.c.l.b16 %v6214
  %v6294 = vunpack.c.l.b16 %v6215
  %v6295 = vunpack.c.l.b16 %v6216
  %v6296 = vunpack.c.l.b16 %v6217
  %v6297 = vunpack.c.l.b16 %v6218
  %v6298 = vunpack.c.l.b16 %v6219
  %v6299 = vunpack.c.l.b16 %v6220
  %v6300 = vpack.c.b16 %v6265, %v6264
  %v6301 = vpack.c.b16 %v6267, %v6266
  %v6302 = vpack.c.b16 %v6269, %v6268
  %v6303 = vpack.c.b16 %v6271, %v6270
  %v6304 = vpack.c.b16 %v6273, %v6272
  %v6305 = vpack.c.b16 %v6275, %v6274
  %v6306 = vpack.c.b16 %v6277, %v6276
  %v6307 = vpack.c.b16 %v6279, %v6278
  %v6308 = vpack.c.b16 %v6281, %v6280
  %v6309 = vpack.c.b16 %v6283, %v6282
  %v6310 = vpack.c.b16 %v6285, %v6284
  %v6311 = vpack.c.b16 %v6287, %v6286
  %v6312 = vpack.c.b16 %v6289, %v6288
  %v6313 = vpack.c.b16 %v6291, %v6290
  %v6314 = vpack.c.b16 %v6293, %v6292
  %v6315 = vpack.c.b16 %v6295, %v6294
  %v6316 = vpack.c.b16 %v6297, %v6296
  %v6317 = vpack.c.b16 %v6299, %v6298
  %v6336 = vsel %vm5960, %v5709, 0
  %v6338 = vsel %vm5960, %v5711, 0
  %v6340 = vsel %vm5960, %v5713, 0
  %v6343 = vsel %vm5960, %v5715, 0
  %v6345 = vsel %vm5960, %v5725, 0
  %v6347 = vsel %vm5960, %v5727, 0
  %v6349 = vsel %vm5960, %v5729, 0
  %v6352 = vsel %vm5960, %v5731, 0
  %v6354 = vsel %vm5960, %v5741, 0
  %v6356 = vsel %vm5960, %v5743, 0
  %v6358 = vsel %vm5960, %v5745, 0
  %v6361 = vsel %vm5960, %v5747, 0
  %v6364 = vsel %vm5960, %v5757, 0
  %v6367 = vsel %vm5960, %v5759, 0
  %v6370 = vsel %vm5960, %v5761, 0
  %v6373 = vsel %vm5960, %v5763, 0
  %6375 = vmatprep.subr.bf16.mxu0 0
  %6376 = vmatpush1.bf16.msra.mxu0 %v6300
  %6377 = vmatprep.subr.bf16.mxu0 0
  %6378 = vmatpush1.bf16.msra.mxu0 %v6301
  %6379 = vmatprep.subr.bf16.mxu0 0
  %6380 = vmatpush1.bf16.msra.mxu0 %v6302
  %6381 = vmatprep.subr.bf16.mxu0 0
  %6382 = vmatpush1.bf16.msra.mxu0 %v6303
  %6383 = vmatprep.subr.bf16.mxu0 0
  %6384 = vmatpush1.bf16.msra.mxu0 %v6304
  %6385 = vmatprep.subr.bf16.mxu0 0
  %6386 = vmatpush1.bf16.msra.mxu0 %v6305
  %6387 = vmatprep.subr.bf16.mxu0 0
  %6388 = vmatpush1.bf16.msra.mxu0 %v6306
  %6389 = vmatprep.subr.bf16.mxu0 0
  %6390 = vmatpush1.bf16.msra.mxu0 %v6307
  %6391 = vmatprep.subr.bf16.mxu0 0
  %6392 = vmatpush1.bf16.msra.mxu0 %v6308
  %6393 = vmatprep.subr.bf16.mxu0 0
  %6394 = vmatpush1.bf16.msra.mxu0 %v6309
  %6395 = vmatprep.subr.bf16.mxu0 0
  %6396 = vmatpush1.bf16.msra.mxu0 %v6310
  %6397 = vmatprep.subr.bf16.mxu0 0
  %6398 = vmatpush1.bf16.msra.mxu0 %v6311
  %6399 = vmatprep.subr.bf16.mxu0 0
  %6400 = vmatpush1.bf16.msra.mxu0 %v6312
  %6401 = vmatprep.subr.bf16.mxu0 0
  %6402 = vmatpush1.bf16.msra.mxu0 %v6313
  %6403 = vmatprep.subr.bf16.mxu0 0
  %6404 = vmatpush1.bf16.msra.mxu0 %v6314
  %6405 = vmatprep.subr.bf16.mxu0 0
  %6406 = vmatpush1.bf16.msra.mxu0 %v6315
  %6407 = vmatprep.mubr.bf16.mxu0 %v6138
  %6408 = vmatmul.mubr.bf16.gmra.mrb[0].mxu0 %v6026
  %v6409 = vpop.f32.mrb[0].mxu0
  %v6410 = vadd.f32 %v6226, %v6409
  %v6411 = vpop.f32.mrb[0].mxu0
  %v6412 = vpop.f32.mrb[0].mxu0
  %v6413 = vadd.f32 %v6226, %v6412
  %v6414 = vpop.f32.mrb[0].mxu0
  %6415 = vmatprep.mubr.bf16.mxu0 %v6141
  %6416 = vmatmul.mubr.bf16.gmra.mrb[0].mxu0 %v6029
  %v6417 = vpop.f32.mrb[0].mxu0
  %v6418 = vadd.f32 %v6226, %v6417
  %v6419 = vpop.f32.mrb[0].mxu0
  %v6420 = vpop.f32.mrb[0].mxu0
  %v6421 = vadd.f32 %v6226, %v6420
  %v6422 = vpop.f32.mrb[0].mxu0
  %6423 = vmatprep.mubr.bf16.mxu0 %v6144
  %6424 = vmatmul.mubr.bf16.gmra.mrb[0].mxu0 %v6032
  %v6425 = vpop.f32.mrb[0].mxu0
  %v6426 = vadd.f32 %v6226, %v6425
  %v6427 = vpop.f32.mrb[0].mxu0
  %v6428 = vpop.f32.mrb[0].mxu0
  %v6429 = vadd.f32 %v6226, %v6428
  %v6430 = vpop.f32.mrb[0].mxu0
  %6431 = vmatprep.mubr.bf16.mxu0 %v6147
  %6432 = vmatmul.mubr.bf16.gmra.mrb[0].mxu0 %v6035
  %v6433 = vpop.f32.mrb[0].mxu0
  %v6434 = vadd.f32 %v6226, %v6433
  %v6435 = vpop.f32.mrb[0].mxu0
  %v6436 = vpop.f32.mrb[0].mxu0
  %v6437 = vadd.f32 %v6226, %v6436
  %v6438 = vpop.f32.mrb[0].mxu0
  %6439 = vmatprep.mubr.bf16.mxu0 %v6150
  %6440 = vmatmul.mubr.bf16.gmra.mrb[0].mxu0 %v6037
  %v6441 = vpop.f32.mrb[0].mxu0
  %v6442 = vadd.f32 %v6226, %v6441
  %v6443 = vpop.f32.mrb[0].mxu0
  %v6444 = vpop.f32.mrb[0].mxu0
  %v6445 = vadd.f32 %v6226, %v6444
  %v6446 = vpop.f32.mrb[0].mxu0
  %6447 = vmatprep.mubr.bf16.mxu0 %v6153
  %6448 = vmatmul.mubr.bf16.gmra.mrb[0].mxu0 %v6040
  %v6449 = vpop.f32.mrb[0].mxu0
  %v6450 = vadd.f32 %v6226, %v6449
  %v6451 = vpop.f32.mrb[0].mxu0
  %v6452 = vpop.f32.mrb[0].mxu0
  %v6453 = vadd.f32 %v6226, %v6452
  %v6454 = vpop.f32.mrb[0].mxu0
  %6455 = vmatprep.mubr.bf16.mxu0 %v6156
  %6456 = vmatmul.mubr.bf16.gmra.mrb[0].mxu0 %v6043
  %v6457 = vpop.f32.mrb[0].mxu0
  %v6458 = vadd.f32 %v6226, %v6457
  %v6459 = vpop.f32.mrb[0].mxu0
  %v6460 = vpop.f32.mrb[0].mxu0
  %v6461 = vadd.f32 %v6226, %v6460
  %v6462 = vpop.f32.mrb[0].mxu0
  %6463 = vmatprep.mubr.bf16.mxu0 %v6159
  %6464 = vmatmul.mubr.bf16.gmra.mrb[0].mxu0 %v6046
  %v6465 = vpop.f32.mrb[0].mxu0
  %v6466 = vadd.f32 %v6226, %v6465
  %v6467 = vpop.f32.mrb[0].mxu0
  %v6468 = vpop.f32.mrb[0].mxu0
  %v6469 = vadd.f32 %v6226, %v6468
  %v6470 = vpop.f32.mrb[0].mxu0
  %6471 = vmatprep.mubr.bf16.mxu0 %v6162
  %6472 = vmatmul.mubr.bf16.gmra.mrb[0].mxu0 %v6048
  %v6473 = vpop.f32.mrb[0].mxu0
  %v6474 = vadd.f32 %v6226, %v6473
  %v6475 = vpop.f32.mrb[0].mxu0
  %v6476 = vpop.f32.mrb[0].mxu0
  %v6477 = vadd.f32 %v6226, %v6476
  %v6478 = vpop.f32.mrb[0].mxu0
  %6479 = vmatprep.mubr.bf16.mxu0 %v6165
  %6480 = vmatmul.mubr.bf16.gmra.mrb[0].mxu0 %v6051
  %v6481 = vpop.f32.mrb[0].mxu0
  %v6482 = vadd.f32 %v6226, %v6481
  %v6483 = vpop.f32.mrb[0].mxu0
  %v6484 = vpop.f32.mrb[0].mxu0
  %v6485 = vadd.f32 %v6226, %v6484
  %v6486 = vpop.f32.mrb[0].mxu0
  %6487 = vmatprep.mubr.bf16.mxu0 %v6168
  %6488 = vmatmul.mubr.bf16.gmra.mrb[0].mxu0 %v6054
  %v6489 = vpop.f32.mrb[0].mxu0
  %v6490 = vadd.f32 %v6226, %v6489
  %v6491 = vpop.f32.mrb[0].mxu0
  %v6492 = vpop.f32.mrb[0].mxu0
  %v6493 = vadd.f32 %v6226, %v6492
  %v6494 = vpop.f32.mrb[0].mxu0
  %6495 = vmatprep.mubr.bf16.mxu0 %v6171
  %6496 = vmatmul.mubr.bf16.gmra.mrb[0].mxu0 %v6057
  %v6497 = vpop.f32.mrb[0].mxu0
  %v6498 = vadd.f32 %v6226, %v6497
  %v6499 = vpop.f32.mrb[0].mxu0
  %v6500 = vpop.f32.mrb[0].mxu0
  %v6501 = vadd.f32 %v6226, %v6500
  %v6502 = vpop.f32.mrb[0].mxu0
  %6503 = vmatprep.mubr.bf16.mxu0 %v6174
  %6504 = vmatmul.mubr.bf16.gmra.mrb[0].mxu0 %v6059
  %v6505 = vpop.f32.mrb[0].mxu0
  %v6506 = vadd.f32 %v6226, %v6505
  %v6507 = vpop.f32.mrb[0].mxu0
  %v6508 = vpop.f32.mrb[0].mxu0
  %v6509 = vadd.f32 %v6226, %v6508
  %v6510 = vpop.f32.mrb[0].mxu0
  %6511 = vmatprep.mubr.bf16.mxu0 %v6177
  %6512 = vmatmul.mubr.bf16.gmra.mrb[0].mxu0 %v6062
  %v6513 = vpop.f32.mrb[0].mxu0
  %v6514 = vadd.f32 %v6226, %v6513
  %v6515 = vpop.f32.mrb[0].mxu0
  %v6516 = vpop.f32.mrb[0].mxu0
  %v6517 = vadd.f32 %v6226, %v6516
  %v6518 = vpop.f32.mrb[0].mxu0
  %6519 = vmatprep.mubr.bf16.mxu0 %v6180
  %6520 = vmatmul.mubr.bf16.gmra.mrb[0].mxu0 %v6065
  %v6521 = vpop.f32.mrb[0].mxu0
  %v6522 = vadd.f32 %v6226, %v6521
  %v6523 = vpop.f32.mrb[0].mxu0
  %v6524 = vpop.f32.mrb[0].mxu0
  %v6525 = vadd.f32 %v6226, %v6524
  %v6526 = vpop.f32.mrb[0].mxu0
  %6527 = vmatprep.mubr.bf16.mxu0 %v6183
  %6528 = vmatmul.mubr.bf16.gmra.mrb[0].mxu0 %v6068
  %v6529 = vpop.f32.mrb[0].mxu0
  %v6530 = vadd.f32 %v6226, %v6529
  %v6531 = vpop.f32.mrb[0].mxu0
  %v6532 = vpop.f32.mrb[0].mxu0
  %v6533 = vadd.f32 %v6226, %v6532
  %v6534 = vpop.f32.mrb[0].mxu0
  %6535 = vdwg.mxu0
  %6536 = vmatprep.subr.bf16.mxu0 0
  %6537 = vmatpush1.bf16.msra.mxu0 %v6316
  %6538 = vmatprep.subr.bf16.mxu0 0
  %6539 = vmatpush1.bf16.msra.mxu0 %v6317
  %6540 = vmatprep.subr.bf16.mxu0 0
  %6541 = vmatpush1.bf16.msra.mxu0 0
  %6542 = vmatprep.subr.bf16.mxu0 0
  %6543 = vmatpush1.bf16.msra.mxu0 0
  %6544 = vmatprep.subr.bf16.mxu0 0
  %6545 = vmatpush1.bf16.msra.mxu0 0
  %6546 = vmatprep.subr.bf16.mxu0 0
  %6547 = vmatpush1.bf16.msra.mxu0 0
  %6548 = vmatprep.subr.bf16.mxu0 0
  %6549 = vmatpush1.bf16.msra.mxu0 0
  %6550 = vmatprep.subr.bf16.mxu0 0
  %6551 = vmatpush1.bf16.msra.mxu0 0
  %6552 = vmatprep.subr.bf16.mxu0 0
  %6553 = vmatpush1.bf16.msra.mxu0 0
  %6554 = vmatprep.subr.bf16.mxu0 0
  %6555 = vmatpush1.bf16.msra.mxu0 0
  %6556 = vmatprep.subr.bf16.mxu0 0
  %6557 = vmatpush1.bf16.msra.mxu0 0
  %6558 = vmatprep.subr.bf16.mxu0 0
  %6559 = vmatpush1.bf16.msra.mxu0 0
  %6560 = vmatprep.subr.bf16.mxu0 0
  %6561 = vmatpush1.bf16.msra.mxu0 0
  %6562 = vmatprep.subr.bf16.mxu0 0
  %6563 = vmatpush1.bf16.msra.mxu0 0
  %6564 = vmatprep.subr.bf16.mxu0 0
  %6565 = vmatpush1.bf16.msra.mxu0 0
  %6566 = vmatprep.subr.bf16.mxu0 0
  %6567 = vmatpush1.bf16.msra.mxu0 0
  %6568 = vmatprep.mubr.bf16.mxu0 0
  %6569 = vmatmul.mubr.bf16.gmra.mrb[0].mxu0 %v6336
  %v6570 = vpop.f32.mrb[0].mxu0
  %v6571 = vadd.f32 %v6410, %v6570
  %v6572 = vpop.f32.mrb[0].mxu0
  %v6573 = vpop.f32.mrb[0].mxu0
  %v6574 = vadd.f32 %v6413, %v6573
  %v6575 = vpop.f32.mrb[0].mxu0
  %6576 = vmatprep.mubr.bf16.mxu0 0
  %6577 = vmatmul.mubr.bf16.gmra.mrb[0].mxu0 %v6338
  %v6578 = vpop.f32.mrb[0].mxu0
  %v6579 = vadd.f32 %v6418, %v6578
  %v6580 = vpop.f32.mrb[0].mxu0
  %v6581 = vpop.f32.mrb[0].mxu0
  %v6582 = vadd.f32 %v6421, %v6581
  %v6583 = vpop.f32.mrb[0].mxu0
  %6584 = vmatprep.mubr.bf16.mxu0 0
  %6585 = vmatmul.mubr.bf16.gmra.mrb[0].mxu0 %v6340
  %v6586 = vpop.f32.mrb[0].mxu0
  %v6587 = vadd.f32 %v6426, %v6586
  %v6588 = vpop.f32.mrb[0].mxu0
  %v6589 = vpop.f32.mrb[0].mxu0
  %v6590 = vadd.f32 %v6429, %v6589
  %v6591 = vpop.f32.mrb[0].mxu0
  %6592 = vmatprep.mubr.bf16.mxu0 0
  %6593 = vmatmul.mubr.bf16.gmra.mrb[0].mxu0 %v6343
  %v6594 = vpop.f32.mrb[0].mxu0
  %v6595 = vadd.f32 %v6434, %v6594
  %v6596 = vpop.f32.mrb[0].mxu0
  %v6597 = vpop.f32.mrb[0].mxu0
  %v6598 = vadd.f32 %v6437, %v6597
  %v6599 = vpop.f32.mrb[0].mxu0
  %6600 = vmatprep.mubr.bf16.mxu0 0
  %6601 = vmatmul.mubr.bf16.gmra.mrb[0].mxu0 %v6345
  %v6602 = vpop.f32.mrb[0].mxu0
  %v6603 = vadd.f32 %v6442, %v6602
  %v6604 = vpop.f32.mrb[0].mxu0
  %v6605 = vpop.f32.mrb[0].mxu0
  %v6606 = vadd.f32 %v6445, %v6605
  %v6607 = vpop.f32.mrb[0].mxu0
  %6608 = vmatprep.mubr.bf16.mxu0 0
  %6609 = vmatmul.mubr.bf16.gmra.mrb[0].mxu0 %v6347
  %v6610 = vpop.f32.mrb[0].mxu0
  %v6611 = vadd.f32 %v6450, %v6610
  %v6612 = vpop.f32.mrb[0].mxu0
  %v6613 = vpop.f32.mrb[0].mxu0
  %v6614 = vadd.f32 %v6453, %v6613
  %v6615 = vpop.f32.mrb[0].mxu0
  %6616 = vmatprep.mubr.bf16.mxu0 0
  %6617 = vmatmul.mubr.bf16.gmra.mrb[0].mxu0 %v6349
  %v6618 = vpop.f32.mrb[0].mxu0
  %v6619 = vadd.f32 %v6458, %v6618
  %v6620 = vpop.f32.mrb[0].mxu0
  %v6621 = vpop.f32.mrb[0].mxu0
  %v6622 = vadd.f32 %v6461, %v6621
  %v6623 = vpop.f32.mrb[0].mxu0
  %6624 = vmatprep.mubr.bf16.mxu0 0
  %6625 = vmatmul.mubr.bf16.gmra.mrb[0].mxu0 %v6352
  %v6626 = vpop.f32.mrb[0].mxu0
  %v6627 = vadd.f32 %v6466, %v6626
  %v6628 = vpop.f32.mrb[0].mxu0
  %v6629 = vpop.f32.mrb[0].mxu0
  %v6630 = vadd.f32 %v6469, %v6629
  %v6631 = vpop.f32.mrb[0].mxu0
  %6632 = vmatprep.mubr.bf16.mxu0 0
  %6633 = vmatmul.mubr.bf16.gmra.mrb[0].mxu0 %v6354
  %v6634 = vpop.f32.mrb[0].mxu0
  %v6635 = vadd.f32 %v6474, %v6634
  %v6636 = vpop.f32.mrb[0].mxu0
  %v6637 = vpop.f32.mrb[0].mxu0
  %v6638 = vadd.f32 %v6477, %v6637
  %v6639 = vpop.f32.mrb[0].mxu0
  %6640 = vmatprep.mubr.bf16.mxu0 0
  %6641 = vmatmul.mubr.bf16.gmra.mrb[0].mxu0 %v6356
  %v6642 = vpop.f32.mrb[0].mxu0
  %v6643 = vadd.f32 %v6482, %v6642
  %v6644 = vpop.f32.mrb[0].mxu0
  %v6645 = vpop.f32.mrb[0].mxu0
  %v6646 = vadd.f32 %v6485, %v6645
  %v6647 = vpop.f32.mrb[0].mxu0
  %6648 = vmatprep.mubr.bf16.mxu0 0
  %6649 = vmatmul.mubr.bf16.gmra.mrb[0].mxu0 %v6358
  %v6650 = vpop.f32.mrb[0].mxu0
  %v6651 = vadd.f32 %v6490, %v6650
  %v6652 = vpop.f32.mrb[0].mxu0
  %v6653 = vpop.f32.mrb[0].mxu0
  %v6654 = vadd.f32 %v6493, %v6653
  %v6655 = vpop.f32.mrb[0].mxu0
  %6656 = vmatprep.mubr.bf16.mxu0 0
  %6657 = vmatmul.mubr.bf16.gmra.mrb[0].mxu0 %v6361
  %v6658 = vpop.f32.mrb[0].mxu0
  %v6659 = vadd.f32 %v6498, %v6658
  %v6660 = vpop.f32.mrb[0].mxu0
  %v6661 = vpop.f32.mrb[0].mxu0
  %v6662 = vadd.f32 %v6501, %v6661
  %v6663 = vpop.f32.mrb[0].mxu0
  %6664 = vmatprep.mubr.bf16.mxu0 0
  %6665 = vmatmul.mubr.bf16.gmra.mrb[0].mxu0 %v6364
  %v6666 = vpop.f32.mrb[0].mxu0
  %v6667 = vadd.f32 %v6506, %v6666
  %v6668 = vpop.f32.mrb[0].mxu0
  %v6669 = vpop.f32.mrb[0].mxu0
  %v6670 = vadd.f32 %v6509, %v6669
  %v6671 = vpop.f32.mrb[0].mxu0
  %6672 = vmatprep.mubr.bf16.mxu0 0
  %6673 = vmatmul.mubr.bf16.gmra.mrb[0].mxu0 %v6367
  %v6674 = vpop.f32.mrb[0].mxu0
  %v6675 = vadd.f32 %v6514, %v6674
  %v6676 = vpop.f32.mrb[0].mxu0
  %v6677 = vpop.f32.mrb[0].mxu0
  %v6678 = vadd.f32 %v6517, %v6677
  %v6679 = vpop.f32.mrb[0].mxu0
  %6680 = vmatprep.mubr.bf16.mxu0 0
  %6681 = vmatmul.mubr.bf16.gmra.mrb[0].mxu0 %v6370
  %v6682 = vpop.f32.mrb[0].mxu0
  %v6683 = vadd.f32 %v6522, %v6682
  %v6684 = vpop.f32.mrb[0].mxu0
  %v6685 = vpop.f32.mrb[0].mxu0
  %v6686 = vadd.f32 %v6525, %v6685
  %v6687 = vpop.f32.mrb[0].mxu0
  %6688 = vmatprep.mubr.bf16.mxu0 0
  %6689 = vmatmul.mubr.bf16.gmra.mrb[0].mxu0 %v6373
  %v6690 = vpop.f32.mrb[0].mxu0
  %v6691 = vadd.f32 %v6530, %v6690
  %v6692 = vpop.f32.mrb[0].mxu0
  %v6693 = vpop.f32.mrb[0].mxu0
  %v6694 = vadd.f32 %v6533, %v6693
  %v6695 = vpop.f32.mrb[0].mxu0
  %6696 = vdwg.mxu0
  %vm6697 = vcmp.gt.f32.partialorder %v6571, 0.0
  %vm6698 = vcmp.gt.f32.partialorder %v6574, 0.0
  %vm6699 = vcmp.gt.f32.partialorder %v6579, 0.0
  %vm6700 = vcmp.gt.f32.partialorder %v6582, 0.0
  %vm6701 = vcmp.gt.f32.partialorder %v6587, 0.0
  %vm6702 = vcmp.gt.f32.partialorder %v6590, 0.0
  %vm6703 = vcmp.gt.f32.partialorder %v6595, 0.0
  %vm6704 = vcmp.gt.f32.partialorder %v6598, 0.0
  %vm6705 = vcmp.gt.f32.partialorder %v6603, 0.0
  %vm6706 = vcmp.gt.f32.partialorder %v6606, 0.0
  %vm6707 = vcmp.gt.f32.partialorder %v6611, 0.0
  %vm6708 = vcmp.gt.f32.partialorder %v6614, 0.0
  %vm6709 = vcmp.gt.f32.partialorder %v6619, 0.0
  %vm6710 = vcmp.gt.f32.partialorder %v6622, 0.0
  %vm6711 = vcmp.gt.f32.partialorder %v6627, 0.0
  %vm6712 = vcmp.gt.f32.partialorder %v6630, 0.0
  %vm6713 = vcmp.gt.f32.partialorder %v6635, 0.0
  %vm6714 = vcmp.gt.f32.partialorder %v6638, 0.0
  %vm6715 = vcmp.gt.f32.partialorder %v6643, 0.0
  %vm6716 = vcmp.gt.f32.partialorder %v6646, 0.0
  %vm6717 = vcmp.gt.f32.partialorder %v6651, 0.0
  %vm6718 = vcmp.gt.f32.partialorder %v6654, 0.0
  %vm6719 = vcmp.gt.f32.partialorder %v6659, 0.0
  %vm6720 = vcmp.gt.f32.partialorder %v6662, 0.0
  %vm6721 = vcmp.gt.f32.partialorder %v6667, 0.0
  %vm6722 = vcmp.gt.f32.partialorder %v6670, 0.0
  %vm6723 = vcmp.gt.f32.partialorder %v6675, 0.0
  %vm6724 = vcmp.gt.f32.partialorder %v6678, 0.0
  %vm6725 = vcmp.gt.f32.partialorder %v6683, 0.0
  %vm6726 = vcmp.gt.f32.partialorder %v6686, 0.0
  %vm6727 = vcmp.gt.f32.partialorder %v6691, 0.0
  %vm6728 = vcmp.gt.f32.partialorder %v6694, 0.0
  %v6729 = vmin.f32 %v6571, 0.0
  %v6730 = vmin.f32 %v6574, 0.0
  %v6731 = vmin.f32 %v6579, 0.0
  %v6732 = vmin.f32 %v6582, 0.0
  %v6733 = vmin.f32 %v6587, 0.0
  %v6734 = vmin.f32 %v6590, 0.0
  %v6735 = vmin.f32 %v6595, 0.0
  %v6736 = vmin.f32 %v6598, 0.0
  %v6737 = vmin.f32 %v6603, 0.0
  %v6738 = vmin.f32 %v6606, 0.0
  %v6739 = vmin.f32 %v6611, 0.0
  %v6740 = vmin.f32 %v6614, 0.0
  %v6741 = vmin.f32 %v6619, 0.0
  %v6742 = vmin.f32 %v6622, 0.0
  %v6743 = vmin.f32 %v6627, 0.0
  %v6744 = vmin.f32 %v6630, 0.0
  %v6745 = vmin.f32 %v6635, 0.0
  %v6746 = vmin.f32 %v6638, 0.0
  %v6747 = vmin.f32 %v6643, 0.0
  %v6748 = vmin.f32 %v6646, 0.0
  %v6749 = vmin.f32 %v6651, 0.0
  %v6750 = vmin.f32 %v6654, 0.0
  %v6751 = vmin.f32 %v6659, 0.0
  %v6752 = vmin.f32 %v6662, 0.0
  %v6753 = vmin.f32 %v6667, 0.0
  %v6754 = vmin.f32 %v6670, 0.0
  %v6755 = vmin.f32 %v6675, 0.0
  %v6756 = vmin.f32 %v6678, 0.0
  %v6757 = vmin.f32 %v6683, 0.0
  %v6758 = vmin.f32 %v6686, 0.0
  %v6759 = vmin.f32 %v6691, 0.0
  %v6760 = vmin.f32 %v6694, 0.0
  %v6761 = vmul.f32 %v6729, 1.442695
  %v6762 = vpow.pop %v6761
  %v6763 = vmul.f32 %v6730, 1.442695
  %v6764 = vpow.pop %v6763
  %v6765 = vmul.f32 %v6731, 1.442695
  %v6766 = vpow.pop %v6765
  %v6767 = vmul.f32 %v6732, 1.442695
  %v6768 = vpow.pop %v6767
  %v6769 = vmul.f32 %v6733, 1.442695
  %v6770 = vpow.pop %v6769
  %v6771 = vmul.f32 %v6734, 1.442695
  %v6772 = vpow.pop %v6771
  %v6773 = vmul.f32 %v6735, 1.442695
  %v6774 = vpow.pop %v6773
  %v6775 = vmul.f32 %v6736, 1.442695
  %v6776 = vpow.pop %v6775
  %v6777 = vmul.f32 %v6737, 1.442695
  %v6778 = vpow.pop %v6777
  %v6779 = vmul.f32 %v6738, 1.442695
  %v6780 = vpow.pop %v6779
  %v6781 = vmul.f32 %v6739, 1.442695
  %v6782 = vpow.pop %v6781
  %v6783 = vmul.f32 %v6740, 1.442695
  %v6784 = vpow.pop %v6783
  %v6785 = vmul.f32 %v6741, 1.442695
  %v6786 = vpow.pop %v6785
  %v6787 = vmul.f32 %v6742, 1.442695
  %v6788 = vpow.pop %v6787
  %v6789 = vmul.f32 %v6743, 1.442695
  %v6790 = vpow.pop %v6789
  %v6791 = vmul.f32 %v6744, 1.442695
  %v6792 = vpow.pop %v6791
  %v6793 = vmul.f32 %v6745, 1.442695
  %v6794 = vpow.pop %v6793
  %v6795 = vmul.f32 %v6746, 1.442695
  %v6796 = vpow.pop %v6795
  %v6797 = vmul.f32 %v6747, 1.442695
  %v6798 = vpow.pop %v6797
  %v6799 = vmul.f32 %v6748, 1.442695
  %v6800 = vpow.pop %v6799
  %v6801 = vmul.f32 %v6749, 1.442695
  %v6802 = vpow.pop %v6801
  %v6803 = vmul.f32 %v6750, 1.442695
  %v6804 = vpow.pop %v6803
  %v6805 = vmul.f32 %v6751, 1.442695
  %v6806 = vpow.pop %v6805
  %v6807 = vmul.f32 %v6752, 1.442695
  %v6808 = vpow.pop %v6807
  %v6809 = vmul.f32 %v6753, 1.442695
  %v6810 = vpow.pop %v6809
  %v6811 = vmul.f32 %v6754, 1.442695
  %v6812 = vpow.pop %v6811
  %v6813 = vmul.f32 %v6755, 1.442695
  %v6814 = vpow.pop %v6813
  %v6815 = vmul.f32 %v6756, 1.442695
  %v6816 = vpow.pop %v6815
  %v6817 = vmul.f32 %v6757, 1.442695
  %v6818 = vpow.pop %v6817
  %v6819 = vmul.f32 %v6758, 1.442695
  %v6820 = vpow.pop %v6819
  %v6821 = vmul.f32 %v6759, 1.442695
  %v6822 = vpow.pop %v6821
  %v6823 = vmul.f32 %v6760, 1.442695
  %v6824 = vpow.pop %v6823
  %v6825 = vsub.f32 %v6762, 1.0
  %v6826 = vsub.f32 %v6764, 1.0
  %v6827 = vsub.f32 %v6766, 1.0
  %v6828 = vsub.f32 %v6768, 1.0
  %v6829 = vsub.f32 %v6770, 1.0
  %v6830 = vsub.f32 %v6772, 1.0
  %v6831 = vsub.f32 %v6774, 1.0
  %v6832 = vsub.f32 %v6776, 1.0
  %v6833 = vsub.f32 %v6778, 1.0
  %v6834 = vsub.f32 %v6780, 1.0
  %v6835 = vsub.f32 %v6782, 1.0
  %v6836 = vsub.f32 %v6784, 1.0
  %v6837 = vsub.f32 %v6786, 1.0
  %v6838 = vsub.f32 %v6788, 1.0
  %v6839 = vsub.f32 %v6790, 1.0
  %v6840 = vsub.f32 %v6792, 1.0
  %v6841 = vsub.f32 %v6794, 1.0
  %v6842 = vsub.f32 %v6796, 1.0
  %v6843 = vsub.f32 %v6798, 1.0
  %v6844 = vsub.f32 %v6800, 1.0
  %v6845 = vsub.f32 %v6802, 1.0
  %v6846 = vsub.f32 %v6804, 1.0
  %v6847 = vsub.f32 %v6806, 1.0
  %v6848 = vsub.f32 %v6808, 1.0
  %v6849 = vsub.f32 %v6810, 1.0
  %v6850 = vsub.f32 %v6812, 1.0
  %v6851 = vsub.f32 %v6814, 1.0
  %v6852 = vsub.f32 %v6816, 1.0
  %v6853 = vsub.f32 %v6818, 1.0
  %v6854 = vsub.f32 %v6820, 1.0
  %v6855 = vsub.f32 %v6822, 1.0
  %v6856 = vsub.f32 %v6824, 1.0
  %v6857 = vsel %vm6697, %v6571, %v6825
  %v6858 = vsel %vm6698, %v6574, %v6826
  %v6859 = vsel %vm6699, %v6579, %v6827
  %v6860 = vsel %vm6700, %v6582, %v6828
  %v6861 = vsel %vm6701, %v6587, %v6829
  %v6862 = vsel %vm6702, %v6590, %v6830
  %v6863 = vsel %vm6703, %v6595, %v6831
  %v6864 = vsel %vm6704, %v6598, %v6832
  %v6865 = vsel %vm6705, %v6603, %v6833
  %v6866 = vsel %vm6706, %v6606, %v6834
  %v6867 = vsel %vm6707, %v6611, %v6835
  %v6868 = vsel %vm6708, %v6614, %v6836
  %v6869 = vsel %vm6709, %v6619, %v6837
  %v6870 = vsel %vm6710, %v6622, %v6838
  %v6871 = vsel %vm6711, %v6627, %v6839
  %v6872 = vsel %vm6712, %v6630, %v6840
  %v6873 = vsel %vm6713, %v6635, %v6841
  %v6874 = vsel %vm6714, %v6638, %v6842
  %v6875 = vsel %vm6715, %v6643, %v6843
  %v6876 = vsel %vm6716, %v6646, %v6844
  %v6877 = vsel %vm6717, %v6651, %v6845
  %v6878 = vsel %vm6718, %v6654, %v6846
  %v6879 = vsel %vm6719, %v6659, %v6847
  %v6880 = vsel %vm6720, %v6662, %v6848
  %v6881 = vsel %vm6721, %v6667, %v6849
  %v6882 = vsel %vm6722, %v6670, %v6850
  %v6883 = vsel %vm6723, %v6675, %v6851
  %v6884 = vsel %vm6724, %v6678, %v6852
  %v6885 = vsel %vm6725, %v6683, %v6853
  %v6886 = vsel %vm6726, %v6686, %v6854
  %v6887 = vsel %vm6727, %v6691, %v6855
  %v6888 = vsel %vm6728, %v6694, %v6856
  %v6889 = vpack.c.bf16 %v6858, %v6857
  %v6890 = vpack.c.bf16 %v6860, %v6859
  %v6891 = vpack.c.bf16 %v6862, %v6861
  %v6892 = vpack.c.bf16 %v6864, %v6863
  %v6893 = vpack.c.bf16 %v6866, %v6865
  %v6894 = vpack.c.bf16 %v6868, %v6867
  %v6895 = vpack.c.bf16 %v6870, %v6869
  %v6896 = vpack.c.bf16 %v6872, %v6871
  %v6897 = vpack.c.bf16 %v6874, %v6873
  %v6898 = vpack.c.bf16 %v6876, %v6875
  %v6899 = vpack.c.bf16 %v6878, %v6877
  %v6900 = vpack.c.bf16 %v6880, %v6879
  %v6901 = vpack.c.bf16 %v6882, %v6881
  %v6902 = vpack.c.bf16 %v6884, %v6883
  %v6903 = vpack.c.bf16 %v6886, %v6885
  %v6904 = vpack.c.bf16 %v6888, %v6887
  %6907 = vrot.lane.b32.xlu0 %v6893, 32
  %v6908 = vpop.permute.xlu0 %6907
  %6909 = vrot.lane.b32.xlu0 %v6895, 32
  %v6910 = vpop.permute.xlu0 %6909
  %6913 = vrot.lane.b32.xlu0 %v6894, 64
  %v6914 = vpop.permute.xlu0 %6913
  %6915 = vrot.lane.b32.xlu0 %v6896, 64
  %v6916 = vpop.permute.xlu0 %6915
  %6919 = vrot.lane.b32.xlu0 %v6890, 96
  %v6920 = vpop.permute.xlu0 %6919
  %6921 = vrot.lane.b32.xlu0 %v6898, 96
  %v6922 = vpop.permute.xlu0 %6921
  %6925 = vrot.lane.b32.xlu0 %v6890, 32
  %v6926 = vpop.permute.xlu0 %6925
  %6927 = vrot.lane.b32.xlu0 %v6892, 32
  %v6928 = vpop.permute.xlu0 %6927
  %6929 = vrot.lane.b32.xlu0 %v6898, 32
  %v6930 = vpop.permute.xlu0 %6929
  %6931 = vrot.lane.b32.xlu0 %v6900, 32
  %v6932 = vpop.permute.xlu0 %6931
  %6934 = vrot.lane.b32.xlu0 %v6902, 64
  %v6935 = vpop.permute.xlu0 %6934
  %6938 = vrot.lane.b32.xlu0 %v6893, 96
  %v6939 = vpop.permute.xlu0 %6938
  %6940 = vrot.lane.b32.xlu0 %v6895, 96
  %v6941 = vpop.permute.xlu0 %6940
  %6942 = vrot.lane.b32.xlu0 %v6901, 96
  %v6943 = vpop.permute.xlu0 %6942
  %6944 = vrot.lane.b32.xlu0 %v6903, 96
  %v6945 = vpop.permute.xlu0 %6944
  %v6947 = vsel %vm5960, 0, %v6908
  %v6950 = vsel %vm5960, %v6894, %v6910
  %v6952 = vsel %vm5997, %v6947, %v6914
  %v6954 = vsel %vm5997, %v6950, %v6916
  %v6956 = vsel %vm6024, %v5999, %v6920
  %v6958 = vsel %vm6024, %v6952, %v5854
  %v6961 = vsel %vm6024, %v6954, %v6922
  %v6965 = vsel %vm5960, %v6889, %v6926
  %v6968 = vsel %vm5960, %v6891, %v6928
  %v6971 = vsel %vm5960, %v6897, %v6930
  %v6974 = vsel %vm5960, %v6899, %v6932
  %v6975 = vsel %vm5997, %v6965, %v5816
  %v6976 = vsel %vm5997, %v6968, %v6914
  %v6977 = vsel %vm5997, %v6971, %v5816
  %v6979 = vsel %vm5997, %v6974, %v6935
  %v6981 = vsel %vm6024, %v6975, %v6939
  %v6984 = vsel %vm6024, %v6976, %v6941
  %v6987 = vsel %vm6024, %v6977, %v6943
  %v6990 = vsel %vm6024, %v6979, %v6945
  %v6992 = vld [vmem:[%s6] sm:$0xf]
  %v6993 = vld [vmem:[%s6 + $0x4] sm:$0xf]
  %v6994 = vld [vmem:[%s6 + $0x8] sm:$0xf]
  %v6995 = vld [vmem:[%s6 + $0xc] sm:$0xf]
  %v6996 = vld [vmem:[%s6 + $0x10] sm:$0xf]
  %v6997 = vld [vmem:[%s6 + $0x14] sm:$0xf]
  %v6998 = vld [vmem:[%s6 + $0x18] sm:$0xf]
  %v6999 = vld [vmem:[%s6 + $0x1c] sm:$0xf]
  %v7000 = vld [vmem:[%s6 + $0x20] sm:$0xf]
  %v7001 = vld [vmem:[%s6 + $0x24] sm:$0xf]
  %v7002 = vld [vmem:[%s6 + $0x28] sm:$0xf]
  %v7003 = vld [vmem:[%s6 + $0x2c] sm:$0xf]
  %v7004 = vld [vmem:[%s6 + $0x30] sm:$0xf]
  %v7005 = vld [vmem:[%s6 + $0x34] sm:$0xf]
  %v7006 = vld [vmem:[%s6 + $0x38] sm:$0xf]
  %v7007 = vld [vmem:[%s6 + $0x3c] sm:$0xf]
  %v7008 = vld [vmem:[%s6 + $0x40] sm:$0xf]
  %v7009 = vld [vmem:[%s6 + $0x44] sm:$0xf]
  %v7010 = vld [vmem:[%s6 + $0x48] sm:$0xf]
  %v7011 = vld [vmem:[%s6 + $0x4c] sm:$0xf]
  %v7012 = vld [vmem:[%s6 + $0x50] sm:$0xf]
  %v7013 = vld [vmem:[%s6 + $0x54] sm:$0xf]
  %v7014 = vld [vmem:[%s6 + $0x58] sm:$0xf]
  %v7015 = vld [vmem:[%s6 + $0x5c] sm:$0xf]
  %v7016 = vld [vmem:[%s6 + $0x60] sm:$0xf]
  %v7017 = vld [vmem:[%s6 + $0x64] sm:$0xf]
  %v7018 = vld [vmem:[%s6 + $0x68] sm:$0xf]
  %v7019 = vld [vmem:[%s6 + $0x6c] sm:$0xf]
  %v7020 = vld [vmem:[%s6 + $0x70] sm:$0xf]
  %v7021 = vld [vmem:[%s6 + $0x74] sm:$0xf]
  %v7022 = vld [vmem:[%s6 + $0x78] sm:$0xf]
  %v7023 = vld [vmem:[%s6 + $0x7c] sm:$0xf]
  %v7024 = vld [vmem:[%s6 + $0x80] sm:$0xf]
  %v7025 = vld [vmem:[%s6 + $0x84] sm:$0xf]
  %v7026 = vld [vmem:[%s6 + $0x88] sm:$0xf]
  %v7027 = vld [vmem:[%s6 + $0x8c] sm:$0xf]
  %v7028 = vld [vmem:[%s7] sm:$0x1]
  %v7030 = vlaneseq
  %v7031 = vshrl.u32 %v7030, 7
  %v7032 = vsub.s32 0, %v7031
  %v7033 = vrot.slane %v7028, %v7032
  %v7071 = vunpack.c.l.b16 %v6992
  %v7072 = vunpack.c.l.b16 %v6993
  %v7073 = vunpack.c.l.b16 %v6994
  %v7074 = vunpack.c.l.b16 %v6995
  %v7075 = vunpack.c.l.b16 %v6996
  %v7076 = vunpack.c.l.b16 %v6997
  %v7077 = vunpack.c.l.b16 %v6998
  %v7078 = vunpack.c.l.b16 %v6999
  %v7079 = vunpack.c.l.b16 %v7000
  %v7080 = vunpack.c.l.b16 %v7001
  %v7081 = vunpack.c.l.b16 %v7002
  %v7082 = vunpack.c.l.b16 %v7003
  %v7083 = vunpack.c.l.b16 %v7004
  %v7084 = vunpack.c.l.b16 %v7005
  %v7085 = vunpack.c.l.b16 %v7006
  %v7086 = vunpack.c.l.b16 %v7007
  %v7087 = vunpack.c.l.b16 %v7008
  %v7088 = vunpack.c.l.b16 %v7009
  %v7089 = vunpack.c.l.b16 %v7010
  %v7090 = vunpack.c.l.b16 %v7011
  %v7091 = vunpack.c.l.b16 %v7012
  %v7092 = vunpack.c.l.b16 %v7013
  %v7093 = vunpack.c.l.b16 %v7014
  %v7094 = vunpack.c.l.b16 %v7015
  %v7095 = vunpack.c.l.b16 %v7016
  %v7096 = vunpack.c.l.b16 %v7017
  %v7097 = vunpack.c.l.b16 %v7018
  %v7098 = vunpack.c.l.b16 %v7019
  %v7099 = vunpack.c.l.b16 %v7020
  %v7100 = vunpack.c.l.b16 %v7021
  %v7101 = vunpack.c.l.b16 %v7022
  %v7102 = vunpack.c.l.b16 %v7023
  %v7103 = vunpack.c.l.b16 %v7024
  %v7104 = vunpack.c.l.b16 %v7025
  %v7105 = vunpack.c.l.b16 %v7026
  %v7106 = vunpack.c.l.b16 %v7027
  %v7107 = vpack.c.b16 %v7072, %v7071
  %v7108 = vpack.c.b16 %v7074, %v7073
  %v7109 = vpack.c.b16 %v7076, %v7075
  %v7110 = vpack.c.b16 %v7078, %v7077
  %v7111 = vpack.c.b16 %v7080, %v7079
  %v7112 = vpack.c.b16 %v7082, %v7081
  %v7113 = vpack.c.b16 %v7084, %v7083
  %v7114 = vpack.c.b16 %v7086, %v7085
  %v7115 = vpack.c.b16 %v7088, %v7087
  %v7116 = vpack.c.b16 %v7090, %v7089
  %v7117 = vpack.c.b16 %v7092, %v7091
  %v7118 = vpack.c.b16 %v7094, %v7093
  %v7119 = vpack.c.b16 %v7096, %v7095
  %v7120 = vpack.c.b16 %v7098, %v7097
  %v7121 = vpack.c.b16 %v7100, %v7099
  %v7122 = vpack.c.b16 %v7102, %v7101
  %v7123 = vpack.c.b16 %v7104, %v7103
  %v7124 = vpack.c.b16 %v7106, %v7105
  %v7143 = vsel %vm5960, %v6894, 0
  %v7146 = vsel %vm5960, %v6896, 0
  %v7149 = vsel %vm5960, %v6902, 0
  %v7152 = vsel %vm5960, %v6904, 0
  %7154 = vmatprep.subr.bf16.mxu0 0
  %7155 = vmatpush1.bf16.msra.mxu0 %v7107
  %7156 = vmatprep.subr.bf16.mxu0 0
  %7157 = vmatpush1.bf16.msra.mxu0 %v7108
  %7158 = vmatprep.subr.bf16.mxu0 0
  %7159 = vmatpush1.bf16.msra.mxu0 %v7109
  %7160 = vmatprep.subr.bf16.mxu0 0
  %7161 = vmatpush1.bf16.msra.mxu0 %v7110
  %7162 = vmatprep.subr.bf16.mxu0 0
  %7163 = vmatpush1.bf16.msra.mxu0 %v7111
  %7164 = vmatprep.subr.bf16.mxu0 0
  %7165 = vmatpush1.bf16.msra.mxu0 %v7112
  %7166 = vmatprep.subr.bf16.mxu0 0
  %7167 = vmatpush1.bf16.msra.mxu0 %v7113
  %7168 = vmatprep.subr.bf16.mxu0 0
  %7169 = vmatpush1.bf16.msra.mxu0 %v7114
  %7170 = vmatprep.subr.bf16.mxu0 0
  %7171 = vmatpush1.bf16.msra.mxu0 %v7115
  %7172 = vmatprep.subr.bf16.mxu0 0
  %7173 = vmatpush1.bf16.msra.mxu0 %v7116
  %7174 = vmatprep.subr.bf16.mxu0 0
  %7175 = vmatpush1.bf16.msra.mxu0 %v7117
  %7176 = vmatprep.subr.bf16.mxu0 0
  %7177 = vmatpush1.bf16.msra.mxu0 %v7118
  %7178 = vmatprep.subr.bf16.mxu0 0
  %7179 = vmatpush1.bf16.msra.mxu0 %v7119
  %7180 = vmatprep.subr.bf16.mxu0 0
  %7181 = vmatpush1.bf16.msra.mxu0 %v7120
  %7182 = vmatprep.subr.bf16.mxu0 0
  %7183 = vmatpush1.bf16.msra.mxu0 %v7121
  %7184 = vmatprep.subr.bf16.mxu0 0
  %7185 = vmatpush1.bf16.msra.mxu0 %v7122
  %7186 = vmatprep.mubr.bf16.mxu0 %v6981
  %7187 = vmatmul.mubr.bf16.gmra.mrb[0].mxu0 %v6026
  %v7188 = vpop.f32.mrb[0].mxu0
  %v7189 = vadd.f32 %v7033, %v7188
  %v7190 = vpop.f32.mrb[0].mxu0
  %v7191 = vpop.f32.mrb[0].mxu0
  %v7192 = vadd.f32 %v7033, %v7191
  %v7193 = vpop.f32.mrb[0].mxu0
  %7194 = vmatprep.mubr.bf16.mxu0 %v6984
  %7195 = vmatmul.mubr.bf16.gmra.mrb[0].mxu0 %v6956
  %v7196 = vpop.f32.mrb[0].mxu0
  %v7197 = vadd.f32 %v7033, %v7196
  %v7198 = vpop.f32.mrb[0].mxu0
  %v7199 = vpop.f32.mrb[0].mxu0
  %v7200 = vadd.f32 %v7033, %v7199
  %v7201 = vpop.f32.mrb[0].mxu0
  %7202 = vmatprep.mubr.bf16.mxu0 %v6987
  %7203 = vmatmul.mubr.bf16.gmra.mrb[0].mxu0 %v6958
  %v7204 = vpop.f32.mrb[0].mxu0
  %v7205 = vadd.f32 %v7033, %v7204
  %v7206 = vpop.f32.mrb[0].mxu0
  %v7207 = vpop.f32.mrb[0].mxu0
  %v7208 = vadd.f32 %v7033, %v7207
  %v7209 = vpop.f32.mrb[0].mxu0
  %7210 = vmatprep.mubr.bf16.mxu0 %v6990
  %7211 = vmatmul.mubr.bf16.gmra.mrb[0].mxu0 %v6961
  %v7212 = vpop.f32.mrb[0].mxu0
  %v7213 = vadd.f32 %v7033, %v7212
  %v7214 = vpop.f32.mrb[0].mxu0
  %v7215 = vpop.f32.mrb[0].mxu0
  %v7216 = vadd.f32 %v7033, %v7215
  %v7217 = vpop.f32.mrb[0].mxu0
  %7218 = vdwg.mxu0
  %7219 = vmatprep.subr.bf16.mxu0 0
  %7220 = vmatpush1.bf16.msra.mxu0 %v7123
  %7221 = vmatprep.subr.bf16.mxu0 0
  %7222 = vmatpush1.bf16.msra.mxu0 %v7124
  %7223 = vmatprep.subr.bf16.mxu0 0
  %7224 = vmatpush1.bf16.msra.mxu0 0
  %7225 = vmatprep.subr.bf16.mxu0 0
  %7226 = vmatpush1.bf16.msra.mxu0 0
  %7227 = vmatprep.subr.bf16.mxu0 0
  %7228 = vmatpush1.bf16.msra.mxu0 0
  %7229 = vmatprep.subr.bf16.mxu0 0
  %7230 = vmatpush1.bf16.msra.mxu0 0
  %7231 = vmatprep.subr.bf16.mxu0 0
  %7232 = vmatpush1.bf16.msra.mxu0 0
  %7233 = vmatprep.subr.bf16.mxu0 0
  %7234 = vmatpush1.bf16.msra.mxu0 0
  %7235 = vmatprep.subr.bf16.mxu0 0
  %7236 = vmatpush1.bf16.msra.mxu0 0
  %7237 = vmatprep.subr.bf16.mxu0 0
  %7238 = vmatpush1.bf16.msra.mxu0 0
  %7239 = vmatprep.subr.bf16.mxu0 0
  %7240 = vmatpush1.bf16.msra.mxu0 0
  %7241 = vmatprep.subr.bf16.mxu0 0
  %7242 = vmatpush1.bf16.msra.mxu0 0
  %7243 = vmatprep.subr.bf16.mxu0 0
  %7244 = vmatpush1.bf16.msra.mxu0 0
  %7245 = vmatprep.subr.bf16.mxu0 0
  %7246 = vmatpush1.bf16.msra.mxu0 0
  %7247 = vmatprep.subr.bf16.mxu0 0
  %7248 = vmatpush1.bf16.msra.mxu0 0
  %7249 = vmatprep.subr.bf16.mxu0 0
  %7250 = vmatpush1.bf16.msra.mxu0 0
  %7251 = vmatprep.mubr.bf16.mxu0 0
  %7252 = vmatmul.mubr.bf16.gmra.mrb[0].mxu0 %v7143
  %v7253 = vpop.f32.mrb[0].mxu0
  %v7254 = vadd.f32 %v7189, %v7253
  %v7255 = vpop.f32.mrb[0].mxu0
  %v7256 = vpop.f32.mrb[0].mxu0
  %v7257 = vadd.f32 %v7192, %v7256
  %v7258 = vpop.f32.mrb[0].mxu0
  %7259 = vmatprep.mubr.bf16.mxu0 0
  %7260 = vmatmul.mubr.bf16.gmra.mrb[0].mxu0 %v7146
  %v7261 = vpop.f32.mrb[0].mxu0
  %v7262 = vadd.f32 %v7197, %v7261
  %v7263 = vpop.f32.mrb[0].mxu0
  %v7264 = vpop.f32.mrb[0].mxu0
  %v7265 = vadd.f32 %v7200, %v7264
  %v7266 = vpop.f32.mrb[0].mxu0
  %7267 = vmatprep.mubr.bf16.mxu0 0
  %7268 = vmatmul.mubr.bf16.gmra.mrb[0].mxu0 %v7149
  %v7269 = vpop.f32.mrb[0].mxu0
  %v7270 = vadd.f32 %v7205, %v7269
  %v7271 = vpop.f32.mrb[0].mxu0
  %v7272 = vpop.f32.mrb[0].mxu0
  %v7273 = vadd.f32 %v7208, %v7272
  %v7274 = vpop.f32.mrb[0].mxu0
  %7275 = vmatprep.mubr.bf16.mxu0 0
  %7276 = vmatmul.mubr.bf16.gmra.mrb[0].mxu0 %v7152
  %v7277 = vpop.f32.mrb[0].mxu0
  %v7278 = vadd.f32 %v7213, %v7277
  %v7279 = vpop.f32.mrb[0].mxu0
  %v7280 = vpop.f32.mrb[0].mxu0
  %v7281 = vadd.f32 %v7216, %v7280
  %v7282 = vpop.f32.mrb[0].mxu0
  %7283 = vdwg.mxu0
  %vm7284 = vcmp.gt.f32.partialorder %v7254, 0.0
  %vm7285 = vcmp.gt.f32.partialorder %v7257, 0.0
  %vm7286 = vcmp.gt.f32.partialorder %v7262, 0.0
  %vm7287 = vcmp.gt.f32.partialorder %v7265, 0.0
  %vm7288 = vcmp.gt.f32.partialorder %v7270, 0.0
  %vm7289 = vcmp.gt.f32.partialorder %v7273, 0.0
  %vm7290 = vcmp.gt.f32.partialorder %v7278, 0.0
  %vm7291 = vcmp.gt.f32.partialorder %v7281, 0.0
  %v7292 = vmin.f32 %v7254, 0.0
  %v7293 = vmin.f32 %v7257, 0.0
  %v7294 = vmin.f32 %v7262, 0.0
  %v7295 = vmin.f32 %v7265, 0.0
  %v7296 = vmin.f32 %v7270, 0.0
  %v7297 = vmin.f32 %v7273, 0.0
  %v7298 = vmin.f32 %v7278, 0.0
  %v7299 = vmin.f32 %v7281, 0.0
  %v7300 = vmul.f32 %v7292, 1.442695
  %v7301 = vpow.pop %v7300
  %v7302 = vmul.f32 %v7293, 1.442695
  %v7303 = vpow.pop %v7302
  %v7304 = vmul.f32 %v7294, 1.442695
  %v7305 = vpow.pop %v7304
  %v7306 = vmul.f32 %v7295, 1.442695
  %v7307 = vpow.pop %v7306
  %v7308 = vmul.f32 %v7296, 1.442695
  %v7309 = vpow.pop %v7308
  %v7310 = vmul.f32 %v7297, 1.442695
  %v7311 = vpow.pop %v7310
  %v7312 = vmul.f32 %v7298, 1.442695
  %v7313 = vpow.pop %v7312
  %v7314 = vmul.f32 %v7299, 1.442695
  %v7315 = vpow.pop %v7314
  %v7316 = vsub.f32 %v7301, 1.0
  %v7317 = vsub.f32 %v7303, 1.0
  %v7318 = vsub.f32 %v7305, 1.0
  %v7319 = vsub.f32 %v7307, 1.0
  %v7320 = vsub.f32 %v7309, 1.0
  %v7321 = vsub.f32 %v7311, 1.0
  %v7322 = vsub.f32 %v7313, 1.0
  %v7323 = vsub.f32 %v7315, 1.0
  %v7324 = vsel %vm7284, %v7254, %v7316
  %v7325 = vsel %vm7285, %v7257, %v7317
  %v7326 = vsel %vm7286, %v7262, %v7318
  %v7327 = vsel %vm7287, %v7265, %v7319
  %v7328 = vsel %vm7288, %v7270, %v7320
  %v7329 = vsel %vm7289, %v7273, %v7321
  %v7330 = vsel %vm7290, %v7278, %v7322
  %v7331 = vsel %vm7291, %v7281, %v7323
  %v7332 = vpack.c.bf16 %v7325, %v7324
  %v7333 = vpack.c.bf16 %v7327, %v7326
  %v7334 = vpack.c.bf16 %v7329, %v7328
  %v7335 = vpack.c.bf16 %v7331, %v7330
  %7337 = vrot.lane.b32.xlu0 %v7333, 32
  %v7338 = vpop.permute.xlu0 %7337
  %7340 = vrot.lane.b32.xlu0 %v7334, 96
  %v7341 = vpop.permute.xlu0 %7340
  %v7344 = vsel %vm5960, %v7332, %v7338
  %v7345 = vsel %vm5997, %v7344, %v5816
  %v7347 = vsel %vm6024, %v7345, %v7341
  %v7349 = vld [vmem:[%s8] sm:$0xf]
  %v7350 = vld [vmem:[%s8 + $0x4] sm:$0xf]
  %v7351 = vld [vmem:[%s8 + $0x8] sm:$0xf]
  %v7352 = vld [vmem:[%s8 + $0xc] sm:$0xf]
  %v7353 = vld [vmem:[%s8 + $0x10] sm:$0xf]
  %v7354 = vld [vmem:[%s8 + $0x14] sm:$0xf]
  %v7355 = vld [vmem:[%s8 + $0x18] sm:$0xf]
  %v7356 = vld [vmem:[%s8 + $0x1c] sm:$0xf]
  %v7357 = vld [vmem:[%s8 + $0x20] sm:$0xf]
  %v7358 = vld [vmem:[%s8 + $0x24] sm:$0xf]
  %v7359 = vld [vmem:[%s8 + $0x28] sm:$0xf]
  %v7360 = vld [vmem:[%s8 + $0x2c] sm:$0xf]
  %v7361 = vld [vmem:[%s8 + $0x30] sm:$0xf]
  %v7362 = vld [vmem:[%s8 + $0x34] sm:$0xf]
  %v7363 = vld [vmem:[%s8 + $0x38] sm:$0xf]
  %v7364 = vld [vmem:[%s8 + $0x3c] sm:$0xf]
  %v7365 = vld [vmem:[%s8 + $0x40] sm:$0xf]
  %v7366 = vld [vmem:[%s8 + $0x44] sm:$0xf]
  %v7367 = vld [vmem:[%s8 + $0x48] sm:$0xf]
  %v7368 = vld [vmem:[%s8 + $0x4c] sm:$0xf]
  %v7369 = vld [vmem:[%s8 + $0x50] sm:$0xf]
  %v7370 = vld [vmem:[%s8 + $0x54] sm:$0xf]
  %v7371 = vld [vmem:[%s8 + $0x58] sm:$0xf]
  %v7372 = vld [vmem:[%s8 + $0x5c] sm:$0xf]
  %v7373 = vld [vmem:[%s8 + $0x60] sm:$0xf]
  %v7374 = vld [vmem:[%s8 + $0x64] sm:$0xf]
  %v7375 = vld [vmem:[%s8 + $0x68] sm:$0xf]
  %v7376 = vld [vmem:[%s8 + $0x6c] sm:$0xf]
  %v7377 = vld [vmem:[%s8 + $0x70] sm:$0xf]
  %v7378 = vld [vmem:[%s8 + $0x74] sm:$0xf]
  %v7379 = vld [vmem:[%s8 + $0x78] sm:$0xf]
  %v7380 = vld [vmem:[%s8 + $0x7c] sm:$0xf]
  %v7381 = vld [vmem:[%s8 + $0x80] sm:$0xf]
  %v7382 = vld [vmem:[%s8 + $0x84] sm:$0xf]
  %v7383 = vld [vmem:[%s8 + $0x88] sm:$0xf]
  %v7384 = vld [vmem:[%s8 + $0x8c] sm:$0xf]
  %v7385 = vld [vmem:[%s9] sm:$0x1]
  %v7387 = vlaneseq
  %v7388 = vshrl.u32 %v7387, 7
  %v7389 = vsub.s32 0, %v7388
  %v7390 = vrot.slane %v7385, %v7389
  %v7428 = vunpack.c.l.b16 %v7349
  %v7429 = vunpack.c.l.b16 %v7350
  %v7430 = vunpack.c.l.b16 %v7351
  %v7431 = vunpack.c.l.b16 %v7352
  %v7432 = vunpack.c.l.b16 %v7353
  %v7433 = vunpack.c.l.b16 %v7354
  %v7434 = vunpack.c.l.b16 %v7355
  %v7435 = vunpack.c.l.b16 %v7356
  %v7436 = vunpack.c.l.b16 %v7357
  %v7437 = vunpack.c.l.b16 %v7358
  %v7438 = vunpack.c.l.b16 %v7359
  %v7439 = vunpack.c.l.b16 %v7360
  %v7440 = vunpack.c.l.b16 %v7361
  %v7441 = vunpack.c.l.b16 %v7362
  %v7442 = vunpack.c.l.b16 %v7363
  %v7443 = vunpack.c.l.b16 %v7364
  %v7444 = vunpack.c.l.b16 %v7365
  %v7445 = vunpack.c.l.b16 %v7366
  %v7446 = vunpack.c.l.b16 %v7367
  %v7447 = vunpack.c.l.b16 %v7368
  %v7448 = vunpack.c.l.b16 %v7369
  %v7449 = vunpack.c.l.b16 %v7370
  %v7450 = vunpack.c.l.b16 %v7371
  %v7451 = vunpack.c.l.b16 %v7372
  %v7452 = vunpack.c.l.b16 %v7373
  %v7453 = vunpack.c.l.b16 %v7374
  %v7454 = vunpack.c.l.b16 %v7375
  %v7455 = vunpack.c.l.b16 %v7376
  %v7456 = vunpack.c.l.b16 %v7377
  %v7457 = vunpack.c.l.b16 %v7378
  %v7458 = vunpack.c.l.b16 %v7379
  %v7459 = vunpack.c.l.b16 %v7380
  %v7460 = vunpack.c.l.b16 %v7381
  %v7461 = vunpack.c.l.b16 %v7382
  %v7462 = vunpack.c.l.b16 %v7383
  %v7463 = vunpack.c.l.b16 %v7384
  %v7464 = vpack.c.b16 %v7429, %v7428
  %v7465 = vpack.c.b16 %v7431, %v7430
  %v7466 = vpack.c.b16 %v7433, %v7432
  %v7467 = vpack.c.b16 %v7435, %v7434
  %v7468 = vpack.c.b16 %v7437, %v7436
  %v7469 = vpack.c.b16 %v7439, %v7438
  %v7470 = vpack.c.b16 %v7441, %v7440
  %v7471 = vpack.c.b16 %v7443, %v7442
  %v7472 = vpack.c.b16 %v7445, %v7444
  %v7473 = vpack.c.b16 %v7447, %v7446
  %v7474 = vpack.c.b16 %v7449, %v7448
  %v7475 = vpack.c.b16 %v7451, %v7450
  %v7476 = vpack.c.b16 %v7453, %v7452
  %v7477 = vpack.c.b16 %v7455, %v7454
  %v7478 = vpack.c.b16 %v7457, %v7456
  %v7479 = vpack.c.b16 %v7459, %v7458
  %v7480 = vpack.c.b16 %v7461, %v7460
  %v7481 = vpack.c.b16 %v7463, %v7462
  %v7501 = vsel %vm5960, %v7335, 0
  %7503 = vmatprep.subr.bf16.mxu0 0
  %7504 = vmatpush1.bf16.msra.mxu0 %v7464
  %7505 = vmatprep.subr.bf16.mxu0 0
  %7506 = vmatpush1.bf16.msra.mxu0 %v7465
  %7507 = vmatprep.subr.bf16.mxu0 0
  %7508 = vmatpush1.bf16.msra.mxu0 %v7466
  %7509 = vmatprep.subr.bf16.mxu0 0
  %7510 = vmatpush1.bf16.msra.mxu0 %v7467
  %7511 = vmatprep.subr.bf16.mxu0 0
  %7512 = vmatpush1.bf16.msra.mxu0 %v7468
  %7513 = vmatprep.subr.bf16.mxu0 0
  %7514 = vmatpush1.bf16.msra.mxu0 %v7469
  %7515 = vmatprep.subr.bf16.mxu0 0
  %7516 = vmatpush1.bf16.msra.mxu0 %v7470
  %7517 = vmatprep.subr.bf16.mxu0 0
  %7518 = vmatpush1.bf16.msra.mxu0 %v7471
  %7519 = vmatprep.subr.bf16.mxu0 0
  %7520 = vmatpush1.bf16.msra.mxu0 %v7472
  %7521 = vmatprep.subr.bf16.mxu0 0
  %7522 = vmatpush1.bf16.msra.mxu0 %v7473
  %7523 = vmatprep.subr.bf16.mxu0 0
  %7524 = vmatpush1.bf16.msra.mxu0 %v7474
  %7525 = vmatprep.subr.bf16.mxu0 0
  %7526 = vmatpush1.bf16.msra.mxu0 %v7475
  %7527 = vmatprep.subr.bf16.mxu0 0
  %7528 = vmatpush1.bf16.msra.mxu0 %v7476
  %7529 = vmatprep.subr.bf16.mxu0 0
  %7530 = vmatpush1.bf16.msra.mxu0 %v7477
  %7531 = vmatprep.subr.bf16.mxu0 0
  %7532 = vmatpush1.bf16.msra.mxu0 %v7478
  %7533 = vmatprep.subr.bf16.mxu0 0
  %7534 = vmatpush1.bf16.msra.mxu0 %v7479
  %7535 = vmatprep.mubr.bf16.mxu0 %v7347
  %7536 = vmatmul.mubr.bf16.gmra.mrb[0].mxu0 %v6026
  %v7537 = vpop.f32.mrb[0].mxu0
  %v7538 = vadd.f32 %v7390, %v7537
  %v7539 = vpop.f32.mrb[0].mxu0
  %v7540 = vpop.f32.mrb[0].mxu0
  %v7541 = vadd.f32 %v7390, %v7540
  %v7542 = vpop.f32.mrb[0].mxu0
  %7543 = vdwg.mxu0
  %7544 = vmatprep.subr.bf16.mxu0 0
  %7545 = vmatpush1.bf16.msra.mxu0 %v7480
  %7546 = vmatprep.subr.bf16.mxu0 0
  %7547 = vmatpush1.bf16.msra.mxu0 %v7481
  %7548 = vmatprep.subr.bf16.mxu0 0
  %7549 = vmatpush1.bf16.msra.mxu0 0
  %7550 = vmatprep.subr.bf16.mxu0 0
  %7551 = vmatpush1.bf16.msra.mxu0 0
  %7552 = vmatprep.subr.bf16.mxu0 0
  %7553 = vmatpush1.bf16.msra.mxu0 0
  %7554 = vmatprep.subr.bf16.mxu0 0
  %7555 = vmatpush1.bf16.msra.mxu0 0
  %7556 = vmatprep.subr.bf16.mxu0 0
  %7557 = vmatpush1.bf16.msra.mxu0 0
  %7558 = vmatprep.subr.bf16.mxu0 0
  %7559 = vmatpush1.bf16.msra.mxu0 0
  %7560 = vmatprep.subr.bf16.mxu0 0
  %7561 = vmatpush1.bf16.msra.mxu0 0
  %7562 = vmatprep.subr.bf16.mxu0 0
  %7563 = vmatpush1.bf16.msra.mxu0 0
  %7564 = vmatprep.subr.bf16.mxu0 0
  %7565 = vmatpush1.bf16.msra.mxu0 0
  %7566 = vmatprep.subr.bf16.mxu0 0
  %7567 = vmatpush1.bf16.msra.mxu0 0
  %7568 = vmatprep.subr.bf16.mxu0 0
  %7569 = vmatpush1.bf16.msra.mxu0 0
  %7570 = vmatprep.subr.bf16.mxu0 0
  %7571 = vmatpush1.bf16.msra.mxu0 0
  %7572 = vmatprep.subr.bf16.mxu0 0
  %7573 = vmatpush1.bf16.msra.mxu0 0
  %7574 = vmatprep.subr.bf16.mxu0 0
  %7575 = vmatpush1.bf16.msra.mxu0 0
  %7576 = vmatprep.mubr.bf16.mxu0 0
  %7577 = vmatmul.mubr.bf16.gmra.mrb[0].mxu0 %v7501
  %v7578 = vpop.f32.mrb[0].mxu0
  %v7579 = vadd.f32 %v7538, %v7578
  %v7580 = vpop.f32.mrb[0].mxu0
  %v7581 = vpop.f32.mrb[0].mxu0
  %v7582 = vadd.f32 %v7541, %v7581
  %v7583 = vpop.f32.mrb[0].mxu0
  %7584 = vdwg.mxu0
  %vm7585 = vcmp.gt.f32.partialorder %v7579, 0.0
  %vm7586 = vcmp.gt.f32.partialorder %v7582, 0.0
  %v7587 = vmin.f32 %v7579, 0.0
  %v7588 = vmin.f32 %v7582, 0.0
  %v7589 = vmul.f32 %v7587, 1.442695
  %v7590 = vpow.pop %v7589
  %v7591 = vmul.f32 %v7588, 1.442695
  %v7592 = vpow.pop %v7591
  %v7593 = vsub.f32 %v7590, 1.0
  %v7594 = vsub.f32 %v7592, 1.0
  %v7595 = vsel %vm7585, %v7579, %v7593
  %v7596 = vsel %vm7586, %v7582, %v7594
  %v7597 = vpack.c.bf16 %v7596, %v7595
  %v7598 = vld [vmem:[%s10 + $0x40] sm:$0xf]
  %v7599 = vld [vmem:[%s10 + $0x44] sm:$0xf]
  %v7600 = vld [vmem:[%s10 + $0x48] sm:$0xf]
  %v7601 = vld [vmem:[%s10 + $0x4c] sm:$0xf]
  %v7602 = vld [vmem:[%s11] sm:$0x1]
  %v7604 = vlaneseq
  %v7605 = vshrl.u32 %v7604, 7
  %v7606 = vsub.s32 0, %v7605
  %v7607 = vrot.slane %v7602, %v7606
  %v7613 = vunpack.c.l.b16 %v7598
  %v7614 = vunpack.c.l.b16 %v7599
  %v7615 = vunpack.c.l.b16 %v7600
  %v7616 = vunpack.c.l.b16 %v7601
  %v7617 = vpack.c.b16 %v7614, %v7613
  %v7618 = vpack.c.b16 %v7616, %v7615
  %v7622 = vsel %vm5960, %v7597, 0
  %7624 = vmatprep.subr.bf16.mxu0 0
  %7625 = vmatpush1.bf16.msra.mxu0 %v7617
  %7626 = vmatprep.subr.bf16.mxu0 0
  %7627 = vmatpush1.bf16.msra.mxu0 %v7618
  %7628 = vmatprep.subr.bf16.mxu0 0
  %7629 = vmatpush1.bf16.msra.mxu0 0
  %7630 = vmatprep.subr.bf16.mxu0 0
  %7631 = vmatpush1.bf16.msra.mxu0 0
  %7632 = vmatprep.subr.bf16.mxu0 0
  %7633 = vmatpush1.bf16.msra.mxu0 0
  %7634 = vmatprep.subr.bf16.mxu0 0
  %7635 = vmatpush1.bf16.msra.mxu0 0
  %7636 = vmatprep.subr.bf16.mxu0 0
  %7637 = vmatpush1.bf16.msra.mxu0 0
  %7638 = vmatprep.subr.bf16.mxu0 0
  %7639 = vmatpush1.bf16.msra.mxu0 0
  %7640 = vmatprep.subr.bf16.mxu0 0
  %7641 = vmatpush1.bf16.msra.mxu0 0
  %7642 = vmatprep.subr.bf16.mxu0 0
  %7643 = vmatpush1.bf16.msra.mxu0 0
  %7644 = vmatprep.subr.bf16.mxu0 0
  %7645 = vmatpush1.bf16.msra.mxu0 0
  %7646 = vmatprep.subr.bf16.mxu0 0
  %7647 = vmatpush1.bf16.msra.mxu0 0
  %7648 = vmatprep.subr.bf16.mxu0 0
  %7649 = vmatpush1.bf16.msra.mxu0 0
  %7650 = vmatprep.subr.bf16.mxu0 0
  %7651 = vmatpush1.bf16.msra.mxu0 0
  %7652 = vmatprep.subr.bf16.mxu0 0
  %7653 = vmatpush1.bf16.msra.mxu0 0
  %7654 = vmatprep.subr.bf16.mxu0 0
  %7655 = vmatpush1.bf16.msra.mxu0 0
  %7656 = vmatprep.mubr.bf16.mxu0 0
  %7657 = vmatmul.mubr.bf16.gmra.mrb[0].mxu0 %v7622
  %v7658 = vpop.f32.mrb[0].mxu0
  %v7659 = vadd.f32 %v7607, %v7658
  %v7660 = vpop.f32.mrb[0].mxu0
  %v7661 = vpop.f32.mrb[0].mxu0
  %v7662 = vadd.f32 %v7607, %v7661
  %v7663 = vpop.f32.mrb[0].mxu0
  %7664 = vdwg.mxu0
  %vm7665 = vcmp.gt.f32.partialorder %v7659, 0.0
  %vm7666 = vcmp.gt.f32.partialorder %v7662, 0.0
  %v7667 = vmin.f32 %v7659, 0.0
  %v7668 = vmin.f32 %v7662, 0.0
  %v7669 = vmul.f32 %v7667, 1.442695
  %v7670 = vpow.pop %v7669
  %v7671 = vmul.f32 %v7668, 1.442695
  %v7672 = vpow.pop %v7671
  %v7673 = vsub.f32 %v7670, 1.0
  %v7674 = vsub.f32 %v7672, 1.0
  %v7675 = vsel %vm7665, %v7659, %v7673
  %v7676 = vsel %vm7666, %v7662, %v7674
  %v7677 = vpack.c.bf16 %v7676, %v7675
  %v7678 = vld [vmem:[%s1] sm:$0xf]
  %v7679 = vld [vmem:[%s1 + $0x4] sm:$0xf]
  %v7680 = vld [vmem:[%s12] sm:$0xf]
  %v7681 = vld [vmem:[%s12 + $0x4] sm:$0xf]
  %v7682 = vld [vmem:[%s12 + $0x8] sm:$0xf]
  %v7683 = vld [vmem:[%s12 + $0xc] sm:$0xf]
  %v7684 = vld [vmem:[%s13] sm:$0xf]
  %v7685 = vld [vmem:[%s13 + $0x4] sm:$0xf]
  %v7686 = vld [vmem:[%s13 + $0x8] sm:$0x1]
  %v7689 = vunpack.c.l.b16 %v7678
  %v7690 = vunpack.c.l.b16 %v7679
  %v7691 = vpack.c.b16 %v7690, %v7689
  %v7695 = vunpack.c.l.b16 %v7684
  %v7696 = vunpack.c.l.b16 %v7685
  %v7697 = vunpack.c.l.b16 %v7686
  %v7698 = vpack.c.b16 %v7696, %v7695
  %v7699 = vpack.c.b16 %v7697, %v7697
  %vm7701 = vcmask 146432
  %v7703 = vsel %vm7701, %v7691, 0
  %vm7705 = vcmask 1040384
  %v7707 = vsel %vm7705, %v7699, 0
  %7709 = vmatprep.subr.bf16.mxu0 0
  %7710 = vmatpush1.bf16.msra.mxu0 %v7698
  %7711 = vmatprep.subr.bf16.mxu0 0
  %7712 = vmatpush1.bf16.msra.mxu0 %v7707
  %7713 = vmatprep.subr.bf16.mxu0 0
  %7714 = vmatpush1.bf16.msra.mxu0 0
  %7715 = vmatprep.subr.bf16.mxu0 0
  %7716 = vmatpush1.bf16.msra.mxu0 0
  %7717 = vmatprep.subr.bf16.mxu0 0
  %7718 = vmatpush1.bf16.msra.mxu0 0
  %7719 = vmatprep.subr.bf16.mxu0 0
  %7720 = vmatpush1.bf16.msra.mxu0 0
  %7721 = vmatprep.subr.bf16.mxu0 0
  %7722 = vmatpush1.bf16.msra.mxu0 0
  %7723 = vmatprep.subr.bf16.mxu0 0
  %7724 = vmatpush1.bf16.msra.mxu0 0
  %7725 = vmatprep.subr.bf16.mxu0 0
  %7726 = vmatpush1.bf16.msra.mxu0 0
  %7727 = vmatprep.subr.bf16.mxu0 0
  %7728 = vmatpush1.bf16.msra.mxu0 0
  %7729 = vmatprep.subr.bf16.mxu0 0
  %7730 = vmatpush1.bf16.msra.mxu0 0
  %7731 = vmatprep.subr.bf16.mxu0 0
  %7732 = vmatpush1.bf16.msra.mxu0 0
  %7733 = vmatprep.subr.bf16.mxu0 0
  %7734 = vmatpush1.bf16.msra.mxu0 0
  %7735 = vmatprep.subr.bf16.mxu0 0
  %7736 = vmatpush1.bf16.msra.mxu0 0
  %7737 = vmatprep.subr.bf16.mxu0 0
  %7738 = vmatpush1.bf16.msra.mxu0 0
  %7739 = vmatprep.subr.bf16.mxu0 0
  %7740 = vmatpush1.bf16.msra.mxu0 0
  %7741 = vmatprep.mubr.bf16.mxu0 0
  %7742 = vmatmul.mubr.bf16.gmra.mrb[0].mxu0 %v7703
  %v7743 = vpop.f32.mrb[0].mxu0
  %v7744 = vadd.f32 0.0, %v7743
  %v7745 = vpop.f32.mrb[0].mxu0
  %v7746 = vpop.f32.mrb[0].mxu0
  %v7747 = vadd.f32 0.0, %v7746
  %v7748 = vpop.f32.mrb[0].mxu0
  %7749 = vdwg.mxu0
  %v7754 = vunpack.c.l.b16 %v7680
  %v7755 = vunpack.c.l.b16 %v7681
  %v7756 = vunpack.c.l.b16 %v7682
  %v7757 = vunpack.c.l.b16 %v7683
  %v7758 = vpack.c.b16 %v7755, %v7754
  %v7759 = vpack.c.b16 %v7757, %v7756
  %v7763 = vsel %vm5960, %v7677, 0
  %7765 = vmatprep.subr.bf16.mxu0 0
  %7766 = vmatpush1.bf16.msra.mxu0 %v7758
  %7767 = vmatprep.subr.bf16.mxu0 0
  %7768 = vmatpush1.bf16.msra.mxu0 %v7759
  %7769 = vmatprep.subr.bf16.mxu0 0
  %7770 = vmatpush1.bf16.msra.mxu0 0
  %7771 = vmatprep.subr.bf16.mxu0 0
  %7772 = vmatpush1.bf16.msra.mxu0 0
  %7773 = vmatprep.subr.bf16.mxu0 0
  %7774 = vmatpush1.bf16.msra.mxu0 0
  %7775 = vmatprep.subr.bf16.mxu0 0
  %7776 = vmatpush1.bf16.msra.mxu0 0
  %7777 = vmatprep.subr.bf16.mxu0 0
  %7778 = vmatpush1.bf16.msra.mxu0 0
  %7779 = vmatprep.subr.bf16.mxu0 0
  %7780 = vmatpush1.bf16.msra.mxu0 0
  %7781 = vmatprep.subr.bf16.mxu0 0
  %7782 = vmatpush1.bf16.msra.mxu0 0
  %7783 = vmatprep.subr.bf16.mxu0 0
  %7784 = vmatpush1.bf16.msra.mxu0 0
  %7785 = vmatprep.subr.bf16.mxu0 0
  %7786 = vmatpush1.bf16.msra.mxu0 0
  %7787 = vmatprep.subr.bf16.mxu0 0
  %7788 = vmatpush1.bf16.msra.mxu0 0
  %7789 = vmatprep.subr.bf16.mxu0 0
  %7790 = vmatpush1.bf16.msra.mxu0 0
  %7791 = vmatprep.subr.bf16.mxu0 0
  %7792 = vmatpush1.bf16.msra.mxu0 0
  %7793 = vmatprep.subr.bf16.mxu0 0
  %7794 = vmatpush1.bf16.msra.mxu0 0
  %7795 = vmatprep.subr.bf16.mxu0 0
  %7796 = vmatpush1.bf16.msra.mxu0 0
  %7797 = vmatprep.mubr.bf16.mxu0 0
  %7798 = vmatmul.mubr.bf16.gmra.mrb[0].mxu0 %v7763
  %v7799 = vpop.f32.mrb[0].mxu0
  %v7800 = vadd.f32 %v7744, %v7799
  %v7801 = vpop.f32.mrb[0].mxu0
  %v7802 = vpop.f32.mrb[0].mxu0
  %v7803 = vadd.f32 %v7747, %v7802
  %v7804 = vpop.f32.mrb[0].mxu0
  %7805 = vdwg.mxu0
  %v7806 = vld [vmem:[%s14] sm:$0x1]
  %v7808 = vlaneseq
  %v7809 = vshrl.u32 %v7808, 7
  %v7810 = vsub.s32 0, %v7809
  %v7811 = vrot.slane %v7806, %v7810
  %v7813 = vadd.f32 %v7800, %v7811
  %v7814 = vadd.f32 %v7803, %v7811
  %v7815 = vmax.f32 %v7813, 0.0
  %v7816 = vmax.f32 %v7814, 0.0
  %v7817 = vpack.c.bf16 %v7816, %v7815
  %v7818 = vld [vmem:[%s15] sm:$0xf]
  %v7819 = vld [vmem:[%s15 + $0x4] sm:$0xf]
  %v7820 = vld [vmem:[%s15 + $0x8] sm:$0xf]
  %v7821 = vld [vmem:[%s15 + $0xc] sm:$0xf]
  %v7822 = vld [vmem:[%s15 + $0x10] sm:$0xf]
  %v7823 = vld [vmem:[%s15 + $0x14] sm:$0xf]
  %v7824 = vld [vmem:[%s15 + $0x18] sm:$0xf]
  %v7825 = vld [vmem:[%s15 + $0x1c] sm:$0xf]
  %v7826 = vld [vmem:[%s15 + $0x20] sm:$0xf]
  %v7827 = vld [vmem:[%s15 + $0x24] sm:$0xf]
  %v7828 = vld [vmem:[%s15 + $0x28] sm:$0xf]
  %v7829 = vld [vmem:[%s15 + $0x2c] sm:$0xf]
  %v7830 = vld [vmem:[%s15 + $0x30] sm:$0xf]
  %v7831 = vld [vmem:[%s15 + $0x34] sm:$0xf]
  %v7832 = vld [vmem:[%s15 + $0x38] sm:$0xf]
  %v7833 = vld [vmem:[%s15 + $0x3c] sm:$0xf]
  %v7834 = vld [vmem:[%s16] sm:$0x1]
  %v7836 = vlaneseq
  %v7837 = vshrl.u32 %v7836, 7
  %v7838 = vsub.s32 0, %v7837
  %v7839 = vrot.slane %v7834, %v7838
  %v7857 = vunpack.c.l.b16 %v7818
  %v7858 = vunpack.c.l.b16 %v7819
  %v7859 = vunpack.c.l.b16 %v7820
  %v7860 = vunpack.c.l.b16 %v7821
  %v7861 = vunpack.c.l.b16 %v7822
  %v7862 = vunpack.c.l.b16 %v7823
  %v7863 = vunpack.c.l.b16 %v7824
  %v7864 = vunpack.c.l.b16 %v7825
  %v7865 = vunpack.c.l.b16 %v7826
  %v7866 = vunpack.c.l.b16 %v7827
  %v7867 = vunpack.c.l.b16 %v7828
  %v7868 = vunpack.c.l.b16 %v7829
  %v7869 = vunpack.c.l.b16 %v7830
  %v7870 = vunpack.c.l.b16 %v7831
  %v7871 = vunpack.c.l.b16 %v7832
  %v7872 = vunpack.c.l.b16 %v7833
  %v7873 = vpack.c.b16 %v7858, %v7857
  %v7874 = vpack.c.b16 %v7860, %v7859
  %v7875 = vpack.c.b16 %v7862, %v7861
  %v7876 = vpack.c.b16 %v7864, %v7863
  %v7877 = vpack.c.b16 %v7866, %v7865
  %v7878 = vpack.c.b16 %v7868, %v7867
  %v7879 = vpack.c.b16 %v7870, %v7869
  %v7880 = vpack.c.b16 %v7872, %v7871
  %7889 = vmatprep.subr.bf16.mxu0 0
  %7890 = vmatpush1.bf16.msra.mxu0 %v7873
  %7891 = vmatprep.subr.bf16.mxu0 0
  %7892 = vmatpush1.bf16.msra.mxu0 %v7874
  %7893 = vmatprep.subr.bf16.mxu0 0
  %7894 = vmatpush1.bf16.msra.mxu0 %v7875
  %7895 = vmatprep.subr.bf16.mxu0 0
  %7896 = vmatpush1.bf16.msra.mxu0 %v7876
  %7897 = vmatprep.subr.bf16.mxu0 0
  %7898 = vmatpush1.bf16.msra.mxu0 %v7877
  %7899 = vmatprep.subr.bf16.mxu0 0
  %7900 = vmatpush1.bf16.msra.mxu0 %v7878
  %7901 = vmatprep.subr.bf16.mxu0 0
  %7902 = vmatpush1.bf16.msra.mxu0 %v7879
  %7903 = vmatprep.subr.bf16.mxu0 0
  %7904 = vmatpush1.bf16.msra.mxu0 %v7880
  %7905 = vmatprep.subr.bf16.mxu0 0
  %7906 = vmatpush1.bf16.msra.mxu0 0
  %7907 = vmatprep.subr.bf16.mxu0 0
  %7908 = vmatpush1.bf16.msra.mxu0 0
  %7909 = vmatprep.subr.bf16.mxu0 0
  %7910 = vmatpush1.bf16.msra.mxu0 0
  %7911 = vmatprep.subr.bf16.mxu0 0
  %7912 = vmatpush1.bf16.msra.mxu0 0
  %7913 = vmatprep.subr.bf16.mxu0 0
  %7914 = vmatpush1.bf16.msra.mxu0 0
  %7915 = vmatprep.subr.bf16.mxu0 0
  %7916 = vmatpush1.bf16.msra.mxu0 0
  %7917 = vmatprep.subr.bf16.mxu0 0
  %7918 = vmatpush1.bf16.msra.mxu0 0
  %7919 = vmatprep.subr.bf16.mxu0 0
  %7920 = vmatpush1.bf16.msra.mxu0 0
  %7921 = vmatprep.mubr.bf16.mxu0 0
  %7922 = vmatmul.mubr.bf16.gmra.mrb[0].mxu0 %v7817
  %v7923 = vpop.f32.mrb[0].mxu0
  %v7924 = vadd.f32 %v7839, %v7923
  %v7925 = vpop.f32.mrb[0].mxu0
  %v7926 = vpop.f32.mrb[0].mxu0
  %v7927 = vadd.f32 %v7839, %v7926
  %v7928 = vpop.f32.mrb[0].mxu0
  %7929 = vdwg.mxu0
  %v7930 = vmax.f32 %v7924, 0.0
  %v7931 = vmax.f32 %v7927, 0.0
  %7932 = vst [vmem:[%s17] sm:$0xff] %v7930
  %7933 = vst [vmem:[%s17 + $0x8] sm:$0xff] %v7931
  // Predicated region
  $region70: #{_lambda_.1} parent=0 // pred_check
    _
  $region71: #{_lambda_.1} parent=0 // pred_check_branch
    %7935 = sbr.rel (0) target = $region73
  $region72: #{_lambda_.1} parent=0 // pred_region
    _
  $region73: #{_lambda_.1} parent=0 // pred_fallthru
    _
  // Predicated region
  $region74: #{_lambda_.1} parent=0 // pred_check
    _
  $region75: #{_lambda_.1} parent=0 // pred_check_branch
    %7937 = sbr.rel (0) target = $region77
  $region76: #{_lambda_.1} parent=0 // pred_region
    _
  $region77: #{_lambda_.1} parent=0 // pred_fallthru
    _

</llo_original>
